<compile_context>
chip_gen: v7x
topology: tpu7x:2x2x1
jax: 0.10.0
libtpu: 0.0.40
codegen_flags: <defaults>
</compile_context>

<pallas_src>
import math

import jax
import jax.numpy as jnp
from jax import lax
from jax.experimental import pallas as pl
from jax.experimental.pallas import tpu as pltpu

N_D = 16
N_A = 16
N_STEPS = 5
GAMMA = 1.5
SQRT_HALF = math.sqrt(0.5)
NA_ND = N_D + N_A            # 32 = width of every feature-transformer output
SPARSEMAX_ITERS = 10         # Michelot cap; typically converges in <= 5-8 for F=32


def _sparsemax_sublane(z):
    """Sparsemax along axis 0 (the sublane / feature axis) of a (F, tb) tensor.

    Newton/Michelot iteration on g(tau) = sum_j max(z_j - tau, 0) - 1 = 0,
    started from a provable lower bound of tau* (so every iterate stays <= tau*
    and the iteration lands on tau* once the final linear piece is reached).
    In the batch-on-lanes layout the per-column reductions are cheap sublane
    reductions over dense vregs.  The loop is a non-unrolled fori_loop capped
    at SPARSEMAX_ITERS; a final exact-division refinement solves the last
    linear piece so the approx reciprocal never touches the returned tau.
    """
    f = z.shape[0]
    z_max = jnp.max(z, axis=0, keepdims=True)
    z_sum = jnp.sum(z, axis=0, keepdims=True)
    tau0 = jnp.maximum(z_max - 1.0, (z_sum - 1.0) / f)     # both lower-bound tau*

    def refine(tau, exact):
        supp = jnp.where(z > tau, 1.0, 0.0)
        k = jnp.maximum(jnp.sum(supp, axis=0, keepdims=True), 1.0)
        s = jnp.sum(supp * z, axis=0, keepdims=True)
        if exact:
            return (s - 1.0) / k
        return (s - 1.0) * pl.reciprocal(k, approx=True)    # EUP slot is idle here

    tau = lax.fori_loop(0, SPARSEMAX_ITERS, lambda _, t: refine(t, False), tau0)
    tau = refine(tau, True)          # exact solve of the final linear piece
    return jnp.maximum(z - tau, 0.0)


def tabnet_kernel(xT_ref, bn_scale_ref, bn_shift_ref,
                  ws0v_ref, ws0g_ref, ws1v_ref, ws1g_ref,
                  wiv_ref, wig_ref, watt_ref, wfc_ref, bcls_ref,
                  out_ref):
    xT = xT_ref[...]                                       # (F, tb) f32
    x_bn = xT * bn_scale_ref[...] + bn_shift_ref[...]      # eval-mode BatchNorm1d
    x_bn_b = x_bn.astype(jnp.bfloat16)                     # MXU operand only
    tb = xT.shape[1]

    ws0v = ws0v_ref[...]; ws0g = ws0g_ref[...]             # (32, F) bf16
    ws1v = ws1v_ref[...]; ws1g = ws1g_ref[...]             # (32, 32) bf16

    def mm(w_b, h_b):
        # bf16 x bf16 -> f32 accumulate on the MXU; all VPU math stays f32.
        return jnp.dot(w_b, h_b, preferred_element_type=jnp.float32)

    def glu(h_b, wv, wg):
        # value/gate weights are separate (32, in) matrices, so the kernel
        # never slices a 64-row matmul result.
        return mm(wv, h_b) * jax.nn.sigmoid(mm(wg, h_b))

    def feat_transformer(in_b, t):
        # shared GLU block (first=True, n_shared=2)
        h = glu(in_b, ws0v, ws0g)
        h = (h + glu(h.astype(jnp.bfloat16), ws1v, ws1g)) * SQRT_HALF
        # independent GLU block (first=False, n_independent=2); t is static.
        h = (h + glu(h.astype(jnp.bfloat16), wiv_ref[t, 0], wig_ref[t, 0])) * SQRT_HALF
        h = (h + glu(h.astype(jnp.bfloat16), wiv_ref[t, 1], wig_ref[t, 1])) * SQRT_HALF
        return h                                           # (32, tb) = [d ; a]

    # initial splitter (transformer index 0): its d-half is discarded and its
    # a-half is selected implicitly by the zero columns of the padded att fc.
    out = feat_transformer(x_bn_b, 0)

    prior = jnp.ones_like(x_bn)                            # (F, tb)
    res = jnp.zeros((NA_ND, tb), jnp.float32)              # a-half rows are
                                                           # zeroed later by wfc

    # 5 steps, statically unrolled: the live state is a few dense (32, tb) /
    # (F, tb) tensors, so vreg pressure stays low.
    for step in range(N_STEPS):
        att_b = out.astype(jnp.bfloat16)
        a = mm(watt_ref[step], att_b)                      # (F, tb); GBN folded,
                                                           # zero cols drop d-half
        a = a * prior
        m = _sparsemax_sublane(a)                          # mask (F, tb)
        prior = (GAMMA - m) * prior
        masked_b = (m * x_bn).astype(jnp.bfloat16)
        out = feat_transformer(masked_b, step + 1)
        res = res + jnp.maximum(out, 0.0)                  # ReLU(d) accumulate

    # cls_fc @ final_mapping was pre-folded in the wrapper (Dropout(0.3) is the
    # identity in eval mode); zero columns of wfc drop the a-half of `res`, and
    # the class rows are padded to a multiple of 8 sublanes.  The 128-lane
    # tile_b output dim gives an unmasked, lane-dense store.
    pred = jnp.dot(wfc_ref[...], res, preferred_element_type=jnp.float32)
    out_ref[...] = pred + bcls_ref[...]


def make_params(key, feature_dim, tabnet_output_dim, num_classes):
    """Random eval-mode parameters, pre-packed into the kernel layout.

    Ghost BatchNorm in eval mode with PyTorch-default running stats
    (mean=0, var=1, gamma=1, beta=0) is a pure per-channel scale 1/sqrt(1+eps),
    folded into the preceding bias-free Linear weights (exact for this case).
    For real trained stats, fold the actual per-channel scale here and carry
    the shift separately (the initial BN already has an explicit shift input).
    """
    eps = 1e-5
    bn_fold = 1.0 / math.sqrt(1.0 + eps)
    two = 2 * NA_ND
    keys = jax.random.split(key, 8)

    def nrm(k, shape, fan_in):
        return jax.random.normal(k, shape, dtype=jnp.float32) / math.sqrt(fan_in)

    # PyTorch-layout weights: (out_dim, in_dim), bias-free except cls_fc.
    ws0 = nrm(keys[0], (two, feature_dim), feature_dim) * bn_fold     # shared fc0
    ws1 = nrm(keys[1], (two, NA_ND), NA_ND) * bn_fold                 # shared fc1
    wind = nrm(keys[2], (N_STEPS + 1, 2, two, NA_ND), NA_ND) * bn_fold
    watt = nrm(keys[3], (N_STEPS, feature_dim, N_A), N_A) * bn_fold
    wfin = nrm(keys[4], (tabnet_output_dim, N_D), N_D)                # bias-free
    wcls = nrm(keys[5], (num_classes, tabnet_output_dim), tabnet_output_dim)
    bcls = jax.random.normal(keys[6], (num_classes,), dtype=jnp.float32) * 0.01

    # ---- kernel-ready re-packing (pure glue, exact) ----
    bf = jnp.bfloat16
    ws0_v, ws0_g = ws0[:NA_ND].astype(bf), ws0[NA_ND:].astype(bf)
    ws1_v, ws1_g = ws1[:NA_ND].astype(bf), ws1[NA_ND:].astype(bf)
    wind_v = wind[:, :, :NA_ND, :].astype(bf)
    wind_g = wind[:, :, NA_ND:, :].astype(bf)

    # attentive fc: pad the n_a input columns up to the full 32-wide transformer
    # output; zero columns select the attention half with no in-kernel slice.
    watt_pad = jnp.zeros((N_STEPS, feature_dim, NA_ND), jnp.float32)
    watt_pad = watt_pad.at[:, :, N_D:].set(watt).astype(bf)

    # fold cls_fc @ final_mapping, pad the n_d input columns to 32 and the class
    # rows up to a multiple of 8 sublanes.
    out_rows = max(8, ((num_classes + 7) // 8) * 8)
    wfc = wcls @ wfin                                                  # (C, N_D)
    wfc_pad = jnp.zeros((out_rows, NA_ND), jnp.float32)
    wfc_pad = wfc_pad.at[:num_classes, :N_D].set(wfc)
    bcls_pad = jnp.zeros((out_rows, 1), jnp.float32)
    bcls_pad = bcls_pad.at[:num_classes, 0].set(bcls)

    # encoder initial BatchNorm1d (eval, default running stats): pure scale.
    bn_scale = jnp.full((feature_dim, 1), bn_fold, jnp.float32)
    bn_shift = jnp.zeros((feature_dim, 1), jnp.float32)

    return dict(num_classes=num_classes,
                bn_scale=bn_scale, bn_shift=bn_shift,
                ws0_v=ws0_v, ws0_g=ws0_g, ws1_v=ws1_v, ws1_g=ws1_g,
                wind_v=wind_v, wind_g=wind_g,
                watt=watt_pad, wfc=wfc_pad, bcls=bcls_pad)


def tabnet_classifier_forward(x, params, *, tile_b=128):
    """TabNetClassifier forward pass (eval mode).

    x: (B, F) float32.  tile_b = 128 keeps every tensor lane-dense; keep
    B // tile_b an even number >= 2 so both v7x TensorCores get grid steps.
    """
    B, F = x.shape
    num_classes = int(params["num_classes"])
    out_rows = params["wfc"].shape[0]
    tile_b = min(tile_b, B)
    assert B % tile_b == 0, "batch must be divisible by tile_b"

    xT = x.T                                  # (F, B): batch on lanes

    def bcast(arr):
        nd = arr.ndim
        return pl.BlockSpec(arr.shape, lambda i, _nd=nd: (0,) * _nd)

    weight_names = ("bn_scale", "bn_shift", "ws0_v", "ws0_g", "ws1_v", "ws1_g",
                    "wind_v", "wind_g", "watt", "wfc", "bcls")
    in_specs = [pl.BlockSpec((F, tile_b), lambda i: (0, i))]
    in_specs += [bcast(params[n]) for n in weight_names]
    out_specs = pl.BlockSpec((out_rows, tile_b), lambda i: (0, i))

    out_full = pl.pallas_call(
        tabnet_kernel,
        out_shape=jax.ShapeDtypeStruct((out_rows, B), jnp.float32),
        grid_spec=pltpu.PrefetchScalarGridSpec(
            num_scalar_prefetch=0,
            grid=(B // tile_b,),
            in_specs=in_specs,
            out_specs=out_specs,
        ),
        compiler_params=pltpu.CompilerParams(
            dimension_semantics=("parallel",),
            vmem_limit_bytes=32 * 1024 * 1024,   # explicit; safe on v5e/v6e/v7x
        ),
    )(xT, *(params[n] for n in weight_names))

    return out_full[:num_classes, :].T        # (B, num_classes)


if __name__ == "__main__":
    # Small shapes consistent with the module: tabular features -> 2 classes.
    # B=256 / tile_b=128 gives an even 2-step parallel grid (both v7x TCs busy).
    B, FEATURE_DIM, TABNET_OUT_DIM, NUM_CLASSES = 256, 32, 512, 2

    key = jax.random.PRNGKey(0)
    k_x, k_p = jax.random.split(key)
    x = jax.random.normal(k_x, (B, FEATURE_DIM), dtype=jnp.float32)
    params = make_params(k_p, FEATURE_DIM, TABNET_OUT_DIM, NUM_CLASSES)

    pred = tabnet_classifier_forward(x, params, tile_b=128)
    pred = jax.block_until_ready(pred)
    assert pred.shape == (B, NUM_CLASSES)
    assert bool(jnp.all(jnp.isfinite(pred)))
    print("KERNEL_OK")
</pallas_src>

<mosaic_0001>
module attributes {stable_mosaic.version = 11 : i64} {
  func.func @tabnet_kernel(%arg0: i32, %arg1: memref<32x128xf32, #tpu.memory_space<vmem>>, %arg2: memref<32x1xf32, #tpu.memory_space<vmem>>, %arg3: memref<32x1xf32, #tpu.memory_space<vmem>>, %arg4: memref<32x32xbf16, #tpu.memory_space<vmem>>, %arg5: memref<32x32xbf16, #tpu.memory_space<vmem>>, %arg6: memref<32x32xbf16, #tpu.memory_space<vmem>>, %arg7: memref<32x32xbf16, #tpu.memory_space<vmem>>, %arg8: memref<6x2x32x32xbf16, #tpu.memory_space<vmem>>, %arg9: memref<6x2x32x32xbf16, #tpu.memory_space<vmem>>, %arg10: memref<5x32x32xbf16, #tpu.memory_space<vmem>>, %arg11: memref<8x32xf32, #tpu.memory_space<vmem>>, %arg12: memref<8x1xf32, #tpu.memory_space<vmem>>, %arg13: memref<8x128xf32, #tpu.memory_space<vmem>>) attributes {dimension_semantics = [#tpu.dimension_semantics<parallel>], iteration_bounds = array<i64: 2>, scalar_prefetch = 0 : i64, scratch_operands = 0 : i64, tpu.core_type = #tpu.core_type<tc>, window_params = [{transform_indices = @transform_0, window_bounds = array<i64: 32, 128>}, {pipeline_mode = #tpu.pipeline_mode<synchronous>, transform_indices = @transform_1, window_bounds = array<i64: 32, 1>}, {pipeline_mode = #tpu.pipeline_mode<synchronous>, transform_indices = @transform_2, window_bounds = array<i64: 32, 1>}, {pipeline_mode = #tpu.pipeline_mode<synchronous>, transform_indices = @transform_3, window_bounds = array<i64: 32, 32>}, {pipeline_mode = #tpu.pipeline_mode<synchronous>, transform_indices = @transform_4, window_bounds = array<i64: 32, 32>}, {pipeline_mode = #tpu.pipeline_mode<synchronous>, transform_indices = @transform_5, window_bounds = array<i64: 32, 32>}, {pipeline_mode = #tpu.pipeline_mode<synchronous>, transform_indices = @transform_6, window_bounds = array<i64: 32, 32>}, {pipeline_mode = #tpu.pipeline_mode<synchronous>, transform_indices = @transform_7, window_bounds = array<i64: 6, 2, 32, 32>}, {pipeline_mode = #tpu.pipeline_mode<synchronous>, transform_indices = @transform_8, window_bounds = array<i64: 6, 2, 32, 32>}, {pipeline_mode = #tpu.pipeline_mode<synchronous>, transform_indices = @transform_9, window_bounds = array<i64: 5, 32, 32>}, {pipeline_mode = #tpu.pipeline_mode<synchronous>, transform_indices = @transform_10, window_bounds = array<i64: 8, 32>}, {pipeline_mode = #tpu.pipeline_mode<synchronous>, transform_indices = @transform_11, window_bounds = array<i64: 8, 1>}, {transform_indices = @transform_12, window_bounds = array<i64: 8, 128>}]} {
    %c0 = arith.constant 0 : index
    %c0_0 = arith.constant 0 : index
    %0 = vector.load %arg1[%c0, %c0_0] : memref<32x128xf32, #tpu.memory_space<vmem>>, vector<32x128xf32>
    %c0_1 = arith.constant 0 : index
    %c0_2 = arith.constant 0 : index
    %1 = vector.load %arg2[%c0_1, %c0_2] : memref<32x1xf32, #tpu.memory_space<vmem>>, vector<32x1xf32>
    %2 = vector.broadcast %1 : vector<32x1xf32> to vector<32x128xf32>
    %3 = arith.mulf %0, %2 : vector<32x128xf32>
    %c0_3 = arith.constant 0 : index
    %c0_4 = arith.constant 0 : index
    %4 = vector.load %arg3[%c0_3, %c0_4] : memref<32x1xf32, #tpu.memory_space<vmem>>, vector<32x1xf32>
    %5 = vector.broadcast %4 : vector<32x1xf32> to vector<32x128xf32>
    %6 = arith.addf %3, %5 : vector<32x128xf32>
    %7 = arith.truncf %6 : vector<32x128xf32> to vector<32x128xbf16>
    %c0_5 = arith.constant 0 : index
    %c0_6 = arith.constant 0 : index
    %8 = vector.load %arg4[%c0_5, %c0_6] : memref<32x32xbf16, #tpu.memory_space<vmem>>, vector<32x32xbf16>
    %c0_7 = arith.constant 0 : index
    %c0_8 = arith.constant 0 : index
    %9 = vector.load %arg5[%c0_7, %c0_8] : memref<32x32xbf16, #tpu.memory_space<vmem>>, vector<32x32xbf16>
    %c0_9 = arith.constant 0 : index
    %c0_10 = arith.constant 0 : index
    %10 = vector.load %arg6[%c0_9, %c0_10] : memref<32x32xbf16, #tpu.memory_space<vmem>>, vector<32x32xbf16>
    %c0_11 = arith.constant 0 : index
    %c0_12 = arith.constant 0 : index
    %11 = vector.load %arg7[%c0_11, %c0_12] : memref<32x32xbf16, #tpu.memory_space<vmem>>, vector<32x32xbf16>
    %cst = arith.constant dense<0.000000e+00> : vector<32x128xf32>
    %12 = tpu.matmul %8, %7, %cst {dimension_numbers = #tpu.dot_dimension_numbers<[1], [0], [0], [1], [0, 0, 1, 1], [], []>} : vector<32x32xbf16>, vector<32x128xbf16>, vector<32x128xf32> -> vector<32x128xf32>
    %cst_13 = arith.constant dense<0.000000e+00> : vector<32x128xf32>
    %13 = tpu.matmul %9, %7, %cst_13 {dimension_numbers = #tpu.dot_dimension_numbers<[1], [0], [0], [1], [0, 0, 1, 1], [], []>} : vector<32x32xbf16>, vector<32x128xbf16>, vector<32x128xf32> -> vector<32x128xf32>
    %14 = arith.negf %13 : vector<32x128xf32>
    %15 = math.exp %14 : vector<32x128xf32>
    %cst_14 = arith.constant 1.000000e+00 : f32
    %16 = vector.broadcast %cst_14 : f32 to vector<32x128xf32>
    %17 = arith.addf %16, %15 : vector<32x128xf32>
    %18 = arith.divf %16, %17 : vector<32x128xf32>
    %19 = arith.mulf %12, %18 : vector<32x128xf32>
    %20 = arith.truncf %19 : vector<32x128xf32> to vector<32x128xbf16>
    %cst_15 = arith.constant dense<0.000000e+00> : vector<32x128xf32>
    %21 = tpu.matmul %10, %20, %cst_15 {dimension_numbers = #tpu.dot_dimension_numbers<[1], [0], [0], [1], [0, 0, 1, 1], [], []>} : vector<32x32xbf16>, vector<32x128xbf16>, vector<32x128xf32> -> vector<32x128xf32>
    %cst_16 = arith.constant dense<0.000000e+00> : vector<32x128xf32>
    %22 = tpu.matmul %11, %20, %cst_16 {dimension_numbers = #tpu.dot_dimension_numbers<[1], [0], [0], [1], [0, 0, 1, 1], [], []>} : vector<32x32xbf16>, vector<32x128xbf16>, vector<32x128xf32> -> vector<32x128xf32>
    %23 = arith.negf %22 : vector<32x128xf32>
    %24 = math.exp %23 : vector<32x128xf32>
    %cst_17 = arith.constant 1.000000e+00 : f32
    %25 = vector.broadcast %cst_17 : f32 to vector<32x128xf32>
    %26 = arith.addf %25, %24 : vector<32x128xf32>
    %27 = arith.divf %25, %26 : vector<32x128xf32>
    %28 = arith.mulf %21, %27 : vector<32x128xf32>
    %29 = arith.addf %19, %28 : vector<32x128xf32>
    %cst_18 = arith.constant 0.707106769 : f32
    %30 = vector.broadcast %cst_18 : f32 to vector<32x128xf32>
    %31 = arith.mulf %29, %30 : vector<32x128xf32>
    %32 = arith.truncf %31 : vector<32x128xf32> to vector<32x128xbf16>
    %c0_19 = arith.constant 0 : index
    %c0_20 = arith.constant 0 : index
    %c0_21 = arith.constant 0 : index
    %c0_22 = arith.constant 0 : index
    %33 = vector.load %arg8[%c0_19, %c0_20, %c0_21, %c0_22] : memref<6x2x32x32xbf16, #tpu.memory_space<vmem>>, vector<1x1x32x32xbf16>
    %34 = vector.shape_cast %33 : vector<1x1x32x32xbf16> to vector<32x32xbf16>
    %c0_23 = arith.constant 0 : index
    %c0_24 = arith.constant 0 : index
    %c0_25 = arith.constant 0 : index
    %c0_26 = arith.constant 0 : index
    %35 = vector.load %arg9[%c0_23, %c0_24, %c0_25, %c0_26] : memref<6x2x32x32xbf16, #tpu.memory_space<vmem>>, vector<1x1x32x32xbf16>
    %36 = vector.shape_cast %35 : vector<1x1x32x32xbf16> to vector<32x32xbf16>
    %cst_27 = arith.constant dense<0.000000e+00> : vector<32x128xf32>
    %37 = tpu.matmul %34, %32, %cst_27 {dimension_numbers = #tpu.dot_dimension_numbers<[1], [0], [0], [1], [0, 0, 1, 1], [], []>} : vector<32x32xbf16>, vector<32x128xbf16>, vector<32x128xf32> -> vector<32x128xf32>
    %cst_28 = arith.constant dense<0.000000e+00> : vector<32x128xf32>
    %38 = tpu.matmul %36, %32, %cst_28 {dimension_numbers = #tpu.dot_dimension_numbers<[1], [0], [0], [1], [0, 0, 1, 1], [], []>} : vector<32x32xbf16>, vector<32x128xbf16>, vector<32x128xf32> -> vector<32x128xf32>
    %39 = arith.negf %38 : vector<32x128xf32>
    %40 = math.exp %39 : vector<32x128xf32>
    %cst_29 = arith.constant 1.000000e+00 : f32
    %41 = vector.broadcast %cst_29 : f32 to vector<32x128xf32>
    %42 = arith.addf %41, %40 : vector<32x128xf32>
    %43 = arith.divf %41, %42 : vector<32x128xf32>
    %44 = arith.mulf %37, %43 : vector<32x128xf32>
    %45 = arith.addf %31, %44 : vector<32x128xf32>
    %cst_30 = arith.constant 0.707106769 : f32
    %46 = vector.broadcast %cst_30 : f32 to vector<32x128xf32>
    %47 = arith.mulf %45, %46 : vector<32x128xf32>
    %48 = arith.truncf %47 : vector<32x128xf32> to vector<32x128xbf16>
    %c0_31 = arith.constant 0 : index
    %c1 = arith.constant 1 : index
    %c0_32 = arith.constant 0 : index
    %c0_33 = arith.constant 0 : index
    %49 = vector.load %arg8[%c0_31, %c1, %c0_32, %c0_33] : memref<6x2x32x32xbf16, #tpu.memory_space<vmem>>, vector<1x1x32x32xbf16>
    %50 = vector.shape_cast %49 : vector<1x1x32x32xbf16> to vector<32x32xbf16>
    %c0_34 = arith.constant 0 : index
    %c1_35 = arith.constant 1 : index
    %c0_36 = arith.constant 0 : index
    %c0_37 = arith.constant 0 : index
    %51 = vector.load %arg9[%c0_34, %c1_35, %c0_36, %c0_37] : memref<6x2x32x32xbf16, #tpu.memory_space<vmem>>, vector<1x1x32x32xbf16>
    %52 = vector.shape_cast %51 : vector<1x1x32x32xbf16> to vector<32x32xbf16>
    %cst_38 = arith.constant dense<0.000000e+00> : vector<32x128xf32>
    %53 = tpu.matmul %50, %48, %cst_38 {dimension_numbers = #tpu.dot_dimension_numbers<[1], [0], [0], [1], [0, 0, 1, 1], [], []>} : vector<32x32xbf16>, vector<32x128xbf16>, vector<32x128xf32> -> vector<32x128xf32>
    %cst_39 = arith.constant dense<0.000000e+00> : vector<32x128xf32>
    %54 = tpu.matmul %52, %48, %cst_39 {dimension_numbers = #tpu.dot_dimension_numbers<[1], [0], [0], [1], [0, 0, 1, 1], [], []>} : vector<32x32xbf16>, vector<32x128xbf16>, vector<32x128xf32> -> vector<32x128xf32>
    %55 = arith.negf %54 : vector<32x128xf32>
    %56 = math.exp %55 : vector<32x128xf32>
    %cst_40 = arith.constant 1.000000e+00 : f32
    %57 = vector.broadcast %cst_40 : f32 to vector<32x128xf32>
    %58 = arith.addf %57, %56 : vector<32x128xf32>
    %59 = arith.divf %57, %58 : vector<32x128xf32>
    %60 = arith.mulf %53, %59 : vector<32x128xf32>
    %61 = arith.addf %47, %60 : vector<32x128xf32>
    %cst_41 = arith.constant 0.707106769 : f32
    %62 = vector.broadcast %cst_41 : f32 to vector<32x128xf32>
    %63 = arith.mulf %61, %62 : vector<32x128xf32>
    %cst_42 = arith.constant 1.000000e+00 : f32
    %64 = vector.broadcast %cst_42 : f32 to vector<32x128xf32>
    %cst_43 = arith.constant 0.000000e+00 : f32
    %65 = vector.broadcast %cst_43 : f32 to vector<32x128xf32>
    %66 = arith.truncf %63 : vector<32x128xf32> to vector<32x128xbf16>
    %c0_44 = arith.constant 0 : index
    %c0_45 = arith.constant 0 : index
    %c0_46 = arith.constant 0 : index
    %67 = vector.load %arg10[%c0_44, %c0_45, %c0_46] : memref<5x32x32xbf16, #tpu.memory_space<vmem>>, vector<1x32x32xbf16>
    %68 = vector.shape_cast %67 : vector<1x32x32xbf16> to vector<32x32xbf16>
    %cst_47 = arith.constant dense<0.000000e+00> : vector<32x128xf32>
    %69 = tpu.matmul %68, %66, %cst_47 {dimension_numbers = #tpu.dot_dimension_numbers<[1], [0], [0], [1], [0, 0, 1, 1], [], []>} : vector<32x32xbf16>, vector<32x128xbf16>, vector<32x128xf32> -> vector<32x128xf32>
    %70 = arith.mulf %69, %64 : vector<32x128xf32>
    %cst_48 = arith.constant dense<0xFF800000> : vector<128xf32>
    %71 = vector.multi_reduction <maximumf>, %70, %cst_48 [0] : vector<32x128xf32> to vector<128xf32>
    %72 = vector.shape_cast %71 : vector<128xf32> to vector<1x128xf32>
    %cst_49 = arith.constant dense<0.000000e+00> : vector<128xf32>
    %73 = vector.multi_reduction <add>, %70, %cst_49 [0] : vector<32x128xf32> to vector<128xf32>
    %74 = vector.shape_cast %73 : vector<128xf32> to vector<1x128xf32>
    %cst_50 = arith.constant 1.000000e+00 : f32
    %75 = vector.broadcast %cst_50 : f32 to vector<1x128xf32>
    %76 = arith.subf %72, %75 : vector<1x128xf32>
    %cst_51 = arith.constant 1.000000e+00 : f32
    %77 = vector.broadcast %cst_51 : f32 to vector<1x128xf32>
    %78 = arith.subf %74, %77 : vector<1x128xf32>
    %cst_52 = arith.constant 3.200000e+01 : f32
    %79 = vector.broadcast %cst_52 : f32 to vector<1x128xf32>
    %80 = arith.divf %78, %79 : vector<1x128xf32>
    %81 = arith.maximumf %76, %80 : vector<1x128xf32>
    %c0_i32 = arith.constant 0 : i32
    %c10_i32 = arith.constant 10 : i32
    %82 = arith.addi %c0_i32, %c10_i32 : i32
    %c1_i32 = arith.constant 1 : i32
    %83 = scf.for %arg14 = %c0_i32 to %82 step %c1_i32 iter_args(%arg15 = %81) -> (vector<1x128xf32>)  : i32 {
      %554 = vector.broadcast %arg15 : vector<1x128xf32> to vector<32x128xf32>
      %555 = arith.cmpf ogt, %70, %554 : vector<32x128xf32>
      %cst_303 = arith.constant 1.000000e+00 : f32
      %cst_304 = arith.constant 0.000000e+00 : f32
      %556 = vector.broadcast %cst_303 : f32 to vector<32x128xf32>
      %557 = vector.broadcast %cst_304 : f32 to vector<32x128xf32>
      %558 = arith.select %555, %556, %557 : vector<32x128xi1>, vector<32x128xf32>
      %cst_305 = arith.constant dense<0.000000e+00> : vector<128xf32>
      %559 = vector.multi_reduction <add>, %558, %cst_305 [0] : vector<32x128xf32> to vector<128xf32>
      %560 = vector.shape_cast %559 : vector<128xf32> to vector<1x128xf32>
      %cst_306 = arith.constant 1.000000e+00 : f32
      %561 = vector.broadcast %cst_306 : f32 to vector<1x128xf32>
      %562 = arith.maximumf %560, %561 : vector<1x128xf32>
      %563 = arith.mulf %558, %70 : vector<32x128xf32>
      %cst_307 = arith.constant dense<0.000000e+00> : vector<128xf32>
      %564 = vector.multi_reduction <add>, %563, %cst_307 [0] : vector<32x128xf32> to vector<128xf32>
      %565 = vector.shape_cast %564 : vector<128xf32> to vector<1x128xf32>
      %cst_308 = arith.constant 1.000000e+00 : f32
      %566 = vector.broadcast %cst_308 : f32 to vector<1x128xf32>
      %567 = arith.subf %565, %566 : vector<1x128xf32>
      %568 = tpu.reciprocal %562 {approx = true} : vector<1x128xf32> -> vector<1x128xf32>
      %569 = arith.mulf %567, %568 : vector<1x128xf32>
      scf.yield %569 : vector<1x128xf32>
    }
    %84 = vector.broadcast %83 : vector<1x128xf32> to vector<32x128xf32>
    %85 = arith.cmpf ogt, %70, %84 : vector<32x128xf32>
    %cst_53 = arith.constant 1.000000e+00 : f32
    %cst_54 = arith.constant 0.000000e+00 : f32
    %86 = vector.broadcast %cst_53 : f32 to vector<32x128xf32>
    %87 = vector.broadcast %cst_54 : f32 to vector<32x128xf32>
    %88 = arith.select %85, %86, %87 : vector<32x128xi1>, vector<32x128xf32>
    %cst_55 = arith.constant dense<0.000000e+00> : vector<128xf32>
    %89 = vector.multi_reduction <add>, %88, %cst_55 [0] : vector<32x128xf32> to vector<128xf32>
    %90 = vector.shape_cast %89 : vector<128xf32> to vector<1x128xf32>
    %cst_56 = arith.constant 1.000000e+00 : f32
    %91 = vector.broadcast %cst_56 : f32 to vector<1x128xf32>
    %92 = arith.maximumf %90, %91 : vector<1x128xf32>
    %93 = arith.mulf %88, %70 : vector<32x128xf32>
    %cst_57 = arith.constant dense<0.000000e+00> : vector<128xf32>
    %94 = vector.multi_reduction <add>, %93, %cst_57 [0] : vector<32x128xf32> to vector<128xf32>
    %95 = vector.shape_cast %94 : vector<128xf32> to vector<1x128xf32>
    %cst_58 = arith.constant 1.000000e+00 : f32
    %96 = vector.broadcast %cst_58 : f32 to vector<1x128xf32>
    %97 = arith.subf %95, %96 : vector<1x128xf32>
    %98 = arith.divf %97, %92 : vector<1x128xf32>
    %99 = vector.broadcast %98 : vector<1x128xf32> to vector<32x128xf32>
    %100 = arith.subf %70, %99 : vector<32x128xf32>
    %cst_59 = arith.constant 0.000000e+00 : f32
    %101 = vector.broadcast %cst_59 : f32 to vector<32x128xf32>
    %102 = arith.maximumf %100, %101 : vector<32x128xf32>
    %cst_60 = arith.constant 1.500000e+00 : f32
    %103 = vector.broadcast %cst_60 : f32 to vector<32x128xf32>
    %104 = arith.subf %103, %102 : vector<32x128xf32>
    %105 = arith.mulf %104, %64 : vector<32x128xf32>
    %106 = arith.mulf %102, %6 : vector<32x128xf32>
    %107 = arith.truncf %106 : vector<32x128xf32> to vector<32x128xbf16>
    %cst_61 = arith.constant dense<0.000000e+00> : vector<32x128xf32>
    %108 = tpu.matmul %8, %107, %cst_61 {dimension_numbers = #tpu.dot_dimension_numbers<[1], [0], [0], [1], [0, 0, 1, 1], [], []>} : vector<32x32xbf16>, vector<32x128xbf16>, vector<32x128xf32> -> vector<32x128xf32>
    %cst_62 = arith.constant dense<0.000000e+00> : vector<32x128xf32>
    %109 = tpu.matmul %9, %107, %cst_62 {dimension_numbers = #tpu.dot_dimension_numbers<[1], [0], [0], [1], [0, 0, 1, 1], [], []>} : vector<32x32xbf16>, vector<32x128xbf16>, vector<32x128xf32> -> vector<32x128xf32>
    %110 = arith.negf %109 : vector<32x128xf32>
    %111 = math.exp %110 : vector<32x128xf32>
    %cst_63 = arith.constant 1.000000e+00 : f32
    %112 = vector.broadcast %cst_63 : f32 to vector<32x128xf32>
    %113 = arith.addf %112, %111 : vector<32x128xf32>
    %114 = arith.divf %112, %113 : vector<32x128xf32>
    %115 = arith.mulf %108, %114 : vector<32x128xf32>
    %116 = arith.truncf %115 : vector<32x128xf32> to vector<32x128xbf16>
    %cst_64 = arith.constant dense<0.000000e+00> : vector<32x128xf32>
    %117 = tpu.matmul %10, %116, %cst_64 {dimension_numbers = #tpu.dot_dimension_numbers<[1], [0], [0], [1], [0, 0, 1, 1], [], []>} : vector<32x32xbf16>, vector<32x128xbf16>, vector<32x128xf32> -> vector<32x128xf32>
    %cst_65 = arith.constant dense<0.000000e+00> : vector<32x128xf32>
    %118 = tpu.matmul %11, %116, %cst_65 {dimension_numbers = #tpu.dot_dimension_numbers<[1], [0], [0], [1], [0, 0, 1, 1], [], []>} : vector<32x32xbf16>, vector<32x128xbf16>, vector<32x128xf32> -> vector<32x128xf32>
    %119 = arith.negf %118 : vector<32x128xf32>
    %120 = math.exp %119 : vector<32x128xf32>
    %cst_66 = arith.constant 1.000000e+00 : f32
    %121 = vector.broadcast %cst_66 : f32 to vector<32x128xf32>
    %122 = arith.addf %121, %120 : vector<32x128xf32>
    %123 = arith.divf %121, %122 : vector<32x128xf32>
    %124 = arith.mulf %117, %123 : vector<32x128xf32>
    %125 = arith.addf %115, %124 : vector<32x128xf32>
    %cst_67 = arith.constant 0.707106769 : f32
    %126 = vector.broadcast %cst_67 : f32 to vector<32x128xf32>
    %127 = arith.mulf %125, %126 : vector<32x128xf32>
    %128 = arith.truncf %127 : vector<32x128xf32> to vector<32x128xbf16>
    %c1_68 = arith.constant 1 : index
    %c0_69 = arith.constant 0 : index
    %c0_70 = arith.constant 0 : index
    %c0_71 = arith.constant 0 : index
    %129 = vector.load %arg8[%c1_68, %c0_69, %c0_70, %c0_71] : memref<6x2x32x32xbf16, #tpu.memory_space<vmem>>, vector<1x1x32x32xbf16>
    %130 = vector.shape_cast %129 : vector<1x1x32x32xbf16> to vector<32x32xbf16>
    %c1_72 = arith.constant 1 : index
    %c0_73 = arith.constant 0 : index
    %c0_74 = arith.constant 0 : index
    %c0_75 = arith.constant 0 : index
    %131 = vector.load %arg9[%c1_72, %c0_73, %c0_74, %c0_75] : memref<6x2x32x32xbf16, #tpu.memory_space<vmem>>, vector<1x1x32x32xbf16>
    %132 = vector.shape_cast %131 : vector<1x1x32x32xbf16> to vector<32x32xbf16>
    %cst_76 = arith.constant dense<0.000000e+00> : vector<32x128xf32>
    %133 = tpu.matmul %130, %128, %cst_76 {dimension_numbers = #tpu.dot_dimension_numbers<[1], [0], [0], [1], [0, 0, 1, 1], [], []>} : vector<32x32xbf16>, vector<32x128xbf16>, vector<32x128xf32> -> vector<32x128xf32>
    %cst_77 = arith.constant dense<0.000000e+00> : vector<32x128xf32>
    %134 = tpu.matmul %132, %128, %cst_77 {dimension_numbers = #tpu.dot_dimension_numbers<[1], [0], [0], [1], [0, 0, 1, 1], [], []>} : vector<32x32xbf16>, vector<32x128xbf16>, vector<32x128xf32> -> vector<32x128xf32>
    %135 = arith.negf %134 : vector<32x128xf32>
    %136 = math.exp %135 : vector<32x128xf32>
    %cst_78 = arith.constant 1.000000e+00 : f32
    %137 = vector.broadcast %cst_78 : f32 to vector<32x128xf32>
    %138 = arith.addf %137, %136 : vector<32x128xf32>
    %139 = arith.divf %137, %138 : vector<32x128xf32>
    %140 = arith.mulf %133, %139 : vector<32x128xf32>
    %141 = arith.addf %127, %140 : vector<32x128xf32>
    %cst_79 = arith.constant 0.707106769 : f32
    %142 = vector.broadcast %cst_79 : f32 to vector<32x128xf32>
    %143 = arith.mulf %141, %142 : vector<32x128xf32>
    %144 = arith.truncf %143 : vector<32x128xf32> to vector<32x128xbf16>
    %c1_80 = arith.constant 1 : index
    %c1_81 = arith.constant 1 : index
    %c0_82 = arith.constant 0 : index
    %c0_83 = arith.constant 0 : index
    %145 = vector.load %arg8[%c1_80, %c1_81, %c0_82, %c0_83] : memref<6x2x32x32xbf16, #tpu.memory_space<vmem>>, vector<1x1x32x32xbf16>
    %146 = vector.shape_cast %145 : vector<1x1x32x32xbf16> to vector<32x32xbf16>
    %c1_84 = arith.constant 1 : index
    %c1_85 = arith.constant 1 : index
    %c0_86 = arith.constant 0 : index
    %c0_87 = arith.constant 0 : index
    %147 = vector.load %arg9[%c1_84, %c1_85, %c0_86, %c0_87] : memref<6x2x32x32xbf16, #tpu.memory_space<vmem>>, vector<1x1x32x32xbf16>
    %148 = vector.shape_cast %147 : vector<1x1x32x32xbf16> to vector<32x32xbf16>
    %cst_88 = arith.constant dense<0.000000e+00> : vector<32x128xf32>
    %149 = tpu.matmul %146, %144, %cst_88 {dimension_numbers = #tpu.dot_dimension_numbers<[1], [0], [0], [1], [0, 0, 1, 1], [], []>} : vector<32x32xbf16>, vector<32x128xbf16>, vector<32x128xf32> -> vector<32x128xf32>
    %cst_89 = arith.constant dense<0.000000e+00> : vector<32x128xf32>
    %150 = tpu.matmul %148, %144, %cst_89 {dimension_numbers = #tpu.dot_dimension_numbers<[1], [0], [0], [1], [0, 0, 1, 1], [], []>} : vector<32x32xbf16>, vector<32x128xbf16>, vector<32x128xf32> -> vector<32x128xf32>
    %151 = arith.negf %150 : vector<32x128xf32>
    %152 = math.exp %151 : vector<32x128xf32>
    %cst_90 = arith.constant 1.000000e+00 : f32
    %153 = vector.broadcast %cst_90 : f32 to vector<32x128xf32>
    %154 = arith.addf %153, %152 : vector<32x128xf32>
    %155 = arith.divf %153, %154 : vector<32x128xf32>
    %156 = arith.mulf %149, %155 : vector<32x128xf32>
    %157 = arith.addf %143, %156 : vector<32x128xf32>
    %cst_91 = arith.constant 0.707106769 : f32
    %158 = vector.broadcast %cst_91 : f32 to vector<32x128xf32>
    %159 = arith.mulf %157, %158 : vector<32x128xf32>
    %cst_92 = arith.constant 0.000000e+00 : f32
    %160 = vector.broadcast %cst_92 : f32 to vector<32x128xf32>
    %161 = arith.maximumf %159, %160 : vector<32x128xf32>
    %162 = arith.addf %65, %161 : vector<32x128xf32>
    %163 = arith.truncf %159 : vector<32x128xf32> to vector<32x128xbf16>
    %c1_93 = arith.constant 1 : index
    %c0_94 = arith.constant 0 : index
    %c0_95 = arith.constant 0 : index
    %164 = vector.load %arg10[%c1_93, %c0_94, %c0_95] : memref<5x32x32xbf16, #tpu.memory_space<vmem>>, vector<1x32x32xbf16>
    %165 = vector.shape_cast %164 : vector<1x32x32xbf16> to vector<32x32xbf16>
    %cst_96 = arith.constant dense<0.000000e+00> : vector<32x128xf32>
    %166 = tpu.matmul %165, %163, %cst_96 {dimension_numbers = #tpu.dot_dimension_numbers<[1], [0], [0], [1], [0, 0, 1, 1], [], []>} : vector<32x32xbf16>, vector<32x128xbf16>, vector<32x128xf32> -> vector<32x128xf32>
    %167 = arith.mulf %166, %105 : vector<32x128xf32>
    %cst_97 = arith.constant dense<0xFF800000> : vector<128xf32>
    %168 = vector.multi_reduction <maximumf>, %167, %cst_97 [0] : vector<32x128xf32> to vector<128xf32>
    %169 = vector.shape_cast %168 : vector<128xf32> to vector<1x128xf32>
    %cst_98 = arith.constant dense<0.000000e+00> : vector<128xf32>
    %170 = vector.multi_reduction <add>, %167, %cst_98 [0] : vector<32x128xf32> to vector<128xf32>
    %171 = vector.shape_cast %170 : vector<128xf32> to vector<1x128xf32>
    %cst_99 = arith.constant 1.000000e+00 : f32
    %172 = vector.broadcast %cst_99 : f32 to vector<1x128xf32>
    %173 = arith.subf %169, %172 : vector<1x128xf32>
    %cst_100 = arith.constant 1.000000e+00 : f32
    %174 = vector.broadcast %cst_100 : f32 to vector<1x128xf32>
    %175 = arith.subf %171, %174 : vector<1x128xf32>
    %cst_101 = arith.constant 3.200000e+01 : f32
    %176 = vector.broadcast %cst_101 : f32 to vector<1x128xf32>
    %177 = arith.divf %175, %176 : vector<1x128xf32>
    %178 = arith.maximumf %173, %177 : vector<1x128xf32>
    %c0_i32_102 = arith.constant 0 : i32
    %c10_i32_103 = arith.constant 10 : i32
    %179 = arith.addi %c0_i32_102, %c10_i32_103 : i32
    %c1_i32_104 = arith.constant 1 : i32
    %180 = scf.for %arg14 = %c0_i32_102 to %179 step %c1_i32_104 iter_args(%arg15 = %178) -> (vector<1x128xf32>)  : i32 {
      %554 = vector.broadcast %arg15 : vector<1x128xf32> to vector<32x128xf32>
      %555 = arith.cmpf ogt, %167, %554 : vector<32x128xf32>
      %cst_303 = arith.constant 1.000000e+00 : f32
      %cst_304 = arith.constant 0.000000e+00 : f32
      %556 = vector.broadcast %cst_303 : f32 to vector<32x128xf32>
      %557 = vector.broadcast %cst_304 : f32 to vector<32x128xf32>
      %558 = arith.select %555, %556, %557 : vector<32x128xi1>, vector<32x128xf32>
      %cst_305 = arith.constant dense<0.000000e+00> : vector<128xf32>
      %559 = vector.multi_reduction <add>, %558, %cst_305 [0] : vector<32x128xf32> to vector<128xf32>
      %560 = vector.shape_cast %559 : vector<128xf32> to vector<1x128xf32>
      %cst_306 = arith.constant 1.000000e+00 : f32
      %561 = vector.broadcast %cst_306 : f32 to vector<1x128xf32>
      %562 = arith.maximumf %560, %561 : vector<1x128xf32>
      %563 = arith.mulf %558, %167 : vector<32x128xf32>
      %cst_307 = arith.constant dense<0.000000e+00> : vector<128xf32>
      %564 = vector.multi_reduction <add>, %563, %cst_307 [0] : vector<32x128xf32> to vector<128xf32>
      %565 = vector.shape_cast %564 : vector<128xf32> to vector<1x128xf32>
      %cst_308 = arith.constant 1.000000e+00 : f32
      %566 = vector.broadcast %cst_308 : f32 to vector<1x128xf32>
      %567 = arith.subf %565, %566 : vector<1x128xf32>
      %568 = tpu.reciprocal %562 {approx = true} : vector<1x128xf32> -> vector<1x128xf32>
      %569 = arith.mulf %567, %568 : vector<1x128xf32>
      scf.yield %569 : vector<1x128xf32>
    }
    %181 = vector.broadcast %180 : vector<1x128xf32> to vector<32x128xf32>
    %182 = arith.cmpf ogt, %167, %181 : vector<32x128xf32>
    %cst_105 = arith.constant 1.000000e+00 : f32
    %cst_106 = arith.constant 0.000000e+00 : f32
    %183 = vector.broadcast %cst_105 : f32 to vector<32x128xf32>
    %184 = vector.broadcast %cst_106 : f32 to vector<32x128xf32>
    %185 = arith.select %182, %183, %184 : vector<32x128xi1>, vector<32x128xf32>
    %cst_107 = arith.constant dense<0.000000e+00> : vector<128xf32>
    %186 = vector.multi_reduction <add>, %185, %cst_107 [0] : vector<32x128xf32> to vector<128xf32>
    %187 = vector.shape_cast %186 : vector<128xf32> to vector<1x128xf32>
    %cst_108 = arith.constant 1.000000e+00 : f32
    %188 = vector.broadcast %cst_108 : f32 to vector<1x128xf32>
    %189 = arith.maximumf %187, %188 : vector<1x128xf32>
    %190 = arith.mulf %185, %167 : vector<32x128xf32>
    %cst_109 = arith.constant dense<0.000000e+00> : vector<128xf32>
    %191 = vector.multi_reduction <add>, %190, %cst_109 [0] : vector<32x128xf32> to vector<128xf32>
    %192 = vector.shape_cast %191 : vector<128xf32> to vector<1x128xf32>
    %cst_110 = arith.constant 1.000000e+00 : f32
    %193 = vector.broadcast %cst_110 : f32 to vector<1x128xf32>
    %194 = arith.subf %192, %193 : vector<1x128xf32>
    %195 = arith.divf %194, %189 : vector<1x128xf32>
    %196 = vector.broadcast %195 : vector<1x128xf32> to vector<32x128xf32>
    %197 = arith.subf %167, %196 : vector<32x128xf32>
    %cst_111 = arith.constant 0.000000e+00 : f32
    %198 = vector.broadcast %cst_111 : f32 to vector<32x128xf32>
    %199 = arith.maximumf %197, %198 : vector<32x128xf32>
    %cst_112 = arith.constant 1.500000e+00 : f32
    %200 = vector.broadcast %cst_112 : f32 to vector<32x128xf32>
    %201 = arith.subf %200, %199 : vector<32x128xf32>
    %202 = arith.mulf %201, %105 : vector<32x128xf32>
    %203 = arith.mulf %199, %6 : vector<32x128xf32>
    %204 = arith.truncf %203 : vector<32x128xf32> to vector<32x128xbf16>
    %cst_113 = arith.constant dense<0.000000e+00> : vector<32x128xf32>
    %205 = tpu.matmul %8, %204, %cst_113 {dimension_numbers = #tpu.dot_dimension_numbers<[1], [0], [0], [1], [0, 0, 1, 1], [], []>} : vector<32x32xbf16>, vector<32x128xbf16>, vector<32x128xf32> -> vector<32x128xf32>
    %cst_114 = arith.constant dense<0.000000e+00> : vector<32x128xf32>
    %206 = tpu.matmul %9, %204, %cst_114 {dimension_numbers = #tpu.dot_dimension_numbers<[1], [0], [0], [1], [0, 0, 1, 1], [], []>} : vector<32x32xbf16>, vector<32x128xbf16>, vector<32x128xf32> -> vector<32x128xf32>
    %207 = arith.negf %206 : vector<32x128xf32>
    %208 = math.exp %207 : vector<32x128xf32>
    %cst_115 = arith.constant 1.000000e+00 : f32
    %209 = vector.broadcast %cst_115 : f32 to vector<32x128xf32>
    %210 = arith.addf %209, %208 : vector<32x128xf32>
    %211 = arith.divf %209, %210 : vector<32x128xf32>
    %212 = arith.mulf %205, %211 : vector<32x128xf32>
    %213 = arith.truncf %212 : vector<32x128xf32> to vector<32x128xbf16>
    %cst_116 = arith.constant dense<0.000000e+00> : vector<32x128xf32>
    %214 = tpu.matmul %10, %213, %cst_116 {dimension_numbers = #tpu.dot_dimension_numbers<[1], [0], [0], [1], [0, 0, 1, 1], [], []>} : vector<32x32xbf16>, vector<32x128xbf16>, vector<32x128xf32> -> vector<32x128xf32>
    %cst_117 = arith.constant dense<0.000000e+00> : vector<32x128xf32>
    %215 = tpu.matmul %11, %213, %cst_117 {dimension_numbers = #tpu.dot_dimension_numbers<[1], [0], [0], [1], [0, 0, 1, 1], [], []>} : vector<32x32xbf16>, vector<32x128xbf16>, vector<32x128xf32> -> vector<32x128xf32>
    %216 = arith.negf %215 : vector<32x128xf32>
    %217 = math.exp %216 : vector<32x128xf32>
    %cst_118 = arith.constant 1.000000e+00 : f32
    %218 = vector.broadcast %cst_118 : f32 to vector<32x128xf32>
    %219 = arith.addf %218, %217 : vector<32x128xf32>
    %220 = arith.divf %218, %219 : vector<32x128xf32>
    %221 = arith.mulf %214, %220 : vector<32x128xf32>
    %222 = arith.addf %212, %221 : vector<32x128xf32>
    %cst_119 = arith.constant 0.707106769 : f32
    %223 = vector.broadcast %cst_119 : f32 to vector<32x128xf32>
    %224 = arith.mulf %222, %223 : vector<32x128xf32>
    %225 = arith.truncf %224 : vector<32x128xf32> to vector<32x128xbf16>
    %c2 = arith.constant 2 : index
    %c0_120 = arith.constant 0 : index
    %c0_121 = arith.constant 0 : index
    %c0_122 = arith.constant 0 : index
    %226 = vector.load %arg8[%c2, %c0_120, %c0_121, %c0_122] : memref<6x2x32x32xbf16, #tpu.memory_space<vmem>>, vector<1x1x32x32xbf16>
    %227 = vector.shape_cast %226 : vector<1x1x32x32xbf16> to vector<32x32xbf16>
    %c2_123 = arith.constant 2 : index
    %c0_124 = arith.constant 0 : index
    %c0_125 = arith.constant 0 : index
    %c0_126 = arith.constant 0 : index
    %228 = vector.load %arg9[%c2_123, %c0_124, %c0_125, %c0_126] : memref<6x2x32x32xbf16, #tpu.memory_space<vmem>>, vector<1x1x32x32xbf16>
    %229 = vector.shape_cast %228 : vector<1x1x32x32xbf16> to vector<32x32xbf16>
    %cst_127 = arith.constant dense<0.000000e+00> : vector<32x128xf32>
    %230 = tpu.matmul %227, %225, %cst_127 {dimension_numbers = #tpu.dot_dimension_numbers<[1], [0], [0], [1], [0, 0, 1, 1], [], []>} : vector<32x32xbf16>, vector<32x128xbf16>, vector<32x128xf32> -> vector<32x128xf32>
    %cst_128 = arith.constant dense<0.000000e+00> : vector<32x128xf32>
    %231 = tpu.matmul %229, %225, %cst_128 {dimension_numbers = #tpu.dot_dimension_numbers<[1], [0], [0], [1], [0, 0, 1, 1], [], []>} : vector<32x32xbf16>, vector<32x128xbf16>, vector<32x128xf32> -> vector<32x128xf32>
    %232 = arith.negf %231 : vector<32x128xf32>
    %233 = math.exp %232 : vector<32x128xf32>
    %cst_129 = arith.constant 1.000000e+00 : f32
    %234 = vector.broadcast %cst_129 : f32 to vector<32x128xf32>
    %235 = arith.addf %234, %233 : vector<32x128xf32>
    %236 = arith.divf %234, %235 : vector<32x128xf32>
    %237 = arith.mulf %230, %236 : vector<32x128xf32>
    %238 = arith.addf %224, %237 : vector<32x128xf32>
    %cst_130 = arith.constant 0.707106769 : f32
    %239 = vector.broadcast %cst_130 : f32 to vector<32x128xf32>
    %240 = arith.mulf %238, %239 : vector<32x128xf32>
    %241 = arith.truncf %240 : vector<32x128xf32> to vector<32x128xbf16>
    %c2_131 = arith.constant 2 : index
    %c1_132 = arith.constant 1 : index
    %c0_133 = arith.constant 0 : index
    %c0_134 = arith.constant 0 : index
    %242 = vector.load %arg8[%c2_131, %c1_132, %c0_133, %c0_134] : memref<6x2x32x32xbf16, #tpu.memory_space<vmem>>, vector<1x1x32x32xbf16>
    %243 = vector.shape_cast %242 : vector<1x1x32x32xbf16> to vector<32x32xbf16>
    %c2_135 = arith.constant 2 : index
    %c1_136 = arith.constant 1 : index
    %c0_137 = arith.constant 0 : index
    %c0_138 = arith.constant 0 : index
    %244 = vector.load %arg9[%c2_135, %c1_136, %c0_137, %c0_138] : memref<6x2x32x32xbf16, #tpu.memory_space<vmem>>, vector<1x1x32x32xbf16>
    %245 = vector.shape_cast %244 : vector<1x1x32x32xbf16> to vector<32x32xbf16>
    %cst_139 = arith.constant dense<0.000000e+00> : vector<32x128xf32>
    %246 = tpu.matmul %243, %241, %cst_139 {dimension_numbers = #tpu.dot_dimension_numbers<[1], [0], [0], [1], [0, 0, 1, 1], [], []>} : vector<32x32xbf16>, vector<32x128xbf16>, vector<32x128xf32> -> vector<32x128xf32>
    %cst_140 = arith.constant dense<0.000000e+00> : vector<32x128xf32>
    %247 = tpu.matmul %245, %241, %cst_140 {dimension_numbers = #tpu.dot_dimension_numbers<[1], [0], [0], [1], [0, 0, 1, 1], [], []>} : vector<32x32xbf16>, vector<32x128xbf16>, vector<32x128xf32> -> vector<32x128xf32>
    %248 = arith.negf %247 : vector<32x128xf32>
    %249 = math.exp %248 : vector<32x128xf32>
    %cst_141 = arith.constant 1.000000e+00 : f32
    %250 = vector.broadcast %cst_141 : f32 to vector<32x128xf32>
    %251 = arith.addf %250, %249 : vector<32x128xf32>
    %252 = arith.divf %250, %251 : vector<32x128xf32>
    %253 = arith.mulf %246, %252 : vector<32x128xf32>
    %254 = arith.addf %240, %253 : vector<32x128xf32>
    %cst_142 = arith.constant 0.707106769 : f32
    %255 = vector.broadcast %cst_142 : f32 to vector<32x128xf32>
    %256 = arith.mulf %254, %255 : vector<32x128xf32>
    %cst_143 = arith.constant 0.000000e+00 : f32
    %257 = vector.broadcast %cst_143 : f32 to vector<32x128xf32>
    %258 = arith.maximumf %256, %257 : vector<32x128xf32>
    %259 = arith.addf %162, %258 : vector<32x128xf32>
    %260 = arith.truncf %256 : vector<32x128xf32> to vector<32x128xbf16>
    %c2_144 = arith.constant 2 : index
    %c0_145 = arith.constant 0 : index
    %c0_146 = arith.constant 0 : index
    %261 = vector.load %arg10[%c2_144, %c0_145, %c0_146] : memref<5x32x32xbf16, #tpu.memory_space<vmem>>, vector<1x32x32xbf16>
    %262 = vector.shape_cast %261 : vector<1x32x32xbf16> to vector<32x32xbf16>
    %cst_147 = arith.constant dense<0.000000e+00> : vector<32x128xf32>
    %263 = tpu.matmul %262, %260, %cst_147 {dimension_numbers = #tpu.dot_dimension_numbers<[1], [0], [0], [1], [0, 0, 1, 1], [], []>} : vector<32x32xbf16>, vector<32x128xbf16>, vector<32x128xf32> -> vector<32x128xf32>
    %264 = arith.mulf %263, %202 : vector<32x128xf32>
    %cst_148 = arith.constant dense<0xFF800000> : vector<128xf32>
    %265 = vector.multi_reduction <maximumf>, %264, %cst_148 [0] : vector<32x128xf32> to vector<128xf32>
    %266 = vector.shape_cast %265 : vector<128xf32> to vector<1x128xf32>
    %cst_149 = arith.constant dense<0.000000e+00> : vector<128xf32>
    %267 = vector.multi_reduction <add>, %264, %cst_149 [0] : vector<32x128xf32> to vector<128xf32>
    %268 = vector.shape_cast %267 : vector<128xf32> to vector<1x128xf32>
    %cst_150 = arith.constant 1.000000e+00 : f32
    %269 = vector.broadcast %cst_150 : f32 to vector<1x128xf32>
    %270 = arith.subf %266, %269 : vector<1x128xf32>
    %cst_151 = arith.constant 1.000000e+00 : f32
    %271 = vector.broadcast %cst_151 : f32 to vector<1x128xf32>
    %272 = arith.subf %268, %271 : vector<1x128xf32>
    %cst_152 = arith.constant 3.200000e+01 : f32
    %273 = vector.broadcast %cst_152 : f32 to vector<1x128xf32>
    %274 = arith.divf %272, %273 : vector<1x128xf32>
    %275 = arith.maximumf %270, %274 : vector<1x128xf32>
    %c0_i32_153 = arith.constant 0 : i32
    %c10_i32_154 = arith.constant 10 : i32
    %276 = arith.addi %c0_i32_153, %c10_i32_154 : i32
    %c1_i32_155 = arith.constant 1 : i32
    %277 = scf.for %arg14 = %c0_i32_153 to %276 step %c1_i32_155 iter_args(%arg15 = %275) -> (vector<1x128xf32>)  : i32 {
      %554 = vector.broadcast %arg15 : vector<1x128xf32> to vector<32x128xf32>
      %555 = arith.cmpf ogt, %264, %554 : vector<32x128xf32>
      %cst_303 = arith.constant 1.000000e+00 : f32
      %cst_304 = arith.constant 0.000000e+00 : f32
      %556 = vector.broadcast %cst_303 : f32 to vector<32x128xf32>
      %557 = vector.broadcast %cst_304 : f32 to vector<32x128xf32>
      %558 = arith.select %555, %556, %557 : vector<32x128xi1>, vector<32x128xf32>
      %cst_305 = arith.constant dense<0.000000e+00> : vector<128xf32>
      %559 = vector.multi_reduction <add>, %558, %cst_305 [0] : vector<32x128xf32> to vector<128xf32>
      %560 = vector.shape_cast %559 : vector<128xf32> to vector<1x128xf32>
      %cst_306 = arith.constant 1.000000e+00 : f32
      %561 = vector.broadcast %cst_306 : f32 to vector<1x128xf32>
      %562 = arith.maximumf %560, %561 : vector<1x128xf32>
      %563 = arith.mulf %558, %264 : vector<32x128xf32>
      %cst_307 = arith.constant dense<0.000000e+00> : vector<128xf32>
      %564 = vector.multi_reduction <add>, %563, %cst_307 [0] : vector<32x128xf32> to vector<128xf32>
      %565 = vector.shape_cast %564 : vector<128xf32> to vector<1x128xf32>
      %cst_308 = arith.constant 1.000000e+00 : f32
      %566 = vector.broadcast %cst_308 : f32 to vector<1x128xf32>
      %567 = arith.subf %565, %566 : vector<1x128xf32>
      %568 = tpu.reciprocal %562 {approx = true} : vector<1x128xf32> -> vector<1x128xf32>
      %569 = arith.mulf %567, %568 : vector<1x128xf32>
      scf.yield %569 : vector<1x128xf32>
    }
    %278 = vector.broadcast %277 : vector<1x128xf32> to vector<32x128xf32>
    %279 = arith.cmpf ogt, %264, %278 : vector<32x128xf32>
    %cst_156 = arith.constant 1.000000e+00 : f32
    %cst_157 = arith.constant 0.000000e+00 : f32
    %280 = vector.broadcast %cst_156 : f32 to vector<32x128xf32>
    %281 = vector.broadcast %cst_157 : f32 to vector<32x128xf32>
    %282 = arith.select %279, %280, %281 : vector<32x128xi1>, vector<32x128xf32>
    %cst_158 = arith.constant dense<0.000000e+00> : vector<128xf32>
    %283 = vector.multi_reduction <add>, %282, %cst_158 [0] : vector<32x128xf32> to vector<128xf32>
    %284 = vector.shape_cast %283 : vector<128xf32> to vector<1x128xf32>
    %cst_159 = arith.constant 1.000000e+00 : f32
    %285 = vector.broadcast %cst_159 : f32 to vector<1x128xf32>
    %286 = arith.maximumf %284, %285 : vector<1x128xf32>
    %287 = arith.mulf %282, %264 : vector<32x128xf32>
    %cst_160 = arith.constant dense<0.000000e+00> : vector<128xf32>
    %288 = vector.multi_reduction <add>, %287, %cst_160 [0] : vector<32x128xf32> to vector<128xf32>
    %289 = vector.shape_cast %288 : vector<128xf32> to vector<1x128xf32>
    %cst_161 = arith.constant 1.000000e+00 : f32
    %290 = vector.broadcast %cst_161 : f32 to vector<1x128xf32>
    %291 = arith.subf %289, %290 : vector<1x128xf32>
    %292 = arith.divf %291, %286 : vector<1x128xf32>
    %293 = vector.broadcast %292 : vector<1x128xf32> to vector<32x128xf32>
    %294 = arith.subf %264, %293 : vector<32x128xf32>
    %cst_162 = arith.constant 0.000000e+00 : f32
    %295 = vector.broadcast %cst_162 : f32 to vector<32x128xf32>
    %296 = arith.maximumf %294, %295 : vector<32x128xf32>
    %cst_163 = arith.constant 1.500000e+00 : f32
    %297 = vector.broadcast %cst_163 : f32 to vector<32x128xf32>
    %298 = arith.subf %297, %296 : vector<32x128xf32>
    %299 = arith.mulf %298, %202 : vector<32x128xf32>
    %300 = arith.mulf %296, %6 : vector<32x128xf32>
    %301 = arith.truncf %300 : vector<32x128xf32> to vector<32x128xbf16>
    %cst_164 = arith.constant dense<0.000000e+00> : vector<32x128xf32>
    %302 = tpu.matmul %8, %301, %cst_164 {dimension_numbers = #tpu.dot_dimension_numbers<[1], [0], [0], [1], [0, 0, 1, 1], [], []>} : vector<32x32xbf16>, vector<32x128xbf16>, vector<32x128xf32> -> vector<32x128xf32>
    %cst_165 = arith.constant dense<0.000000e+00> : vector<32x128xf32>
    %303 = tpu.matmul %9, %301, %cst_165 {dimension_numbers = #tpu.dot_dimension_numbers<[1], [0], [0], [1], [0, 0, 1, 1], [], []>} : vector<32x32xbf16>, vector<32x128xbf16>, vector<32x128xf32> -> vector<32x128xf32>
    %304 = arith.negf %303 : vector<32x128xf32>
    %305 = math.exp %304 : vector<32x128xf32>
    %cst_166 = arith.constant 1.000000e+00 : f32
    %306 = vector.broadcast %cst_166 : f32 to vector<32x128xf32>
    %307 = arith.addf %306, %305 : vector<32x128xf32>
    %308 = arith.divf %306, %307 : vector<32x128xf32>
    %309 = arith.mulf %302, %308 : vector<32x128xf32>
    %310 = arith.truncf %309 : vector<32x128xf32> to vector<32x128xbf16>
    %cst_167 = arith.constant dense<0.000000e+00> : vector<32x128xf32>
    %311 = tpu.matmul %10, %310, %cst_167 {dimension_numbers = #tpu.dot_dimension_numbers<[1], [0], [0], [1], [0, 0, 1, 1], [], []>} : vector<32x32xbf16>, vector<32x128xbf16>, vector<32x128xf32> -> vector<32x128xf32>
    %cst_168 = arith.constant dense<0.000000e+00> : vector<32x128xf32>
    %312 = tpu.matmul %11, %310, %cst_168 {dimension_numbers = #tpu.dot_dimension_numbers<[1], [0], [0], [1], [0, 0, 1, 1], [], []>} : vector<32x32xbf16>, vector<32x128xbf16>, vector<32x128xf32> -> vector<32x128xf32>
    %313 = arith.negf %312 : vector<32x128xf32>
    %314 = math.exp %313 : vector<32x128xf32>
    %cst_169 = arith.constant 1.000000e+00 : f32
    %315 = vector.broadcast %cst_169 : f32 to vector<32x128xf32>
    %316 = arith.addf %315, %314 : vector<32x128xf32>
    %317 = arith.divf %315, %316 : vector<32x128xf32>
    %318 = arith.mulf %311, %317 : vector<32x128xf32>
    %319 = arith.addf %309, %318 : vector<32x128xf32>
    %cst_170 = arith.constant 0.707106769 : f32
    %320 = vector.broadcast %cst_170 : f32 to vector<32x128xf32>
    %321 = arith.mulf %319, %320 : vector<32x128xf32>
    %322 = arith.truncf %321 : vector<32x128xf32> to vector<32x128xbf16>
    %c3 = arith.constant 3 : index
    %c0_171 = arith.constant 0 : index
    %c0_172 = arith.constant 0 : index
    %c0_173 = arith.constant 0 : index
    %323 = vector.load %arg8[%c3, %c0_171, %c0_172, %c0_173] : memref<6x2x32x32xbf16, #tpu.memory_space<vmem>>, vector<1x1x32x32xbf16>
    %324 = vector.shape_cast %323 : vector<1x1x32x32xbf16> to vector<32x32xbf16>
    %c3_174 = arith.constant 3 : index
    %c0_175 = arith.constant 0 : index
    %c0_176 = arith.constant 0 : index
    %c0_177 = arith.constant 0 : index
    %325 = vector.load %arg9[%c3_174, %c0_175, %c0_176, %c0_177] : memref<6x2x32x32xbf16, #tpu.memory_space<vmem>>, vector<1x1x32x32xbf16>
    %326 = vector.shape_cast %325 : vector<1x1x32x32xbf16> to vector<32x32xbf16>
    %cst_178 = arith.constant dense<0.000000e+00> : vector<32x128xf32>
    %327 = tpu.matmul %324, %322, %cst_178 {dimension_numbers = #tpu.dot_dimension_numbers<[1], [0], [0], [1], [0, 0, 1, 1], [], []>} : vector<32x32xbf16>, vector<32x128xbf16>, vector<32x128xf32> -> vector<32x128xf32>
    %cst_179 = arith.constant dense<0.000000e+00> : vector<32x128xf32>
    %328 = tpu.matmul %326, %322, %cst_179 {dimension_numbers = #tpu.dot_dimension_numbers<[1], [0], [0], [1], [0, 0, 1, 1], [], []>} : vector<32x32xbf16>, vector<32x128xbf16>, vector<32x128xf32> -> vector<32x128xf32>
    %329 = arith.negf %328 : vector<32x128xf32>
    %330 = math.exp %329 : vector<32x128xf32>
    %cst_180 = arith.constant 1.000000e+00 : f32
    %331 = vector.broadcast %cst_180 : f32 to vector<32x128xf32>
    %332 = arith.addf %331, %330 : vector<32x128xf32>
    %333 = arith.divf %331, %332 : vector<32x128xf32>
    %334 = arith.mulf %327, %333 : vector<32x128xf32>
    %335 = arith.addf %321, %334 : vector<32x128xf32>
    %cst_181 = arith.constant 0.707106769 : f32
    %336 = vector.broadcast %cst_181 : f32 to vector<32x128xf32>
    %337 = arith.mulf %335, %336 : vector<32x128xf32>
    %338 = arith.truncf %337 : vector<32x128xf32> to vector<32x128xbf16>
    %c3_182 = arith.constant 3 : index
    %c1_183 = arith.constant 1 : index
    %c0_184 = arith.constant 0 : index
    %c0_185 = arith.constant 0 : index
    %339 = vector.load %arg8[%c3_182, %c1_183, %c0_184, %c0_185] : memref<6x2x32x32xbf16, #tpu.memory_space<vmem>>, vector<1x1x32x32xbf16>
    %340 = vector.shape_cast %339 : vector<1x1x32x32xbf16> to vector<32x32xbf16>
    %c3_186 = arith.constant 3 : index
    %c1_187 = arith.constant 1 : index
    %c0_188 = arith.constant 0 : index
    %c0_189 = arith.constant 0 : index
    %341 = vector.load %arg9[%c3_186, %c1_187, %c0_188, %c0_189] : memref<6x2x32x32xbf16, #tpu.memory_space<vmem>>, vector<1x1x32x32xbf16>
    %342 = vector.shape_cast %341 : vector<1x1x32x32xbf16> to vector<32x32xbf16>
    %cst_190 = arith.constant dense<0.000000e+00> : vector<32x128xf32>
    %343 = tpu.matmul %340, %338, %cst_190 {dimension_numbers = #tpu.dot_dimension_numbers<[1], [0], [0], [1], [0, 0, 1, 1], [], []>} : vector<32x32xbf16>, vector<32x128xbf16>, vector<32x128xf32> -> vector<32x128xf32>
    %cst_191 = arith.constant dense<0.000000e+00> : vector<32x128xf32>
    %344 = tpu.matmul %342, %338, %cst_191 {dimension_numbers = #tpu.dot_dimension_numbers<[1], [0], [0], [1], [0, 0, 1, 1], [], []>} : vector<32x32xbf16>, vector<32x128xbf16>, vector<32x128xf32> -> vector<32x128xf32>
    %345 = arith.negf %344 : vector<32x128xf32>
    %346 = math.exp %345 : vector<32x128xf32>
    %cst_192 = arith.constant 1.000000e+00 : f32
    %347 = vector.broadcast %cst_192 : f32 to vector<32x128xf32>
    %348 = arith.addf %347, %346 : vector<32x128xf32>
    %349 = arith.divf %347, %348 : vector<32x128xf32>
    %350 = arith.mulf %343, %349 : vector<32x128xf32>
    %351 = arith.addf %337, %350 : vector<32x128xf32>
    %cst_193 = arith.constant 0.707106769 : f32
    %352 = vector.broadcast %cst_193 : f32 to vector<32x128xf32>
    %353 = arith.mulf %351, %352 : vector<32x128xf32>
    %cst_194 = arith.constant 0.000000e+00 : f32
    %354 = vector.broadcast %cst_194 : f32 to vector<32x128xf32>
    %355 = arith.maximumf %353, %354 : vector<32x128xf32>
    %356 = arith.addf %259, %355 : vector<32x128xf32>
    %357 = arith.truncf %353 : vector<32x128xf32> to vector<32x128xbf16>
    %c3_195 = arith.constant 3 : index
    %c0_196 = arith.constant 0 : index
    %c0_197 = arith.constant 0 : index
    %358 = vector.load %arg10[%c3_195, %c0_196, %c0_197] : memref<5x32x32xbf16, #tpu.memory_space<vmem>>, vector<1x32x32xbf16>
    %359 = vector.shape_cast %358 : vector<1x32x32xbf16> to vector<32x32xbf16>
    %cst_198 = arith.constant dense<0.000000e+00> : vector<32x128xf32>
    %360 = tpu.matmul %359, %357, %cst_198 {dimension_numbers = #tpu.dot_dimension_numbers<[1], [0], [0], [1], [0, 0, 1, 1], [], []>} : vector<32x32xbf16>, vector<32x128xbf16>, vector<32x128xf32> -> vector<32x128xf32>
    %361 = arith.mulf %360, %299 : vector<32x128xf32>
    %cst_199 = arith.constant dense<0xFF800000> : vector<128xf32>
    %362 = vector.multi_reduction <maximumf>, %361, %cst_199 [0] : vector<32x128xf32> to vector<128xf32>
    %363 = vector.shape_cast %362 : vector<128xf32> to vector<1x128xf32>
    %cst_200 = arith.constant dense<0.000000e+00> : vector<128xf32>
    %364 = vector.multi_reduction <add>, %361, %cst_200 [0] : vector<32x128xf32> to vector<128xf32>
    %365 = vector.shape_cast %364 : vector<128xf32> to vector<1x128xf32>
    %cst_201 = arith.constant 1.000000e+00 : f32
    %366 = vector.broadcast %cst_201 : f32 to vector<1x128xf32>
    %367 = arith.subf %363, %366 : vector<1x128xf32>
    %cst_202 = arith.constant 1.000000e+00 : f32
    %368 = vector.broadcast %cst_202 : f32 to vector<1x128xf32>
    %369 = arith.subf %365, %368 : vector<1x128xf32>
    %cst_203 = arith.constant 3.200000e+01 : f32
    %370 = vector.broadcast %cst_203 : f32 to vector<1x128xf32>
    %371 = arith.divf %369, %370 : vector<1x128xf32>
    %372 = arith.maximumf %367, %371 : vector<1x128xf32>
    %c0_i32_204 = arith.constant 0 : i32
    %c10_i32_205 = arith.constant 10 : i32
    %373 = arith.addi %c0_i32_204, %c10_i32_205 : i32
    %c1_i32_206 = arith.constant 1 : i32
    %374 = scf.for %arg14 = %c0_i32_204 to %373 step %c1_i32_206 iter_args(%arg15 = %372) -> (vector<1x128xf32>)  : i32 {
      %554 = vector.broadcast %arg15 : vector<1x128xf32> to vector<32x128xf32>
      %555 = arith.cmpf ogt, %361, %554 : vector<32x128xf32>
      %cst_303 = arith.constant 1.000000e+00 : f32
      %cst_304 = arith.constant 0.000000e+00 : f32
      %556 = vector.broadcast %cst_303 : f32 to vector<32x128xf32>
      %557 = vector.broadcast %cst_304 : f32 to vector<32x128xf32>
      %558 = arith.select %555, %556, %557 : vector<32x128xi1>, vector<32x128xf32>
      %cst_305 = arith.constant dense<0.000000e+00> : vector<128xf32>
      %559 = vector.multi_reduction <add>, %558, %cst_305 [0] : vector<32x128xf32> to vector<128xf32>
      %560 = vector.shape_cast %559 : vector<128xf32> to vector<1x128xf32>
      %cst_306 = arith.constant 1.000000e+00 : f32
      %561 = vector.broadcast %cst_306 : f32 to vector<1x128xf32>
      %562 = arith.maximumf %560, %561 : vector<1x128xf32>
      %563 = arith.mulf %558, %361 : vector<32x128xf32>
      %cst_307 = arith.constant dense<0.000000e+00> : vector<128xf32>
      %564 = vector.multi_reduction <add>, %563, %cst_307 [0] : vector<32x128xf32> to vector<128xf32>
      %565 = vector.shape_cast %564 : vector<128xf32> to vector<1x128xf32>
      %cst_308 = arith.constant 1.000000e+00 : f32
      %566 = vector.broadcast %cst_308 : f32 to vector<1x128xf32>
      %567 = arith.subf %565, %566 : vector<1x128xf32>
      %568 = tpu.reciprocal %562 {approx = true} : vector<1x128xf32> -> vector<1x128xf32>
      %569 = arith.mulf %567, %568 : vector<1x128xf32>
      scf.yield %569 : vector<1x128xf32>
    }
    %375 = vector.broadcast %374 : vector<1x128xf32> to vector<32x128xf32>
    %376 = arith.cmpf ogt, %361, %375 : vector<32x128xf32>
    %cst_207 = arith.constant 1.000000e+00 : f32
    %cst_208 = arith.constant 0.000000e+00 : f32
    %377 = vector.broadcast %cst_207 : f32 to vector<32x128xf32>
    %378 = vector.broadcast %cst_208 : f32 to vector<32x128xf32>
    %379 = arith.select %376, %377, %378 : vector<32x128xi1>, vector<32x128xf32>
    %cst_209 = arith.constant dense<0.000000e+00> : vector<128xf32>
    %380 = vector.multi_reduction <add>, %379, %cst_209 [0] : vector<32x128xf32> to vector<128xf32>
    %381 = vector.shape_cast %380 : vector<128xf32> to vector<1x128xf32>
    %cst_210 = arith.constant 1.000000e+00 : f32
    %382 = vector.broadcast %cst_210 : f32 to vector<1x128xf32>
    %383 = arith.maximumf %381, %382 : vector<1x128xf32>
    %384 = arith.mulf %379, %361 : vector<32x128xf32>
    %cst_211 = arith.constant dense<0.000000e+00> : vector<128xf32>
    %385 = vector.multi_reduction <add>, %384, %cst_211 [0] : vector<32x128xf32> to vector<128xf32>
    %386 = vector.shape_cast %385 : vector<128xf32> to vector<1x128xf32>
    %cst_212 = arith.constant 1.000000e+00 : f32
    %387 = vector.broadcast %cst_212 : f32 to vector<1x128xf32>
    %388 = arith.subf %386, %387 : vector<1x128xf32>
    %389 = arith.divf %388, %383 : vector<1x128xf32>
    %390 = vector.broadcast %389 : vector<1x128xf32> to vector<32x128xf32>
    %391 = arith.subf %361, %390 : vector<32x128xf32>
    %cst_213 = arith.constant 0.000000e+00 : f32
    %392 = vector.broadcast %cst_213 : f32 to vector<32x128xf32>
    %393 = arith.maximumf %391, %392 : vector<32x128xf32>
    %cst_214 = arith.constant 1.500000e+00 : f32
    %394 = vector.broadcast %cst_214 : f32 to vector<32x128xf32>
    %395 = arith.subf %394, %393 : vector<32x128xf32>
    %396 = arith.mulf %395, %299 : vector<32x128xf32>
    %397 = arith.mulf %393, %6 : vector<32x128xf32>
    %398 = arith.truncf %397 : vector<32x128xf32> to vector<32x128xbf16>
    %cst_215 = arith.constant dense<0.000000e+00> : vector<32x128xf32>
    %399 = tpu.matmul %8, %398, %cst_215 {dimension_numbers = #tpu.dot_dimension_numbers<[1], [0], [0], [1], [0, 0, 1, 1], [], []>} : vector<32x32xbf16>, vector<32x128xbf16>, vector<32x128xf32> -> vector<32x128xf32>
    %cst_216 = arith.constant dense<0.000000e+00> : vector<32x128xf32>
    %400 = tpu.matmul %9, %398, %cst_216 {dimension_numbers = #tpu.dot_dimension_numbers<[1], [0], [0], [1], [0, 0, 1, 1], [], []>} : vector<32x32xbf16>, vector<32x128xbf16>, vector<32x128xf32> -> vector<32x128xf32>
    %401 = arith.negf %400 : vector<32x128xf32>
    %402 = math.exp %401 : vector<32x128xf32>
    %cst_217 = arith.constant 1.000000e+00 : f32
    %403 = vector.broadcast %cst_217 : f32 to vector<32x128xf32>
    %404 = arith.addf %403, %402 : vector<32x128xf32>
    %405 = arith.divf %403, %404 : vector<32x128xf32>
    %406 = arith.mulf %399, %405 : vector<32x128xf32>
    %407 = arith.truncf %406 : vector<32x128xf32> to vector<32x128xbf16>
    %cst_218 = arith.constant dense<0.000000e+00> : vector<32x128xf32>
    %408 = tpu.matmul %10, %407, %cst_218 {dimension_numbers = #tpu.dot_dimension_numbers<[1], [0], [0], [1], [0, 0, 1, 1], [], []>} : vector<32x32xbf16>, vector<32x128xbf16>, vector<32x128xf32> -> vector<32x128xf32>
    %cst_219 = arith.constant dense<0.000000e+00> : vector<32x128xf32>
    %409 = tpu.matmul %11, %407, %cst_219 {dimension_numbers = #tpu.dot_dimension_numbers<[1], [0], [0], [1], [0, 0, 1, 1], [], []>} : vector<32x32xbf16>, vector<32x128xbf16>, vector<32x128xf32> -> vector<32x128xf32>
    %410 = arith.negf %409 : vector<32x128xf32>
    %411 = math.exp %410 : vector<32x128xf32>
    %cst_220 = arith.constant 1.000000e+00 : f32
    %412 = vector.broadcast %cst_220 : f32 to vector<32x128xf32>
    %413 = arith.addf %412, %411 : vector<32x128xf32>
    %414 = arith.divf %412, %413 : vector<32x128xf32>
    %415 = arith.mulf %408, %414 : vector<32x128xf32>
    %416 = arith.addf %406, %415 : vector<32x128xf32>
    %cst_221 = arith.constant 0.707106769 : f32
    %417 = vector.broadcast %cst_221 : f32 to vector<32x128xf32>
    %418 = arith.mulf %416, %417 : vector<32x128xf32>
    %419 = arith.truncf %418 : vector<32x128xf32> to vector<32x128xbf16>
    %c4 = arith.constant 4 : index
    %c0_222 = arith.constant 0 : index
    %c0_223 = arith.constant 0 : index
    %c0_224 = arith.constant 0 : index
    %420 = vector.load %arg8[%c4, %c0_222, %c0_223, %c0_224] : memref<6x2x32x32xbf16, #tpu.memory_space<vmem>>, vector<1x1x32x32xbf16>
    %421 = vector.shape_cast %420 : vector<1x1x32x32xbf16> to vector<32x32xbf16>
    %c4_225 = arith.constant 4 : index
    %c0_226 = arith.constant 0 : index
    %c0_227 = arith.constant 0 : index
    %c0_228 = arith.constant 0 : index
    %422 = vector.load %arg9[%c4_225, %c0_226, %c0_227, %c0_228] : memref<6x2x32x32xbf16, #tpu.memory_space<vmem>>, vector<1x1x32x32xbf16>
    %423 = vector.shape_cast %422 : vector<1x1x32x32xbf16> to vector<32x32xbf16>
    %cst_229 = arith.constant dense<0.000000e+00> : vector<32x128xf32>
    %424 = tpu.matmul %421, %419, %cst_229 {dimension_numbers = #tpu.dot_dimension_numbers<[1], [0], [0], [1], [0, 0, 1, 1], [], []>} : vector<32x32xbf16>, vector<32x128xbf16>, vector<32x128xf32> -> vector<32x128xf32>
    %cst_230 = arith.constant dense<0.000000e+00> : vector<32x128xf32>
    %425 = tpu.matmul %423, %419, %cst_230 {dimension_numbers = #tpu.dot_dimension_numbers<[1], [0], [0], [1], [0, 0, 1, 1], [], []>} : vector<32x32xbf16>, vector<32x128xbf16>, vector<32x128xf32> -> vector<32x128xf32>
    %426 = arith.negf %425 : vector<32x128xf32>
    %427 = math.exp %426 : vector<32x128xf32>
    %cst_231 = arith.constant 1.000000e+00 : f32
    %428 = vector.broadcast %cst_231 : f32 to vector<32x128xf32>
    %429 = arith.addf %428, %427 : vector<32x128xf32>
    %430 = arith.divf %428, %429 : vector<32x128xf32>
    %431 = arith.mulf %424, %430 : vector<32x128xf32>
    %432 = arith.addf %418, %431 : vector<32x128xf32>
    %cst_232 = arith.constant 0.707106769 : f32
    %433 = vector.broadcast %cst_232 : f32 to vector<32x128xf32>
    %434 = arith.mulf %432, %433 : vector<32x128xf32>
    %435 = arith.truncf %434 : vector<32x128xf32> to vector<32x128xbf16>
    %c4_233 = arith.constant 4 : index
    %c1_234 = arith.constant 1 : index
    %c0_235 = arith.constant 0 : index
    %c0_236 = arith.constant 0 : index
    %436 = vector.load %arg8[%c4_233, %c1_234, %c0_235, %c0_236] : memref<6x2x32x32xbf16, #tpu.memory_space<vmem>>, vector<1x1x32x32xbf16>
    %437 = vector.shape_cast %436 : vector<1x1x32x32xbf16> to vector<32x32xbf16>
    %c4_237 = arith.constant 4 : index
    %c1_238 = arith.constant 1 : index
    %c0_239 = arith.constant 0 : index
    %c0_240 = arith.constant 0 : index
    %438 = vector.load %arg9[%c4_237, %c1_238, %c0_239, %c0_240] : memref<6x2x32x32xbf16, #tpu.memory_space<vmem>>, vector<1x1x32x32xbf16>
    %439 = vector.shape_cast %438 : vector<1x1x32x32xbf16> to vector<32x32xbf16>
    %cst_241 = arith.constant dense<0.000000e+00> : vector<32x128xf32>
    %440 = tpu.matmul %437, %435, %cst_241 {dimension_numbers = #tpu.dot_dimension_numbers<[1], [0], [0], [1], [0, 0, 1, 1], [], []>} : vector<32x32xbf16>, vector<32x128xbf16>, vector<32x128xf32> -> vector<32x128xf32>
    %cst_242 = arith.constant dense<0.000000e+00> : vector<32x128xf32>
    %441 = tpu.matmul %439, %435, %cst_242 {dimension_numbers = #tpu.dot_dimension_numbers<[1], [0], [0], [1], [0, 0, 1, 1], [], []>} : vector<32x32xbf16>, vector<32x128xbf16>, vector<32x128xf32> -> vector<32x128xf32>
    %442 = arith.negf %441 : vector<32x128xf32>
    %443 = math.exp %442 : vector<32x128xf32>
    %cst_243 = arith.constant 1.000000e+00 : f32
    %444 = vector.broadcast %cst_243 : f32 to vector<32x128xf32>
    %445 = arith.addf %444, %443 : vector<32x128xf32>
    %446 = arith.divf %444, %445 : vector<32x128xf32>
    %447 = arith.mulf %440, %446 : vector<32x128xf32>
    %448 = arith.addf %434, %447 : vector<32x128xf32>
    %cst_244 = arith.constant 0.707106769 : f32
    %449 = vector.broadcast %cst_244 : f32 to vector<32x128xf32>
    %450 = arith.mulf %448, %449 : vector<32x128xf32>
    %cst_245 = arith.constant 0.000000e+00 : f32
    %451 = vector.broadcast %cst_245 : f32 to vector<32x128xf32>
    %452 = arith.maximumf %450, %451 : vector<32x128xf32>
    %453 = arith.addf %356, %452 : vector<32x128xf32>
    %454 = arith.truncf %450 : vector<32x128xf32> to vector<32x128xbf16>
    %c4_246 = arith.constant 4 : index
    %c0_247 = arith.constant 0 : index
    %c0_248 = arith.constant 0 : index
    %455 = vector.load %arg10[%c4_246, %c0_247, %c0_248] : memref<5x32x32xbf16, #tpu.memory_space<vmem>>, vector<1x32x32xbf16>
    %456 = vector.shape_cast %455 : vector<1x32x32xbf16> to vector<32x32xbf16>
    %cst_249 = arith.constant dense<0.000000e+00> : vector<32x128xf32>
    %457 = tpu.matmul %456, %454, %cst_249 {dimension_numbers = #tpu.dot_dimension_numbers<[1], [0], [0], [1], [0, 0, 1, 1], [], []>} : vector<32x32xbf16>, vector<32x128xbf16>, vector<32x128xf32> -> vector<32x128xf32>
    %458 = arith.mulf %457, %396 : vector<32x128xf32>
    %cst_250 = arith.constant dense<0xFF800000> : vector<128xf32>
    %459 = vector.multi_reduction <maximumf>, %458, %cst_250 [0] : vector<32x128xf32> to vector<128xf32>
    %460 = vector.shape_cast %459 : vector<128xf32> to vector<1x128xf32>
    %cst_251 = arith.constant dense<0.000000e+00> : vector<128xf32>
    %461 = vector.multi_reduction <add>, %458, %cst_251 [0] : vector<32x128xf32> to vector<128xf32>
    %462 = vector.shape_cast %461 : vector<128xf32> to vector<1x128xf32>
    %cst_252 = arith.constant 1.000000e+00 : f32
    %463 = vector.broadcast %cst_252 : f32 to vector<1x128xf32>
    %464 = arith.subf %460, %463 : vector<1x128xf32>
    %cst_253 = arith.constant 1.000000e+00 : f32
    %465 = vector.broadcast %cst_253 : f32 to vector<1x128xf32>
    %466 = arith.subf %462, %465 : vector<1x128xf32>
    %cst_254 = arith.constant 3.200000e+01 : f32
    %467 = vector.broadcast %cst_254 : f32 to vector<1x128xf32>
    %468 = arith.divf %466, %467 : vector<1x128xf32>
    %469 = arith.maximumf %464, %468 : vector<1x128xf32>
    %c0_i32_255 = arith.constant 0 : i32
    %c10_i32_256 = arith.constant 10 : i32
    %470 = arith.addi %c0_i32_255, %c10_i32_256 : i32
    %c1_i32_257 = arith.constant 1 : i32
    %471 = scf.for %arg14 = %c0_i32_255 to %470 step %c1_i32_257 iter_args(%arg15 = %469) -> (vector<1x128xf32>)  : i32 {
      %554 = vector.broadcast %arg15 : vector<1x128xf32> to vector<32x128xf32>
      %555 = arith.cmpf ogt, %458, %554 : vector<32x128xf32>
      %cst_303 = arith.constant 1.000000e+00 : f32
      %cst_304 = arith.constant 0.000000e+00 : f32
      %556 = vector.broadcast %cst_303 : f32 to vector<32x128xf32>
      %557 = vector.broadcast %cst_304 : f32 to vector<32x128xf32>
      %558 = arith.select %555, %556, %557 : vector<32x128xi1>, vector<32x128xf32>
      %cst_305 = arith.constant dense<0.000000e+00> : vector<128xf32>
      %559 = vector.multi_reduction <add>, %558, %cst_305 [0] : vector<32x128xf32> to vector<128xf32>
      %560 = vector.shape_cast %559 : vector<128xf32> to vector<1x128xf32>
      %cst_306 = arith.constant 1.000000e+00 : f32
      %561 = vector.broadcast %cst_306 : f32 to vector<1x128xf32>
      %562 = arith.maximumf %560, %561 : vector<1x128xf32>
      %563 = arith.mulf %558, %458 : vector<32x128xf32>
      %cst_307 = arith.constant dense<0.000000e+00> : vector<128xf32>
      %564 = vector.multi_reduction <add>, %563, %cst_307 [0] : vector<32x128xf32> to vector<128xf32>
      %565 = vector.shape_cast %564 : vector<128xf32> to vector<1x128xf32>
      %cst_308 = arith.constant 1.000000e+00 : f32
      %566 = vector.broadcast %cst_308 : f32 to vector<1x128xf32>
      %567 = arith.subf %565, %566 : vector<1x128xf32>
      %568 = tpu.reciprocal %562 {approx = true} : vector<1x128xf32> -> vector<1x128xf32>
      %569 = arith.mulf %567, %568 : vector<1x128xf32>
      scf.yield %569 : vector<1x128xf32>
    }
    %472 = vector.broadcast %471 : vector<1x128xf32> to vector<32x128xf32>
    %473 = arith.cmpf ogt, %458, %472 : vector<32x128xf32>
    %cst_258 = arith.constant 1.000000e+00 : f32
    %cst_259 = arith.constant 0.000000e+00 : f32
    %474 = vector.broadcast %cst_258 : f32 to vector<32x128xf32>
    %475 = vector.broadcast %cst_259 : f32 to vector<32x128xf32>
    %476 = arith.select %473, %474, %475 : vector<32x128xi1>, vector<32x128xf32>
    %cst_260 = arith.constant dense<0.000000e+00> : vector<128xf32>
    %477 = vector.multi_reduction <add>, %476, %cst_260 [0] : vector<32x128xf32> to vector<128xf32>
    %478 = vector.shape_cast %477 : vector<128xf32> to vector<1x128xf32>
    %cst_261 = arith.constant 1.000000e+00 : f32
    %479 = vector.broadcast %cst_261 : f32 to vector<1x128xf32>
    %480 = arith.maximumf %478, %479 : vector<1x128xf32>
    %481 = arith.mulf %476, %458 : vector<32x128xf32>
    %cst_262 = arith.constant dense<0.000000e+00> : vector<128xf32>
    %482 = vector.multi_reduction <add>, %481, %cst_262 [0] : vector<32x128xf32> to vector<128xf32>
    %483 = vector.shape_cast %482 : vector<128xf32> to vector<1x128xf32>
    %cst_263 = arith.constant 1.000000e+00 : f32
    %484 = vector.broadcast %cst_263 : f32 to vector<1x128xf32>
    %485 = arith.subf %483, %484 : vector<1x128xf32>
    %486 = arith.divf %485, %480 : vector<1x128xf32>
    %487 = vector.broadcast %486 : vector<1x128xf32> to vector<32x128xf32>
    %488 = arith.subf %458, %487 : vector<32x128xf32>
    %cst_264 = arith.constant 0.000000e+00 : f32
    %489 = vector.broadcast %cst_264 : f32 to vector<32x128xf32>
    %490 = arith.maximumf %488, %489 : vector<32x128xf32>
    %491 = arith.mulf %490, %6 : vector<32x128xf32>
    %492 = arith.truncf %491 : vector<32x128xf32> to vector<32x128xbf16>
    %cst_265 = arith.constant dense<0.000000e+00> : vector<32x128xf32>
    %493 = tpu.matmul %8, %492, %cst_265 {dimension_numbers = #tpu.dot_dimension_numbers<[1], [0], [0], [1], [0, 0, 1, 1], [], []>} : vector<32x32xbf16>, vector<32x128xbf16>, vector<32x128xf32> -> vector<32x128xf32>
    %cst_266 = arith.constant dense<0.000000e+00> : vector<32x128xf32>
    %494 = tpu.matmul %9, %492, %cst_266 {dimension_numbers = #tpu.dot_dimension_numbers<[1], [0], [0], [1], [0, 0, 1, 1], [], []>} : vector<32x32xbf16>, vector<32x128xbf16>, vector<32x128xf32> -> vector<32x128xf32>
    %495 = arith.negf %494 : vector<32x128xf32>
    %496 = math.exp %495 : vector<32x128xf32>
    %cst_267 = arith.constant 1.000000e+00 : f32
    %497 = vector.broadcast %cst_267 : f32 to vector<32x128xf32>
    %498 = arith.addf %497, %496 : vector<32x128xf32>
    %499 = arith.divf %497, %498 : vector<32x128xf32>
    %500 = arith.mulf %493, %499 : vector<32x128xf32>
    %501 = arith.truncf %500 : vector<32x128xf32> to vector<32x128xbf16>
    %cst_268 = arith.constant dense<0.000000e+00> : vector<32x128xf32>
    %502 = tpu.matmul %10, %501, %cst_268 {dimension_numbers = #tpu.dot_dimension_numbers<[1], [0], [0], [1], [0, 0, 1, 1], [], []>} : vector<32x32xbf16>, vector<32x128xbf16>, vector<32x128xf32> -> vector<32x128xf32>
    %cst_269 = arith.constant dense<0.000000e+00> : vector<32x128xf32>
    %503 = tpu.matmul %11, %501, %cst_269 {dimension_numbers = #tpu.dot_dimension_numbers<[1], [0], [0], [1], [0, 0, 1, 1], [], []>} : vector<32x32xbf16>, vector<32x128xbf16>, vector<32x128xf32> -> vector<32x128xf32>
    %504 = arith.negf %503 : vector<32x128xf32>
    %505 = math.exp %504 : vector<32x128xf32>
    %cst_270 = arith.constant 1.000000e+00 : f32
    %506 = vector.broadcast %cst_270 : f32 to vector<32x128xf32>
    %507 = arith.addf %506, %505 : vector<32x128xf32>
    %508 = arith.divf %506, %507 : vector<32x128xf32>
    %509 = arith.mulf %502, %508 : vector<32x128xf32>
    %510 = arith.addf %500, %509 : vector<32x128xf32>
    %cst_271 = arith.constant 0.707106769 : f32
    %511 = vector.broadcast %cst_271 : f32 to vector<32x128xf32>
    %512 = arith.mulf %510, %511 : vector<32x128xf32>
    %513 = arith.truncf %512 : vector<32x128xf32> to vector<32x128xbf16>
    %c5 = arith.constant 5 : index
    %c0_272 = arith.constant 0 : index
    %c0_273 = arith.constant 0 : index
    %c0_274 = arith.constant 0 : index
    %514 = vector.load %arg8[%c5, %c0_272, %c0_273, %c0_274] : memref<6x2x32x32xbf16, #tpu.memory_space<vmem>>, vector<1x1x32x32xbf16>
    %515 = vector.shape_cast %514 : vector<1x1x32x32xbf16> to vector<32x32xbf16>
    %c5_275 = arith.constant 5 : index
    %c0_276 = arith.constant 0 : index
    %c0_277 = arith.constant 0 : index
    %c0_278 = arith.constant 0 : index
    %516 = vector.load %arg9[%c5_275, %c0_276, %c0_277, %c0_278] : memref<6x2x32x32xbf16, #tpu.memory_space<vmem>>, vector<1x1x32x32xbf16>
    %517 = vector.shape_cast %516 : vector<1x1x32x32xbf16> to vector<32x32xbf16>
    %cst_279 = arith.constant dense<0.000000e+00> : vector<32x128xf32>
    %518 = tpu.matmul %515, %513, %cst_279 {dimension_numbers = #tpu.dot_dimension_numbers<[1], [0], [0], [1], [0, 0, 1, 1], [], []>} : vector<32x32xbf16>, vector<32x128xbf16>, vector<32x128xf32> -> vector<32x128xf32>
    %cst_280 = arith.constant dense<0.000000e+00> : vector<32x128xf32>
    %519 = tpu.matmul %517, %513, %cst_280 {dimension_numbers = #tpu.dot_dimension_numbers<[1], [0], [0], [1], [0, 0, 1, 1], [], []>} : vector<32x32xbf16>, vector<32x128xbf16>, vector<32x128xf32> -> vector<32x128xf32>
    %520 = arith.negf %519 : vector<32x128xf32>
    %521 = math.exp %520 : vector<32x128xf32>
    %cst_281 = arith.constant 1.000000e+00 : f32
    %522 = vector.broadcast %cst_281 : f32 to vector<32x128xf32>
    %523 = arith.addf %522, %521 : vector<32x128xf32>
    %524 = arith.divf %522, %523 : vector<32x128xf32>
    %525 = arith.mulf %518, %524 : vector<32x128xf32>
    %526 = arith.addf %512, %525 : vector<32x128xf32>
    %cst_282 = arith.constant 0.707106769 : f32
    %527 = vector.broadcast %cst_282 : f32 to vector<32x128xf32>
    %528 = arith.mulf %526, %527 : vector<32x128xf32>
    %529 = arith.truncf %528 : vector<32x128xf32> to vector<32x128xbf16>
    %c5_283 = arith.constant 5 : index
    %c1_284 = arith.constant 1 : index
    %c0_285 = arith.constant 0 : index
    %c0_286 = arith.constant 0 : index
    %530 = vector.load %arg8[%c5_283, %c1_284, %c0_285, %c0_286] : memref<6x2x32x32xbf16, #tpu.memory_space<vmem>>, vector<1x1x32x32xbf16>
    %531 = vector.shape_cast %530 : vector<1x1x32x32xbf16> to vector<32x32xbf16>
    %c5_287 = arith.constant 5 : index
    %c1_288 = arith.constant 1 : index
    %c0_289 = arith.constant 0 : index
    %c0_290 = arith.constant 0 : index
    %532 = vector.load %arg9[%c5_287, %c1_288, %c0_289, %c0_290] : memref<6x2x32x32xbf16, #tpu.memory_space<vmem>>, vector<1x1x32x32xbf16>
    %533 = vector.shape_cast %532 : vector<1x1x32x32xbf16> to vector<32x32xbf16>
    %cst_291 = arith.constant dense<0.000000e+00> : vector<32x128xf32>
    %534 = tpu.matmul %531, %529, %cst_291 {dimension_numbers = #tpu.dot_dimension_numbers<[1], [0], [0], [1], [0, 0, 1, 1], [], []>} : vector<32x32xbf16>, vector<32x128xbf16>, vector<32x128xf32> -> vector<32x128xf32>
    %cst_292 = arith.constant dense<0.000000e+00> : vector<32x128xf32>
    %535 = tpu.matmul %533, %529, %cst_292 {dimension_numbers = #tpu.dot_dimension_numbers<[1], [0], [0], [1], [0, 0, 1, 1], [], []>} : vector<32x32xbf16>, vector<32x128xbf16>, vector<32x128xf32> -> vector<32x128xf32>
    %536 = arith.negf %535 : vector<32x128xf32>
    %537 = math.exp %536 : vector<32x128xf32>
    %cst_293 = arith.constant 1.000000e+00 : f32
    %538 = vector.broadcast %cst_293 : f32 to vector<32x128xf32>
    %539 = arith.addf %538, %537 : vector<32x128xf32>
    %540 = arith.divf %538, %539 : vector<32x128xf32>
    %541 = arith.mulf %534, %540 : vector<32x128xf32>
    %542 = arith.addf %528, %541 : vector<32x128xf32>
    %cst_294 = arith.constant 0.707106769 : f32
    %543 = vector.broadcast %cst_294 : f32 to vector<32x128xf32>
    %544 = arith.mulf %542, %543 : vector<32x128xf32>
    %cst_295 = arith.constant 0.000000e+00 : f32
    %545 = vector.broadcast %cst_295 : f32 to vector<32x128xf32>
    %546 = arith.maximumf %544, %545 : vector<32x128xf32>
    %547 = arith.addf %453, %546 : vector<32x128xf32>
    %c0_296 = arith.constant 0 : index
    %c0_297 = arith.constant 0 : index
    %548 = vector.load %arg11[%c0_296, %c0_297] : memref<8x32xf32, #tpu.memory_space<vmem>>, vector<8x32xf32>
    %cst_298 = arith.constant dense<0.000000e+00> : vector<8x128xf32>
    %549 = tpu.matmul %548, %547, %cst_298 {dimension_numbers = #tpu.dot_dimension_numbers<[1], [0], [0], [1], [0, 0, 1, 1], [], []>} : vector<8x32xf32>, vector<32x128xf32>, vector<8x128xf32> -> vector<8x128xf32>
    %c0_299 = arith.constant 0 : index
    %c0_300 = arith.constant 0 : index
    %550 = vector.load %arg12[%c0_299, %c0_300] : memref<8x1xf32, #tpu.memory_space<vmem>>, vector<8x1xf32>
    %551 = vector.broadcast %550 : vector<8x1xf32> to vector<8x128xf32>
    %552 = arith.addf %549, %551 : vector<8x128xf32>
    %c0_301 = arith.constant 0 : index
    %c0_302 = arith.constant 0 : index
    %553 = vector.load %arg13[%c0_301, %c0_302] : memref<8x128xf32, #tpu.memory_space<vmem>>, vector<8x128xf32>
    tpu.vector_store %arg13[%c0_301, %c0_302], %552 {strides = array<i32>} : memref<8x128xf32, #tpu.memory_space<vmem>>, vector<8x128xf32>,
    return
  }
  func.func @transform_0(%arg0: i32) -> (i32, i32) {
    %c0_i32 = arith.constant 0 : i32
    %c0_i32_0 = arith.constant 0 : i32
    return %c0_i32, %arg0 : i32, i32
  }
  func.func @transform_1(%arg0: i32) -> (i32, i32) {
    %c0_i32 = arith.constant 0 : i32
    %c0_i32_0 = arith.constant 0 : i32
    %c0_i32_1 = arith.constant 0 : i32
    return %c0_i32, %c0_i32_0 : i32, i32
  }
  func.func @transform_2(%arg0: i32) -> (i32, i32) {
    %c0_i32 = arith.constant 0 : i32
    %c0_i32_0 = arith.constant 0 : i32
    %c0_i32_1 = arith.constant 0 : i32
    return %c0_i32, %c0_i32_0 : i32, i32
  }
  func.func @transform_3(%arg0: i32) -> (i32, i32) {
    %c0_i32 = arith.constant 0 : i32
    %c0_i32_0 = arith.constant 0 : i32
    %c0_i32_1 = arith.constant 0 : i32
    return %c0_i32, %c0_i32_0 : i32, i32
  }
  func.func @transform_4(%arg0: i32) -> (i32, i32) {
    %c0_i32 = arith.constant 0 : i32
    %c0_i32_0 = arith.constant 0 : i32
    %c0_i32_1 = arith.constant 0 : i32
    return %c0_i32, %c0_i32_0 : i32, i32
  }
  func.func @transform_5(%arg0: i32) -> (i32, i32) {
    %c0_i32 = arith.constant 0 : i32
    %c0_i32_0 = arith.constant 0 : i32
    %c0_i32_1 = arith.constant 0 : i32
    return %c0_i32, %c0_i32_0 : i32, i32
  }
  func.func @transform_6(%arg0: i32) -> (i32, i32) {
    %c0_i32 = arith.constant 0 : i32
    %c0_i32_0 = arith.constant 0 : i32
    %c0_i32_1 = arith.constant 0 : i32
    return %c0_i32, %c0_i32_0 : i32, i32
  }
  func.func @transform_7(%arg0: i32) -> (i32, i32, i32, i32) {
    %c0_i32 = arith.constant 0 : i32
    %c0_i32_0 = arith.constant 0 : i32
    %c0_i32_1 = arith.constant 0 : i32
    %c0_i32_2 = arith.constant 0 : i32
    %c0_i32_3 = arith.constant 0 : i32
    return %c0_i32, %c0_i32_0, %c0_i32_1, %c0_i32_2 : i32, i32, i32, i32
  }
  func.func @transform_8(%arg0: i32) -> (i32, i32, i32, i32) {
    %c0_i32 = arith.constant 0 : i32
    %c0_i32_0 = arith.constant 0 : i32
    %c0_i32_1 = arith.constant 0 : i32
    %c0_i32_2 = arith.constant 0 : i32
    %c0_i32_3 = arith.constant 0 : i32
    return %c0_i32, %c0_i32_0, %c0_i32_1, %c0_i32_2 : i32, i32, i32, i32
  }
  func.func @transform_9(%arg0: i32) -> (i32, i32, i32) {
    %c0_i32 = arith.constant 0 : i32
    %c0_i32_0 = arith.constant 0 : i32
    %c0_i32_1 = arith.constant 0 : i32
    %c0_i32_2 = arith.constant 0 : i32
    return %c0_i32, %c0_i32_0, %c0_i32_1 : i32, i32, i32
  }
  func.func @transform_10(%arg0: i32) -> (i32, i32) {
    %c0_i32 = arith.constant 0 : i32
    %c0_i32_0 = arith.constant 0 : i32
    %c0_i32_1 = arith.constant 0 : i32
    return %c0_i32, %c0_i32_0 : i32, i32
  }
  func.func @transform_11(%arg0: i32) -> (i32, i32) {
    %c0_i32 = arith.constant 0 : i32
    %c0_i32_0 = arith.constant 0 : i32
    %c0_i32_1 = arith.constant 0 : i32
    return %c0_i32, %c0_i32_0 : i32, i32
  }
  func.func @transform_12(%arg0: i32) -> (i32, i32) {
    %c0_i32 = arith.constant 0 : i32
    %c0_i32_0 = arith.constant 0 : i32
    return %c0_i32, %arg0 : i32, i32
  }
}

</mosaic_0001>

<llo_original>
// kernel: tpu_custom_call.1
$region0: #{tpu_custom_call.1}
  #allocation0 [shape = 'u32[]', space=smem, size = 0x4, offset = 0x4, fixed_abs, tag = 'smem constant byte address 0x4 - core index']
  #allocation1 [shape = 'u32[144,128]{1,0:T(1,128)}', space=vmem, size = 0x12000, scoped, tag = 'internal scratch']
  %s0 = inlined_call_operand.hbm [shape: f32[32,256], index: 0, kind: input, shape index: {}]
  %s1 = inlined_call_operand.vmem [shape: f32[32,1], index: 1, kind: input, shape index: {}]
  %s2 = inlined_call_operand.vmem [shape: f32[32,1], index: 2, kind: input, shape index: {}]
  %s3 = inlined_call_operand.vmem [shape: bf16[32,32], index: 3, kind: input, shape index: {}]
  %s4 = inlined_call_operand.hbm [shape: bf16[32,32], index: 4, kind: input, shape index: {}]
  %s5 = inlined_call_operand.hbm [shape: bf16[32,32], index: 5, kind: input, shape index: {}]
  %s6 = inlined_call_operand.hbm [shape: bf16[32,32], index: 6, kind: input, shape index: {}]
  %s7 = inlined_call_operand.hbm [shape: bf16[6,2,32,32], index: 7, kind: input, shape index: {}]
  %s8 = inlined_call_operand.hbm [shape: bf16[6,2,32,32], index: 8, kind: input, shape index: {}]
  %s9 = inlined_call_operand.vmem [shape: bf16[5,32,32], index: 9, kind: input, shape index: {}]
  %s10 = inlined_call_operand.vmem [shape: f32[8,32], index: 10, kind: input, shape index: {}]
  %s11 = inlined_call_operand.vmem [shape: f32[8,1], index: 11, kind: input, shape index: {}]
  %s12 = inlined_call_operand.hbm [shape: f32[8,256], index: 12, kind: output, shape index: {}]
  %s13 = sld [smem:[#allocation0]]
  $region140: #{tpu_custom_call.1} parent=0
    _
  %s15 = ssub.s32 1, %s13
  %s16 = scalar_select 0, %s15, %s13
  $region1: #{tpu_custom_call.1} parent=0
    #allocation2 [shape = 'u8[32768]{0}', space=vmem, size = 0x8000, scoped, tag = 'input window, operand 0']
    #allocation3 [shape = 's32[2]{0}', space=sflag, size = 0x8, scoped, tag = 'scoped memory for tpu_custom_call.1']
    #allocation4 [shape = 's32[2]{0}', space=sflag, size = 0x8, scoped, tag = 'scoped memory for tpu_custom_call.1']
    #allocation5 [shape = 'u8[8192]{0}', space=vmem, size = 0x2000, scoped, tag = 'input window, operand 4, single buffered']
    #allocation6 [shape = 's32[1]{0}', space=sflag, size = 0x4, scoped, tag = 'scoped memory for tpu_custom_call.1']
    #allocation7 [shape = 'u8[8192]{0}', space=vmem, size = 0x2000, scoped, tag = 'input window, operand 5, single buffered']
    #allocation8 [shape = 'u8[8192]{0}', space=vmem, size = 0x2000, scoped, tag = 'input window, operand 6, single buffered']
    #allocation9 [shape = 's32[1]{0}', space=sflag, size = 0x4, scoped, tag = 'scoped memory for tpu_custom_call.1']
    #allocation10 [shape = 'u8[98304]{0}', space=vmem, size = 0x18000, scoped, tag = 'input window, operand 7, single buffered']
    #allocation11 [shape = 'u8[98304]{0}', space=vmem, size = 0x18000, scoped, tag = 'input window, operand 8, single buffered']
    #allocation12 [shape = 's32[1]{0}', space=sflag, size = 0x4, scoped, tag = 'scoped memory for tpu_custom_call.1']
    #allocation13 [shape = 'u8[8192]{0}', space=vmem, size = 0x2000, scoped, tag = 'output window, operand 0']
    %17 = vsyncpa [#allocation3], 0
    %s18 = scalar_lea.sflag [#allocation3], 1
    %19 = vsyncpa %s18, 0
    %20 = vsyncpa [#allocation6], 0
    %21 = vsyncpa [#allocation9], 0
    %22 = vsyncpa [#allocation12], 0
    %23 = vsyncpa [#allocation4], 0
    %s24 = scalar_lea.sflag [#allocation4], 1
    %25 = vsyncpa %s24, 0
    loop: start=0, step=1, limit=4
    $region2: #{tpu_custom_call.1} parent=1 // loop_pre_header
      _
    $region3: #{tpu_custom_call.1} parent=1 // loop_header
      %s27 = sphi 0, %s31
      %p28 = scmp.ge.s32.totalorder %s27, 4
      %s37 = sphi 0, %s39
      %s40 = sphi 0, %s37
      %s41 = sphi 0, %s40
      %s57 = sphi 0, %s41
      %s61 = sphi 0, %s61
      %s63 = sphi 0, %s61
      %s64 = sphi 0, %s63
      %s78 = sphi 0, %s64
      %s82 = sphi 0, %s82
      %s84 = sphi 0, %s82
      %s85 = sphi 0, %s84
      %s99 = sphi 0, %s85
      %s103 = sphi 0, %s103
      %s105 = sphi 0, %s103
      %s106 = sphi 0, %s105
      %s120 = sphi 0, %s106
      %s124 = sphi 0, %s124
      %s126 = sphi 0, %s124
      %s127 = sphi 0, %s126
      %s141 = sphi 0, %s127
      %s145 = sphi 0, %s145
      %s147 = sphi 0, %s145
      %s148 = sphi 0, %s147
      %s162 = sphi 0, %s148
      %s166 = sphi 0, %s166
      %s168 = sphi 0, %s166
      %s169 = sphi 0, %s168
      %s183 = sphi 0, %s169
      %s187 = sphi 0, %s187
      %s189 = sphi 0, %s187
      %s190 = sphi 0, %s189
      %s204 = sphi 0, %s190
      %s208 = sphi 0, %s208
      %s210 = sphi 0, %s208
      %s211 = sphi 0, %s210
      %s225 = sphi 0, %s211
      %s229 = sphi 0, %s229
      %s231 = sphi 0, %s229
      %s232 = sphi 0, %s231
      %s246 = sphi 0, %s232
      %s250 = sphi 0, %s250
      %s252 = sphi 0, %s250
      %s253 = sphi 0, %s252
      %s267 = sphi 0, %s253
      %s271 = sphi 0, %s271
      %s273 = sphi 0, %s271
      %s274 = sphi 0, %s273
      %s288 = sphi 0, %s274
      %s294 = sphi 0, %s296
      %s297 = sphi 0, %s294
      %s298 = sphi 0, %s297
      %s314 = sphi 0, %s298
    $region4: #{tpu_custom_call.1} parent=1 // loop_header_branch
      %30 = sbr.rel (%p28) target = $region8
    $region5: #{tpu_custom_call.1} parent=1 // loop_body
      %s32 = ssub.s32 %s27, 1
      %s33 = ssub.s32 %s27, 2
      %s34 = sadd.s32 %s27, 1
      %s35 = ssub.s32 %s27, %s34
      %p36 = scmp.eq.s32.totalorder %s35, 0
      %s38 = sadd.s32 %s37, 1
      %s39 = scalar_select %p36, %s37, %s38
      %p42 = pneg %p36
      %p43 = scmp.eq.s32.totalorder %s27, 1
      %p44 = por %p42, %p43
      %p45 = scmp.ne.s32.totalorder %s37, %s40
      %p46 = scmp.eq.s32.totalorder %s27, 0
      %p47 = por %p45, %p46
      %p48 = scmp.ne.s32.totalorder %s37, %s40
      %p49 = scmp.eq.s32.totalorder %s32, 1
      %p50 = por %p48, %p49
      %p51 = scmp.ne.s32.totalorder %s40, %s41
      %p52 = scmp.eq.s32.totalorder %s32, 0
      %p53 = por %p51, %p52
      %p54 = scmp.ne.s32.totalorder %s40, %s41
      %p55 = scmp.eq.s32.totalorder %s33, 1
      %p56 = por %p54, %p55
      %p58 = scmp.ne.s32.totalorder %s41, %s57
      %p59 = scmp.eq.s32.totalorder %s33, 0
      %p60 = por %p58, %p59
      %s62 = sadd.s32 %s61, 1
      %p65 = scmp.eq.s32.totalorder %s27, 1
      %p66 = scmp.ne.s32.totalorder %s61, %s63
      %p67 = scmp.eq.s32.totalorder %s27, 0
      %p68 = por %p66, %p67
      %p69 = scmp.ne.s32.totalorder %s61, %s63
      %p70 = scmp.eq.s32.totalorder %s32, 1
      %p71 = por %p69, %p70
      %p72 = scmp.ne.s32.totalorder %s63, %s64
      %p73 = scmp.eq.s32.totalorder %s32, 0
      %p74 = por %p72, %p73
      %p75 = scmp.ne.s32.totalorder %s63, %s64
      %p76 = scmp.eq.s32.totalorder %s33, 1
      %p77 = por %p75, %p76
      %p79 = scmp.ne.s32.totalorder %s64, %s78
      %p80 = scmp.eq.s32.totalorder %s33, 0
      %p81 = por %p79, %p80
      %s83 = sadd.s32 %s82, 1
      %p86 = scmp.eq.s32.totalorder %s27, 1
      %p87 = scmp.ne.s32.totalorder %s82, %s84
      %p88 = scmp.eq.s32.totalorder %s27, 0
      %p89 = por %p87, %p88
      %p90 = scmp.ne.s32.totalorder %s82, %s84
      %p91 = scmp.eq.s32.totalorder %s32, 1
      %p92 = por %p90, %p91
      %p93 = scmp.ne.s32.totalorder %s84, %s85
      %p94 = scmp.eq.s32.totalorder %s32, 0
      %p95 = por %p93, %p94
      %p96 = scmp.ne.s32.totalorder %s84, %s85
      %p97 = scmp.eq.s32.totalorder %s33, 1
      %p98 = por %p96, %p97
      %p100 = scmp.ne.s32.totalorder %s85, %s99
      %p101 = scmp.eq.s32.totalorder %s33, 0
      %p102 = por %p100, %p101
      %s104 = sadd.s32 %s103, 1
      %p107 = scmp.eq.s32.totalorder %s27, 1
      %p108 = scmp.ne.s32.totalorder %s103, %s105
      %p109 = scmp.eq.s32.totalorder %s27, 0
      %p110 = por %p108, %p109
      %p111 = scmp.ne.s32.totalorder %s103, %s105
      %p112 = scmp.eq.s32.totalorder %s32, 1
      %p113 = por %p111, %p112
      %p114 = scmp.ne.s32.totalorder %s105, %s106
      %p115 = scmp.eq.s32.totalorder %s32, 0
      %p116 = por %p114, %p115
      %p117 = scmp.ne.s32.totalorder %s105, %s106
      %p118 = scmp.eq.s32.totalorder %s33, 1
      %p119 = por %p117, %p118
      %p121 = scmp.ne.s32.totalorder %s106, %s120
      %p122 = scmp.eq.s32.totalorder %s33, 0
      %p123 = por %p121, %p122
      %s125 = sadd.s32 %s124, 1
      %p128 = scmp.eq.s32.totalorder %s27, 1
      %p129 = scmp.ne.s32.totalorder %s124, %s126
      %p130 = scmp.eq.s32.totalorder %s27, 0
      %p131 = por %p129, %p130
      %p132 = scmp.ne.s32.totalorder %s124, %s126
      %p133 = scmp.eq.s32.totalorder %s32, 1
      %p134 = por %p132, %p133
      %p135 = scmp.ne.s32.totalorder %s126, %s127
      %p136 = scmp.eq.s32.totalorder %s32, 0
      %p137 = por %p135, %p136
      %p138 = scmp.ne.s32.totalorder %s126, %s127
      %p139 = scmp.eq.s32.totalorder %s33, 1
      %p140 = por %p138, %p139
      %p142 = scmp.ne.s32.totalorder %s127, %s141
      %p143 = scmp.eq.s32.totalorder %s33, 0
      %p144 = por %p142, %p143
      %s146 = sadd.s32 %s145, 1
      %p149 = scmp.eq.s32.totalorder %s27, 1
      %p150 = scmp.ne.s32.totalorder %s145, %s147
      %p151 = scmp.eq.s32.totalorder %s27, 0
      %p152 = por %p150, %p151
      %p153 = scmp.ne.s32.totalorder %s145, %s147
      %p154 = scmp.eq.s32.totalorder %s32, 1
      %p155 = por %p153, %p154
      %p156 = scmp.ne.s32.totalorder %s147, %s148
      %p157 = scmp.eq.s32.totalorder %s32, 0
      %p158 = por %p156, %p157
      %p159 = scmp.ne.s32.totalorder %s147, %s148
      %p160 = scmp.eq.s32.totalorder %s33, 1
      %p161 = por %p159, %p160
      %p163 = scmp.ne.s32.totalorder %s148, %s162
      %p164 = scmp.eq.s32.totalorder %s33, 0
      %p165 = por %p163, %p164
      %s167 = sadd.s32 %s166, 1
      %p170 = scmp.eq.s32.totalorder %s27, 1
      %p171 = scmp.ne.s32.totalorder %s166, %s168
      %p172 = scmp.eq.s32.totalorder %s27, 0
      %p173 = por %p171, %p172
      %p174 = scmp.ne.s32.totalorder %s166, %s168
      %p175 = scmp.eq.s32.totalorder %s32, 1
      %p176 = por %p174, %p175
      %p177 = scmp.ne.s32.totalorder %s168, %s169
      %p178 = scmp.eq.s32.totalorder %s32, 0
      %p179 = por %p177, %p178
      %p180 = scmp.ne.s32.totalorder %s168, %s169
      %p181 = scmp.eq.s32.totalorder %s33, 1
      %p182 = por %p180, %p181
      %p184 = scmp.ne.s32.totalorder %s169, %s183
      %p185 = scmp.eq.s32.totalorder %s33, 0
      %p186 = por %p184, %p185
      %s188 = sadd.s32 %s187, 1
      %p191 = scmp.eq.s32.totalorder %s27, 1
      %p192 = scmp.ne.s32.totalorder %s187, %s189
      %p193 = scmp.eq.s32.totalorder %s27, 0
      %p194 = por %p192, %p193
      %p195 = scmp.ne.s32.totalorder %s187, %s189
      %p196 = scmp.eq.s32.totalorder %s32, 1
      %p197 = por %p195, %p196
      %p198 = scmp.ne.s32.totalorder %s189, %s190
      %p199 = scmp.eq.s32.totalorder %s32, 0
      %p200 = por %p198, %p199
      %p201 = scmp.ne.s32.totalorder %s189, %s190
      %p202 = scmp.eq.s32.totalorder %s33, 1
      %p203 = por %p201, %p202
      %p205 = scmp.ne.s32.totalorder %s190, %s204
      %p206 = scmp.eq.s32.totalorder %s33, 0
      %p207 = por %p205, %p206
      %s209 = sadd.s32 %s208, 1
      %p212 = scmp.eq.s32.totalorder %s27, 1
      %p213 = scmp.ne.s32.totalorder %s208, %s210
      %p214 = scmp.eq.s32.totalorder %s27, 0
      %p215 = por %p213, %p214
      %p216 = scmp.ne.s32.totalorder %s208, %s210
      %p217 = scmp.eq.s32.totalorder %s32, 1
      %p218 = por %p216, %p217
      %p219 = scmp.ne.s32.totalorder %s210, %s211
      %p220 = scmp.eq.s32.totalorder %s32, 0
      %p221 = por %p219, %p220
      %p222 = scmp.ne.s32.totalorder %s210, %s211
      %p223 = scmp.eq.s32.totalorder %s33, 1
      %p224 = por %p222, %p223
      %p226 = scmp.ne.s32.totalorder %s211, %s225
      %p227 = scmp.eq.s32.totalorder %s33, 0
      %p228 = por %p226, %p227
      %s230 = sadd.s32 %s229, 1
      %p233 = scmp.eq.s32.totalorder %s27, 1
      %p234 = scmp.ne.s32.totalorder %s229, %s231
      %p235 = scmp.eq.s32.totalorder %s27, 0
      %p236 = por %p234, %p235
      %p237 = scmp.ne.s32.totalorder %s229, %s231
      %p238 = scmp.eq.s32.totalorder %s32, 1
      %p239 = por %p237, %p238
      %p240 = scmp.ne.s32.totalorder %s231, %s232
      %p241 = scmp.eq.s32.totalorder %s32, 0
      %p242 = por %p240, %p241
      %p243 = scmp.ne.s32.totalorder %s231, %s232
      %p244 = scmp.eq.s32.totalorder %s33, 1
      %p245 = por %p243, %p244
      %p247 = scmp.ne.s32.totalorder %s232, %s246
      %p248 = scmp.eq.s32.totalorder %s33, 0
      %p249 = por %p247, %p248
      %s251 = sadd.s32 %s250, 1
      %p254 = scmp.eq.s32.totalorder %s27, 1
      %p255 = scmp.ne.s32.totalorder %s250, %s252
      %p256 = scmp.eq.s32.totalorder %s27, 0
      %p257 = por %p255, %p256
      %p258 = scmp.ne.s32.totalorder %s250, %s252
      %p259 = scmp.eq.s32.totalorder %s32, 1
      %p260 = por %p258, %p259
      %p261 = scmp.ne.s32.totalorder %s252, %s253
      %p262 = scmp.eq.s32.totalorder %s32, 0
      %p263 = por %p261, %p262
      %p264 = scmp.ne.s32.totalorder %s252, %s253
      %p265 = scmp.eq.s32.totalorder %s33, 1
      %p266 = por %p264, %p265
      %p268 = scmp.ne.s32.totalorder %s253, %s267
      %p269 = scmp.eq.s32.totalorder %s33, 0
      %p270 = por %p268, %p269
      %s272 = sadd.s32 %s271, 1
      %p275 = scmp.eq.s32.totalorder %s27, 1
      %p276 = scmp.ne.s32.totalorder %s271, %s273
      %p277 = scmp.eq.s32.totalorder %s27, 0
      %p278 = por %p276, %p277
      %p279 = scmp.ne.s32.totalorder %s271, %s273
      %p280 = scmp.eq.s32.totalorder %s32, 1
      %p281 = por %p279, %p280
      %p282 = scmp.ne.s32.totalorder %s273, %s274
      %p283 = scmp.eq.s32.totalorder %s32, 0
      %p284 = por %p282, %p283
      %p285 = scmp.ne.s32.totalorder %s273, %s274
      %p286 = scmp.eq.s32.totalorder %s33, 1
      %p287 = por %p285, %p286
      %p289 = scmp.ne.s32.totalorder %s274, %s288
      %p290 = scmp.eq.s32.totalorder %s33, 0
      %p291 = por %p289, %p290
      %s292 = ssub.s32 %s27, %s34
      %p293 = scmp.eq.s32.totalorder %s292, 0
      %s295 = sadd.s32 %s294, 1
      %s296 = scalar_select %p293, %s294, %s295
      %p299 = pneg %p293
      %p300 = scmp.eq.s32.totalorder %s27, 1
      %p301 = por %p299, %p300
      %p302 = scmp.ne.s32.totalorder %s294, %s297
      %p303 = scmp.eq.s32.totalorder %s27, 0
      %p304 = por %p302, %p303
      %p305 = scmp.ne.s32.totalorder %s294, %s297
      %p306 = scmp.eq.s32.totalorder %s32, 1
      %p307 = por %p305, %p306
      %p308 = scmp.ne.s32.totalorder %s297, %s298
      %p309 = scmp.eq.s32.totalorder %s32, 0
      %p310 = por %p308, %p309
      %p311 = scmp.ne.s32.totalorder %s297, %s298
      %p312 = scmp.eq.s32.totalorder %s33, 1
      %p313 = por %p311, %p312
      %p315 = scmp.ne.s32.totalorder %s298, %s314
      %p316 = scmp.eq.s32.totalorder %s33, 0
      %p317 = por %p315, %p316
      %p318 = scmp.le.s32.totalorder 1, %s27
      %p319 = scmp.lt.s32.totalorder %s27, 3
      %p320 = pnand %p318, %p319
      %p321 = pneg %p320
      // Predicated region
      $region9: #{tpu_custom_call.1} parent=5 // pred_check
        _
      $region10: #{tpu_custom_call.1} parent=5 // pred_check_branch
        %323 = sbr.rel (%p320) target = $region12
      $region11: #{tpu_custom_call.1} parent=5 // pred_region
        %s324 = ssub.s32 %s27, 1
        // Predicated region
        $region13: #{tpu_custom_call.1} parent=11 // pred_check
          %p325 = pneg %p74
        $region14: #{tpu_custom_call.1} parent=11 // pred_check_branch
          %327 = sbr.rel (%p325) target = $region16
        $region15: #{tpu_custom_call.1} parent=11 // pred_region
          _
        $region16: #{tpu_custom_call.1} parent=11 // pred_fallthru
          _
        // Predicated region
        $region17: #{tpu_custom_call.1} parent=11 // pred_check
          %p328 = pneg %p95
        $region18: #{tpu_custom_call.1} parent=11 // pred_check_branch
          %330 = sbr.rel (%p328) target = $region20
        $region19: #{tpu_custom_call.1} parent=11 // pred_region
          _
        $region20: #{tpu_custom_call.1} parent=11 // pred_fallthru
          _
        // Predicated region
        $region21: #{tpu_custom_call.1} parent=11 // pred_check
          %p331 = pneg %p116
        $region22: #{tpu_custom_call.1} parent=11 // pred_check_branch
          %333 = sbr.rel (%p331) target = $region24
        $region23: #{tpu_custom_call.1} parent=11 // pred_region
          _
        $region24: #{tpu_custom_call.1} parent=11 // pred_fallthru
          _
        // Predicated region
        $region25: #{tpu_custom_call.1} parent=11 // pred_check
          %p334 = pneg %p137
        $region26: #{tpu_custom_call.1} parent=11 // pred_check_branch
          %336 = sbr.rel (%p334) target = $region28
        $region27: #{tpu_custom_call.1} parent=11 // pred_region
          %s338 = ssub.s32 256, 256
          %339 = vsyncadd [#allocation6], %s338
          %s340 = sshll.u32 [#allocation5], 4
          %s341 = int_to_ptr.vmem [resolvable:$true] %s340
          %346 = dma.hbm_to_vmem [thread:$0]  %s4, 256, %s341, [#allocation6], 64, 64, 4
        $region28: #{tpu_custom_call.1} parent=11 // pred_fallthru
          _
        // Predicated region
        $region29: #{tpu_custom_call.1} parent=11 // pred_check
          %p347 = pneg %p158
        $region30: #{tpu_custom_call.1} parent=11 // pred_check_branch
          %349 = sbr.rel (%p347) target = $region32
        $region31: #{tpu_custom_call.1} parent=11 // pred_region
          %s351 = ssub.s32 256, 256
          %352 = vsyncadd [#allocation6], %s351
          %s353 = sshll.u32 [#allocation7], 4
          %s354 = int_to_ptr.vmem [resolvable:$true] %s353
          %359 = dma.hbm_to_vmem [thread:$0]  %s5, 256, %s354, [#allocation6], 64, 64, 4
        $region32: #{tpu_custom_call.1} parent=11 // pred_fallthru
          _
        // Predicated region
        $region33: #{tpu_custom_call.1} parent=11 // pred_check
          %p360 = pneg %p179
        $region34: #{tpu_custom_call.1} parent=11 // pred_check_branch
          %362 = sbr.rel (%p360) target = $region36
        $region35: #{tpu_custom_call.1} parent=11 // pred_region
          %s364 = ssub.s32 256, 256
          %365 = vsyncadd [#allocation9], %s364
          %s366 = sshll.u32 [#allocation8], 4
          %s367 = int_to_ptr.vmem [resolvable:$true] %s366
          %372 = dma.hbm_to_vmem [thread:$0]  %s6, 256, %s367, [#allocation9], 64, 64, 4
        $region36: #{tpu_custom_call.1} parent=11 // pred_fallthru
          _
        // Predicated region
        $region37: #{tpu_custom_call.1} parent=11 // pred_check
          %p373 = pneg %p200
        $region38: #{tpu_custom_call.1} parent=11 // pred_check_branch
          %375 = sbr.rel (%p373) target = $region40
        $region39: #{tpu_custom_call.1} parent=11 // pred_region
          %s377 = ssub.s32 3072, 3072
          %378 = vsyncadd [#allocation9], %s377
          %s379 = sshll.u32 [#allocation10], 4
          %s380 = int_to_ptr.vmem [resolvable:$true] %s379
          %385 = dma.hbm_to_vmem [thread:$0]  %s7, 3072, %s380, [#allocation9], 64, 64, 4
        $region40: #{tpu_custom_call.1} parent=11 // pred_fallthru
          _
        // Predicated region
        $region41: #{tpu_custom_call.1} parent=11 // pred_check
          %p386 = pneg %p221
        $region42: #{tpu_custom_call.1} parent=11 // pred_check_branch
          %388 = sbr.rel (%p386) target = $region44
        $region43: #{tpu_custom_call.1} parent=11 // pred_region
          %s390 = ssub.s32 3072, 3072
          %391 = vsyncadd [#allocation12], %s390
          %s392 = sshll.u32 [#allocation11], 4
          %s393 = int_to_ptr.vmem [resolvable:$true] %s392
          %398 = dma.hbm_to_vmem [thread:$0]  %s8, 3072, %s393, [#allocation12], 64, 64, 4
        $region44: #{tpu_custom_call.1} parent=11 // pred_fallthru
          _
        // Predicated region
        $region45: #{tpu_custom_call.1} parent=11 // pred_check
          %p399 = pneg %p242
        $region46: #{tpu_custom_call.1} parent=11 // pred_check_branch
          %401 = sbr.rel (%p399) target = $region48
        $region47: #{tpu_custom_call.1} parent=11 // pred_region
          _
        $region48: #{tpu_custom_call.1} parent=11 // pred_fallthru
          _
        // Predicated region
        $region49: #{tpu_custom_call.1} parent=11 // pred_check
          %p402 = pneg %p263
        $region50: #{tpu_custom_call.1} parent=11 // pred_check_branch
          %404 = sbr.rel (%p402) target = $region52
        $region51: #{tpu_custom_call.1} parent=11 // pred_region
          _
        $region52: #{tpu_custom_call.1} parent=11 // pred_fallthru
          _
        // Predicated region
        $region53: #{tpu_custom_call.1} parent=11 // pred_check
          %p405 = pneg %p284
        $region54: #{tpu_custom_call.1} parent=11 // pred_check_branch
          %407 = sbr.rel (%p405) target = $region56
        $region55: #{tpu_custom_call.1} parent=11 // pred_region
          _
        $region56: #{tpu_custom_call.1} parent=11 // pred_fallthru
          _
      $region12: #{tpu_custom_call.1} parent=5 // pred_fallthru
        _
      %p408 = scmp.lt.s32.totalorder %s27, 2
      // Predicated region
      $region57: #{tpu_custom_call.1} parent=5 // pred_check
        %p409 = pneg %p408
      $region58: #{tpu_custom_call.1} parent=5 // pred_check_branch
        %411 = sbr.rel (%p409) target = $region60
      $region59: #{tpu_custom_call.1} parent=5 // pred_region
        // Predicated region
        $region61: #{tpu_custom_call.1} parent=59 // pred_check
          %p412 = pneg %p47
        $region62: #{tpu_custom_call.1} parent=59 // pred_check_branch
          %414 = sbr.rel (%p412) target = $region64
        $region63: #{tpu_custom_call.1} parent=59 // pred_region
          %s415 = sand.u32 %s37, 1
          %s416 = scalar_lea.sflag [#allocation3], %s415
          %s417 = sand.u32 %s37, 1
          %s418 = smul.addr %s417, 32
          %s419 = scalar_lea.vmem [#allocation2], %s418
          %s421 = ssub.s32 512, 512
          %422 = vsyncadd %s416, %s421
          %s423 = smul.addr %s27, 128
          %s424 = scalar_lea.hbm %s0, %s423
          %s425 = sshll.u32 %s419, 4
          %s426 = int_to_ptr.vmem [resolvable:$true] %s425
          %431 = dma.hbm_to_vmem [thread:$0]  %s424, 512, %s426, %s416, 256, 128, 8
        $region64: #{tpu_custom_call.1} parent=59 // pred_fallthru
          _
      $region60: #{tpu_custom_call.1} parent=5 // pred_fallthru
        _
      %p432 = scmp.le.s32.totalorder 1, %s27
      %p433 = scmp.lt.s32.totalorder %s27, 3
      %p434 = pnand %p432, %p433
      %p435 = pneg %p434
      // Predicated region
      $region65: #{tpu_custom_call.1} parent=5 // pred_check
        _
      $region66: #{tpu_custom_call.1} parent=5 // pred_check_branch
        %437 = sbr.rel (%p434) target = $region68
      $region67: #{tpu_custom_call.1} parent=5 // pred_region
        %s438 = ssub.s32 %s27, 1
        %s439 = sand.u32 %s40, 1
        %s440 = scalar_lea.sflag [#allocation3], %s439
        %s441 = sand.u32 %s40, 1
        %s442 = smul.addr %s441, 32
        %s443 = scalar_lea.vmem [#allocation2], %s442
        // Predicated region
        $region69: #{tpu_custom_call.1} parent=67 // pred_check
          %p444 = pneg %p53
        $region70: #{tpu_custom_call.1} parent=67 // pred_check_branch
          %446 = sbr.rel (%p444) target = $region72
        $region71: #{tpu_custom_call.1} parent=67 // pred_region
          %447 = dma.done %s440, 512
        $region72: #{tpu_custom_call.1} parent=67 // pred_fallthru
          _
        // Predicated region
        $region73: #{tpu_custom_call.1} parent=67 // pred_check
          %p448 = pneg %p137
        $region74: #{tpu_custom_call.1} parent=67 // pred_check_branch
          %450 = sbr.rel (%p448) target = $region76
        $region75: #{tpu_custom_call.1} parent=67 // pred_region
          %451 = dma.done [#allocation6], 256
        $region76: #{tpu_custom_call.1} parent=67 // pred_fallthru
          _
        // Predicated region
        $region77: #{tpu_custom_call.1} parent=67 // pred_check
          %p452 = pneg %p158
        $region78: #{tpu_custom_call.1} parent=67 // pred_check_branch
          %454 = sbr.rel (%p452) target = $region80
        $region79: #{tpu_custom_call.1} parent=67 // pred_region
          %455 = dma.done [#allocation6], 256
        $region80: #{tpu_custom_call.1} parent=67 // pred_fallthru
          _
        // Predicated region
        $region81: #{tpu_custom_call.1} parent=67 // pred_check
          %p456 = pneg %p179
        $region82: #{tpu_custom_call.1} parent=67 // pred_check_branch
          %458 = sbr.rel (%p456) target = $region84
        $region83: #{tpu_custom_call.1} parent=67 // pred_region
          %459 = dma.done [#allocation9], 256
        $region84: #{tpu_custom_call.1} parent=67 // pred_fallthru
          _
        // Predicated region
        $region85: #{tpu_custom_call.1} parent=67 // pred_check
          %p460 = pneg %p200
        $region86: #{tpu_custom_call.1} parent=67 // pred_check_branch
          %462 = sbr.rel (%p460) target = $region88
        $region87: #{tpu_custom_call.1} parent=67 // pred_region
          %463 = dma.done [#allocation9], 3072
        $region88: #{tpu_custom_call.1} parent=67 // pred_fallthru
          _
        // Predicated region
        $region89: #{tpu_custom_call.1} parent=67 // pred_check
          %p464 = pneg %p221
        $region90: #{tpu_custom_call.1} parent=67 // pred_check_branch
          %466 = sbr.rel (%p464) target = $region92
        $region91: #{tpu_custom_call.1} parent=67 // pred_region
          %467 = dma.done [#allocation12], 3072
        $region92: #{tpu_custom_call.1} parent=67 // pred_fallthru
          _
        %s468 = sand.u32 %s40, 1
        %s469 = scalar_lea.sflag [#allocation3], %s468
        %s470 = sand.u32 %s40, 1
        %s471 = smul.addr %s470, 32
        %s472 = scalar_lea.vmem [#allocation2], %s471
        %p473 = pneg %p53
        %p474 = pneg %p50
        %p475 = pneg %p74
        %p476 = pneg %p71
        %p477 = pneg %p95
        %p478 = pneg %p92
        %p479 = pneg %p116
        %p480 = pneg %p113
        %p481 = pneg %p137
        %p482 = pneg %p134
        %p483 = pneg %p158
        %p484 = pneg %p155
        %p485 = pneg %p179
        %p486 = pneg %p176
        %p487 = pneg %p200
        %p488 = pneg %p197
        %p489 = pneg %p221
        %p490 = pneg %p218
        %p491 = pneg %p242
        %p492 = pneg %p239
        %p493 = pneg %p263
        %p494 = pneg %p260
        %p495 = pneg %p284
        %p496 = pneg %p281
        %p497 = pneg %p310
        %p498 = pneg %p307
        %s499 = sand.u32 %s297, 1
        %s500 = scalar_lea.sflag [#allocation4], %s499
        %s501 = sand.u32 %s297, 1
        %s502 = smul.addr %s501, 8
        %s503 = scalar_lea.vmem [#allocation13], %s502
        %v505 = vld [vmem:[%s443] sm:$0xff]
        %v506 = vld [vmem:[%s443 + $0x8] sm:$0xff]
        %v507 = vld [vmem:[%s443 + $0x10] sm:$0xff]
        %v508 = vld [vmem:[%s443 + $0x18] sm:$0xff]
        %v509 = vld [vmem:[%s1] sm:$0xff]
        %v510 = vld [vmem:[%s1 + $0x8] sm:$0xff]
        %v511 = vld [vmem:[%s1 + $0x10] sm:$0xff]
        %v512 = vld [vmem:[%s1 + $0x18] sm:$0xff]
        %514 = vset.pattern.permute.xlu0 0
        %515 = vperm.xlu0 %514, %v509
        %v516 = vpop.permute.xlu0 %515
        %519 = vset.pattern.permute.xlu0 0
        %520 = vperm.xlu0 %519, %v510
        %v521 = vpop.permute.xlu0 %520
        %524 = vset.pattern.permute.xlu0 0
        %525 = vperm.xlu0 %524, %v511
        %v526 = vpop.permute.xlu0 %525
        %529 = vset.pattern.permute.xlu0 0
        %530 = vperm.xlu0 %529, %v512
        %v531 = vpop.permute.xlu0 %530
        %v533 = vmul.f32 %v505, %v516
        %v534 = vmul.f32 %v506, %v521
        %v535 = vmul.f32 %v507, %v526
        %v536 = vmul.f32 %v508, %v531
        %v537 = vld [vmem:[%s2] sm:$0xff]
        %v538 = vld [vmem:[%s2 + $0x8] sm:$0xff]
        %v539 = vld [vmem:[%s2 + $0x10] sm:$0xff]
        %v540 = vld [vmem:[%s2 + $0x18] sm:$0xff]
        %542 = vset.pattern.permute.xlu0 0
        %543 = vperm.xlu0 %542, %v537
        %v544 = vpop.permute.xlu0 %543
        %547 = vset.pattern.permute.xlu0 0
        %548 = vperm.xlu0 %547, %v538
        %v549 = vpop.permute.xlu0 %548
        %552 = vset.pattern.permute.xlu0 0
        %553 = vperm.xlu0 %552, %v539
        %v554 = vpop.permute.xlu0 %553
        %557 = vset.pattern.permute.xlu0 0
        %558 = vperm.xlu0 %557, %v540
        %v559 = vpop.permute.xlu0 %558
        %v561 = vadd.f32 %v533, %v544
        %v562 = vadd.f32 %v534, %v549
        %v563 = vadd.f32 %v535, %v554
        %v564 = vadd.f32 %v536, %v559
        %v565 = vpack.c.bf16 %v562, %v561
        %v566 = vpack.c.bf16 %v564, %v563
        %v567 = vld [vmem:[%s3] sm:$0xf]
        %v568 = vld [vmem:[%s3 + $0x4] sm:$0xf]
        %v569 = vld [vmem:[%s3 + $0x8] sm:$0xf]
        %v570 = vld [vmem:[%s3 + $0xc] sm:$0xf]
        %v571 = vld [vmem:[#allocation5] sm:$0xf]
        %v572 = vld [vmem:[#allocation5 + $0x4] sm:$0xf]
        %v573 = vld [vmem:[#allocation5 + $0x8] sm:$0xf]
        %v574 = vld [vmem:[#allocation5 + $0xc] sm:$0xf]
        %v575 = vld [vmem:[#allocation7] sm:$0xf]
        %v576 = vld [vmem:[#allocation7 + $0x4] sm:$0xf]
        %v577 = vld [vmem:[#allocation7 + $0x8] sm:$0xf]
        %v578 = vld [vmem:[#allocation7 + $0xc] sm:$0xf]
        %v579 = vld [vmem:[#allocation8] sm:$0xf]
        %v580 = vld [vmem:[#allocation8 + $0x4] sm:$0xf]
        %v581 = vld [vmem:[#allocation8 + $0x8] sm:$0xf]
        %v582 = vld [vmem:[#allocation8 + $0xc] sm:$0xf]
        %v587 = vunpack.c.l.b16 %v567
        %v588 = vunpack.c.l.b16 %v568
        %v589 = vunpack.c.l.b16 %v569
        %v590 = vunpack.c.l.b16 %v570
        %v591 = vpack.c.b16 %v588, %v587
        %v592 = vpack.c.b16 %v590, %v589
        %vm593 = vcmask 261120
        %v595 = vsel %vm593, %v591, 0
        %v598 = vsel %vm593, %v592, 0
        %600 = vmatprep.subr.bf16.mxu0 0
        %601 = vmatpush1.bf16.msra.mxu0 %v565
        %602 = vmatprep.subr.bf16.mxu0 0
        %603 = vmatpush1.bf16.msra.mxu0 %v566
        %604 = vmatprep.subr.bf16.mxu0 0
        %605 = vmatpush1.bf16.msra.mxu0 0
        %606 = vmatprep.subr.bf16.mxu0 0
        %607 = vmatpush1.bf16.msra.mxu0 0
        %608 = vmatprep.subr.bf16.mxu0 0
        %609 = vmatpush1.bf16.msra.mxu0 0
        %610 = vmatprep.subr.bf16.mxu0 0
        %611 = vmatpush1.bf16.msra.mxu0 0
        %612 = vmatprep.subr.bf16.mxu0 0
        %613 = vmatpush1.bf16.msra.mxu0 0
        %614 = vmatprep.subr.bf16.mxu0 0
        %615 = vmatpush1.bf16.msra.mxu0 0
        %616 = vmatprep.subr.bf16.mxu0 0
        %617 = vmatpush1.bf16.msra.mxu0 0
        %618 = vmatprep.subr.bf16.mxu0 0
        %619 = vmatpush1.bf16.msra.mxu0 0
        %620 = vmatprep.subr.bf16.mxu0 0
        %621 = vmatpush1.bf16.msra.mxu0 0
        %622 = vmatprep.subr.bf16.mxu0 0
        %623 = vmatpush1.bf16.msra.mxu0 0
        %624 = vmatprep.subr.bf16.mxu0 0
        %625 = vmatpush1.bf16.msra.mxu0 0
        %626 = vmatprep.subr.bf16.mxu0 0
        %627 = vmatpush1.bf16.msra.mxu0 0
        %628 = vmatprep.subr.bf16.mxu0 0
        %629 = vmatpush1.bf16.msra.mxu0 0
        %630 = vmatprep.subr.bf16.mxu0 0
        %631 = vmatpush1.bf16.msra.mxu0 0
        %632 = vmatprep.mubr.bf16.mxu0 0
        %633 = vmatmul.mubr.bf16.gmra.mrb[0].mxu0 %v595
        %v634 = vpop.f32.mrb[0].mxu0
        %v635 = vadd.f32 0.0, %v634
        %v636 = vpop.f32.mrb[0].mxu0
        %v637 = vpop.f32.mrb[0].mxu0
        %v638 = vadd.f32 0.0, %v637
        %v639 = vpop.f32.mrb[0].mxu0
        %640 = vmatprep.mubr.bf16.mxu0 0
        %641 = vmatmul.mubr.bf16.gmra.mrb[0].mxu0 %v598
        %v642 = vpop.f32.mrb[0].mxu0
        %v643 = vadd.f32 0.0, %v642
        %v644 = vpop.f32.mrb[0].mxu0
        %v645 = vpop.f32.mrb[0].mxu0
        %v646 = vadd.f32 0.0, %v645
        %v647 = vpop.f32.mrb[0].mxu0
        %648 = vdwg.mxu0
        %v653 = vunpack.c.l.b16 %v571
        %v654 = vunpack.c.l.b16 %v572
        %v655 = vunpack.c.l.b16 %v573
        %v656 = vunpack.c.l.b16 %v574
        %v657 = vpack.c.b16 %v654, %v653
        %v658 = vpack.c.b16 %v656, %v655
        %v660 = vsel %vm593, %v657, 0
        %v663 = vsel %vm593, %v658, 0
        %665 = vmatprep.subr.bf16.mxu0 0
        %666 = vmatpush1.bf16.msra.mxu0 %v565
        %667 = vmatprep.subr.bf16.mxu0 0
        %668 = vmatpush1.bf16.msra.mxu0 %v566
        %669 = vmatprep.subr.bf16.mxu0 0
        %670 = vmatpush1.bf16.msra.mxu0 0
        %671 = vmatprep.subr.bf16.mxu0 0
        %672 = vmatpush1.bf16.msra.mxu0 0
        %673 = vmatprep.subr.bf16.mxu0 0
        %674 = vmatpush1.bf16.msra.mxu0 0
        %675 = vmatprep.subr.bf16.mxu0 0
        %676 = vmatpush1.bf16.msra.mxu0 0
        %677 = vmatprep.subr.bf16.mxu0 0
        %678 = vmatpush1.bf16.msra.mxu0 0
        %679 = vmatprep.subr.bf16.mxu0 0
        %680 = vmatpush1.bf16.msra.mxu0 0
        %681 = vmatprep.subr.bf16.mxu0 0
        %682 = vmatpush1.bf16.msra.mxu0 0
        %683 = vmatprep.subr.bf16.mxu0 0
        %684 = vmatpush1.bf16.msra.mxu0 0
        %685 = vmatprep.subr.bf16.mxu0 0
        %686 = vmatpush1.bf16.msra.mxu0 0
        %687 = vmatprep.subr.bf16.mxu0 0
        %688 = vmatpush1.bf16.msra.mxu0 0
        %689 = vmatprep.subr.bf16.mxu0 0
        %690 = vmatpush1.bf16.msra.mxu0 0
        %691 = vmatprep.subr.bf16.mxu0 0
        %692 = vmatpush1.bf16.msra.mxu0 0
        %693 = vmatprep.subr.bf16.mxu0 0
        %694 = vmatpush1.bf16.msra.mxu0 0
        %695 = vmatprep.subr.bf16.mxu0 0
        %696 = vmatpush1.bf16.msra.mxu0 0
        %697 = vmatprep.mubr.bf16.mxu0 0
        %698 = vmatmul.mubr.bf16.gmra.mrb[0].mxu0 %v660
        %v699 = vpop.f32.mrb[0].mxu0
        %v700 = vadd.f32 0.0, %v699
        %v701 = vpop.f32.mrb[0].mxu0
        %v702 = vpop.f32.mrb[0].mxu0
        %v703 = vadd.f32 0.0, %v702
        %v704 = vpop.f32.mrb[0].mxu0
        %705 = vmatprep.mubr.bf16.mxu0 0
        %706 = vmatmul.mubr.bf16.gmra.mrb[0].mxu0 %v663
        %v707 = vpop.f32.mrb[0].mxu0
        %v708 = vadd.f32 0.0, %v707
        %v709 = vpop.f32.mrb[0].mxu0
        %v710 = vpop.f32.mrb[0].mxu0
        %v711 = vadd.f32 0.0, %v710
        %v712 = vpop.f32.mrb[0].mxu0
        %713 = vdwg.mxu0
        %v714 = vxor.u32 %v700, 2147483648
        %v715 = vxor.u32 %v703, 2147483648
        %v716 = vxor.u32 %v708, 2147483648
        %v717 = vxor.u32 %v711, 2147483648
        %v718 = vmul.f32 %v714, 1.442695
        %v719 = vpow.pop %v718
        %v720 = vmul.f32 %v715, 1.442695
        %v721 = vpow.pop %v720
        %v722 = vmul.f32 %v716, 1.442695
        %v723 = vpow.pop %v722
        %v724 = vmul.f32 %v717, 1.442695
        %v725 = vpow.pop %v724
        %v726 = vadd.f32 %v719, 1.0
        %v727 = vadd.f32 %v721, 1.0
        %v728 = vadd.f32 %v723, 1.0
        %v729 = vadd.f32 %v725, 1.0
        %v730 = vrcp.pop %v726
        %v731 = vmul.f32 1.0, %v730
        %v732 = vrcp.pop %v727
        %v733 = vmul.f32 1.0, %v732
        %v734 = vrcp.pop %v728
        %v735 = vmul.f32 1.0, %v734
        %v736 = vrcp.pop %v729
        %v737 = vmul.f32 1.0, %v736
        %v738 = vmul.f32 %v635, %v731
        %v739 = vmul.f32 %v638, %v733
        %v740 = vmul.f32 %v643, %v735
        %v741 = vmul.f32 %v646, %v737
        %v742 = vpack.c.bf16 %v739, %v738
        %v743 = vpack.c.bf16 %v741, %v740
        %v748 = vunpack.c.l.b16 %v575
        %v749 = vunpack.c.l.b16 %v576
        %v750 = vunpack.c.l.b16 %v577
        %v751 = vunpack.c.l.b16 %v578
        %v752 = vpack.c.b16 %v749, %v748
        %v753 = vpack.c.b16 %v751, %v750
        %v755 = vsel %vm593, %v752, 0
        %v758 = vsel %vm593, %v753, 0
        %760 = vmatprep.subr.bf16.mxu0 0
        %761 = vmatpush1.bf16.msra.mxu0 %v742
        %762 = vmatprep.subr.bf16.mxu0 0
        %763 = vmatpush1.bf16.msra.mxu0 %v743
        %764 = vmatprep.subr.bf16.mxu0 0
        %765 = vmatpush1.bf16.msra.mxu0 0
        %766 = vmatprep.subr.bf16.mxu0 0
        %767 = vmatpush1.bf16.msra.mxu0 0
        %768 = vmatprep.subr.bf16.mxu0 0
        %769 = vmatpush1.bf16.msra.mxu0 0
        %770 = vmatprep.subr.bf16.mxu0 0
        %771 = vmatpush1.bf16.msra.mxu0 0
        %772 = vmatprep.subr.bf16.mxu0 0
        %773 = vmatpush1.bf16.msra.mxu0 0
        %774 = vmatprep.subr.bf16.mxu0 0
        %775 = vmatpush1.bf16.msra.mxu0 0
        %776 = vmatprep.subr.bf16.mxu0 0
        %777 = vmatpush1.bf16.msra.mxu0 0
        %778 = vmatprep.subr.bf16.mxu0 0
        %779 = vmatpush1.bf16.msra.mxu0 0
        %780 = vmatprep.subr.bf16.mxu0 0
        %781 = vmatpush1.bf16.msra.mxu0 0
        %782 = vmatprep.subr.bf16.mxu0 0
        %783 = vmatpush1.bf16.msra.mxu0 0
        %784 = vmatprep.subr.bf16.mxu0 0
        %785 = vmatpush1.bf16.msra.mxu0 0
        %786 = vmatprep.subr.bf16.mxu0 0
        %787 = vmatpush1.bf16.msra.mxu0 0
        %788 = vmatprep.subr.bf16.mxu0 0
        %789 = vmatpush1.bf16.msra.mxu0 0
        %790 = vmatprep.subr.bf16.mxu0 0
        %791 = vmatpush1.bf16.msra.mxu0 0
        %792 = vmatprep.mubr.bf16.mxu0 0
        %793 = vmatmul.mubr.bf16.gmra.mrb[0].mxu0 %v755
        %v794 = vpop.f32.mrb[0].mxu0
        %v795 = vadd.f32 0.0, %v794
        %v796 = vpop.f32.mrb[0].mxu0
        %v797 = vpop.f32.mrb[0].mxu0
        %v798 = vadd.f32 0.0, %v797
        %v799 = vpop.f32.mrb[0].mxu0
        %800 = vmatprep.mubr.bf16.mxu0 0
        %801 = vmatmul.mubr.bf16.gmra.mrb[0].mxu0 %v758
        %v802 = vpop.f32.mrb[0].mxu0
        %v803 = vadd.f32 0.0, %v802
        %v804 = vpop.f32.mrb[0].mxu0
        %v805 = vpop.f32.mrb[0].mxu0
        %v806 = vadd.f32 0.0, %v805
        %v807 = vpop.f32.mrb[0].mxu0
        %808 = vdwg.mxu0
        %v813 = vunpack.c.l.b16 %v579
        %v814 = vunpack.c.l.b16 %v580
        %v815 = vunpack.c.l.b16 %v581
        %v816 = vunpack.c.l.b16 %v582
        %v817 = vpack.c.b16 %v814, %v813
        %v818 = vpack.c.b16 %v816, %v815
        %v820 = vsel %vm593, %v817, 0
        %v823 = vsel %vm593, %v818, 0
        %825 = vmatprep.subr.bf16.mxu0 0
        %826 = vmatpush1.bf16.msra.mxu0 %v742
        %827 = vmatprep.subr.bf16.mxu0 0
        %828 = vmatpush1.bf16.msra.mxu0 %v743
        %829 = vmatprep.subr.bf16.mxu0 0
        %830 = vmatpush1.bf16.msra.mxu0 0
        %831 = vmatprep.subr.bf16.mxu0 0
        %832 = vmatpush1.bf16.msra.mxu0 0
        %833 = vmatprep.subr.bf16.mxu0 0
        %834 = vmatpush1.bf16.msra.mxu0 0
        %835 = vmatprep.subr.bf16.mxu0 0
        %836 = vmatpush1.bf16.msra.mxu0 0
        %837 = vmatprep.subr.bf16.mxu0 0
        %838 = vmatpush1.bf16.msra.mxu0 0
        %839 = vmatprep.subr.bf16.mxu0 0
        %840 = vmatpush1.bf16.msra.mxu0 0
        %841 = vmatprep.subr.bf16.mxu0 0
        %842 = vmatpush1.bf16.msra.mxu0 0
        %843 = vmatprep.subr.bf16.mxu0 0
        %844 = vmatpush1.bf16.msra.mxu0 0
        %845 = vmatprep.subr.bf16.mxu0 0
        %846 = vmatpush1.bf16.msra.mxu0 0
        %847 = vmatprep.subr.bf16.mxu0 0
        %848 = vmatpush1.bf16.msra.mxu0 0
        %849 = vmatprep.subr.bf16.mxu0 0
        %850 = vmatpush1.bf16.msra.mxu0 0
        %851 = vmatprep.subr.bf16.mxu0 0
        %852 = vmatpush1.bf16.msra.mxu0 0
        %853 = vmatprep.subr.bf16.mxu0 0
        %854 = vmatpush1.bf16.msra.mxu0 0
        %855 = vmatprep.subr.bf16.mxu0 0
        %856 = vmatpush1.bf16.msra.mxu0 0
        %857 = vmatprep.mubr.bf16.mxu0 0
        %858 = vmatmul.mubr.bf16.gmra.mrb[0].mxu0 %v820
        %v859 = vpop.f32.mrb[0].mxu0
        %v860 = vadd.f32 0.0, %v859
        %v861 = vpop.f32.mrb[0].mxu0
        %v862 = vpop.f32.mrb[0].mxu0
        %v863 = vadd.f32 0.0, %v862
        %v864 = vpop.f32.mrb[0].mxu0
        %865 = vmatprep.mubr.bf16.mxu0 0
        %866 = vmatmul.mubr.bf16.gmra.mrb[0].mxu0 %v823
        %v867 = vpop.f32.mrb[0].mxu0
        %v868 = vadd.f32 0.0, %v867
        %v869 = vpop.f32.mrb[0].mxu0
        %v870 = vpop.f32.mrb[0].mxu0
        %v871 = vadd.f32 0.0, %v870
        %v872 = vpop.f32.mrb[0].mxu0
        %873 = vdwg.mxu0
        %v874 = vxor.u32 %v860, 2147483648
        %v875 = vxor.u32 %v863, 2147483648
        %v876 = vxor.u32 %v868, 2147483648
        %v877 = vxor.u32 %v871, 2147483648
        %v878 = vmul.f32 %v874, 1.442695
        %v879 = vpow.pop %v878
        %v880 = vmul.f32 %v875, 1.442695
        %v881 = vpow.pop %v880
        %v882 = vmul.f32 %v876, 1.442695
        %v883 = vpow.pop %v882
        %v884 = vmul.f32 %v877, 1.442695
        %v885 = vpow.pop %v884
        %v886 = vadd.f32 %v879, 1.0
        %v887 = vadd.f32 %v881, 1.0
        %v888 = vadd.f32 %v883, 1.0
        %v889 = vadd.f32 %v885, 1.0
        %v890 = vrcp.pop %v886
        %v891 = vmul.f32 1.0, %v890
        %v892 = vrcp.pop %v887
        %v893 = vmul.f32 1.0, %v892
        %v894 = vrcp.pop %v888
        %v895 = vmul.f32 1.0, %v894
        %v896 = vrcp.pop %v889
        %v897 = vmul.f32 1.0, %v896
        %v898 = vmul.f32 %v795, %v891
        %v899 = vmul.f32 %v798, %v893
        %v900 = vmul.f32 %v803, %v895
        %v901 = vmul.f32 %v806, %v897
        %v902 = vadd.f32 %v738, %v898
        %v903 = vadd.f32 %v739, %v899
        %v904 = vadd.f32 %v740, %v900
        %v905 = vadd.f32 %v741, %v901
        %v906 = vmul.f32 %v902, 0.70710677
        %v907 = vmul.f32 %v903, 0.70710677
        %v908 = vmul.f32 %v904, 0.70710677
        %v909 = vmul.f32 %v905, 0.70710677
        %v910 = vpack.c.bf16 %v907, %v906
        %v911 = vpack.c.bf16 %v909, %v908
        %v912 = vld [vmem:[#allocation10] sm:$0xf]
        %v913 = vld [vmem:[#allocation10 + $0x4] sm:$0xf]
        %v914 = vld [vmem:[#allocation10 + $0x8] sm:$0xf]
        %v915 = vld [vmem:[#allocation10 + $0xc] sm:$0xf]
        %v916 = vld [vmem:[#allocation11] sm:$0xf]
        %v917 = vld [vmem:[#allocation11 + $0x4] sm:$0xf]
        %v918 = vld [vmem:[#allocation11 + $0x8] sm:$0xf]
        %v919 = vld [vmem:[#allocation11 + $0xc] sm:$0xf]
        %v924 = vunpack.c.l.b16 %v912
        %v925 = vunpack.c.l.b16 %v913
        %v926 = vunpack.c.l.b16 %v914
        %v927 = vunpack.c.l.b16 %v915
        %v928 = vpack.c.b16 %v925, %v924
        %v929 = vpack.c.b16 %v927, %v926
        %v931 = vsel %vm593, %v928, 0
        %v934 = vsel %vm593, %v929, 0
        %936 = vmatprep.subr.bf16.mxu0 0
        %937 = vmatpush1.bf16.msra.mxu0 %v910
        %938 = vmatprep.subr.bf16.mxu0 0
        %939 = vmatpush1.bf16.msra.mxu0 %v911
        %940 = vmatprep.subr.bf16.mxu0 0
        %941 = vmatpush1.bf16.msra.mxu0 0
        %942 = vmatprep.subr.bf16.mxu0 0
        %943 = vmatpush1.bf16.msra.mxu0 0
        %944 = vmatprep.subr.bf16.mxu0 0
        %945 = vmatpush1.bf16.msra.mxu0 0
        %946 = vmatprep.subr.bf16.mxu0 0
        %947 = vmatpush1.bf16.msra.mxu0 0
        %948 = vmatprep.subr.bf16.mxu0 0
        %949 = vmatpush1.bf16.msra.mxu0 0
        %950 = vmatprep.subr.bf16.mxu0 0
        %951 = vmatpush1.bf16.msra.mxu0 0
        %952 = vmatprep.subr.bf16.mxu0 0
        %953 = vmatpush1.bf16.msra.mxu0 0
        %954 = vmatprep.subr.bf16.mxu0 0
        %955 = vmatpush1.bf16.msra.mxu0 0
        %956 = vmatprep.subr.bf16.mxu0 0
        %957 = vmatpush1.bf16.msra.mxu0 0
        %958 = vmatprep.subr.bf16.mxu0 0
        %959 = vmatpush1.bf16.msra.mxu0 0
        %960 = vmatprep.subr.bf16.mxu0 0
        %961 = vmatpush1.bf16.msra.mxu0 0
        %962 = vmatprep.subr.bf16.mxu0 0
        %963 = vmatpush1.bf16.msra.mxu0 0
        %964 = vmatprep.subr.bf16.mxu0 0
        %965 = vmatpush1.bf16.msra.mxu0 0
        %966 = vmatprep.subr.bf16.mxu0 0
        %967 = vmatpush1.bf16.msra.mxu0 0
        %968 = vmatprep.mubr.bf16.mxu0 0
        %969 = vmatmul.mubr.bf16.gmra.mrb[0].mxu0 %v931
        %v970 = vpop.f32.mrb[0].mxu0
        %v971 = vadd.f32 0.0, %v970
        %v972 = vpop.f32.mrb[0].mxu0
        %v973 = vpop.f32.mrb[0].mxu0
        %v974 = vadd.f32 0.0, %v973
        %v975 = vpop.f32.mrb[0].mxu0
        %976 = vmatprep.mubr.bf16.mxu0 0
        %977 = vmatmul.mubr.bf16.gmra.mrb[0].mxu0 %v934
        %v978 = vpop.f32.mrb[0].mxu0
        %v979 = vadd.f32 0.0, %v978
        %v980 = vpop.f32.mrb[0].mxu0
        %v981 = vpop.f32.mrb[0].mxu0
        %v982 = vadd.f32 0.0, %v981
        %v983 = vpop.f32.mrb[0].mxu0
        %984 = vdwg.mxu0
        %v989 = vunpack.c.l.b16 %v916
        %v990 = vunpack.c.l.b16 %v917
        %v991 = vunpack.c.l.b16 %v918
        %v992 = vunpack.c.l.b16 %v919
        %v993 = vpack.c.b16 %v990, %v989
        %v994 = vpack.c.b16 %v992, %v991
        %v996 = vsel %vm593, %v993, 0
        %v999 = vsel %vm593, %v994, 0
        %1001 = vmatprep.subr.bf16.mxu0 0
        %1002 = vmatpush1.bf16.msra.mxu0 %v910
        %1003 = vmatprep.subr.bf16.mxu0 0
        %1004 = vmatpush1.bf16.msra.mxu0 %v911
        %1005 = vmatprep.subr.bf16.mxu0 0
        %1006 = vmatpush1.bf16.msra.mxu0 0
        %1007 = vmatprep.subr.bf16.mxu0 0
        %1008 = vmatpush1.bf16.msra.mxu0 0
        %1009 = vmatprep.subr.bf16.mxu0 0
        %1010 = vmatpush1.bf16.msra.mxu0 0
        %1011 = vmatprep.subr.bf16.mxu0 0
        %1012 = vmatpush1.bf16.msra.mxu0 0
        %1013 = vmatprep.subr.bf16.mxu0 0
        %1014 = vmatpush1.bf16.msra.mxu0 0
        %1015 = vmatprep.subr.bf16.mxu0 0
        %1016 = vmatpush1.bf16.msra.mxu0 0
        %1017 = vmatprep.subr.bf16.mxu0 0
        %1018 = vmatpush1.bf16.msra.mxu0 0
        %1019 = vmatprep.subr.bf16.mxu0 0
        %1020 = vmatpush1.bf16.msra.mxu0 0
        %1021 = vmatprep.subr.bf16.mxu0 0
        %1022 = vmatpush1.bf16.msra.mxu0 0
        %1023 = vmatprep.subr.bf16.mxu0 0
        %1024 = vmatpush1.bf16.msra.mxu0 0
        %1025 = vmatprep.subr.bf16.mxu0 0
        %1026 = vmatpush1.bf16.msra.mxu0 0
        %1027 = vmatprep.subr.bf16.mxu0 0
        %1028 = vmatpush1.bf16.msra.mxu0 0
        %1029 = vmatprep.subr.bf16.mxu0 0
        %1030 = vmatpush1.bf16.msra.mxu0 0
        %1031 = vmatprep.subr.bf16.mxu0 0
        %1032 = vmatpush1.bf16.msra.mxu0 0
        %1033 = vmatprep.mubr.bf16.mxu0 0
        %1034 = vmatmul.mubr.bf16.gmra.mrb[0].mxu0 %v996
        %v1035 = vpop.f32.mrb[0].mxu0
        %v1036 = vadd.f32 0.0, %v1035
        %v1037 = vpop.f32.mrb[0].mxu0
        %v1038 = vpop.f32.mrb[0].mxu0
        %v1039 = vadd.f32 0.0, %v1038
        %v1040 = vpop.f32.mrb[0].mxu0
        %1041 = vmatprep.mubr.bf16.mxu0 0
        %1042 = vmatmul.mubr.bf16.gmra.mrb[0].mxu0 %v999
        %v1043 = vpop.f32.mrb[0].mxu0
        %v1044 = vadd.f32 0.0, %v1043
        %v1045 = vpop.f32.mrb[0].mxu0
        %v1046 = vpop.f32.mrb[0].mxu0
        %v1047 = vadd.f32 0.0, %v1046
        %v1048 = vpop.f32.mrb[0].mxu0
        %1049 = vdwg.mxu0
        %v1050 = vxor.u32 %v1036, 2147483648
        %v1051 = vxor.u32 %v1039, 2147483648
        %v1052 = vxor.u32 %v1044, 2147483648
        %v1053 = vxor.u32 %v1047, 2147483648
        %v1054 = vmul.f32 %v1050, 1.442695
        %v1055 = vpow.pop %v1054
        %v1056 = vmul.f32 %v1051, 1.442695
        %v1057 = vpow.pop %v1056
        %v1058 = vmul.f32 %v1052, 1.442695
        %v1059 = vpow.pop %v1058
        %v1060 = vmul.f32 %v1053, 1.442695
        %v1061 = vpow.pop %v1060
        %v1062 = vadd.f32 %v1055, 1.0
        %v1063 = vadd.f32 %v1057, 1.0
        %v1064 = vadd.f32 %v1059, 1.0
        %v1065 = vadd.f32 %v1061, 1.0
        %v1066 = vrcp.pop %v1062
        %v1067 = vmul.f32 1.0, %v1066
        %v1068 = vrcp.pop %v1063
        %v1069 = vmul.f32 1.0, %v1068
        %v1070 = vrcp.pop %v1064
        %v1071 = vmul.f32 1.0, %v1070
        %v1072 = vrcp.pop %v1065
        %v1073 = vmul.f32 1.0, %v1072
        %v1074 = vmul.f32 %v971, %v1067
        %v1075 = vmul.f32 %v974, %v1069
        %v1076 = vmul.f32 %v979, %v1071
        %v1077 = vmul.f32 %v982, %v1073
        %v1078 = vadd.f32 %v906, %v1074
        %v1079 = vadd.f32 %v907, %v1075
        %v1080 = vadd.f32 %v908, %v1076
        %v1081 = vadd.f32 %v909, %v1077
        %v1082 = vmul.f32 %v1078, 0.70710677
        %v1083 = vmul.f32 %v1079, 0.70710677
        %v1084 = vmul.f32 %v1080, 0.70710677
        %v1085 = vmul.f32 %v1081, 0.70710677
        %v1086 = vpack.c.bf16 %v1083, %v1082
        %v1087 = vpack.c.bf16 %v1085, %v1084
        %s1088 = scalar_lea.vmem [#allocation10], 16
        %v1089 = vld [vmem:[%s1088] sm:$0xf]
        %v1090 = vld [vmem:[%s1088 + $0x4] sm:$0xf]
        %v1091 = vld [vmem:[%s1088 + $0x8] sm:$0xf]
        %v1092 = vld [vmem:[%s1088 + $0xc] sm:$0xf]
        %s1093 = scalar_lea.vmem [#allocation11], 16
        %v1094 = vld [vmem:[%s1093] sm:$0xf]
        %v1095 = vld [vmem:[%s1093 + $0x4] sm:$0xf]
        %v1096 = vld [vmem:[%s1093 + $0x8] sm:$0xf]
        %v1097 = vld [vmem:[%s1093 + $0xc] sm:$0xf]
        %v1102 = vunpack.c.l.b16 %v1089
        %v1103 = vunpack.c.l.b16 %v1090
        %v1104 = vunpack.c.l.b16 %v1091
        %v1105 = vunpack.c.l.b16 %v1092
        %v1106 = vpack.c.b16 %v1103, %v1102
        %v1107 = vpack.c.b16 %v1105, %v1104
        %v1109 = vsel %vm593, %v1106, 0
        %v1112 = vsel %vm593, %v1107, 0
        %1114 = vmatprep.subr.bf16.mxu0 0
        %1115 = vmatpush1.bf16.msra.mxu0 %v1086
        %1116 = vmatprep.subr.bf16.mxu0 0
        %1117 = vmatpush1.bf16.msra.mxu0 %v1087
        %1118 = vmatprep.subr.bf16.mxu0 0
        %1119 = vmatpush1.bf16.msra.mxu0 0
        %1120 = vmatprep.subr.bf16.mxu0 0
        %1121 = vmatpush1.bf16.msra.mxu0 0
        %1122 = vmatprep.subr.bf16.mxu0 0
        %1123 = vmatpush1.bf16.msra.mxu0 0
        %1124 = vmatprep.subr.bf16.mxu0 0
        %1125 = vmatpush1.bf16.msra.mxu0 0
        %1126 = vmatprep.subr.bf16.mxu0 0
        %1127 = vmatpush1.bf16.msra.mxu0 0
        %1128 = vmatprep.subr.bf16.mxu0 0
        %1129 = vmatpush1.bf16.msra.mxu0 0
        %1130 = vmatprep.subr.bf16.mxu0 0
        %1131 = vmatpush1.bf16.msra.mxu0 0
        %1132 = vmatprep.subr.bf16.mxu0 0
        %1133 = vmatpush1.bf16.msra.mxu0 0
        %1134 = vmatprep.subr.bf16.mxu0 0
        %1135 = vmatpush1.bf16.msra.mxu0 0
        %1136 = vmatprep.subr.bf16.mxu0 0
        %1137 = vmatpush1.bf16.msra.mxu0 0
        %1138 = vmatprep.subr.bf16.mxu0 0
        %1139 = vmatpush1.bf16.msra.mxu0 0
        %1140 = vmatprep.subr.bf16.mxu0 0
        %1141 = vmatpush1.bf16.msra.mxu0 0
        %1142 = vmatprep.subr.bf16.mxu0 0
        %1143 = vmatpush1.bf16.msra.mxu0 0
        %1144 = vmatprep.subr.bf16.mxu0 0
        %1145 = vmatpush1.bf16.msra.mxu0 0
        %1146 = vmatprep.mubr.bf16.mxu0 0
        %1147 = vmatmul.mubr.bf16.gmra.mrb[0].mxu0 %v1109
        %v1148 = vpop.f32.mrb[0].mxu0
        %v1149 = vadd.f32 0.0, %v1148
        %v1150 = vpop.f32.mrb[0].mxu0
        %v1151 = vpop.f32.mrb[0].mxu0
        %v1152 = vadd.f32 0.0, %v1151
        %v1153 = vpop.f32.mrb[0].mxu0
        %1154 = vmatprep.mubr.bf16.mxu0 0
        %1155 = vmatmul.mubr.bf16.gmra.mrb[0].mxu0 %v1112
        %v1156 = vpop.f32.mrb[0].mxu0
        %v1157 = vadd.f32 0.0, %v1156
        %v1158 = vpop.f32.mrb[0].mxu0
        %v1159 = vpop.f32.mrb[0].mxu0
        %v1160 = vadd.f32 0.0, %v1159
        %v1161 = vpop.f32.mrb[0].mxu0
        %1162 = vdwg.mxu0
        %v1167 = vunpack.c.l.b16 %v1094
        %v1168 = vunpack.c.l.b16 %v1095
        %v1169 = vunpack.c.l.b16 %v1096
        %v1170 = vunpack.c.l.b16 %v1097
        %v1171 = vpack.c.b16 %v1168, %v1167
        %v1172 = vpack.c.b16 %v1170, %v1169
        %v1174 = vsel %vm593, %v1171, 0
        %v1177 = vsel %vm593, %v1172, 0
        %1179 = vmatprep.subr.bf16.mxu0 0
        %1180 = vmatpush1.bf16.msra.mxu0 %v1086
        %1181 = vmatprep.subr.bf16.mxu0 0
        %1182 = vmatpush1.bf16.msra.mxu0 %v1087
        %1183 = vmatprep.subr.bf16.mxu0 0
        %1184 = vmatpush1.bf16.msra.mxu0 0
        %1185 = vmatprep.subr.bf16.mxu0 0
        %1186 = vmatpush1.bf16.msra.mxu0 0
        %1187 = vmatprep.subr.bf16.mxu0 0
        %1188 = vmatpush1.bf16.msra.mxu0 0
        %1189 = vmatprep.subr.bf16.mxu0 0
        %1190 = vmatpush1.bf16.msra.mxu0 0
        %1191 = vmatprep.subr.bf16.mxu0 0
        %1192 = vmatpush1.bf16.msra.mxu0 0
        %1193 = vmatprep.subr.bf16.mxu0 0
        %1194 = vmatpush1.bf16.msra.mxu0 0
        %1195 = vmatprep.subr.bf16.mxu0 0
        %1196 = vmatpush1.bf16.msra.mxu0 0
        %1197 = vmatprep.subr.bf16.mxu0 0
        %1198 = vmatpush1.bf16.msra.mxu0 0
        %1199 = vmatprep.subr.bf16.mxu0 0
        %1200 = vmatpush1.bf16.msra.mxu0 0
        %1201 = vmatprep.subr.bf16.mxu0 0
        %1202 = vmatpush1.bf16.msra.mxu0 0
        %1203 = vmatprep.subr.bf16.mxu0 0
        %1204 = vmatpush1.bf16.msra.mxu0 0
        %1205 = vmatprep.subr.bf16.mxu0 0
        %1206 = vmatpush1.bf16.msra.mxu0 0
        %1207 = vmatprep.subr.bf16.mxu0 0
        %1208 = vmatpush1.bf16.msra.mxu0 0
        %1209 = vmatprep.subr.bf16.mxu0 0
        %1210 = vmatpush1.bf16.msra.mxu0 0
        %1211 = vmatprep.mubr.bf16.mxu0 0
        %1212 = vmatmul.mubr.bf16.gmra.mrb[0].mxu0 %v1174
        %v1213 = vpop.f32.mrb[0].mxu0
        %v1214 = vadd.f32 0.0, %v1213
        %v1215 = vpop.f32.mrb[0].mxu0
        %v1216 = vpop.f32.mrb[0].mxu0
        %v1217 = vadd.f32 0.0, %v1216
        %v1218 = vpop.f32.mrb[0].mxu0
        %1219 = vmatprep.mubr.bf16.mxu0 0
        %1220 = vmatmul.mubr.bf16.gmra.mrb[0].mxu0 %v1177
        %v1221 = vpop.f32.mrb[0].mxu0
        %v1222 = vadd.f32 0.0, %v1221
        %v1223 = vpop.f32.mrb[0].mxu0
        %v1224 = vpop.f32.mrb[0].mxu0
        %v1225 = vadd.f32 0.0, %v1224
        %v1226 = vpop.f32.mrb[0].mxu0
        %1227 = vdwg.mxu0
        %v1228 = vxor.u32 %v1214, 2147483648
        %v1229 = vxor.u32 %v1217, 2147483648
        %v1230 = vxor.u32 %v1222, 2147483648
        %v1231 = vxor.u32 %v1225, 2147483648
        %v1232 = vmul.f32 %v1228, 1.442695
        %v1233 = vpow.pop %v1232
        %v1234 = vmul.f32 %v1229, 1.442695
        %v1235 = vpow.pop %v1234
        %v1236 = vmul.f32 %v1230, 1.442695
        %v1237 = vpow.pop %v1236
        %v1238 = vmul.f32 %v1231, 1.442695
        %v1239 = vpow.pop %v1238
        %v1240 = vadd.f32 %v1233, 1.0
        %v1241 = vadd.f32 %v1235, 1.0
        %v1242 = vadd.f32 %v1237, 1.0
        %v1243 = vadd.f32 %v1239, 1.0
        %v1244 = vrcp.pop %v1240
        %v1245 = vmul.f32 1.0, %v1244
        %v1246 = vrcp.pop %v1241
        %v1247 = vmul.f32 1.0, %v1246
        %v1248 = vrcp.pop %v1242
        %v1249 = vmul.f32 1.0, %v1248
        %v1250 = vrcp.pop %v1243
        %v1251 = vmul.f32 1.0, %v1250
        %v1252 = vmul.f32 %v1149, %v1245
        %v1253 = vmul.f32 %v1152, %v1247
        %v1254 = vmul.f32 %v1157, %v1249
        %v1255 = vmul.f32 %v1160, %v1251
        %v1256 = vadd.f32 %v1082, %v1252
        %v1257 = vadd.f32 %v1083, %v1253
        %v1258 = vadd.f32 %v1084, %v1254
        %v1259 = vadd.f32 %v1085, %v1255
        %v1260 = vmul.f32 %v1256, 0.70710677
        %v1261 = vmul.f32 %v1257, 0.70710677
        %v1262 = vmul.f32 %v1258, 0.70710677
        %v1263 = vmul.f32 %v1259, 0.70710677
        %v1264 = vpack.c.bf16 %v1261, %v1260
        %v1265 = vpack.c.bf16 %v1263, %v1262
        %v1266 = vld [vmem:[%s9] sm:$0xf]
        %v1267 = vld [vmem:[%s9 + $0x4] sm:$0xf]
        %v1268 = vld [vmem:[%s9 + $0x8] sm:$0xf]
        %v1269 = vld [vmem:[%s9 + $0xc] sm:$0xf]
        %v1274 = vunpack.c.l.b16 %v1266
        %v1275 = vunpack.c.l.b16 %v1267
        %v1276 = vunpack.c.l.b16 %v1268
        %v1277 = vunpack.c.l.b16 %v1269
        %v1278 = vpack.c.b16 %v1275, %v1274
        %v1279 = vpack.c.b16 %v1277, %v1276
        %v1281 = vsel %vm593, %v1278, 0
        %v1284 = vsel %vm593, %v1279, 0
        %1286 = vmatprep.subr.bf16.mxu0 0
        %1287 = vmatpush1.bf16.msra.mxu0 %v1264
        %1288 = vmatprep.subr.bf16.mxu0 0
        %1289 = vmatpush1.bf16.msra.mxu0 %v1265
        %1290 = vmatprep.subr.bf16.mxu0 0
        %1291 = vmatpush1.bf16.msra.mxu0 0
        %1292 = vmatprep.subr.bf16.mxu0 0
        %1293 = vmatpush1.bf16.msra.mxu0 0
        %1294 = vmatprep.subr.bf16.mxu0 0
        %1295 = vmatpush1.bf16.msra.mxu0 0
        %1296 = vmatprep.subr.bf16.mxu0 0
        %1297 = vmatpush1.bf16.msra.mxu0 0
        %1298 = vmatprep.subr.bf16.mxu0 0
        %1299 = vmatpush1.bf16.msra.mxu0 0
        %1300 = vmatprep.subr.bf16.mxu0 0
        %1301 = vmatpush1.bf16.msra.mxu0 0
        %1302 = vmatprep.subr.bf16.mxu0 0
        %1303 = vmatpush1.bf16.msra.mxu0 0
        %1304 = vmatprep.subr.bf16.mxu0 0
        %1305 = vmatpush1.bf16.msra.mxu0 0
        %1306 = vmatprep.subr.bf16.mxu0 0
        %1307 = vmatpush1.bf16.msra.mxu0 0
        %1308 = vmatprep.subr.bf16.mxu0 0
        %1309 = vmatpush1.bf16.msra.mxu0 0
        %1310 = vmatprep.subr.bf16.mxu0 0
        %1311 = vmatpush1.bf16.msra.mxu0 0
        %1312 = vmatprep.subr.bf16.mxu0 0
        %1313 = vmatpush1.bf16.msra.mxu0 0
        %1314 = vmatprep.subr.bf16.mxu0 0
        %1315 = vmatpush1.bf16.msra.mxu0 0
        %1316 = vmatprep.subr.bf16.mxu0 0
        %1317 = vmatpush1.bf16.msra.mxu0 0
        %1318 = vmatprep.mubr.bf16.mxu0 0
        %1319 = vmatmul.mubr.bf16.gmra.mrb[0].mxu0 %v1281
        %v1320 = vpop.f32.mrb[0].mxu0
        %v1321 = vadd.f32 0.0, %v1320
        %v1322 = vpop.f32.mrb[0].mxu0
        %v1323 = vpop.f32.mrb[0].mxu0
        %v1324 = vadd.f32 0.0, %v1323
        %v1325 = vpop.f32.mrb[0].mxu0
        %1326 = vmatprep.mubr.bf16.mxu0 0
        %1327 = vmatmul.mubr.bf16.gmra.mrb[0].mxu0 %v1284
        %v1328 = vpop.f32.mrb[0].mxu0
        %v1329 = vadd.f32 0.0, %v1328
        %v1330 = vpop.f32.mrb[0].mxu0
        %v1331 = vpop.f32.mrb[0].mxu0
        %v1332 = vadd.f32 0.0, %v1331
        %v1333 = vpop.f32.mrb[0].mxu0
        %1334 = vdwg.mxu0
        %v1335 = vmax.f32 %v1321, %v1324
        %v1336 = vmax.f32 %v1329, %v1332
        %v1337 = vmax.f32 %v1335, %v1336
        %v1338 = vrot.slane %v1337, 4
        %v1339 = vmax.f32 %v1337, %v1338
        %v1340 = vrot.slane %v1339, 2
        %v1341 = vmax.f32 %v1339, %v1340
        %v1342 = vrot.slane %v1341, 1
        %v1343 = vmax.f32 %v1341, %v1342
        %v1344 = vadd.f32 %v1321, %v1324
        %v1345 = vadd.f32 %v1344, %v1329
        %v1346 = vadd.f32 %v1345, %v1332
        %v1347 = vrot.slane %v1346, 4
        %v1348 = vadd.f32 %v1346, %v1347
        %v1349 = vrot.slane %v1348, 2
        %v1350 = vadd.f32 %v1348, %v1349
        %v1351 = vrot.slane %v1350, 1
        %v1352 = vadd.f32 %v1350, %v1351
        %v1353 = vsub.f32 %v1343, 1.0
        %v1354 = vsub.f32 %v1352, 1.0
        %v1355 = vrcp.pop 32.0
        %v1356 = vmul.f32 %v1354, %v1355
        %v1357 = vmax.f32 %v1353, %v1356
        loop: start=0, step=1, limit=10
        $region93: #{tpu_custom_call.1} parent=67 // loop_pre_header
          _
        $region94: #{tpu_custom_call.1} parent=67 // loop_header
          %s1359 = sphi 0, %s1363
          %p1360 = scmp.ge.s32.totalorder %s1359, 10
          %v1364 = vphi %v1357, %v1398
        $region95: #{tpu_custom_call.1} parent=67 // loop_header_branch
          %1362 = sbr.rel (%p1360) target = $region99
        $region96: #{tpu_custom_call.1} parent=67 // loop_body
          %vm1365 = vcmp.gt.f32.partialorder %v1321, %v1364
          %vm1366 = vcmp.gt.f32.partialorder %v1324, %v1364
          %vm1367 = vcmp.gt.f32.partialorder %v1329, %v1364
          %vm1368 = vcmp.gt.f32.partialorder %v1332, %v1364
          %v1369 = vsel %vm1365, 1.0, 0.0
          %v1370 = vsel %vm1366, 1.0, 0.0
          %v1371 = vsel %vm1367, 1.0, 0.0
          %v1372 = vsel %vm1368, 1.0, 0.0
          %v1373 = vadd.f32 %v1369, %v1370
          %v1374 = vadd.f32 %v1373, %v1371
          %v1375 = vadd.f32 %v1374, %v1372
          %v1376 = vrot.slane %v1375, 4
          %v1377 = vadd.f32 %v1375, %v1376
          %v1378 = vrot.slane %v1377, 2
          %v1379 = vadd.f32 %v1377, %v1378
          %v1380 = vrot.slane %v1379, 1
          %v1381 = vadd.f32 %v1379, %v1380
          %v1382 = vmax.f32 %v1381, 1.0
          %v1383 = vmul.f32 %v1369, %v1321
          %v1384 = vmul.f32 %v1370, %v1324
          %v1385 = vmul.f32 %v1371, %v1329
          %v1386 = vmul.f32 %v1372, %v1332
          %v1387 = vadd.f32 %v1383, %v1384
          %v1388 = vadd.f32 %v1387, %v1385
          %v1389 = vadd.f32 %v1388, %v1386
          %v1390 = vrot.slane %v1389, 4
          %v1391 = vadd.f32 %v1389, %v1390
          %v1392 = vrot.slane %v1391, 2
          %v1393 = vadd.f32 %v1391, %v1392
          %v1394 = vrot.slane %v1393, 1
          %v1395 = vadd.f32 %v1393, %v1394
          %v1396 = vsub.f32 %v1395, 1.0
          %v1397 = vrcp.pop %v1382
          %v1398 = vmul.f32 %v1396, %v1397
        $region97: #{tpu_custom_call.1} parent=67 // loop_footer
          %s1363 = sadd.s32 1, %s1359
        $region98: #{tpu_custom_call.1} parent=67 // loop_footer_branch
          %1358 = sbr.rel target = $region94
        $region99: #{tpu_custom_call.1} parent=67 // loop_exit
          _
        %vm1399 = vcmp.gt.f32.partialorder %v1321, %v1364
        %vm1400 = vcmp.gt.f32.partialorder %v1324, %v1364
        %vm1401 = vcmp.gt.f32.partialorder %v1329, %v1364
        %vm1402 = vcmp.gt.f32.partialorder %v1332, %v1364
        %v1403 = vsel %vm1399, 1.0, 0.0
        %v1404 = vsel %vm1400, 1.0, 0.0
        %v1405 = vsel %vm1401, 1.0, 0.0
        %v1406 = vsel %vm1402, 1.0, 0.0
        %v1407 = vadd.f32 %v1403, %v1404
        %v1408 = vadd.f32 %v1407, %v1405
        %v1409 = vadd.f32 %v1408, %v1406
        %v1410 = vrot.slane %v1409, 4
        %v1411 = vadd.f32 %v1409, %v1410
        %v1412 = vrot.slane %v1411, 2
        %v1413 = vadd.f32 %v1411, %v1412
        %v1414 = vrot.slane %v1413, 1
        %v1415 = vadd.f32 %v1413, %v1414
        %v1416 = vmax.f32 %v1415, 1.0
        %v1417 = vmul.f32 %v1403, %v1321
        %v1418 = vmul.f32 %v1404, %v1324
        %v1419 = vmul.f32 %v1405, %v1329
        %v1420 = vmul.f32 %v1406, %v1332
        %v1421 = vadd.f32 %v1417, %v1418
        %v1422 = vadd.f32 %v1421, %v1419
        %v1423 = vadd.f32 %v1422, %v1420
        %v1424 = vrot.slane %v1423, 4
        %v1425 = vadd.f32 %v1423, %v1424
        %v1426 = vrot.slane %v1425, 2
        %v1427 = vadd.f32 %v1425, %v1426
        %v1428 = vrot.slane %v1427, 1
        %v1429 = vadd.f32 %v1427, %v1428
        %v1430 = vsub.f32 %v1429, 1.0
        %v1431 = vrcp.pop %v1416
        %v1432 = vmul.f32 %v1430, %v1431
        %v1433 = vsub.f32 %v1321, %v1432
        %v1434 = vsub.f32 %v1324, %v1432
        %v1435 = vsub.f32 %v1329, %v1432
        %v1436 = vsub.f32 %v1332, %v1432
        %v1437 = vmax.f32 %v1433, 0.0
        %v1438 = vmax.f32 %v1434, 0.0
        %v1439 = vmax.f32 %v1435, 0.0
        %v1440 = vmax.f32 %v1436, 0.0
        %v1441 = vsub.f32 1.5, %v1437
        %v1442 = vsub.f32 1.5, %v1438
        %v1443 = vsub.f32 1.5, %v1439
        %v1444 = vsub.f32 1.5, %v1440
        %v1445 = vmul.f32 %v1437, %v561
        %v1446 = vmul.f32 %v1438, %v562
        %v1447 = vmul.f32 %v1439, %v563
        %v1448 = vmul.f32 %v1440, %v564
        %v1449 = vpack.c.bf16 %v1446, %v1445
        %v1450 = vpack.c.bf16 %v1448, %v1447
        %1451 = vmatprep.subr.bf16.mxu0 0
        %1452 = vmatpush1.bf16.msra.mxu0 %v1449
        %1453 = vmatprep.subr.bf16.mxu0 0
        %1454 = vmatpush1.bf16.msra.mxu0 %v1450
        %1455 = vmatprep.subr.bf16.mxu0 0
        %1456 = vmatpush1.bf16.msra.mxu0 0
        %1457 = vmatprep.subr.bf16.mxu0 0
        %1458 = vmatpush1.bf16.msra.mxu0 0
        %1459 = vmatprep.subr.bf16.mxu0 0
        %1460 = vmatpush1.bf16.msra.mxu0 0
        %1461 = vmatprep.subr.bf16.mxu0 0
        %1462 = vmatpush1.bf16.msra.mxu0 0
        %1463 = vmatprep.subr.bf16.mxu0 0
        %1464 = vmatpush1.bf16.msra.mxu0 0
        %1465 = vmatprep.subr.bf16.mxu0 0
        %1466 = vmatpush1.bf16.msra.mxu0 0
        %1467 = vmatprep.subr.bf16.mxu0 0
        %1468 = vmatpush1.bf16.msra.mxu0 0
        %1469 = vmatprep.subr.bf16.mxu0 0
        %1470 = vmatpush1.bf16.msra.mxu0 0
        %1471 = vmatprep.subr.bf16.mxu0 0
        %1472 = vmatpush1.bf16.msra.mxu0 0
        %1473 = vmatprep.subr.bf16.mxu0 0
        %1474 = vmatpush1.bf16.msra.mxu0 0
        %1475 = vmatprep.subr.bf16.mxu0 0
        %1476 = vmatpush1.bf16.msra.mxu0 0
        %1477 = vmatprep.subr.bf16.mxu0 0
        %1478 = vmatpush1.bf16.msra.mxu0 0
        %1479 = vmatprep.subr.bf16.mxu0 0
        %1480 = vmatpush1.bf16.msra.mxu0 0
        %1481 = vmatprep.subr.bf16.mxu0 0
        %1482 = vmatpush1.bf16.msra.mxu0 0
        %1483 = vmatprep.mubr.bf16.mxu0 0
        %1484 = vmatmul.mubr.bf16.gmra.mrb[0].mxu0 %v595
        %v1485 = vpop.f32.mrb[0].mxu0
        %v1486 = vadd.f32 0.0, %v1485
        %v1487 = vpop.f32.mrb[0].mxu0
        %v1488 = vpop.f32.mrb[0].mxu0
        %v1489 = vadd.f32 0.0, %v1488
        %v1490 = vpop.f32.mrb[0].mxu0
        %1491 = vmatprep.mubr.bf16.mxu0 0
        %1492 = vmatmul.mubr.bf16.gmra.mrb[0].mxu0 %v598
        %v1493 = vpop.f32.mrb[0].mxu0
        %v1494 = vadd.f32 0.0, %v1493
        %v1495 = vpop.f32.mrb[0].mxu0
        %v1496 = vpop.f32.mrb[0].mxu0
        %v1497 = vadd.f32 0.0, %v1496
        %v1498 = vpop.f32.mrb[0].mxu0
        %1499 = vdwg.mxu0
        %1500 = vmatprep.subr.bf16.mxu0 0
        %1501 = vmatpush1.bf16.msra.mxu0 %v1449
        %1502 = vmatprep.subr.bf16.mxu0 0
        %1503 = vmatpush1.bf16.msra.mxu0 %v1450
        %1504 = vmatprep.subr.bf16.mxu0 0
        %1505 = vmatpush1.bf16.msra.mxu0 0
        %1506 = vmatprep.subr.bf16.mxu0 0
        %1507 = vmatpush1.bf16.msra.mxu0 0
        %1508 = vmatprep.subr.bf16.mxu0 0
        %1509 = vmatpush1.bf16.msra.mxu0 0
        %1510 = vmatprep.subr.bf16.mxu0 0
        %1511 = vmatpush1.bf16.msra.mxu0 0
        %1512 = vmatprep.subr.bf16.mxu0 0
        %1513 = vmatpush1.bf16.msra.mxu0 0
        %1514 = vmatprep.subr.bf16.mxu0 0
        %1515 = vmatpush1.bf16.msra.mxu0 0
        %1516 = vmatprep.subr.bf16.mxu0 0
        %1517 = vmatpush1.bf16.msra.mxu0 0
        %1518 = vmatprep.subr.bf16.mxu0 0
        %1519 = vmatpush1.bf16.msra.mxu0 0
        %1520 = vmatprep.subr.bf16.mxu0 0
        %1521 = vmatpush1.bf16.msra.mxu0 0
        %1522 = vmatprep.subr.bf16.mxu0 0
        %1523 = vmatpush1.bf16.msra.mxu0 0
        %1524 = vmatprep.subr.bf16.mxu0 0
        %1525 = vmatpush1.bf16.msra.mxu0 0
        %1526 = vmatprep.subr.bf16.mxu0 0
        %1527 = vmatpush1.bf16.msra.mxu0 0
        %1528 = vmatprep.subr.bf16.mxu0 0
        %1529 = vmatpush1.bf16.msra.mxu0 0
        %1530 = vmatprep.subr.bf16.mxu0 0
        %1531 = vmatpush1.bf16.msra.mxu0 0
        %1532 = vmatprep.mubr.bf16.mxu0 0
        %1533 = vmatmul.mubr.bf16.gmra.mrb[0].mxu0 %v660
        %v1534 = vpop.f32.mrb[0].mxu0
        %v1535 = vadd.f32 0.0, %v1534
        %v1536 = vpop.f32.mrb[0].mxu0
        %v1537 = vpop.f32.mrb[0].mxu0
        %v1538 = vadd.f32 0.0, %v1537
        %v1539 = vpop.f32.mrb[0].mxu0
        %1540 = vmatprep.mubr.bf16.mxu0 0
        %1541 = vmatmul.mubr.bf16.gmra.mrb[0].mxu0 %v663
        %v1542 = vpop.f32.mrb[0].mxu0
        %v1543 = vadd.f32 0.0, %v1542
        %v1544 = vpop.f32.mrb[0].mxu0
        %v1545 = vpop.f32.mrb[0].mxu0
        %v1546 = vadd.f32 0.0, %v1545
        %v1547 = vpop.f32.mrb[0].mxu0
        %1548 = vdwg.mxu0
        %v1549 = vxor.u32 %v1535, 2147483648
        %v1550 = vxor.u32 %v1538, 2147483648
        %v1551 = vxor.u32 %v1543, 2147483648
        %v1552 = vxor.u32 %v1546, 2147483648
        %v1553 = vmul.f32 %v1549, 1.442695
        %v1554 = vpow.pop %v1553
        %v1555 = vmul.f32 %v1550, 1.442695
        %v1556 = vpow.pop %v1555
        %v1557 = vmul.f32 %v1551, 1.442695
        %v1558 = vpow.pop %v1557
        %v1559 = vmul.f32 %v1552, 1.442695
        %v1560 = vpow.pop %v1559
        %v1561 = vadd.f32 %v1554, 1.0
        %v1562 = vadd.f32 %v1556, 1.0
        %v1563 = vadd.f32 %v1558, 1.0
        %v1564 = vadd.f32 %v1560, 1.0
        %v1565 = vrcp.pop %v1561
        %v1566 = vmul.f32 1.0, %v1565
        %v1567 = vrcp.pop %v1562
        %v1568 = vmul.f32 1.0, %v1567
        %v1569 = vrcp.pop %v1563
        %v1570 = vmul.f32 1.0, %v1569
        %v1571 = vrcp.pop %v1564
        %v1572 = vmul.f32 1.0, %v1571
        %v1573 = vmul.f32 %v1486, %v1566
        %v1574 = vmul.f32 %v1489, %v1568
        %v1575 = vmul.f32 %v1494, %v1570
        %v1576 = vmul.f32 %v1497, %v1572
        %v1577 = vpack.c.bf16 %v1574, %v1573
        %v1578 = vpack.c.bf16 %v1576, %v1575
        %1579 = vmatprep.subr.bf16.mxu0 0
        %1580 = vmatpush1.bf16.msra.mxu0 %v1577
        %1581 = vmatprep.subr.bf16.mxu0 0
        %1582 = vmatpush1.bf16.msra.mxu0 %v1578
        %1583 = vmatprep.subr.bf16.mxu0 0
        %1584 = vmatpush1.bf16.msra.mxu0 0
        %1585 = vmatprep.subr.bf16.mxu0 0
        %1586 = vmatpush1.bf16.msra.mxu0 0
        %1587 = vmatprep.subr.bf16.mxu0 0
        %1588 = vmatpush1.bf16.msra.mxu0 0
        %1589 = vmatprep.subr.bf16.mxu0 0
        %1590 = vmatpush1.bf16.msra.mxu0 0
        %1591 = vmatprep.subr.bf16.mxu0 0
        %1592 = vmatpush1.bf16.msra.mxu0 0
        %1593 = vmatprep.subr.bf16.mxu0 0
        %1594 = vmatpush1.bf16.msra.mxu0 0
        %1595 = vmatprep.subr.bf16.mxu0 0
        %1596 = vmatpush1.bf16.msra.mxu0 0
        %1597 = vmatprep.subr.bf16.mxu0 0
        %1598 = vmatpush1.bf16.msra.mxu0 0
        %1599 = vmatprep.subr.bf16.mxu0 0
        %1600 = vmatpush1.bf16.msra.mxu0 0
        %1601 = vmatprep.subr.bf16.mxu0 0
        %1602 = vmatpush1.bf16.msra.mxu0 0
        %1603 = vmatprep.subr.bf16.mxu0 0
        %1604 = vmatpush1.bf16.msra.mxu0 0
        %1605 = vmatprep.subr.bf16.mxu0 0
        %1606 = vmatpush1.bf16.msra.mxu0 0
        %1607 = vmatprep.subr.bf16.mxu0 0
        %1608 = vmatpush1.bf16.msra.mxu0 0
        %1609 = vmatprep.subr.bf16.mxu0 0
        %1610 = vmatpush1.bf16.msra.mxu0 0
        %1611 = vmatprep.mubr.bf16.mxu0 0
        %1612 = vmatmul.mubr.bf16.gmra.mrb[0].mxu0 %v755
        %v1613 = vpop.f32.mrb[0].mxu0
        %v1614 = vadd.f32 0.0, %v1613
        %v1615 = vpop.f32.mrb[0].mxu0
        %v1616 = vpop.f32.mrb[0].mxu0
        %v1617 = vadd.f32 0.0, %v1616
        %v1618 = vpop.f32.mrb[0].mxu0
        %1619 = vmatprep.mubr.bf16.mxu0 0
        %1620 = vmatmul.mubr.bf16.gmra.mrb[0].mxu0 %v758
        %v1621 = vpop.f32.mrb[0].mxu0
        %v1622 = vadd.f32 0.0, %v1621
        %v1623 = vpop.f32.mrb[0].mxu0
        %v1624 = vpop.f32.mrb[0].mxu0
        %v1625 = vadd.f32 0.0, %v1624
        %v1626 = vpop.f32.mrb[0].mxu0
        %1627 = vdwg.mxu0
        %1628 = vmatprep.subr.bf16.mxu0 0
        %1629 = vmatpush1.bf16.msra.mxu0 %v1577
        %1630 = vmatprep.subr.bf16.mxu0 0
        %1631 = vmatpush1.bf16.msra.mxu0 %v1578
        %1632 = vmatprep.subr.bf16.mxu0 0
        %1633 = vmatpush1.bf16.msra.mxu0 0
        %1634 = vmatprep.subr.bf16.mxu0 0
        %1635 = vmatpush1.bf16.msra.mxu0 0
        %1636 = vmatprep.subr.bf16.mxu0 0
        %1637 = vmatpush1.bf16.msra.mxu0 0
        %1638 = vmatprep.subr.bf16.mxu0 0
        %1639 = vmatpush1.bf16.msra.mxu0 0
        %1640 = vmatprep.subr.bf16.mxu0 0
        %1641 = vmatpush1.bf16.msra.mxu0 0
        %1642 = vmatprep.subr.bf16.mxu0 0
        %1643 = vmatpush1.bf16.msra.mxu0 0
        %1644 = vmatprep.subr.bf16.mxu0 0
        %1645 = vmatpush1.bf16.msra.mxu0 0
        %1646 = vmatprep.subr.bf16.mxu0 0
        %1647 = vmatpush1.bf16.msra.mxu0 0
        %1648 = vmatprep.subr.bf16.mxu0 0
        %1649 = vmatpush1.bf16.msra.mxu0 0
        %1650 = vmatprep.subr.bf16.mxu0 0
        %1651 = vmatpush1.bf16.msra.mxu0 0
        %1652 = vmatprep.subr.bf16.mxu0 0
        %1653 = vmatpush1.bf16.msra.mxu0 0
        %1654 = vmatprep.subr.bf16.mxu0 0
        %1655 = vmatpush1.bf16.msra.mxu0 0
        %1656 = vmatprep.subr.bf16.mxu0 0
        %1657 = vmatpush1.bf16.msra.mxu0 0
        %1658 = vmatprep.subr.bf16.mxu0 0
        %1659 = vmatpush1.bf16.msra.mxu0 0
        %1660 = vmatprep.mubr.bf16.mxu0 0
        %1661 = vmatmul.mubr.bf16.gmra.mrb[0].mxu0 %v820
        %v1662 = vpop.f32.mrb[0].mxu0
        %v1663 = vadd.f32 0.0, %v1662
        %v1664 = vpop.f32.mrb[0].mxu0
        %v1665 = vpop.f32.mrb[0].mxu0
        %v1666 = vadd.f32 0.0, %v1665
        %v1667 = vpop.f32.mrb[0].mxu0
        %1668 = vmatprep.mubr.bf16.mxu0 0
        %1669 = vmatmul.mubr.bf16.gmra.mrb[0].mxu0 %v823
        %v1670 = vpop.f32.mrb[0].mxu0
        %v1671 = vadd.f32 0.0, %v1670
        %v1672 = vpop.f32.mrb[0].mxu0
        %v1673 = vpop.f32.mrb[0].mxu0
        %v1674 = vadd.f32 0.0, %v1673
        %v1675 = vpop.f32.mrb[0].mxu0
        %1676 = vdwg.mxu0
        %v1677 = vxor.u32 %v1663, 2147483648
        %v1678 = vxor.u32 %v1666, 2147483648
        %v1679 = vxor.u32 %v1671, 2147483648
        %v1680 = vxor.u32 %v1674, 2147483648
        %v1681 = vmul.f32 %v1677, 1.442695
        %v1682 = vpow.pop %v1681
        %v1683 = vmul.f32 %v1678, 1.442695
        %v1684 = vpow.pop %v1683
        %v1685 = vmul.f32 %v1679, 1.442695
        %v1686 = vpow.pop %v1685
        %v1687 = vmul.f32 %v1680, 1.442695
        %v1688 = vpow.pop %v1687
        %v1689 = vadd.f32 %v1682, 1.0
        %v1690 = vadd.f32 %v1684, 1.0
        %v1691 = vadd.f32 %v1686, 1.0
        %v1692 = vadd.f32 %v1688, 1.0
        %v1693 = vrcp.pop %v1689
        %v1694 = vmul.f32 1.0, %v1693
        %v1695 = vrcp.pop %v1690
        %v1696 = vmul.f32 1.0, %v1695
        %v1697 = vrcp.pop %v1691
        %v1698 = vmul.f32 1.0, %v1697
        %v1699 = vrcp.pop %v1692
        %v1700 = vmul.f32 1.0, %v1699
        %v1701 = vmul.f32 %v1614, %v1694
        %v1702 = vmul.f32 %v1617, %v1696
        %v1703 = vmul.f32 %v1622, %v1698
        %v1704 = vmul.f32 %v1625, %v1700
        %v1705 = vadd.f32 %v1573, %v1701
        %v1706 = vadd.f32 %v1574, %v1702
        %v1707 = vadd.f32 %v1575, %v1703
        %v1708 = vadd.f32 %v1576, %v1704
        %v1709 = vmul.f32 %v1705, 0.70710677
        %v1710 = vmul.f32 %v1706, 0.70710677
        %v1711 = vmul.f32 %v1707, 0.70710677
        %v1712 = vmul.f32 %v1708, 0.70710677
        %v1713 = vpack.c.bf16 %v1710, %v1709
        %v1714 = vpack.c.bf16 %v1712, %v1711
        %s1715 = scalar_lea.vmem [#allocation10], 32
        %v1716 = vld [vmem:[%s1715] sm:$0xf]
        %v1717 = vld [vmem:[%s1715 + $0x4] sm:$0xf]
        %v1718 = vld [vmem:[%s1715 + $0x8] sm:$0xf]
        %v1719 = vld [vmem:[%s1715 + $0xc] sm:$0xf]
        %s1720 = scalar_lea.vmem [#allocation11], 32
        %v1721 = vld [vmem:[%s1720] sm:$0xf]
        %v1722 = vld [vmem:[%s1720 + $0x4] sm:$0xf]
        %v1723 = vld [vmem:[%s1720 + $0x8] sm:$0xf]
        %v1724 = vld [vmem:[%s1720 + $0xc] sm:$0xf]
        %v1729 = vunpack.c.l.b16 %v1716
        %v1730 = vunpack.c.l.b16 %v1717
        %v1731 = vunpack.c.l.b16 %v1718
        %v1732 = vunpack.c.l.b16 %v1719
        %v1733 = vpack.c.b16 %v1730, %v1729
        %v1734 = vpack.c.b16 %v1732, %v1731
        %v1736 = vsel %vm593, %v1733, 0
        %v1739 = vsel %vm593, %v1734, 0
        %1741 = vmatprep.subr.bf16.mxu0 0
        %1742 = vmatpush1.bf16.msra.mxu0 %v1713
        %1743 = vmatprep.subr.bf16.mxu0 0
        %1744 = vmatpush1.bf16.msra.mxu0 %v1714
        %1745 = vmatprep.subr.bf16.mxu0 0
        %1746 = vmatpush1.bf16.msra.mxu0 0
        %1747 = vmatprep.subr.bf16.mxu0 0
        %1748 = vmatpush1.bf16.msra.mxu0 0
        %1749 = vmatprep.subr.bf16.mxu0 0
        %1750 = vmatpush1.bf16.msra.mxu0 0
        %1751 = vmatprep.subr.bf16.mxu0 0
        %1752 = vmatpush1.bf16.msra.mxu0 0
        %1753 = vmatprep.subr.bf16.mxu0 0
        %1754 = vmatpush1.bf16.msra.mxu0 0
        %1755 = vmatprep.subr.bf16.mxu0 0
        %1756 = vmatpush1.bf16.msra.mxu0 0
        %1757 = vmatprep.subr.bf16.mxu0 0
        %1758 = vmatpush1.bf16.msra.mxu0 0
        %1759 = vmatprep.subr.bf16.mxu0 0
        %1760 = vmatpush1.bf16.msra.mxu0 0
        %1761 = vmatprep.subr.bf16.mxu0 0
        %1762 = vmatpush1.bf16.msra.mxu0 0
        %1763 = vmatprep.subr.bf16.mxu0 0
        %1764 = vmatpush1.bf16.msra.mxu0 0
        %1765 = vmatprep.subr.bf16.mxu0 0
        %1766 = vmatpush1.bf16.msra.mxu0 0
        %1767 = vmatprep.subr.bf16.mxu0 0
        %1768 = vmatpush1.bf16.msra.mxu0 0
        %1769 = vmatprep.subr.bf16.mxu0 0
        %1770 = vmatpush1.bf16.msra.mxu0 0
        %1771 = vmatprep.subr.bf16.mxu0 0
        %1772 = vmatpush1.bf16.msra.mxu0 0
        %1773 = vmatprep.mubr.bf16.mxu0 0
        %1774 = vmatmul.mubr.bf16.gmra.mrb[0].mxu0 %v1736
        %v1775 = vpop.f32.mrb[0].mxu0
        %v1776 = vadd.f32 0.0, %v1775
        %v1777 = vpop.f32.mrb[0].mxu0
        %v1778 = vpop.f32.mrb[0].mxu0
        %v1779 = vadd.f32 0.0, %v1778
        %v1780 = vpop.f32.mrb[0].mxu0
        %1781 = vmatprep.mubr.bf16.mxu0 0
        %1782 = vmatmul.mubr.bf16.gmra.mrb[0].mxu0 %v1739
        %v1783 = vpop.f32.mrb[0].mxu0
        %v1784 = vadd.f32 0.0, %v1783
        %v1785 = vpop.f32.mrb[0].mxu0
        %v1786 = vpop.f32.mrb[0].mxu0
        %v1787 = vadd.f32 0.0, %v1786
        %v1788 = vpop.f32.mrb[0].mxu0
        %1789 = vdwg.mxu0
        %v1794 = vunpack.c.l.b16 %v1721
        %v1795 = vunpack.c.l.b16 %v1722
        %v1796 = vunpack.c.l.b16 %v1723
        %v1797 = vunpack.c.l.b16 %v1724
        %v1798 = vpack.c.b16 %v1795, %v1794
        %v1799 = vpack.c.b16 %v1797, %v1796
        %v1801 = vsel %vm593, %v1798, 0
        %v1804 = vsel %vm593, %v1799, 0
        %1806 = vmatprep.subr.bf16.mxu0 0
        %1807 = vmatpush1.bf16.msra.mxu0 %v1713
        %1808 = vmatprep.subr.bf16.mxu0 0
        %1809 = vmatpush1.bf16.msra.mxu0 %v1714
        %1810 = vmatprep.subr.bf16.mxu0 0
        %1811 = vmatpush1.bf16.msra.mxu0 0
        %1812 = vmatprep.subr.bf16.mxu0 0
        %1813 = vmatpush1.bf16.msra.mxu0 0
        %1814 = vmatprep.subr.bf16.mxu0 0
        %1815 = vmatpush1.bf16.msra.mxu0 0
        %1816 = vmatprep.subr.bf16.mxu0 0
        %1817 = vmatpush1.bf16.msra.mxu0 0
        %1818 = vmatprep.subr.bf16.mxu0 0
        %1819 = vmatpush1.bf16.msra.mxu0 0
        %1820 = vmatprep.subr.bf16.mxu0 0
        %1821 = vmatpush1.bf16.msra.mxu0 0
        %1822 = vmatprep.subr.bf16.mxu0 0
        %1823 = vmatpush1.bf16.msra.mxu0 0
        %1824 = vmatprep.subr.bf16.mxu0 0
        %1825 = vmatpush1.bf16.msra.mxu0 0
        %1826 = vmatprep.subr.bf16.mxu0 0
        %1827 = vmatpush1.bf16.msra.mxu0 0
        %1828 = vmatprep.subr.bf16.mxu0 0
        %1829 = vmatpush1.bf16.msra.mxu0 0
        %1830 = vmatprep.subr.bf16.mxu0 0
        %1831 = vmatpush1.bf16.msra.mxu0 0
        %1832 = vmatprep.subr.bf16.mxu0 0
        %1833 = vmatpush1.bf16.msra.mxu0 0
        %1834 = vmatprep.subr.bf16.mxu0 0
        %1835 = vmatpush1.bf16.msra.mxu0 0
        %1836 = vmatprep.subr.bf16.mxu0 0
        %1837 = vmatpush1.bf16.msra.mxu0 0
        %1838 = vmatprep.mubr.bf16.mxu0 0
        %1839 = vmatmul.mubr.bf16.gmra.mrb[0].mxu0 %v1801
        %v1840 = vpop.f32.mrb[0].mxu0
        %v1841 = vadd.f32 0.0, %v1840
        %v1842 = vpop.f32.mrb[0].mxu0
        %v1843 = vpop.f32.mrb[0].mxu0
        %v1844 = vadd.f32 0.0, %v1843
        %v1845 = vpop.f32.mrb[0].mxu0
        %1846 = vmatprep.mubr.bf16.mxu0 0
        %1847 = vmatmul.mubr.bf16.gmra.mrb[0].mxu0 %v1804
        %v1848 = vpop.f32.mrb[0].mxu0
        %v1849 = vadd.f32 0.0, %v1848
        %v1850 = vpop.f32.mrb[0].mxu0
        %v1851 = vpop.f32.mrb[0].mxu0
        %v1852 = vadd.f32 0.0, %v1851
        %v1853 = vpop.f32.mrb[0].mxu0
        %1854 = vdwg.mxu0
        %v1855 = vxor.u32 %v1841, 2147483648
        %v1856 = vxor.u32 %v1844, 2147483648
        %v1857 = vxor.u32 %v1849, 2147483648
        %v1858 = vxor.u32 %v1852, 2147483648
        %v1859 = vmul.f32 %v1855, 1.442695
        %v1860 = vpow.pop %v1859
        %v1861 = vmul.f32 %v1856, 1.442695
        %v1862 = vpow.pop %v1861
        %v1863 = vmul.f32 %v1857, 1.442695
        %v1864 = vpow.pop %v1863
        %v1865 = vmul.f32 %v1858, 1.442695
        %v1866 = vpow.pop %v1865
        %v1867 = vadd.f32 %v1860, 1.0
        %v1868 = vadd.f32 %v1862, 1.0
        %v1869 = vadd.f32 %v1864, 1.0
        %v1870 = vadd.f32 %v1866, 1.0
        %v1871 = vrcp.pop %v1867
        %v1872 = vmul.f32 1.0, %v1871
        %v1873 = vrcp.pop %v1868
        %v1874 = vmul.f32 1.0, %v1873
        %v1875 = vrcp.pop %v1869
        %v1876 = vmul.f32 1.0, %v1875
        %v1877 = vrcp.pop %v1870
        %v1878 = vmul.f32 1.0, %v1877
        %v1879 = vmul.f32 %v1776, %v1872
        %v1880 = vmul.f32 %v1779, %v1874
        %v1881 = vmul.f32 %v1784, %v1876
        %v1882 = vmul.f32 %v1787, %v1878
        %v1883 = vadd.f32 %v1709, %v1879
        %v1884 = vadd.f32 %v1710, %v1880
        %v1885 = vadd.f32 %v1711, %v1881
        %v1886 = vadd.f32 %v1712, %v1882
        %v1887 = vmul.f32 %v1883, 0.70710677
        %v1888 = vmul.f32 %v1884, 0.70710677
        %v1889 = vmul.f32 %v1885, 0.70710677
        %v1890 = vmul.f32 %v1886, 0.70710677
        %v1891 = vpack.c.bf16 %v1888, %v1887
        %v1892 = vpack.c.bf16 %v1890, %v1889
        %s1893 = scalar_lea.vmem [#allocation10], 48
        %v1894 = vld [vmem:[%s1893] sm:$0xf]
        %v1895 = vld [vmem:[%s1893 + $0x4] sm:$0xf]
        %v1896 = vld [vmem:[%s1893 + $0x8] sm:$0xf]
        %v1897 = vld [vmem:[%s1893 + $0xc] sm:$0xf]
        %s1898 = scalar_lea.vmem [#allocation11], 48
        %v1899 = vld [vmem:[%s1898] sm:$0xf]
        %v1900 = vld [vmem:[%s1898 + $0x4] sm:$0xf]
        %v1901 = vld [vmem:[%s1898 + $0x8] sm:$0xf]
        %v1902 = vld [vmem:[%s1898 + $0xc] sm:$0xf]
        %v1907 = vunpack.c.l.b16 %v1894
        %v1908 = vunpack.c.l.b16 %v1895
        %v1909 = vunpack.c.l.b16 %v1896
        %v1910 = vunpack.c.l.b16 %v1897
        %v1911 = vpack.c.b16 %v1908, %v1907
        %v1912 = vpack.c.b16 %v1910, %v1909
        %v1914 = vsel %vm593, %v1911, 0
        %v1917 = vsel %vm593, %v1912, 0
        %1919 = vmatprep.subr.bf16.mxu0 0
        %1920 = vmatpush1.bf16.msra.mxu0 %v1891
        %1921 = vmatprep.subr.bf16.mxu0 0
        %1922 = vmatpush1.bf16.msra.mxu0 %v1892
        %1923 = vmatprep.subr.bf16.mxu0 0
        %1924 = vmatpush1.bf16.msra.mxu0 0
        %1925 = vmatprep.subr.bf16.mxu0 0
        %1926 = vmatpush1.bf16.msra.mxu0 0
        %1927 = vmatprep.subr.bf16.mxu0 0
        %1928 = vmatpush1.bf16.msra.mxu0 0
        %1929 = vmatprep.subr.bf16.mxu0 0
        %1930 = vmatpush1.bf16.msra.mxu0 0
        %1931 = vmatprep.subr.bf16.mxu0 0
        %1932 = vmatpush1.bf16.msra.mxu0 0
        %1933 = vmatprep.subr.bf16.mxu0 0
        %1934 = vmatpush1.bf16.msra.mxu0 0
        %1935 = vmatprep.subr.bf16.mxu0 0
        %1936 = vmatpush1.bf16.msra.mxu0 0
        %1937 = vmatprep.subr.bf16.mxu0 0
        %1938 = vmatpush1.bf16.msra.mxu0 0
        %1939 = vmatprep.subr.bf16.mxu0 0
        %1940 = vmatpush1.bf16.msra.mxu0 0
        %1941 = vmatprep.subr.bf16.mxu0 0
        %1942 = vmatpush1.bf16.msra.mxu0 0
        %1943 = vmatprep.subr.bf16.mxu0 0
        %1944 = vmatpush1.bf16.msra.mxu0 0
        %1945 = vmatprep.subr.bf16.mxu0 0
        %1946 = vmatpush1.bf16.msra.mxu0 0
        %1947 = vmatprep.subr.bf16.mxu0 0
        %1948 = vmatpush1.bf16.msra.mxu0 0
        %1949 = vmatprep.subr.bf16.mxu0 0
        %1950 = vmatpush1.bf16.msra.mxu0 0
        %1951 = vmatprep.mubr.bf16.mxu0 0
        %1952 = vmatmul.mubr.bf16.gmra.mrb[0].mxu0 %v1914
        %v1953 = vpop.f32.mrb[0].mxu0
        %v1954 = vadd.f32 0.0, %v1953
        %v1955 = vpop.f32.mrb[0].mxu0
        %v1956 = vpop.f32.mrb[0].mxu0
        %v1957 = vadd.f32 0.0, %v1956
        %v1958 = vpop.f32.mrb[0].mxu0
        %1959 = vmatprep.mubr.bf16.mxu0 0
        %1960 = vmatmul.mubr.bf16.gmra.mrb[0].mxu0 %v1917
        %v1961 = vpop.f32.mrb[0].mxu0
        %v1962 = vadd.f32 0.0, %v1961
        %v1963 = vpop.f32.mrb[0].mxu0
        %v1964 = vpop.f32.mrb[0].mxu0
        %v1965 = vadd.f32 0.0, %v1964
        %v1966 = vpop.f32.mrb[0].mxu0
        %1967 = vdwg.mxu0
        %v1972 = vunpack.c.l.b16 %v1899
        %v1973 = vunpack.c.l.b16 %v1900
        %v1974 = vunpack.c.l.b16 %v1901
        %v1975 = vunpack.c.l.b16 %v1902
        %v1976 = vpack.c.b16 %v1973, %v1972
        %v1977 = vpack.c.b16 %v1975, %v1974
        %v1979 = vsel %vm593, %v1976, 0
        %v1982 = vsel %vm593, %v1977, 0
        %1984 = vmatprep.subr.bf16.mxu0 0
        %1985 = vmatpush1.bf16.msra.mxu0 %v1891
        %1986 = vmatprep.subr.bf16.mxu0 0
        %1987 = vmatpush1.bf16.msra.mxu0 %v1892
        %1988 = vmatprep.subr.bf16.mxu0 0
        %1989 = vmatpush1.bf16.msra.mxu0 0
        %1990 = vmatprep.subr.bf16.mxu0 0
        %1991 = vmatpush1.bf16.msra.mxu0 0
        %1992 = vmatprep.subr.bf16.mxu0 0
        %1993 = vmatpush1.bf16.msra.mxu0 0
        %1994 = vmatprep.subr.bf16.mxu0 0
        %1995 = vmatpush1.bf16.msra.mxu0 0
        %1996 = vmatprep.subr.bf16.mxu0 0
        %1997 = vmatpush1.bf16.msra.mxu0 0
        %1998 = vmatprep.subr.bf16.mxu0 0
        %1999 = vmatpush1.bf16.msra.mxu0 0
        %2000 = vmatprep.subr.bf16.mxu0 0
        %2001 = vmatpush1.bf16.msra.mxu0 0
        %2002 = vmatprep.subr.bf16.mxu0 0
        %2003 = vmatpush1.bf16.msra.mxu0 0
        %2004 = vmatprep.subr.bf16.mxu0 0
        %2005 = vmatpush1.bf16.msra.mxu0 0
        %2006 = vmatprep.subr.bf16.mxu0 0
        %2007 = vmatpush1.bf16.msra.mxu0 0
        %2008 = vmatprep.subr.bf16.mxu0 0
        %2009 = vmatpush1.bf16.msra.mxu0 0
        %2010 = vmatprep.subr.bf16.mxu0 0
        %2011 = vmatpush1.bf16.msra.mxu0 0
        %2012 = vmatprep.subr.bf16.mxu0 0
        %2013 = vmatpush1.bf16.msra.mxu0 0
        %2014 = vmatprep.subr.bf16.mxu0 0
        %2015 = vmatpush1.bf16.msra.mxu0 0
        %2016 = vmatprep.mubr.bf16.mxu0 0
        %2017 = vmatmul.mubr.bf16.gmra.mrb[0].mxu0 %v1979
        %v2018 = vpop.f32.mrb[0].mxu0
        %v2019 = vadd.f32 0.0, %v2018
        %v2020 = vpop.f32.mrb[0].mxu0
        %v2021 = vpop.f32.mrb[0].mxu0
        %v2022 = vadd.f32 0.0, %v2021
        %v2023 = vpop.f32.mrb[0].mxu0
        %2024 = vmatprep.mubr.bf16.mxu0 0
        %2025 = vmatmul.mubr.bf16.gmra.mrb[0].mxu0 %v1982
        %v2026 = vpop.f32.mrb[0].mxu0
        %v2027 = vadd.f32 0.0, %v2026
        %v2028 = vpop.f32.mrb[0].mxu0
        %v2029 = vpop.f32.mrb[0].mxu0
        %v2030 = vadd.f32 0.0, %v2029
        %v2031 = vpop.f32.mrb[0].mxu0
        %2032 = vdwg.mxu0
        %v2033 = vxor.u32 %v2019, 2147483648
        %v2034 = vxor.u32 %v2022, 2147483648
        %v2035 = vxor.u32 %v2027, 2147483648
        %v2036 = vxor.u32 %v2030, 2147483648
        %v2037 = vmul.f32 %v2033, 1.442695
        %v2038 = vpow.pop %v2037
        %v2039 = vmul.f32 %v2034, 1.442695
        %v2040 = vpow.pop %v2039
        %v2041 = vmul.f32 %v2035, 1.442695
        %v2042 = vpow.pop %v2041
        %v2043 = vmul.f32 %v2036, 1.442695
        %v2044 = vpow.pop %v2043
        %v2045 = vadd.f32 %v2038, 1.0
        %v2046 = vadd.f32 %v2040, 1.0
        %v2047 = vadd.f32 %v2042, 1.0
        %v2048 = vadd.f32 %v2044, 1.0
        %v2049 = vrcp.pop %v2045
        %v2050 = vmul.f32 1.0, %v2049
        %v2051 = vrcp.pop %v2046
        %v2052 = vmul.f32 1.0, %v2051
        %v2053 = vrcp.pop %v2047
        %v2054 = vmul.f32 1.0, %v2053
        %v2055 = vrcp.pop %v2048
        %v2056 = vmul.f32 1.0, %v2055
        %v2057 = vmul.f32 %v1954, %v2050
        %v2058 = vmul.f32 %v1957, %v2052
        %v2059 = vmul.f32 %v1962, %v2054
        %v2060 = vmul.f32 %v1965, %v2056
        %v2061 = vadd.f32 %v1887, %v2057
        %v2062 = vadd.f32 %v1888, %v2058
        %v2063 = vadd.f32 %v1889, %v2059
        %v2064 = vadd.f32 %v1890, %v2060
        %v2065 = vmul.f32 %v2061, 0.70710677
        %v2066 = vmul.f32 %v2062, 0.70710677
        %v2067 = vmul.f32 %v2063, 0.70710677
        %v2068 = vmul.f32 %v2064, 0.70710677
        %v2069 = vmax.f32 %v2065, 0.0
        %v2070 = vmax.f32 %v2066, 0.0
        %v2071 = vmax.f32 %v2067, 0.0
        %v2072 = vmax.f32 %v2068, 0.0
        %v2073 = vadd.f32 %v2069, 0.0
        %v2074 = vadd.f32 %v2070, 0.0
        %v2075 = vadd.f32 %v2071, 0.0
        %v2076 = vadd.f32 %v2072, 0.0
        %v2077 = vpack.c.bf16 %v2066, %v2065
        %v2078 = vpack.c.bf16 %v2068, %v2067
        %s2079 = scalar_lea.vmem %s9, 16
        %v2080 = vld [vmem:[%s2079] sm:$0xf]
        %v2081 = vld [vmem:[%s2079 + $0x4] sm:$0xf]
        %v2082 = vld [vmem:[%s2079 + $0x8] sm:$0xf]
        %v2083 = vld [vmem:[%s2079 + $0xc] sm:$0xf]
        %v2088 = vunpack.c.l.b16 %v2080
        %v2089 = vunpack.c.l.b16 %v2081
        %v2090 = vunpack.c.l.b16 %v2082
        %v2091 = vunpack.c.l.b16 %v2083
        %v2092 = vpack.c.b16 %v2089, %v2088
        %v2093 = vpack.c.b16 %v2091, %v2090
        %v2095 = vsel %vm593, %v2092, 0
        %v2098 = vsel %vm593, %v2093, 0
        %2100 = vmatprep.subr.bf16.mxu0 0
        %2101 = vmatpush1.bf16.msra.mxu0 %v2077
        %2102 = vmatprep.subr.bf16.mxu0 0
        %2103 = vmatpush1.bf16.msra.mxu0 %v2078
        %2104 = vmatprep.subr.bf16.mxu0 0
        %2105 = vmatpush1.bf16.msra.mxu0 0
        %2106 = vmatprep.subr.bf16.mxu0 0
        %2107 = vmatpush1.bf16.msra.mxu0 0
        %2108 = vmatprep.subr.bf16.mxu0 0
        %2109 = vmatpush1.bf16.msra.mxu0 0
        %2110 = vmatprep.subr.bf16.mxu0 0
        %2111 = vmatpush1.bf16.msra.mxu0 0
        %2112 = vmatprep.subr.bf16.mxu0 0
        %2113 = vmatpush1.bf16.msra.mxu0 0
        %2114 = vmatprep.subr.bf16.mxu0 0
        %2115 = vmatpush1.bf16.msra.mxu0 0
        %2116 = vmatprep.subr.bf16.mxu0 0
        %2117 = vmatpush1.bf16.msra.mxu0 0
        %2118 = vmatprep.subr.bf16.mxu0 0
        %2119 = vmatpush1.bf16.msra.mxu0 0
        %2120 = vmatprep.subr.bf16.mxu0 0
        %2121 = vmatpush1.bf16.msra.mxu0 0
        %2122 = vmatprep.subr.bf16.mxu0 0
        %2123 = vmatpush1.bf16.msra.mxu0 0
        %2124 = vmatprep.subr.bf16.mxu0 0
        %2125 = vmatpush1.bf16.msra.mxu0 0
        %2126 = vmatprep.subr.bf16.mxu0 0
        %2127 = vmatpush1.bf16.msra.mxu0 0
        %2128 = vmatprep.subr.bf16.mxu0 0
        %2129 = vmatpush1.bf16.msra.mxu0 0
        %2130 = vmatprep.subr.bf16.mxu0 0
        %2131 = vmatpush1.bf16.msra.mxu0 0
        %2132 = vmatprep.mubr.bf16.mxu0 0
        %2133 = vmatmul.mubr.bf16.gmra.mrb[0].mxu0 %v2095
        %v2134 = vpop.f32.mrb[0].mxu0
        %v2135 = vadd.f32 0.0, %v2134
        %v2136 = vpop.f32.mrb[0].mxu0
        %v2137 = vpop.f32.mrb[0].mxu0
        %v2138 = vadd.f32 0.0, %v2137
        %v2139 = vpop.f32.mrb[0].mxu0
        %2140 = vmatprep.mubr.bf16.mxu0 0
        %2141 = vmatmul.mubr.bf16.gmra.mrb[0].mxu0 %v2098
        %v2142 = vpop.f32.mrb[0].mxu0
        %v2143 = vadd.f32 0.0, %v2142
        %v2144 = vpop.f32.mrb[0].mxu0
        %v2145 = vpop.f32.mrb[0].mxu0
        %v2146 = vadd.f32 0.0, %v2145
        %v2147 = vpop.f32.mrb[0].mxu0
        %2148 = vdwg.mxu0
        %v2149 = vmul.f32 %v2135, %v1441
        %v2150 = vmul.f32 %v2138, %v1442
        %v2151 = vmul.f32 %v2143, %v1443
        %v2152 = vmul.f32 %v2146, %v1444
        %v2153 = vmax.f32 %v2149, %v2150
        %v2154 = vmax.f32 %v2151, %v2152
        %v2155 = vmax.f32 %v2153, %v2154
        %v2156 = vrot.slane %v2155, 4
        %v2157 = vmax.f32 %v2155, %v2156
        %v2158 = vrot.slane %v2157, 2
        %v2159 = vmax.f32 %v2157, %v2158
        %v2160 = vrot.slane %v2159, 1
        %v2161 = vmax.f32 %v2159, %v2160
        %v2162 = vadd.f32 %v2149, %v2150
        %v2163 = vadd.f32 %v2162, %v2151
        %v2164 = vadd.f32 %v2163, %v2152
        %v2165 = vrot.slane %v2164, 4
        %v2166 = vadd.f32 %v2164, %v2165
        %v2167 = vrot.slane %v2166, 2
        %v2168 = vadd.f32 %v2166, %v2167
        %v2169 = vrot.slane %v2168, 1
        %v2170 = vadd.f32 %v2168, %v2169
        %v2171 = vsub.f32 %v2161, 1.0
        %v2172 = vsub.f32 %v2170, 1.0
        %v2173 = vmul.f32 %v2172, %v1355
        %v2174 = vmax.f32 %v2171, %v2173
        loop: start=0, step=1, limit=10
        $region100: #{tpu_custom_call.1} parent=67 // loop_pre_header
          _
        $region101: #{tpu_custom_call.1} parent=67 // loop_header
          %s2176 = sphi 0, %s2180
          %p2177 = scmp.ge.s32.totalorder %s2176, 10
          %v2181 = vphi %v2174, %v2215
        $region102: #{tpu_custom_call.1} parent=67 // loop_header_branch
          %2179 = sbr.rel (%p2177) target = $region106
        $region103: #{tpu_custom_call.1} parent=67 // loop_body
          %vm2182 = vcmp.gt.f32.partialorder %v2149, %v2181
          %vm2183 = vcmp.gt.f32.partialorder %v2150, %v2181
          %vm2184 = vcmp.gt.f32.partialorder %v2151, %v2181
          %vm2185 = vcmp.gt.f32.partialorder %v2152, %v2181
          %v2186 = vsel %vm2182, 1.0, 0.0
          %v2187 = vsel %vm2183, 1.0, 0.0
          %v2188 = vsel %vm2184, 1.0, 0.0
          %v2189 = vsel %vm2185, 1.0, 0.0
          %v2190 = vadd.f32 %v2186, %v2187
          %v2191 = vadd.f32 %v2190, %v2188
          %v2192 = vadd.f32 %v2191, %v2189
          %v2193 = vrot.slane %v2192, 4
          %v2194 = vadd.f32 %v2192, %v2193
          %v2195 = vrot.slane %v2194, 2
          %v2196 = vadd.f32 %v2194, %v2195
          %v2197 = vrot.slane %v2196, 1
          %v2198 = vadd.f32 %v2196, %v2197
          %v2199 = vmax.f32 %v2198, 1.0
          %v2200 = vmul.f32 %v2186, %v2149
          %v2201 = vmul.f32 %v2187, %v2150
          %v2202 = vmul.f32 %v2188, %v2151
          %v2203 = vmul.f32 %v2189, %v2152
          %v2204 = vadd.f32 %v2200, %v2201
          %v2205 = vadd.f32 %v2204, %v2202
          %v2206 = vadd.f32 %v2205, %v2203
          %v2207 = vrot.slane %v2206, 4
          %v2208 = vadd.f32 %v2206, %v2207
          %v2209 = vrot.slane %v2208, 2
          %v2210 = vadd.f32 %v2208, %v2209
          %v2211 = vrot.slane %v2210, 1
          %v2212 = vadd.f32 %v2210, %v2211
          %v2213 = vsub.f32 %v2212, 1.0
          %v2214 = vrcp.pop %v2199
          %v2215 = vmul.f32 %v2213, %v2214
        $region104: #{tpu_custom_call.1} parent=67 // loop_footer
          %s2180 = sadd.s32 1, %s2176
        $region105: #{tpu_custom_call.1} parent=67 // loop_footer_branch
          %2175 = sbr.rel target = $region101
        $region106: #{tpu_custom_call.1} parent=67 // loop_exit
          _
        %vm2216 = vcmp.gt.f32.partialorder %v2149, %v2181
        %vm2217 = vcmp.gt.f32.partialorder %v2150, %v2181
        %vm2218 = vcmp.gt.f32.partialorder %v2151, %v2181
        %vm2219 = vcmp.gt.f32.partialorder %v2152, %v2181
        %v2220 = vsel %vm2216, 1.0, 0.0
        %v2221 = vsel %vm2217, 1.0, 0.0
        %v2222 = vsel %vm2218, 1.0, 0.0
        %v2223 = vsel %vm2219, 1.0, 0.0
        %v2224 = vadd.f32 %v2220, %v2221
        %v2225 = vadd.f32 %v2224, %v2222
        %v2226 = vadd.f32 %v2225, %v2223
        %v2227 = vrot.slane %v2226, 4
        %v2228 = vadd.f32 %v2226, %v2227
        %v2229 = vrot.slane %v2228, 2
        %v2230 = vadd.f32 %v2228, %v2229
        %v2231 = vrot.slane %v2230, 1
        %v2232 = vadd.f32 %v2230, %v2231
        %v2233 = vmax.f32 %v2232, 1.0
        %v2234 = vmul.f32 %v2220, %v2149
        %v2235 = vmul.f32 %v2221, %v2150
        %v2236 = vmul.f32 %v2222, %v2151
        %v2237 = vmul.f32 %v2223, %v2152
        %v2238 = vadd.f32 %v2234, %v2235
        %v2239 = vadd.f32 %v2238, %v2236
        %v2240 = vadd.f32 %v2239, %v2237
        %v2241 = vrot.slane %v2240, 4
        %v2242 = vadd.f32 %v2240, %v2241
        %v2243 = vrot.slane %v2242, 2
        %v2244 = vadd.f32 %v2242, %v2243
        %v2245 = vrot.slane %v2244, 1
        %v2246 = vadd.f32 %v2244, %v2245
        %v2247 = vsub.f32 %v2246, 1.0
        %v2248 = vrcp.pop %v2233
        %v2249 = vmul.f32 %v2247, %v2248
        %v2250 = vsub.f32 %v2149, %v2249
        %v2251 = vsub.f32 %v2150, %v2249
        %v2252 = vsub.f32 %v2151, %v2249
        %v2253 = vsub.f32 %v2152, %v2249
        %v2254 = vmax.f32 %v2250, 0.0
        %v2255 = vmax.f32 %v2251, 0.0
        %v2256 = vmax.f32 %v2252, 0.0
        %v2257 = vmax.f32 %v2253, 0.0
        %v2258 = vsub.f32 1.5, %v2254
        %v2259 = vsub.f32 1.5, %v2255
        %v2260 = vsub.f32 1.5, %v2256
        %v2261 = vsub.f32 1.5, %v2257
        %v2262 = vmul.f32 %v2258, %v1441
        %v2263 = vmul.f32 %v2259, %v1442
        %v2264 = vmul.f32 %v2260, %v1443
        %v2265 = vmul.f32 %v2261, %v1444
        %v2266 = vmul.f32 %v2254, %v561
        %v2267 = vmul.f32 %v2255, %v562
        %v2268 = vmul.f32 %v2256, %v563
        %v2269 = vmul.f32 %v2257, %v564
        %v2270 = vpack.c.bf16 %v2267, %v2266
        %v2271 = vpack.c.bf16 %v2269, %v2268
        %2272 = vmatprep.subr.bf16.mxu0 0
        %2273 = vmatpush1.bf16.msra.mxu0 %v2270
        %2274 = vmatprep.subr.bf16.mxu0 0
        %2275 = vmatpush1.bf16.msra.mxu0 %v2271
        %2276 = vmatprep.subr.bf16.mxu0 0
        %2277 = vmatpush1.bf16.msra.mxu0 0
        %2278 = vmatprep.subr.bf16.mxu0 0
        %2279 = vmatpush1.bf16.msra.mxu0 0
        %2280 = vmatprep.subr.bf16.mxu0 0
        %2281 = vmatpush1.bf16.msra.mxu0 0
        %2282 = vmatprep.subr.bf16.mxu0 0
        %2283 = vmatpush1.bf16.msra.mxu0 0
        %2284 = vmatprep.subr.bf16.mxu0 0
        %2285 = vmatpush1.bf16.msra.mxu0 0
        %2286 = vmatprep.subr.bf16.mxu0 0
        %2287 = vmatpush1.bf16.msra.mxu0 0
        %2288 = vmatprep.subr.bf16.mxu0 0
        %2289 = vmatpush1.bf16.msra.mxu0 0
        %2290 = vmatprep.subr.bf16.mxu0 0
        %2291 = vmatpush1.bf16.msra.mxu0 0
        %2292 = vmatprep.subr.bf16.mxu0 0
        %2293 = vmatpush1.bf16.msra.mxu0 0
        %2294 = vmatprep.subr.bf16.mxu0 0
        %2295 = vmatpush1.bf16.msra.mxu0 0
        %2296 = vmatprep.subr.bf16.mxu0 0
        %2297 = vmatpush1.bf16.msra.mxu0 0
        %2298 = vmatprep.subr.bf16.mxu0 0
        %2299 = vmatpush1.bf16.msra.mxu0 0
        %2300 = vmatprep.subr.bf16.mxu0 0
        %2301 = vmatpush1.bf16.msra.mxu0 0
        %2302 = vmatprep.subr.bf16.mxu0 0
        %2303 = vmatpush1.bf16.msra.mxu0 0
        %2304 = vmatprep.mubr.bf16.mxu0 0
        %2305 = vmatmul.mubr.bf16.gmra.mrb[0].mxu0 %v595
        %v2306 = vpop.f32.mrb[0].mxu0
        %v2307 = vadd.f32 0.0, %v2306
        %v2308 = vpop.f32.mrb[0].mxu0
        %v2309 = vpop.f32.mrb[0].mxu0
        %v2310 = vadd.f32 0.0, %v2309
        %v2311 = vpop.f32.mrb[0].mxu0
        %2312 = vmatprep.mubr.bf16.mxu0 0
        %2313 = vmatmul.mubr.bf16.gmra.mrb[0].mxu0 %v598
        %v2314 = vpop.f32.mrb[0].mxu0
        %v2315 = vadd.f32 0.0, %v2314
        %v2316 = vpop.f32.mrb[0].mxu0
        %v2317 = vpop.f32.mrb[0].mxu0
        %v2318 = vadd.f32 0.0, %v2317
        %v2319 = vpop.f32.mrb[0].mxu0
        %2320 = vdwg.mxu0
        %2321 = vmatprep.subr.bf16.mxu0 0
        %2322 = vmatpush1.bf16.msra.mxu0 %v2270
        %2323 = vmatprep.subr.bf16.mxu0 0
        %2324 = vmatpush1.bf16.msra.mxu0 %v2271
        %2325 = vmatprep.subr.bf16.mxu0 0
        %2326 = vmatpush1.bf16.msra.mxu0 0
        %2327 = vmatprep.subr.bf16.mxu0 0
        %2328 = vmatpush1.bf16.msra.mxu0 0
        %2329 = vmatprep.subr.bf16.mxu0 0
        %2330 = vmatpush1.bf16.msra.mxu0 0
        %2331 = vmatprep.subr.bf16.mxu0 0
        %2332 = vmatpush1.bf16.msra.mxu0 0
        %2333 = vmatprep.subr.bf16.mxu0 0
        %2334 = vmatpush1.bf16.msra.mxu0 0
        %2335 = vmatprep.subr.bf16.mxu0 0
        %2336 = vmatpush1.bf16.msra.mxu0 0
        %2337 = vmatprep.subr.bf16.mxu0 0
        %2338 = vmatpush1.bf16.msra.mxu0 0
        %2339 = vmatprep.subr.bf16.mxu0 0
        %2340 = vmatpush1.bf16.msra.mxu0 0
        %2341 = vmatprep.subr.bf16.mxu0 0
        %2342 = vmatpush1.bf16.msra.mxu0 0
        %2343 = vmatprep.subr.bf16.mxu0 0
        %2344 = vmatpush1.bf16.msra.mxu0 0
        %2345 = vmatprep.subr.bf16.mxu0 0
        %2346 = vmatpush1.bf16.msra.mxu0 0
        %2347 = vmatprep.subr.bf16.mxu0 0
        %2348 = vmatpush1.bf16.msra.mxu0 0
        %2349 = vmatprep.subr.bf16.mxu0 0
        %2350 = vmatpush1.bf16.msra.mxu0 0
        %2351 = vmatprep.subr.bf16.mxu0 0
        %2352 = vmatpush1.bf16.msra.mxu0 0
        %2353 = vmatprep.mubr.bf16.mxu0 0
        %2354 = vmatmul.mubr.bf16.gmra.mrb[0].mxu0 %v660
        %v2355 = vpop.f32.mrb[0].mxu0
        %v2356 = vadd.f32 0.0, %v2355
        %v2357 = vpop.f32.mrb[0].mxu0
        %v2358 = vpop.f32.mrb[0].mxu0
        %v2359 = vadd.f32 0.0, %v2358
        %v2360 = vpop.f32.mrb[0].mxu0
        %2361 = vmatprep.mubr.bf16.mxu0 0
        %2362 = vmatmul.mubr.bf16.gmra.mrb[0].mxu0 %v663
        %v2363 = vpop.f32.mrb[0].mxu0
        %v2364 = vadd.f32 0.0, %v2363
        %v2365 = vpop.f32.mrb[0].mxu0
        %v2366 = vpop.f32.mrb[0].mxu0
        %v2367 = vadd.f32 0.0, %v2366
        %v2368 = vpop.f32.mrb[0].mxu0
        %2369 = vdwg.mxu0
        %v2370 = vxor.u32 %v2356, 2147483648
        %v2371 = vxor.u32 %v2359, 2147483648
        %v2372 = vxor.u32 %v2364, 2147483648
        %v2373 = vxor.u32 %v2367, 2147483648
        %v2374 = vmul.f32 %v2370, 1.442695
        %v2375 = vpow.pop %v2374
        %v2376 = vmul.f32 %v2371, 1.442695
        %v2377 = vpow.pop %v2376
        %v2378 = vmul.f32 %v2372, 1.442695
        %v2379 = vpow.pop %v2378
        %v2380 = vmul.f32 %v2373, 1.442695
        %v2381 = vpow.pop %v2380
        %v2382 = vadd.f32 %v2375, 1.0
        %v2383 = vadd.f32 %v2377, 1.0
        %v2384 = vadd.f32 %v2379, 1.0
        %v2385 = vadd.f32 %v2381, 1.0
        %v2386 = vrcp.pop %v2382
        %v2387 = vmul.f32 1.0, %v2386
        %v2388 = vrcp.pop %v2383
        %v2389 = vmul.f32 1.0, %v2388
        %v2390 = vrcp.pop %v2384
        %v2391 = vmul.f32 1.0, %v2390
        %v2392 = vrcp.pop %v2385
        %v2393 = vmul.f32 1.0, %v2392
        %v2394 = vmul.f32 %v2307, %v2387
        %v2395 = vmul.f32 %v2310, %v2389
        %v2396 = vmul.f32 %v2315, %v2391
        %v2397 = vmul.f32 %v2318, %v2393
        %v2398 = vpack.c.bf16 %v2395, %v2394
        %v2399 = vpack.c.bf16 %v2397, %v2396
        %2400 = vmatprep.subr.bf16.mxu0 0
        %2401 = vmatpush1.bf16.msra.mxu0 %v2398
        %2402 = vmatprep.subr.bf16.mxu0 0
        %2403 = vmatpush1.bf16.msra.mxu0 %v2399
        %2404 = vmatprep.subr.bf16.mxu0 0
        %2405 = vmatpush1.bf16.msra.mxu0 0
        %2406 = vmatprep.subr.bf16.mxu0 0
        %2407 = vmatpush1.bf16.msra.mxu0 0
        %2408 = vmatprep.subr.bf16.mxu0 0
        %2409 = vmatpush1.bf16.msra.mxu0 0
        %2410 = vmatprep.subr.bf16.mxu0 0
        %2411 = vmatpush1.bf16.msra.mxu0 0
        %2412 = vmatprep.subr.bf16.mxu0 0
        %2413 = vmatpush1.bf16.msra.mxu0 0
        %2414 = vmatprep.subr.bf16.mxu0 0
        %2415 = vmatpush1.bf16.msra.mxu0 0
        %2416 = vmatprep.subr.bf16.mxu0 0
        %2417 = vmatpush1.bf16.msra.mxu0 0
        %2418 = vmatprep.subr.bf16.mxu0 0
        %2419 = vmatpush1.bf16.msra.mxu0 0
        %2420 = vmatprep.subr.bf16.mxu0 0
        %2421 = vmatpush1.bf16.msra.mxu0 0
        %2422 = vmatprep.subr.bf16.mxu0 0
        %2423 = vmatpush1.bf16.msra.mxu0 0
        %2424 = vmatprep.subr.bf16.mxu0 0
        %2425 = vmatpush1.bf16.msra.mxu0 0
        %2426 = vmatprep.subr.bf16.mxu0 0
        %2427 = vmatpush1.bf16.msra.mxu0 0
        %2428 = vmatprep.subr.bf16.mxu0 0
        %2429 = vmatpush1.bf16.msra.mxu0 0
        %2430 = vmatprep.subr.bf16.mxu0 0
        %2431 = vmatpush1.bf16.msra.mxu0 0
        %2432 = vmatprep.mubr.bf16.mxu0 0
        %2433 = vmatmul.mubr.bf16.gmra.mrb[0].mxu0 %v755
        %v2434 = vpop.f32.mrb[0].mxu0
        %v2435 = vadd.f32 0.0, %v2434
        %v2436 = vpop.f32.mrb[0].mxu0
        %v2437 = vpop.f32.mrb[0].mxu0
        %v2438 = vadd.f32 0.0, %v2437
        %v2439 = vpop.f32.mrb[0].mxu0
        %2440 = vmatprep.mubr.bf16.mxu0 0
        %2441 = vmatmul.mubr.bf16.gmra.mrb[0].mxu0 %v758
        %v2442 = vpop.f32.mrb[0].mxu0
        %v2443 = vadd.f32 0.0, %v2442
        %v2444 = vpop.f32.mrb[0].mxu0
        %v2445 = vpop.f32.mrb[0].mxu0
        %v2446 = vadd.f32 0.0, %v2445
        %v2447 = vpop.f32.mrb[0].mxu0
        %2448 = vdwg.mxu0
        %2449 = vmatprep.subr.bf16.mxu0 0
        %2450 = vmatpush1.bf16.msra.mxu0 %v2398
        %2451 = vmatprep.subr.bf16.mxu0 0
        %2452 = vmatpush1.bf16.msra.mxu0 %v2399
        %2453 = vmatprep.subr.bf16.mxu0 0
        %2454 = vmatpush1.bf16.msra.mxu0 0
        %2455 = vmatprep.subr.bf16.mxu0 0
        %2456 = vmatpush1.bf16.msra.mxu0 0
        %2457 = vmatprep.subr.bf16.mxu0 0
        %2458 = vmatpush1.bf16.msra.mxu0 0
        %2459 = vmatprep.subr.bf16.mxu0 0
        %2460 = vmatpush1.bf16.msra.mxu0 0
        %2461 = vmatprep.subr.bf16.mxu0 0
        %2462 = vmatpush1.bf16.msra.mxu0 0
        %2463 = vmatprep.subr.bf16.mxu0 0
        %2464 = vmatpush1.bf16.msra.mxu0 0
        %2465 = vmatprep.subr.bf16.mxu0 0
        %2466 = vmatpush1.bf16.msra.mxu0 0
        %2467 = vmatprep.subr.bf16.mxu0 0
        %2468 = vmatpush1.bf16.msra.mxu0 0
        %2469 = vmatprep.subr.bf16.mxu0 0
        %2470 = vmatpush1.bf16.msra.mxu0 0
        %2471 = vmatprep.subr.bf16.mxu0 0
        %2472 = vmatpush1.bf16.msra.mxu0 0
        %2473 = vmatprep.subr.bf16.mxu0 0
        %2474 = vmatpush1.bf16.msra.mxu0 0
        %2475 = vmatprep.subr.bf16.mxu0 0
        %2476 = vmatpush1.bf16.msra.mxu0 0
        %2477 = vmatprep.subr.bf16.mxu0 0
        %2478 = vmatpush1.bf16.msra.mxu0 0
        %2479 = vmatprep.subr.bf16.mxu0 0
        %2480 = vmatpush1.bf16.msra.mxu0 0
        %2481 = vmatprep.mubr.bf16.mxu0 0
        %2482 = vmatmul.mubr.bf16.gmra.mrb[0].mxu0 %v820
        %v2483 = vpop.f32.mrb[0].mxu0
        %v2484 = vadd.f32 0.0, %v2483
        %v2485 = vpop.f32.mrb[0].mxu0
        %v2486 = vpop.f32.mrb[0].mxu0
        %v2487 = vadd.f32 0.0, %v2486
        %v2488 = vpop.f32.mrb[0].mxu0
        %2489 = vmatprep.mubr.bf16.mxu0 0
        %2490 = vmatmul.mubr.bf16.gmra.mrb[0].mxu0 %v823
        %v2491 = vpop.f32.mrb[0].mxu0
        %v2492 = vadd.f32 0.0, %v2491
        %v2493 = vpop.f32.mrb[0].mxu0
        %v2494 = vpop.f32.mrb[0].mxu0
        %v2495 = vadd.f32 0.0, %v2494
        %v2496 = vpop.f32.mrb[0].mxu0
        %2497 = vdwg.mxu0
        %v2498 = vxor.u32 %v2484, 2147483648
        %v2499 = vxor.u32 %v2487, 2147483648
        %v2500 = vxor.u32 %v2492, 2147483648
        %v2501 = vxor.u32 %v2495, 2147483648
        %v2502 = vmul.f32 %v2498, 1.442695
        %v2503 = vpow.pop %v2502
        %v2504 = vmul.f32 %v2499, 1.442695
        %v2505 = vpow.pop %v2504
        %v2506 = vmul.f32 %v2500, 1.442695
        %v2507 = vpow.pop %v2506
        %v2508 = vmul.f32 %v2501, 1.442695
        %v2509 = vpow.pop %v2508
        %v2510 = vadd.f32 %v2503, 1.0
        %v2511 = vadd.f32 %v2505, 1.0
        %v2512 = vadd.f32 %v2507, 1.0
        %v2513 = vadd.f32 %v2509, 1.0
        %v2514 = vrcp.pop %v2510
        %v2515 = vmul.f32 1.0, %v2514
        %v2516 = vrcp.pop %v2511
        %v2517 = vmul.f32 1.0, %v2516
        %v2518 = vrcp.pop %v2512
        %v2519 = vmul.f32 1.0, %v2518
        %v2520 = vrcp.pop %v2513
        %v2521 = vmul.f32 1.0, %v2520
        %v2522 = vmul.f32 %v2435, %v2515
        %v2523 = vmul.f32 %v2438, %v2517
        %v2524 = vmul.f32 %v2443, %v2519
        %v2525 = vmul.f32 %v2446, %v2521
        %v2526 = vadd.f32 %v2394, %v2522
        %v2527 = vadd.f32 %v2395, %v2523
        %v2528 = vadd.f32 %v2396, %v2524
        %v2529 = vadd.f32 %v2397, %v2525
        %v2530 = vmul.f32 %v2526, 0.70710677
        %v2531 = vmul.f32 %v2527, 0.70710677
        %v2532 = vmul.f32 %v2528, 0.70710677
        %v2533 = vmul.f32 %v2529, 0.70710677
        %v2534 = vpack.c.bf16 %v2531, %v2530
        %v2535 = vpack.c.bf16 %v2533, %v2532
        %s2536 = scalar_lea.vmem [#allocation10], 64
        %v2537 = vld [vmem:[%s2536] sm:$0xf]
        %v2538 = vld [vmem:[%s2536 + $0x4] sm:$0xf]
        %v2539 = vld [vmem:[%s2536 + $0x8] sm:$0xf]
        %v2540 = vld [vmem:[%s2536 + $0xc] sm:$0xf]
        %s2541 = scalar_lea.vmem [#allocation11], 64
        %v2542 = vld [vmem:[%s2541] sm:$0xf]
        %v2543 = vld [vmem:[%s2541 + $0x4] sm:$0xf]
        %v2544 = vld [vmem:[%s2541 + $0x8] sm:$0xf]
        %v2545 = vld [vmem:[%s2541 + $0xc] sm:$0xf]
        %v2550 = vunpack.c.l.b16 %v2537
        %v2551 = vunpack.c.l.b16 %v2538
        %v2552 = vunpack.c.l.b16 %v2539
        %v2553 = vunpack.c.l.b16 %v2540
        %v2554 = vpack.c.b16 %v2551, %v2550
        %v2555 = vpack.c.b16 %v2553, %v2552
        %v2557 = vsel %vm593, %v2554, 0
        %v2560 = vsel %vm593, %v2555, 0
        %2562 = vmatprep.subr.bf16.mxu0 0
        %2563 = vmatpush1.bf16.msra.mxu0 %v2534
        %2564 = vmatprep.subr.bf16.mxu0 0
        %2565 = vmatpush1.bf16.msra.mxu0 %v2535
        %2566 = vmatprep.subr.bf16.mxu0 0
        %2567 = vmatpush1.bf16.msra.mxu0 0
        %2568 = vmatprep.subr.bf16.mxu0 0
        %2569 = vmatpush1.bf16.msra.mxu0 0
        %2570 = vmatprep.subr.bf16.mxu0 0
        %2571 = vmatpush1.bf16.msra.mxu0 0
        %2572 = vmatprep.subr.bf16.mxu0 0
        %2573 = vmatpush1.bf16.msra.mxu0 0
        %2574 = vmatprep.subr.bf16.mxu0 0
        %2575 = vmatpush1.bf16.msra.mxu0 0
        %2576 = vmatprep.subr.bf16.mxu0 0
        %2577 = vmatpush1.bf16.msra.mxu0 0
        %2578 = vmatprep.subr.bf16.mxu0 0
        %2579 = vmatpush1.bf16.msra.mxu0 0
        %2580 = vmatprep.subr.bf16.mxu0 0
        %2581 = vmatpush1.bf16.msra.mxu0 0
        %2582 = vmatprep.subr.bf16.mxu0 0
        %2583 = vmatpush1.bf16.msra.mxu0 0
        %2584 = vmatprep.subr.bf16.mxu0 0
        %2585 = vmatpush1.bf16.msra.mxu0 0
        %2586 = vmatprep.subr.bf16.mxu0 0
        %2587 = vmatpush1.bf16.msra.mxu0 0
        %2588 = vmatprep.subr.bf16.mxu0 0
        %2589 = vmatpush1.bf16.msra.mxu0 0
        %2590 = vmatprep.subr.bf16.mxu0 0
        %2591 = vmatpush1.bf16.msra.mxu0 0
        %2592 = vmatprep.subr.bf16.mxu0 0
        %2593 = vmatpush1.bf16.msra.mxu0 0
        %2594 = vmatprep.mubr.bf16.mxu0 0
        %2595 = vmatmul.mubr.bf16.gmra.mrb[0].mxu0 %v2557
        %v2596 = vpop.f32.mrb[0].mxu0
        %v2597 = vadd.f32 0.0, %v2596
        %v2598 = vpop.f32.mrb[0].mxu0
        %v2599 = vpop.f32.mrb[0].mxu0
        %v2600 = vadd.f32 0.0, %v2599
        %v2601 = vpop.f32.mrb[0].mxu0
        %2602 = vmatprep.mubr.bf16.mxu0 0
        %2603 = vmatmul.mubr.bf16.gmra.mrb[0].mxu0 %v2560
        %v2604 = vpop.f32.mrb[0].mxu0
        %v2605 = vadd.f32 0.0, %v2604
        %v2606 = vpop.f32.mrb[0].mxu0
        %v2607 = vpop.f32.mrb[0].mxu0
        %v2608 = vadd.f32 0.0, %v2607
        %v2609 = vpop.f32.mrb[0].mxu0
        %2610 = vdwg.mxu0
        %v2615 = vunpack.c.l.b16 %v2542
        %v2616 = vunpack.c.l.b16 %v2543
        %v2617 = vunpack.c.l.b16 %v2544
        %v2618 = vunpack.c.l.b16 %v2545
        %v2619 = vpack.c.b16 %v2616, %v2615
        %v2620 = vpack.c.b16 %v2618, %v2617
        %v2622 = vsel %vm593, %v2619, 0
        %v2625 = vsel %vm593, %v2620, 0
        %2627 = vmatprep.subr.bf16.mxu0 0
        %2628 = vmatpush1.bf16.msra.mxu0 %v2534
        %2629 = vmatprep.subr.bf16.mxu0 0
        %2630 = vmatpush1.bf16.msra.mxu0 %v2535
        %2631 = vmatprep.subr.bf16.mxu0 0
        %2632 = vmatpush1.bf16.msra.mxu0 0
        %2633 = vmatprep.subr.bf16.mxu0 0
        %2634 = vmatpush1.bf16.msra.mxu0 0
        %2635 = vmatprep.subr.bf16.mxu0 0
        %2636 = vmatpush1.bf16.msra.mxu0 0
        %2637 = vmatprep.subr.bf16.mxu0 0
        %2638 = vmatpush1.bf16.msra.mxu0 0
        %2639 = vmatprep.subr.bf16.mxu0 0
        %2640 = vmatpush1.bf16.msra.mxu0 0
        %2641 = vmatprep.subr.bf16.mxu0 0
        %2642 = vmatpush1.bf16.msra.mxu0 0
        %2643 = vmatprep.subr.bf16.mxu0 0
        %2644 = vmatpush1.bf16.msra.mxu0 0
        %2645 = vmatprep.subr.bf16.mxu0 0
        %2646 = vmatpush1.bf16.msra.mxu0 0
        %2647 = vmatprep.subr.bf16.mxu0 0
        %2648 = vmatpush1.bf16.msra.mxu0 0
        %2649 = vmatprep.subr.bf16.mxu0 0
        %2650 = vmatpush1.bf16.msra.mxu0 0
        %2651 = vmatprep.subr.bf16.mxu0 0
        %2652 = vmatpush1.bf16.msra.mxu0 0
        %2653 = vmatprep.subr.bf16.mxu0 0
        %2654 = vmatpush1.bf16.msra.mxu0 0
        %2655 = vmatprep.subr.bf16.mxu0 0
        %2656 = vmatpush1.bf16.msra.mxu0 0
        %2657 = vmatprep.subr.bf16.mxu0 0
        %2658 = vmatpush1.bf16.msra.mxu0 0
        %2659 = vmatprep.mubr.bf16.mxu0 0
        %2660 = vmatmul.mubr.bf16.gmra.mrb[0].mxu0 %v2622
        %v2661 = vpop.f32.mrb[0].mxu0
        %v2662 = vadd.f32 0.0, %v2661
        %v2663 = vpop.f32.mrb[0].mxu0
        %v2664 = vpop.f32.mrb[0].mxu0
        %v2665 = vadd.f32 0.0, %v2664
        %v2666 = vpop.f32.mrb[0].mxu0
        %2667 = vmatprep.mubr.bf16.mxu0 0
        %2668 = vmatmul.mubr.bf16.gmra.mrb[0].mxu0 %v2625
        %v2669 = vpop.f32.mrb[0].mxu0
        %v2670 = vadd.f32 0.0, %v2669
        %v2671 = vpop.f32.mrb[0].mxu0
        %v2672 = vpop.f32.mrb[0].mxu0
        %v2673 = vadd.f32 0.0, %v2672
        %v2674 = vpop.f32.mrb[0].mxu0
        %2675 = vdwg.mxu0
        %v2676 = vxor.u32 %v2662, 2147483648
        %v2677 = vxor.u32 %v2665, 2147483648
        %v2678 = vxor.u32 %v2670, 2147483648
        %v2679 = vxor.u32 %v2673, 2147483648
        %v2680 = vmul.f32 %v2676, 1.442695
        %v2681 = vpow.pop %v2680
        %v2682 = vmul.f32 %v2677, 1.442695
        %v2683 = vpow.pop %v2682
        %v2684 = vmul.f32 %v2678, 1.442695
        %v2685 = vpow.pop %v2684
        %v2686 = vmul.f32 %v2679, 1.442695
        %v2687 = vpow.pop %v2686
        %v2688 = vadd.f32 %v2681, 1.0
        %v2689 = vadd.f32 %v2683, 1.0
        %v2690 = vadd.f32 %v2685, 1.0
        %v2691 = vadd.f32 %v2687, 1.0
        %v2692 = vrcp.pop %v2688
        %v2693 = vmul.f32 1.0, %v2692
        %v2694 = vrcp.pop %v2689
        %v2695 = vmul.f32 1.0, %v2694
        %v2696 = vrcp.pop %v2690
        %v2697 = vmul.f32 1.0, %v2696
        %v2698 = vrcp.pop %v2691
        %v2699 = vmul.f32 1.0, %v2698
        %v2700 = vmul.f32 %v2597, %v2693
        %v2701 = vmul.f32 %v2600, %v2695
        %v2702 = vmul.f32 %v2605, %v2697
        %v2703 = vmul.f32 %v2608, %v2699
        %v2704 = vadd.f32 %v2530, %v2700
        %v2705 = vadd.f32 %v2531, %v2701
        %v2706 = vadd.f32 %v2532, %v2702
        %v2707 = vadd.f32 %v2533, %v2703
        %v2708 = vmul.f32 %v2704, 0.70710677
        %v2709 = vmul.f32 %v2705, 0.70710677
        %v2710 = vmul.f32 %v2706, 0.70710677
        %v2711 = vmul.f32 %v2707, 0.70710677
        %v2712 = vpack.c.bf16 %v2709, %v2708
        %v2713 = vpack.c.bf16 %v2711, %v2710
        %s2714 = scalar_lea.vmem [#allocation10], 80
        %v2715 = vld [vmem:[%s2714] sm:$0xf]
        %v2716 = vld [vmem:[%s2714 + $0x4] sm:$0xf]
        %v2717 = vld [vmem:[%s2714 + $0x8] sm:$0xf]
        %v2718 = vld [vmem:[%s2714 + $0xc] sm:$0xf]
        %s2719 = scalar_lea.vmem [#allocation11], 80
        %v2720 = vld [vmem:[%s2719] sm:$0xf]
        %v2721 = vld [vmem:[%s2719 + $0x4] sm:$0xf]
        %v2722 = vld [vmem:[%s2719 + $0x8] sm:$0xf]
        %v2723 = vld [vmem:[%s2719 + $0xc] sm:$0xf]
        %v2728 = vunpack.c.l.b16 %v2715
        %v2729 = vunpack.c.l.b16 %v2716
        %v2730 = vunpack.c.l.b16 %v2717
        %v2731 = vunpack.c.l.b16 %v2718
        %v2732 = vpack.c.b16 %v2729, %v2728
        %v2733 = vpack.c.b16 %v2731, %v2730
        %v2735 = vsel %vm593, %v2732, 0
        %v2738 = vsel %vm593, %v2733, 0
        %2740 = vmatprep.subr.bf16.mxu0 0
        %2741 = vmatpush1.bf16.msra.mxu0 %v2712
        %2742 = vmatprep.subr.bf16.mxu0 0
        %2743 = vmatpush1.bf16.msra.mxu0 %v2713
        %2744 = vmatprep.subr.bf16.mxu0 0
        %2745 = vmatpush1.bf16.msra.mxu0 0
        %2746 = vmatprep.subr.bf16.mxu0 0
        %2747 = vmatpush1.bf16.msra.mxu0 0
        %2748 = vmatprep.subr.bf16.mxu0 0
        %2749 = vmatpush1.bf16.msra.mxu0 0
        %2750 = vmatprep.subr.bf16.mxu0 0
        %2751 = vmatpush1.bf16.msra.mxu0 0
        %2752 = vmatprep.subr.bf16.mxu0 0
        %2753 = vmatpush1.bf16.msra.mxu0 0
        %2754 = vmatprep.subr.bf16.mxu0 0
        %2755 = vmatpush1.bf16.msra.mxu0 0
        %2756 = vmatprep.subr.bf16.mxu0 0
        %2757 = vmatpush1.bf16.msra.mxu0 0
        %2758 = vmatprep.subr.bf16.mxu0 0
        %2759 = vmatpush1.bf16.msra.mxu0 0
        %2760 = vmatprep.subr.bf16.mxu0 0
        %2761 = vmatpush1.bf16.msra.mxu0 0
        %2762 = vmatprep.subr.bf16.mxu0 0
        %2763 = vmatpush1.bf16.msra.mxu0 0
        %2764 = vmatprep.subr.bf16.mxu0 0
        %2765 = vmatpush1.bf16.msra.mxu0 0
        %2766 = vmatprep.subr.bf16.mxu0 0
        %2767 = vmatpush1.bf16.msra.mxu0 0
        %2768 = vmatprep.subr.bf16.mxu0 0
        %2769 = vmatpush1.bf16.msra.mxu0 0
        %2770 = vmatprep.subr.bf16.mxu0 0
        %2771 = vmatpush1.bf16.msra.mxu0 0
        %2772 = vmatprep.mubr.bf16.mxu0 0
        %2773 = vmatmul.mubr.bf16.gmra.mrb[0].mxu0 %v2735
        %v2774 = vpop.f32.mrb[0].mxu0
        %v2775 = vadd.f32 0.0, %v2774
        %v2776 = vpop.f32.mrb[0].mxu0
        %v2777 = vpop.f32.mrb[0].mxu0
        %v2778 = vadd.f32 0.0, %v2777
        %v2779 = vpop.f32.mrb[0].mxu0
        %2780 = vmatprep.mubr.bf16.mxu0 0
        %2781 = vmatmul.mubr.bf16.gmra.mrb[0].mxu0 %v2738
        %v2782 = vpop.f32.mrb[0].mxu0
        %v2783 = vadd.f32 0.0, %v2782
        %v2784 = vpop.f32.mrb[0].mxu0
        %v2785 = vpop.f32.mrb[0].mxu0
        %v2786 = vadd.f32 0.0, %v2785
        %v2787 = vpop.f32.mrb[0].mxu0
        %2788 = vdwg.mxu0
        %v2793 = vunpack.c.l.b16 %v2720
        %v2794 = vunpack.c.l.b16 %v2721
        %v2795 = vunpack.c.l.b16 %v2722
        %v2796 = vunpack.c.l.b16 %v2723
        %v2797 = vpack.c.b16 %v2794, %v2793
        %v2798 = vpack.c.b16 %v2796, %v2795
        %v2800 = vsel %vm593, %v2797, 0
        %v2803 = vsel %vm593, %v2798, 0
        %2805 = vmatprep.subr.bf16.mxu0 0
        %2806 = vmatpush1.bf16.msra.mxu0 %v2712
        %2807 = vmatprep.subr.bf16.mxu0 0
        %2808 = vmatpush1.bf16.msra.mxu0 %v2713
        %2809 = vmatprep.subr.bf16.mxu0 0
        %2810 = vmatpush1.bf16.msra.mxu0 0
        %2811 = vmatprep.subr.bf16.mxu0 0
        %2812 = vmatpush1.bf16.msra.mxu0 0
        %2813 = vmatprep.subr.bf16.mxu0 0
        %2814 = vmatpush1.bf16.msra.mxu0 0
        %2815 = vmatprep.subr.bf16.mxu0 0
        %2816 = vmatpush1.bf16.msra.mxu0 0
        %2817 = vmatprep.subr.bf16.mxu0 0
        %2818 = vmatpush1.bf16.msra.mxu0 0
        %2819 = vmatprep.subr.bf16.mxu0 0
        %2820 = vmatpush1.bf16.msra.mxu0 0
        %2821 = vmatprep.subr.bf16.mxu0 0
        %2822 = vmatpush1.bf16.msra.mxu0 0
        %2823 = vmatprep.subr.bf16.mxu0 0
        %2824 = vmatpush1.bf16.msra.mxu0 0
        %2825 = vmatprep.subr.bf16.mxu0 0
        %2826 = vmatpush1.bf16.msra.mxu0 0
        %2827 = vmatprep.subr.bf16.mxu0 0
        %2828 = vmatpush1.bf16.msra.mxu0 0
        %2829 = vmatprep.subr.bf16.mxu0 0
        %2830 = vmatpush1.bf16.msra.mxu0 0
        %2831 = vmatprep.subr.bf16.mxu0 0
        %2832 = vmatpush1.bf16.msra.mxu0 0
        %2833 = vmatprep.subr.bf16.mxu0 0
        %2834 = vmatpush1.bf16.msra.mxu0 0
        %2835 = vmatprep.subr.bf16.mxu0 0
        %2836 = vmatpush1.bf16.msra.mxu0 0
        %2837 = vmatprep.mubr.bf16.mxu0 0
        %2838 = vmatmul.mubr.bf16.gmra.mrb[0].mxu0 %v2800
        %v2839 = vpop.f32.mrb[0].mxu0
        %v2840 = vadd.f32 0.0, %v2839
        %v2841 = vpop.f32.mrb[0].mxu0
        %v2842 = vpop.f32.mrb[0].mxu0
        %v2843 = vadd.f32 0.0, %v2842
        %v2844 = vpop.f32.mrb[0].mxu0
        %2845 = vmatprep.mubr.bf16.mxu0 0
        %2846 = vmatmul.mubr.bf16.gmra.mrb[0].mxu0 %v2803
        %v2847 = vpop.f32.mrb[0].mxu0
        %v2848 = vadd.f32 0.0, %v2847
        %v2849 = vpop.f32.mrb[0].mxu0
        %v2850 = vpop.f32.mrb[0].mxu0
        %v2851 = vadd.f32 0.0, %v2850
        %v2852 = vpop.f32.mrb[0].mxu0
        %2853 = vdwg.mxu0
        %v2854 = vxor.u32 %v2840, 2147483648
        %v2855 = vxor.u32 %v2843, 2147483648
        %v2856 = vxor.u32 %v2848, 2147483648
        %v2857 = vxor.u32 %v2851, 2147483648
        %v2858 = vmul.f32 %v2854, 1.442695
        %v2859 = vpow.pop %v2858
        %v2860 = vmul.f32 %v2855, 1.442695
        %v2861 = vpow.pop %v2860
        %v2862 = vmul.f32 %v2856, 1.442695
        %v2863 = vpow.pop %v2862
        %v2864 = vmul.f32 %v2857, 1.442695
        %v2865 = vpow.pop %v2864
        %v2866 = vadd.f32 %v2859, 1.0
        %v2867 = vadd.f32 %v2861, 1.0
        %v2868 = vadd.f32 %v2863, 1.0
        %v2869 = vadd.f32 %v2865, 1.0
        %v2870 = vrcp.pop %v2866
        %v2871 = vmul.f32 1.0, %v2870
        %v2872 = vrcp.pop %v2867
        %v2873 = vmul.f32 1.0, %v2872
        %v2874 = vrcp.pop %v2868
        %v2875 = vmul.f32 1.0, %v2874
        %v2876 = vrcp.pop %v2869
        %v2877 = vmul.f32 1.0, %v2876
        %v2878 = vmul.f32 %v2775, %v2871
        %v2879 = vmul.f32 %v2778, %v2873
        %v2880 = vmul.f32 %v2783, %v2875
        %v2881 = vmul.f32 %v2786, %v2877
        %v2882 = vadd.f32 %v2708, %v2878
        %v2883 = vadd.f32 %v2709, %v2879
        %v2884 = vadd.f32 %v2710, %v2880
        %v2885 = vadd.f32 %v2711, %v2881
        %v2886 = vmul.f32 %v2882, 0.70710677
        %v2887 = vmul.f32 %v2883, 0.70710677
        %v2888 = vmul.f32 %v2884, 0.70710677
        %v2889 = vmul.f32 %v2885, 0.70710677
        %v2890 = vmax.f32 %v2886, 0.0
        %v2891 = vmax.f32 %v2887, 0.0
        %v2892 = vmax.f32 %v2888, 0.0
        %v2893 = vmax.f32 %v2889, 0.0
        %v2894 = vadd.f32 %v2073, %v2890
        %v2895 = vadd.f32 %v2074, %v2891
        %v2896 = vadd.f32 %v2075, %v2892
        %v2897 = vadd.f32 %v2076, %v2893
        %v2898 = vpack.c.bf16 %v2887, %v2886
        %v2899 = vpack.c.bf16 %v2889, %v2888
        %s2900 = scalar_lea.vmem %s9, 32
        %v2901 = vld [vmem:[%s2900] sm:$0xf]
        %v2902 = vld [vmem:[%s2900 + $0x4] sm:$0xf]
        %v2903 = vld [vmem:[%s2900 + $0x8] sm:$0xf]
        %v2904 = vld [vmem:[%s2900 + $0xc] sm:$0xf]
        %v2909 = vunpack.c.l.b16 %v2901
        %v2910 = vunpack.c.l.b16 %v2902
        %v2911 = vunpack.c.l.b16 %v2903
        %v2912 = vunpack.c.l.b16 %v2904
        %v2913 = vpack.c.b16 %v2910, %v2909
        %v2914 = vpack.c.b16 %v2912, %v2911
        %v2916 = vsel %vm593, %v2913, 0
        %v2919 = vsel %vm593, %v2914, 0
        %2921 = vmatprep.subr.bf16.mxu0 0
        %2922 = vmatpush1.bf16.msra.mxu0 %v2898
        %2923 = vmatprep.subr.bf16.mxu0 0
        %2924 = vmatpush1.bf16.msra.mxu0 %v2899
        %2925 = vmatprep.subr.bf16.mxu0 0
        %2926 = vmatpush1.bf16.msra.mxu0 0
        %2927 = vmatprep.subr.bf16.mxu0 0
        %2928 = vmatpush1.bf16.msra.mxu0 0
        %2929 = vmatprep.subr.bf16.mxu0 0
        %2930 = vmatpush1.bf16.msra.mxu0 0
        %2931 = vmatprep.subr.bf16.mxu0 0
        %2932 = vmatpush1.bf16.msra.mxu0 0
        %2933 = vmatprep.subr.bf16.mxu0 0
        %2934 = vmatpush1.bf16.msra.mxu0 0
        %2935 = vmatprep.subr.bf16.mxu0 0
        %2936 = vmatpush1.bf16.msra.mxu0 0
        %2937 = vmatprep.subr.bf16.mxu0 0
        %2938 = vmatpush1.bf16.msra.mxu0 0
        %2939 = vmatprep.subr.bf16.mxu0 0
        %2940 = vmatpush1.bf16.msra.mxu0 0
        %2941 = vmatprep.subr.bf16.mxu0 0
        %2942 = vmatpush1.bf16.msra.mxu0 0
        %2943 = vmatprep.subr.bf16.mxu0 0
        %2944 = vmatpush1.bf16.msra.mxu0 0
        %2945 = vmatprep.subr.bf16.mxu0 0
        %2946 = vmatpush1.bf16.msra.mxu0 0
        %2947 = vmatprep.subr.bf16.mxu0 0
        %2948 = vmatpush1.bf16.msra.mxu0 0
        %2949 = vmatprep.subr.bf16.mxu0 0
        %2950 = vmatpush1.bf16.msra.mxu0 0
        %2951 = vmatprep.subr.bf16.mxu0 0
        %2952 = vmatpush1.bf16.msra.mxu0 0
        %2953 = vmatprep.mubr.bf16.mxu0 0
        %2954 = vmatmul.mubr.bf16.gmra.mrb[0].mxu0 %v2916
        %v2955 = vpop.f32.mrb[0].mxu0
        %v2956 = vadd.f32 0.0, %v2955
        %v2957 = vpop.f32.mrb[0].mxu0
        %v2958 = vpop.f32.mrb[0].mxu0
        %v2959 = vadd.f32 0.0, %v2958
        %v2960 = vpop.f32.mrb[0].mxu0
        %2961 = vmatprep.mubr.bf16.mxu0 0
        %2962 = vmatmul.mubr.bf16.gmra.mrb[0].mxu0 %v2919
        %v2963 = vpop.f32.mrb[0].mxu0
        %v2964 = vadd.f32 0.0, %v2963
        %v2965 = vpop.f32.mrb[0].mxu0
        %v2966 = vpop.f32.mrb[0].mxu0
        %v2967 = vadd.f32 0.0, %v2966
        %v2968 = vpop.f32.mrb[0].mxu0
        %2969 = vdwg.mxu0
        %v2970 = vmul.f32 %v2956, %v2262
        %v2971 = vmul.f32 %v2959, %v2263
        %v2972 = vmul.f32 %v2964, %v2264
        %v2973 = vmul.f32 %v2967, %v2265
        %v2974 = vmax.f32 %v2970, %v2971
        %v2975 = vmax.f32 %v2972, %v2973
        %v2976 = vmax.f32 %v2974, %v2975
        %v2977 = vrot.slane %v2976, 4
        %v2978 = vmax.f32 %v2976, %v2977
        %v2979 = vrot.slane %v2978, 2
        %v2980 = vmax.f32 %v2978, %v2979
        %v2981 = vrot.slane %v2980, 1
        %v2982 = vmax.f32 %v2980, %v2981
        %v2983 = vadd.f32 %v2970, %v2971
        %v2984 = vadd.f32 %v2983, %v2972
        %v2985 = vadd.f32 %v2984, %v2973
        %v2986 = vrot.slane %v2985, 4
        %v2987 = vadd.f32 %v2985, %v2986
        %v2988 = vrot.slane %v2987, 2
        %v2989 = vadd.f32 %v2987, %v2988
        %v2990 = vrot.slane %v2989, 1
        %v2991 = vadd.f32 %v2989, %v2990
        %v2992 = vsub.f32 %v2982, 1.0
        %v2993 = vsub.f32 %v2991, 1.0
        %v2994 = vmul.f32 %v2993, %v1355
        %v2995 = vmax.f32 %v2992, %v2994
        loop: start=0, step=1, limit=10
        $region107: #{tpu_custom_call.1} parent=67 // loop_pre_header
          _
        $region108: #{tpu_custom_call.1} parent=67 // loop_header
          %s2997 = sphi 0, %s3001
          %p2998 = scmp.ge.s32.totalorder %s2997, 10
          %v3002 = vphi %v2995, %v3036
        $region109: #{tpu_custom_call.1} parent=67 // loop_header_branch
          %3000 = sbr.rel (%p2998) target = $region113
        $region110: #{tpu_custom_call.1} parent=67 // loop_body
          %vm3003 = vcmp.gt.f32.partialorder %v2970, %v3002
          %vm3004 = vcmp.gt.f32.partialorder %v2971, %v3002
          %vm3005 = vcmp.gt.f32.partialorder %v2972, %v3002
          %vm3006 = vcmp.gt.f32.partialorder %v2973, %v3002
          %v3007 = vsel %vm3003, 1.0, 0.0
          %v3008 = vsel %vm3004, 1.0, 0.0
          %v3009 = vsel %vm3005, 1.0, 0.0
          %v3010 = vsel %vm3006, 1.0, 0.0
          %v3011 = vadd.f32 %v3007, %v3008
          %v3012 = vadd.f32 %v3011, %v3009
          %v3013 = vadd.f32 %v3012, %v3010
          %v3014 = vrot.slane %v3013, 4
          %v3015 = vadd.f32 %v3013, %v3014
          %v3016 = vrot.slane %v3015, 2
          %v3017 = vadd.f32 %v3015, %v3016
          %v3018 = vrot.slane %v3017, 1
          %v3019 = vadd.f32 %v3017, %v3018
          %v3020 = vmax.f32 %v3019, 1.0
          %v3021 = vmul.f32 %v3007, %v2970
          %v3022 = vmul.f32 %v3008, %v2971
          %v3023 = vmul.f32 %v3009, %v2972
          %v3024 = vmul.f32 %v3010, %v2973
          %v3025 = vadd.f32 %v3021, %v3022
          %v3026 = vadd.f32 %v3025, %v3023
          %v3027 = vadd.f32 %v3026, %v3024
          %v3028 = vrot.slane %v3027, 4
          %v3029 = vadd.f32 %v3027, %v3028
          %v3030 = vrot.slane %v3029, 2
          %v3031 = vadd.f32 %v3029, %v3030
          %v3032 = vrot.slane %v3031, 1
          %v3033 = vadd.f32 %v3031, %v3032
          %v3034 = vsub.f32 %v3033, 1.0
          %v3035 = vrcp.pop %v3020
          %v3036 = vmul.f32 %v3034, %v3035
        $region111: #{tpu_custom_call.1} parent=67 // loop_footer
          %s3001 = sadd.s32 1, %s2997
        $region112: #{tpu_custom_call.1} parent=67 // loop_footer_branch
          %2996 = sbr.rel target = $region108
        $region113: #{tpu_custom_call.1} parent=67 // loop_exit
          _
        %vm3037 = vcmp.gt.f32.partialorder %v2970, %v3002
        %vm3038 = vcmp.gt.f32.partialorder %v2971, %v3002
        %vm3039 = vcmp.gt.f32.partialorder %v2972, %v3002
        %vm3040 = vcmp.gt.f32.partialorder %v2973, %v3002
        %v3041 = vsel %vm3037, 1.0, 0.0
        %v3042 = vsel %vm3038, 1.0, 0.0
        %v3043 = vsel %vm3039, 1.0, 0.0
        %v3044 = vsel %vm3040, 1.0, 0.0
        %v3045 = vadd.f32 %v3041, %v3042
        %v3046 = vadd.f32 %v3045, %v3043
        %v3047 = vadd.f32 %v3046, %v3044
        %v3048 = vrot.slane %v3047, 4
        %v3049 = vadd.f32 %v3047, %v3048
        %v3050 = vrot.slane %v3049, 2
        %v3051 = vadd.f32 %v3049, %v3050
        %v3052 = vrot.slane %v3051, 1
        %v3053 = vadd.f32 %v3051, %v3052
        %v3054 = vmax.f32 %v3053, 1.0
        %v3055 = vmul.f32 %v3041, %v2970
        %v3056 = vmul.f32 %v3042, %v2971
        %v3057 = vmul.f32 %v3043, %v2972
        %v3058 = vmul.f32 %v3044, %v2973
        %v3059 = vadd.f32 %v3055, %v3056
        %v3060 = vadd.f32 %v3059, %v3057
        %v3061 = vadd.f32 %v3060, %v3058
        %v3062 = vrot.slane %v3061, 4
        %v3063 = vadd.f32 %v3061, %v3062
        %v3064 = vrot.slane %v3063, 2
        %v3065 = vadd.f32 %v3063, %v3064
        %v3066 = vrot.slane %v3065, 1
        %v3067 = vadd.f32 %v3065, %v3066
        %v3068 = vsub.f32 %v3067, 1.0
        %v3069 = vrcp.pop %v3054
        %v3070 = vmul.f32 %v3068, %v3069
        %v3071 = vsub.f32 %v2970, %v3070
        %v3072 = vsub.f32 %v2971, %v3070
        %v3073 = vsub.f32 %v2972, %v3070
        %v3074 = vsub.f32 %v2973, %v3070
        %v3075 = vmax.f32 %v3071, 0.0
        %v3076 = vmax.f32 %v3072, 0.0
        %v3077 = vmax.f32 %v3073, 0.0
        %v3078 = vmax.f32 %v3074, 0.0
        %v3079 = vsub.f32 1.5, %v3075
        %v3080 = vsub.f32 1.5, %v3076
        %v3081 = vsub.f32 1.5, %v3077
        %v3082 = vsub.f32 1.5, %v3078
        %v3083 = vmul.f32 %v3079, %v2262
        %v3084 = vmul.f32 %v3080, %v2263
        %v3085 = vmul.f32 %v3081, %v2264
        %v3086 = vmul.f32 %v3082, %v2265
        %v3087 = vmul.f32 %v3075, %v561
        %v3088 = vmul.f32 %v3076, %v562
        %v3089 = vmul.f32 %v3077, %v563
        %v3090 = vmul.f32 %v3078, %v564
        %v3091 = vpack.c.bf16 %v3088, %v3087
        %v3092 = vpack.c.bf16 %v3090, %v3089
        %3093 = vmatprep.subr.bf16.mxu0 0
        %3094 = vmatpush1.bf16.msra.mxu0 %v3091
        %3095 = vmatprep.subr.bf16.mxu0 0
        %3096 = vmatpush1.bf16.msra.mxu0 %v3092
        %3097 = vmatprep.subr.bf16.mxu0 0
        %3098 = vmatpush1.bf16.msra.mxu0 0
        %3099 = vmatprep.subr.bf16.mxu0 0
        %3100 = vmatpush1.bf16.msra.mxu0 0
        %3101 = vmatprep.subr.bf16.mxu0 0
        %3102 = vmatpush1.bf16.msra.mxu0 0
        %3103 = vmatprep.subr.bf16.mxu0 0
        %3104 = vmatpush1.bf16.msra.mxu0 0
        %3105 = vmatprep.subr.bf16.mxu0 0
        %3106 = vmatpush1.bf16.msra.mxu0 0
        %3107 = vmatprep.subr.bf16.mxu0 0
        %3108 = vmatpush1.bf16.msra.mxu0 0
        %3109 = vmatprep.subr.bf16.mxu0 0
        %3110 = vmatpush1.bf16.msra.mxu0 0
        %3111 = vmatprep.subr.bf16.mxu0 0
        %3112 = vmatpush1.bf16.msra.mxu0 0
        %3113 = vmatprep.subr.bf16.mxu0 0
        %3114 = vmatpush1.bf16.msra.mxu0 0
        %3115 = vmatprep.subr.bf16.mxu0 0
        %3116 = vmatpush1.bf16.msra.mxu0 0
        %3117 = vmatprep.subr.bf16.mxu0 0
        %3118 = vmatpush1.bf16.msra.mxu0 0
        %3119 = vmatprep.subr.bf16.mxu0 0
        %3120 = vmatpush1.bf16.msra.mxu0 0
        %3121 = vmatprep.subr.bf16.mxu0 0
        %3122 = vmatpush1.bf16.msra.mxu0 0
        %3123 = vmatprep.subr.bf16.mxu0 0
        %3124 = vmatpush1.bf16.msra.mxu0 0
        %3125 = vmatprep.mubr.bf16.mxu0 0
        %3126 = vmatmul.mubr.bf16.gmra.mrb[0].mxu0 %v595
        %v3127 = vpop.f32.mrb[0].mxu0
        %v3128 = vadd.f32 0.0, %v3127
        %v3129 = vpop.f32.mrb[0].mxu0
        %v3130 = vpop.f32.mrb[0].mxu0
        %v3131 = vadd.f32 0.0, %v3130
        %v3132 = vpop.f32.mrb[0].mxu0
        %3133 = vmatprep.mubr.bf16.mxu0 0
        %3134 = vmatmul.mubr.bf16.gmra.mrb[0].mxu0 %v598
        %v3135 = vpop.f32.mrb[0].mxu0
        %v3136 = vadd.f32 0.0, %v3135
        %v3137 = vpop.f32.mrb[0].mxu0
        %v3138 = vpop.f32.mrb[0].mxu0
        %v3139 = vadd.f32 0.0, %v3138
        %v3140 = vpop.f32.mrb[0].mxu0
        %3141 = vdwg.mxu0
        %3142 = vmatprep.subr.bf16.mxu0 0
        %3143 = vmatpush1.bf16.msra.mxu0 %v3091
        %3144 = vmatprep.subr.bf16.mxu0 0
        %3145 = vmatpush1.bf16.msra.mxu0 %v3092
        %3146 = vmatprep.subr.bf16.mxu0 0
        %3147 = vmatpush1.bf16.msra.mxu0 0
        %3148 = vmatprep.subr.bf16.mxu0 0
        %3149 = vmatpush1.bf16.msra.mxu0 0
        %3150 = vmatprep.subr.bf16.mxu0 0
        %3151 = vmatpush1.bf16.msra.mxu0 0
        %3152 = vmatprep.subr.bf16.mxu0 0
        %3153 = vmatpush1.bf16.msra.mxu0 0
        %3154 = vmatprep.subr.bf16.mxu0 0
        %3155 = vmatpush1.bf16.msra.mxu0 0
        %3156 = vmatprep.subr.bf16.mxu0 0
        %3157 = vmatpush1.bf16.msra.mxu0 0
        %3158 = vmatprep.subr.bf16.mxu0 0
        %3159 = vmatpush1.bf16.msra.mxu0 0
        %3160 = vmatprep.subr.bf16.mxu0 0
        %3161 = vmatpush1.bf16.msra.mxu0 0
        %3162 = vmatprep.subr.bf16.mxu0 0
        %3163 = vmatpush1.bf16.msra.mxu0 0
        %3164 = vmatprep.subr.bf16.mxu0 0
        %3165 = vmatpush1.bf16.msra.mxu0 0
        %3166 = vmatprep.subr.bf16.mxu0 0
        %3167 = vmatpush1.bf16.msra.mxu0 0
        %3168 = vmatprep.subr.bf16.mxu0 0
        %3169 = vmatpush1.bf16.msra.mxu0 0
        %3170 = vmatprep.subr.bf16.mxu0 0
        %3171 = vmatpush1.bf16.msra.mxu0 0
        %3172 = vmatprep.subr.bf16.mxu0 0
        %3173 = vmatpush1.bf16.msra.mxu0 0
        %3174 = vmatprep.mubr.bf16.mxu0 0
        %3175 = vmatmul.mubr.bf16.gmra.mrb[0].mxu0 %v660
        %v3176 = vpop.f32.mrb[0].mxu0
        %v3177 = vadd.f32 0.0, %v3176
        %v3178 = vpop.f32.mrb[0].mxu0
        %v3179 = vpop.f32.mrb[0].mxu0
        %v3180 = vadd.f32 0.0, %v3179
        %v3181 = vpop.f32.mrb[0].mxu0
        %3182 = vmatprep.mubr.bf16.mxu0 0
        %3183 = vmatmul.mubr.bf16.gmra.mrb[0].mxu0 %v663
        %v3184 = vpop.f32.mrb[0].mxu0
        %v3185 = vadd.f32 0.0, %v3184
        %v3186 = vpop.f32.mrb[0].mxu0
        %v3187 = vpop.f32.mrb[0].mxu0
        %v3188 = vadd.f32 0.0, %v3187
        %v3189 = vpop.f32.mrb[0].mxu0
        %3190 = vdwg.mxu0
        %v3191 = vxor.u32 %v3177, 2147483648
        %v3192 = vxor.u32 %v3180, 2147483648
        %v3193 = vxor.u32 %v3185, 2147483648
        %v3194 = vxor.u32 %v3188, 2147483648
        %v3195 = vmul.f32 %v3191, 1.442695
        %v3196 = vpow.pop %v3195
        %v3197 = vmul.f32 %v3192, 1.442695
        %v3198 = vpow.pop %v3197
        %v3199 = vmul.f32 %v3193, 1.442695
        %v3200 = vpow.pop %v3199
        %v3201 = vmul.f32 %v3194, 1.442695
        %v3202 = vpow.pop %v3201
        %v3203 = vadd.f32 %v3196, 1.0
        %v3204 = vadd.f32 %v3198, 1.0
        %v3205 = vadd.f32 %v3200, 1.0
        %v3206 = vadd.f32 %v3202, 1.0
        %v3207 = vrcp.pop %v3203
        %v3208 = vmul.f32 1.0, %v3207
        %v3209 = vrcp.pop %v3204
        %v3210 = vmul.f32 1.0, %v3209
        %v3211 = vrcp.pop %v3205
        %v3212 = vmul.f32 1.0, %v3211
        %v3213 = vrcp.pop %v3206
        %v3214 = vmul.f32 1.0, %v3213
        %v3215 = vmul.f32 %v3128, %v3208
        %v3216 = vmul.f32 %v3131, %v3210
        %v3217 = vmul.f32 %v3136, %v3212
        %v3218 = vmul.f32 %v3139, %v3214
        %v3219 = vpack.c.bf16 %v3216, %v3215
        %v3220 = vpack.c.bf16 %v3218, %v3217
        %3221 = vmatprep.subr.bf16.mxu0 0
        %3222 = vmatpush1.bf16.msra.mxu0 %v3219
        %3223 = vmatprep.subr.bf16.mxu0 0
        %3224 = vmatpush1.bf16.msra.mxu0 %v3220
        %3225 = vmatprep.subr.bf16.mxu0 0
        %3226 = vmatpush1.bf16.msra.mxu0 0
        %3227 = vmatprep.subr.bf16.mxu0 0
        %3228 = vmatpush1.bf16.msra.mxu0 0
        %3229 = vmatprep.subr.bf16.mxu0 0
        %3230 = vmatpush1.bf16.msra.mxu0 0
        %3231 = vmatprep.subr.bf16.mxu0 0
        %3232 = vmatpush1.bf16.msra.mxu0 0
        %3233 = vmatprep.subr.bf16.mxu0 0
        %3234 = vmatpush1.bf16.msra.mxu0 0
        %3235 = vmatprep.subr.bf16.mxu0 0
        %3236 = vmatpush1.bf16.msra.mxu0 0
        %3237 = vmatprep.subr.bf16.mxu0 0
        %3238 = vmatpush1.bf16.msra.mxu0 0
        %3239 = vmatprep.subr.bf16.mxu0 0
        %3240 = vmatpush1.bf16.msra.mxu0 0
        %3241 = vmatprep.subr.bf16.mxu0 0
        %3242 = vmatpush1.bf16.msra.mxu0 0
        %3243 = vmatprep.subr.bf16.mxu0 0
        %3244 = vmatpush1.bf16.msra.mxu0 0
        %3245 = vmatprep.subr.bf16.mxu0 0
        %3246 = vmatpush1.bf16.msra.mxu0 0
        %3247 = vmatprep.subr.bf16.mxu0 0
        %3248 = vmatpush1.bf16.msra.mxu0 0
        %3249 = vmatprep.subr.bf16.mxu0 0
        %3250 = vmatpush1.bf16.msra.mxu0 0
        %3251 = vmatprep.subr.bf16.mxu0 0
        %3252 = vmatpush1.bf16.msra.mxu0 0
        %3253 = vmatprep.mubr.bf16.mxu0 0
        %3254 = vmatmul.mubr.bf16.gmra.mrb[0].mxu0 %v755
        %v3255 = vpop.f32.mrb[0].mxu0
        %v3256 = vadd.f32 0.0, %v3255
        %v3257 = vpop.f32.mrb[0].mxu0
        %v3258 = vpop.f32.mrb[0].mxu0
        %v3259 = vadd.f32 0.0, %v3258
        %v3260 = vpop.f32.mrb[0].mxu0
        %3261 = vmatprep.mubr.bf16.mxu0 0
        %3262 = vmatmul.mubr.bf16.gmra.mrb[0].mxu0 %v758
        %v3263 = vpop.f32.mrb[0].mxu0
        %v3264 = vadd.f32 0.0, %v3263
        %v3265 = vpop.f32.mrb[0].mxu0
        %v3266 = vpop.f32.mrb[0].mxu0
        %v3267 = vadd.f32 0.0, %v3266
        %v3268 = vpop.f32.mrb[0].mxu0
        %3269 = vdwg.mxu0
        %3270 = vmatprep.subr.bf16.mxu0 0
        %3271 = vmatpush1.bf16.msra.mxu0 %v3219
        %3272 = vmatprep.subr.bf16.mxu0 0
        %3273 = vmatpush1.bf16.msra.mxu0 %v3220
        %3274 = vmatprep.subr.bf16.mxu0 0
        %3275 = vmatpush1.bf16.msra.mxu0 0
        %3276 = vmatprep.subr.bf16.mxu0 0
        %3277 = vmatpush1.bf16.msra.mxu0 0
        %3278 = vmatprep.subr.bf16.mxu0 0
        %3279 = vmatpush1.bf16.msra.mxu0 0
        %3280 = vmatprep.subr.bf16.mxu0 0
        %3281 = vmatpush1.bf16.msra.mxu0 0
        %3282 = vmatprep.subr.bf16.mxu0 0
        %3283 = vmatpush1.bf16.msra.mxu0 0
        %3284 = vmatprep.subr.bf16.mxu0 0
        %3285 = vmatpush1.bf16.msra.mxu0 0
        %3286 = vmatprep.subr.bf16.mxu0 0
        %3287 = vmatpush1.bf16.msra.mxu0 0
        %3288 = vmatprep.subr.bf16.mxu0 0
        %3289 = vmatpush1.bf16.msra.mxu0 0
        %3290 = vmatprep.subr.bf16.mxu0 0
        %3291 = vmatpush1.bf16.msra.mxu0 0
        %3292 = vmatprep.subr.bf16.mxu0 0
        %3293 = vmatpush1.bf16.msra.mxu0 0
        %3294 = vmatprep.subr.bf16.mxu0 0
        %3295 = vmatpush1.bf16.msra.mxu0 0
        %3296 = vmatprep.subr.bf16.mxu0 0
        %3297 = vmatpush1.bf16.msra.mxu0 0
        %3298 = vmatprep.subr.bf16.mxu0 0
        %3299 = vmatpush1.bf16.msra.mxu0 0
        %3300 = vmatprep.subr.bf16.mxu0 0
        %3301 = vmatpush1.bf16.msra.mxu0 0
        %3302 = vmatprep.mubr.bf16.mxu0 0
        %3303 = vmatmul.mubr.bf16.gmra.mrb[0].mxu0 %v820
        %v3304 = vpop.f32.mrb[0].mxu0
        %v3305 = vadd.f32 0.0, %v3304
        %v3306 = vpop.f32.mrb[0].mxu0
        %v3307 = vpop.f32.mrb[0].mxu0
        %v3308 = vadd.f32 0.0, %v3307
        %v3309 = vpop.f32.mrb[0].mxu0
        %3310 = vmatprep.mubr.bf16.mxu0 0
        %3311 = vmatmul.mubr.bf16.gmra.mrb[0].mxu0 %v823
        %v3312 = vpop.f32.mrb[0].mxu0
        %v3313 = vadd.f32 0.0, %v3312
        %v3314 = vpop.f32.mrb[0].mxu0
        %v3315 = vpop.f32.mrb[0].mxu0
        %v3316 = vadd.f32 0.0, %v3315
        %v3317 = vpop.f32.mrb[0].mxu0
        %3318 = vdwg.mxu0
        %v3319 = vxor.u32 %v3305, 2147483648
        %v3320 = vxor.u32 %v3308, 2147483648
        %v3321 = vxor.u32 %v3313, 2147483648
        %v3322 = vxor.u32 %v3316, 2147483648
        %v3323 = vmul.f32 %v3319, 1.442695
        %v3324 = vpow.pop %v3323
        %v3325 = vmul.f32 %v3320, 1.442695
        %v3326 = vpow.pop %v3325
        %v3327 = vmul.f32 %v3321, 1.442695
        %v3328 = vpow.pop %v3327
        %v3329 = vmul.f32 %v3322, 1.442695
        %v3330 = vpow.pop %v3329
        %v3331 = vadd.f32 %v3324, 1.0
        %v3332 = vadd.f32 %v3326, 1.0
        %v3333 = vadd.f32 %v3328, 1.0
        %v3334 = vadd.f32 %v3330, 1.0
        %v3335 = vrcp.pop %v3331
        %v3336 = vmul.f32 1.0, %v3335
        %v3337 = vrcp.pop %v3332
        %v3338 = vmul.f32 1.0, %v3337
        %v3339 = vrcp.pop %v3333
        %v3340 = vmul.f32 1.0, %v3339
        %v3341 = vrcp.pop %v3334
        %v3342 = vmul.f32 1.0, %v3341
        %v3343 = vmul.f32 %v3256, %v3336
        %v3344 = vmul.f32 %v3259, %v3338
        %v3345 = vmul.f32 %v3264, %v3340
        %v3346 = vmul.f32 %v3267, %v3342
        %v3347 = vadd.f32 %v3215, %v3343
        %v3348 = vadd.f32 %v3216, %v3344
        %v3349 = vadd.f32 %v3217, %v3345
        %v3350 = vadd.f32 %v3218, %v3346
        %v3351 = vmul.f32 %v3347, 0.70710677
        %v3352 = vmul.f32 %v3348, 0.70710677
        %v3353 = vmul.f32 %v3349, 0.70710677
        %v3354 = vmul.f32 %v3350, 0.70710677
        %v3355 = vpack.c.bf16 %v3352, %v3351
        %v3356 = vpack.c.bf16 %v3354, %v3353
        %s3357 = scalar_lea.vmem [#allocation10], 96
        %v3358 = vld [vmem:[%s3357] sm:$0xf]
        %v3359 = vld [vmem:[%s3357 + $0x4] sm:$0xf]
        %v3360 = vld [vmem:[%s3357 + $0x8] sm:$0xf]
        %v3361 = vld [vmem:[%s3357 + $0xc] sm:$0xf]
        %s3362 = scalar_lea.vmem [#allocation11], 96
        %v3363 = vld [vmem:[%s3362] sm:$0xf]
        %v3364 = vld [vmem:[%s3362 + $0x4] sm:$0xf]
        %v3365 = vld [vmem:[%s3362 + $0x8] sm:$0xf]
        %v3366 = vld [vmem:[%s3362 + $0xc] sm:$0xf]
        %v3371 = vunpack.c.l.b16 %v3358
        %v3372 = vunpack.c.l.b16 %v3359
        %v3373 = vunpack.c.l.b16 %v3360
        %v3374 = vunpack.c.l.b16 %v3361
        %v3375 = vpack.c.b16 %v3372, %v3371
        %v3376 = vpack.c.b16 %v3374, %v3373
        %v3378 = vsel %vm593, %v3375, 0
        %v3381 = vsel %vm593, %v3376, 0
        %3383 = vmatprep.subr.bf16.mxu0 0
        %3384 = vmatpush1.bf16.msra.mxu0 %v3355
        %3385 = vmatprep.subr.bf16.mxu0 0
        %3386 = vmatpush1.bf16.msra.mxu0 %v3356
        %3387 = vmatprep.subr.bf16.mxu0 0
        %3388 = vmatpush1.bf16.msra.mxu0 0
        %3389 = vmatprep.subr.bf16.mxu0 0
        %3390 = vmatpush1.bf16.msra.mxu0 0
        %3391 = vmatprep.subr.bf16.mxu0 0
        %3392 = vmatpush1.bf16.msra.mxu0 0
        %3393 = vmatprep.subr.bf16.mxu0 0
        %3394 = vmatpush1.bf16.msra.mxu0 0
        %3395 = vmatprep.subr.bf16.mxu0 0
        %3396 = vmatpush1.bf16.msra.mxu0 0
        %3397 = vmatprep.subr.bf16.mxu0 0
        %3398 = vmatpush1.bf16.msra.mxu0 0
        %3399 = vmatprep.subr.bf16.mxu0 0
        %3400 = vmatpush1.bf16.msra.mxu0 0
        %3401 = vmatprep.subr.bf16.mxu0 0
        %3402 = vmatpush1.bf16.msra.mxu0 0
        %3403 = vmatprep.subr.bf16.mxu0 0
        %3404 = vmatpush1.bf16.msra.mxu0 0
        %3405 = vmatprep.subr.bf16.mxu0 0
        %3406 = vmatpush1.bf16.msra.mxu0 0
        %3407 = vmatprep.subr.bf16.mxu0 0
        %3408 = vmatpush1.bf16.msra.mxu0 0
        %3409 = vmatprep.subr.bf16.mxu0 0
        %3410 = vmatpush1.bf16.msra.mxu0 0
        %3411 = vmatprep.subr.bf16.mxu0 0
        %3412 = vmatpush1.bf16.msra.mxu0 0
        %3413 = vmatprep.subr.bf16.mxu0 0
        %3414 = vmatpush1.bf16.msra.mxu0 0
        %3415 = vmatprep.mubr.bf16.mxu0 0
        %3416 = vmatmul.mubr.bf16.gmra.mrb[0].mxu0 %v3378
        %v3417 = vpop.f32.mrb[0].mxu0
        %v3418 = vadd.f32 0.0, %v3417
        %v3419 = vpop.f32.mrb[0].mxu0
        %v3420 = vpop.f32.mrb[0].mxu0
        %v3421 = vadd.f32 0.0, %v3420
        %v3422 = vpop.f32.mrb[0].mxu0
        %3423 = vmatprep.mubr.bf16.mxu0 0
        %3424 = vmatmul.mubr.bf16.gmra.mrb[0].mxu0 %v3381
        %v3425 = vpop.f32.mrb[0].mxu0
        %v3426 = vadd.f32 0.0, %v3425
        %v3427 = vpop.f32.mrb[0].mxu0
        %v3428 = vpop.f32.mrb[0].mxu0
        %v3429 = vadd.f32 0.0, %v3428
        %v3430 = vpop.f32.mrb[0].mxu0
        %3431 = vdwg.mxu0
        %v3436 = vunpack.c.l.b16 %v3363
        %v3437 = vunpack.c.l.b16 %v3364
        %v3438 = vunpack.c.l.b16 %v3365
        %v3439 = vunpack.c.l.b16 %v3366
        %v3440 = vpack.c.b16 %v3437, %v3436
        %v3441 = vpack.c.b16 %v3439, %v3438
        %v3443 = vsel %vm593, %v3440, 0
        %v3446 = vsel %vm593, %v3441, 0
        %3448 = vmatprep.subr.bf16.mxu0 0
        %3449 = vmatpush1.bf16.msra.mxu0 %v3355
        %3450 = vmatprep.subr.bf16.mxu0 0
        %3451 = vmatpush1.bf16.msra.mxu0 %v3356
        %3452 = vmatprep.subr.bf16.mxu0 0
        %3453 = vmatpush1.bf16.msra.mxu0 0
        %3454 = vmatprep.subr.bf16.mxu0 0
        %3455 = vmatpush1.bf16.msra.mxu0 0
        %3456 = vmatprep.subr.bf16.mxu0 0
        %3457 = vmatpush1.bf16.msra.mxu0 0
        %3458 = vmatprep.subr.bf16.mxu0 0
        %3459 = vmatpush1.bf16.msra.mxu0 0
        %3460 = vmatprep.subr.bf16.mxu0 0
        %3461 = vmatpush1.bf16.msra.mxu0 0
        %3462 = vmatprep.subr.bf16.mxu0 0
        %3463 = vmatpush1.bf16.msra.mxu0 0
        %3464 = vmatprep.subr.bf16.mxu0 0
        %3465 = vmatpush1.bf16.msra.mxu0 0
        %3466 = vmatprep.subr.bf16.mxu0 0
        %3467 = vmatpush1.bf16.msra.mxu0 0
        %3468 = vmatprep.subr.bf16.mxu0 0
        %3469 = vmatpush1.bf16.msra.mxu0 0
        %3470 = vmatprep.subr.bf16.mxu0 0
        %3471 = vmatpush1.bf16.msra.mxu0 0
        %3472 = vmatprep.subr.bf16.mxu0 0
        %3473 = vmatpush1.bf16.msra.mxu0 0
        %3474 = vmatprep.subr.bf16.mxu0 0
        %3475 = vmatpush1.bf16.msra.mxu0 0
        %3476 = vmatprep.subr.bf16.mxu0 0
        %3477 = vmatpush1.bf16.msra.mxu0 0
        %3478 = vmatprep.subr.bf16.mxu0 0
        %3479 = vmatpush1.bf16.msra.mxu0 0
        %3480 = vmatprep.mubr.bf16.mxu0 0
        %3481 = vmatmul.mubr.bf16.gmra.mrb[0].mxu0 %v3443
        %v3482 = vpop.f32.mrb[0].mxu0
        %v3483 = vadd.f32 0.0, %v3482
        %v3484 = vpop.f32.mrb[0].mxu0
        %v3485 = vpop.f32.mrb[0].mxu0
        %v3486 = vadd.f32 0.0, %v3485
        %v3487 = vpop.f32.mrb[0].mxu0
        %3488 = vmatprep.mubr.bf16.mxu0 0
        %3489 = vmatmul.mubr.bf16.gmra.mrb[0].mxu0 %v3446
        %v3490 = vpop.f32.mrb[0].mxu0
        %v3491 = vadd.f32 0.0, %v3490
        %v3492 = vpop.f32.mrb[0].mxu0
        %v3493 = vpop.f32.mrb[0].mxu0
        %v3494 = vadd.f32 0.0, %v3493
        %v3495 = vpop.f32.mrb[0].mxu0
        %3496 = vdwg.mxu0
        %v3497 = vxor.u32 %v3483, 2147483648
        %v3498 = vxor.u32 %v3486, 2147483648
        %v3499 = vxor.u32 %v3491, 2147483648
        %v3500 = vxor.u32 %v3494, 2147483648
        %v3501 = vmul.f32 %v3497, 1.442695
        %v3502 = vpow.pop %v3501
        %v3503 = vmul.f32 %v3498, 1.442695
        %v3504 = vpow.pop %v3503
        %v3505 = vmul.f32 %v3499, 1.442695
        %v3506 = vpow.pop %v3505
        %v3507 = vmul.f32 %v3500, 1.442695
        %v3508 = vpow.pop %v3507
        %v3509 = vadd.f32 %v3502, 1.0
        %v3510 = vadd.f32 %v3504, 1.0
        %v3511 = vadd.f32 %v3506, 1.0
        %v3512 = vadd.f32 %v3508, 1.0
        %v3513 = vrcp.pop %v3509
        %v3514 = vmul.f32 1.0, %v3513
        %v3515 = vrcp.pop %v3510
        %v3516 = vmul.f32 1.0, %v3515
        %v3517 = vrcp.pop %v3511
        %v3518 = vmul.f32 1.0, %v3517
        %v3519 = vrcp.pop %v3512
        %v3520 = vmul.f32 1.0, %v3519
        %v3521 = vmul.f32 %v3418, %v3514
        %v3522 = vmul.f32 %v3421, %v3516
        %v3523 = vmul.f32 %v3426, %v3518
        %v3524 = vmul.f32 %v3429, %v3520
        %v3525 = vadd.f32 %v3351, %v3521
        %v3526 = vadd.f32 %v3352, %v3522
        %v3527 = vadd.f32 %v3353, %v3523
        %v3528 = vadd.f32 %v3354, %v3524
        %v3529 = vmul.f32 %v3525, 0.70710677
        %v3530 = vmul.f32 %v3526, 0.70710677
        %v3531 = vmul.f32 %v3527, 0.70710677
        %v3532 = vmul.f32 %v3528, 0.70710677
        %v3533 = vpack.c.bf16 %v3530, %v3529
        %v3534 = vpack.c.bf16 %v3532, %v3531
        %s3535 = scalar_lea.vmem [#allocation10], 112
        %v3536 = vld [vmem:[%s3535] sm:$0xf]
        %v3537 = vld [vmem:[%s3535 + $0x4] sm:$0xf]
        %v3538 = vld [vmem:[%s3535 + $0x8] sm:$0xf]
        %v3539 = vld [vmem:[%s3535 + $0xc] sm:$0xf]
        %s3540 = scalar_lea.vmem [#allocation11], 112
        %v3541 = vld [vmem:[%s3540] sm:$0xf]
        %v3542 = vld [vmem:[%s3540 + $0x4] sm:$0xf]
        %v3543 = vld [vmem:[%s3540 + $0x8] sm:$0xf]
        %v3544 = vld [vmem:[%s3540 + $0xc] sm:$0xf]
        %v3549 = vunpack.c.l.b16 %v3536
        %v3550 = vunpack.c.l.b16 %v3537
        %v3551 = vunpack.c.l.b16 %v3538
        %v3552 = vunpack.c.l.b16 %v3539
        %v3553 = vpack.c.b16 %v3550, %v3549
        %v3554 = vpack.c.b16 %v3552, %v3551
        %v3556 = vsel %vm593, %v3553, 0
        %v3559 = vsel %vm593, %v3554, 0
        %3561 = vmatprep.subr.bf16.mxu0 0
        %3562 = vmatpush1.bf16.msra.mxu0 %v3533
        %3563 = vmatprep.subr.bf16.mxu0 0
        %3564 = vmatpush1.bf16.msra.mxu0 %v3534
        %3565 = vmatprep.subr.bf16.mxu0 0
        %3566 = vmatpush1.bf16.msra.mxu0 0
        %3567 = vmatprep.subr.bf16.mxu0 0
        %3568 = vmatpush1.bf16.msra.mxu0 0
        %3569 = vmatprep.subr.bf16.mxu0 0
        %3570 = vmatpush1.bf16.msra.mxu0 0
        %3571 = vmatprep.subr.bf16.mxu0 0
        %3572 = vmatpush1.bf16.msra.mxu0 0
        %3573 = vmatprep.subr.bf16.mxu0 0
        %3574 = vmatpush1.bf16.msra.mxu0 0
        %3575 = vmatprep.subr.bf16.mxu0 0
        %3576 = vmatpush1.bf16.msra.mxu0 0
        %3577 = vmatprep.subr.bf16.mxu0 0
        %3578 = vmatpush1.bf16.msra.mxu0 0
        %3579 = vmatprep.subr.bf16.mxu0 0
        %3580 = vmatpush1.bf16.msra.mxu0 0
        %3581 = vmatprep.subr.bf16.mxu0 0
        %3582 = vmatpush1.bf16.msra.mxu0 0
        %3583 = vmatprep.subr.bf16.mxu0 0
        %3584 = vmatpush1.bf16.msra.mxu0 0
        %3585 = vmatprep.subr.bf16.mxu0 0
        %3586 = vmatpush1.bf16.msra.mxu0 0
        %3587 = vmatprep.subr.bf16.mxu0 0
        %3588 = vmatpush1.bf16.msra.mxu0 0
        %3589 = vmatprep.subr.bf16.mxu0 0
        %3590 = vmatpush1.bf16.msra.mxu0 0
        %3591 = vmatprep.subr.bf16.mxu0 0
        %3592 = vmatpush1.bf16.msra.mxu0 0
        %3593 = vmatprep.mubr.bf16.mxu0 0
        %3594 = vmatmul.mubr.bf16.gmra.mrb[0].mxu0 %v3556
        %v3595 = vpop.f32.mrb[0].mxu0
        %v3596 = vadd.f32 0.0, %v3595
        %v3597 = vpop.f32.mrb[0].mxu0
        %v3598 = vpop.f32.mrb[0].mxu0
        %v3599 = vadd.f32 0.0, %v3598
        %v3600 = vpop.f32.mrb[0].mxu0
        %3601 = vmatprep.mubr.bf16.mxu0 0
        %3602 = vmatmul.mubr.bf16.gmra.mrb[0].mxu0 %v3559
        %v3603 = vpop.f32.mrb[0].mxu0
        %v3604 = vadd.f32 0.0, %v3603
        %v3605 = vpop.f32.mrb[0].mxu0
        %v3606 = vpop.f32.mrb[0].mxu0
        %v3607 = vadd.f32 0.0, %v3606
        %v3608 = vpop.f32.mrb[0].mxu0
        %3609 = vdwg.mxu0
        %v3614 = vunpack.c.l.b16 %v3541
        %v3615 = vunpack.c.l.b16 %v3542
        %v3616 = vunpack.c.l.b16 %v3543
        %v3617 = vunpack.c.l.b16 %v3544
        %v3618 = vpack.c.b16 %v3615, %v3614
        %v3619 = vpack.c.b16 %v3617, %v3616
        %v3621 = vsel %vm593, %v3618, 0
        %v3624 = vsel %vm593, %v3619, 0
        %3626 = vmatprep.subr.bf16.mxu0 0
        %3627 = vmatpush1.bf16.msra.mxu0 %v3533
        %3628 = vmatprep.subr.bf16.mxu0 0
        %3629 = vmatpush1.bf16.msra.mxu0 %v3534
        %3630 = vmatprep.subr.bf16.mxu0 0
        %3631 = vmatpush1.bf16.msra.mxu0 0
        %3632 = vmatprep.subr.bf16.mxu0 0
        %3633 = vmatpush1.bf16.msra.mxu0 0
        %3634 = vmatprep.subr.bf16.mxu0 0
        %3635 = vmatpush1.bf16.msra.mxu0 0
        %3636 = vmatprep.subr.bf16.mxu0 0
        %3637 = vmatpush1.bf16.msra.mxu0 0
        %3638 = vmatprep.subr.bf16.mxu0 0
        %3639 = vmatpush1.bf16.msra.mxu0 0
        %3640 = vmatprep.subr.bf16.mxu0 0
        %3641 = vmatpush1.bf16.msra.mxu0 0
        %3642 = vmatprep.subr.bf16.mxu0 0
        %3643 = vmatpush1.bf16.msra.mxu0 0
        %3644 = vmatprep.subr.bf16.mxu0 0
        %3645 = vmatpush1.bf16.msra.mxu0 0
        %3646 = vmatprep.subr.bf16.mxu0 0
        %3647 = vmatpush1.bf16.msra.mxu0 0
        %3648 = vmatprep.subr.bf16.mxu0 0
        %3649 = vmatpush1.bf16.msra.mxu0 0
        %3650 = vmatprep.subr.bf16.mxu0 0
        %3651 = vmatpush1.bf16.msra.mxu0 0
        %3652 = vmatprep.subr.bf16.mxu0 0
        %3653 = vmatpush1.bf16.msra.mxu0 0
        %3654 = vmatprep.subr.bf16.mxu0 0
        %3655 = vmatpush1.bf16.msra.mxu0 0
        %3656 = vmatprep.subr.bf16.mxu0 0
        %3657 = vmatpush1.bf16.msra.mxu0 0
        %3658 = vmatprep.mubr.bf16.mxu0 0
        %3659 = vmatmul.mubr.bf16.gmra.mrb[0].mxu0 %v3621
        %v3660 = vpop.f32.mrb[0].mxu0
        %v3661 = vadd.f32 0.0, %v3660
        %v3662 = vpop.f32.mrb[0].mxu0
        %v3663 = vpop.f32.mrb[0].mxu0
        %v3664 = vadd.f32 0.0, %v3663
        %v3665 = vpop.f32.mrb[0].mxu0
        %3666 = vmatprep.mubr.bf16.mxu0 0
        %3667 = vmatmul.mubr.bf16.gmra.mrb[0].mxu0 %v3624
        %v3668 = vpop.f32.mrb[0].mxu0
        %v3669 = vadd.f32 0.0, %v3668
        %v3670 = vpop.f32.mrb[0].mxu0
        %v3671 = vpop.f32.mrb[0].mxu0
        %v3672 = vadd.f32 0.0, %v3671
        %v3673 = vpop.f32.mrb[0].mxu0
        %3674 = vdwg.mxu0
        %v3675 = vxor.u32 %v3661, 2147483648
        %v3676 = vxor.u32 %v3664, 2147483648
        %v3677 = vxor.u32 %v3669, 2147483648
        %v3678 = vxor.u32 %v3672, 2147483648
        %v3679 = vmul.f32 %v3675, 1.442695
        %v3680 = vpow.pop %v3679
        %v3681 = vmul.f32 %v3676, 1.442695
        %v3682 = vpow.pop %v3681
        %v3683 = vmul.f32 %v3677, 1.442695
        %v3684 = vpow.pop %v3683
        %v3685 = vmul.f32 %v3678, 1.442695
        %v3686 = vpow.pop %v3685
        %v3687 = vadd.f32 %v3680, 1.0
        %v3688 = vadd.f32 %v3682, 1.0
        %v3689 = vadd.f32 %v3684, 1.0
        %v3690 = vadd.f32 %v3686, 1.0
        %v3691 = vrcp.pop %v3687
        %v3692 = vmul.f32 1.0, %v3691
        %v3693 = vrcp.pop %v3688
        %v3694 = vmul.f32 1.0, %v3693
        %v3695 = vrcp.pop %v3689
        %v3696 = vmul.f32 1.0, %v3695
        %v3697 = vrcp.pop %v3690
        %v3698 = vmul.f32 1.0, %v3697
        %v3699 = vmul.f32 %v3596, %v3692
        %v3700 = vmul.f32 %v3599, %v3694
        %v3701 = vmul.f32 %v3604, %v3696
        %v3702 = vmul.f32 %v3607, %v3698
        %v3703 = vadd.f32 %v3529, %v3699
        %v3704 = vadd.f32 %v3530, %v3700
        %v3705 = vadd.f32 %v3531, %v3701
        %v3706 = vadd.f32 %v3532, %v3702
        %v3707 = vmul.f32 %v3703, 0.70710677
        %v3708 = vmul.f32 %v3704, 0.70710677
        %v3709 = vmul.f32 %v3705, 0.70710677
        %v3710 = vmul.f32 %v3706, 0.70710677
        %v3711 = vmax.f32 %v3707, 0.0
        %v3712 = vmax.f32 %v3708, 0.0
        %v3713 = vmax.f32 %v3709, 0.0
        %v3714 = vmax.f32 %v3710, 0.0
        %v3715 = vadd.f32 %v2894, %v3711
        %v3716 = vadd.f32 %v2895, %v3712
        %v3717 = vadd.f32 %v2896, %v3713
        %v3718 = vadd.f32 %v2897, %v3714
        %v3719 = vpack.c.bf16 %v3708, %v3707
        %v3720 = vpack.c.bf16 %v3710, %v3709
        %s3721 = scalar_lea.vmem %s9, 48
        %v3722 = vld [vmem:[%s3721] sm:$0xf]
        %v3723 = vld [vmem:[%s3721 + $0x4] sm:$0xf]
        %v3724 = vld [vmem:[%s3721 + $0x8] sm:$0xf]
        %v3725 = vld [vmem:[%s3721 + $0xc] sm:$0xf]
        %v3730 = vunpack.c.l.b16 %v3722
        %v3731 = vunpack.c.l.b16 %v3723
        %v3732 = vunpack.c.l.b16 %v3724
        %v3733 = vunpack.c.l.b16 %v3725
        %v3734 = vpack.c.b16 %v3731, %v3730
        %v3735 = vpack.c.b16 %v3733, %v3732
        %v3737 = vsel %vm593, %v3734, 0
        %v3740 = vsel %vm593, %v3735, 0
        %3742 = vmatprep.subr.bf16.mxu0 0
        %3743 = vmatpush1.bf16.msra.mxu0 %v3719
        %3744 = vmatprep.subr.bf16.mxu0 0
        %3745 = vmatpush1.bf16.msra.mxu0 %v3720
        %3746 = vmatprep.subr.bf16.mxu0 0
        %3747 = vmatpush1.bf16.msra.mxu0 0
        %3748 = vmatprep.subr.bf16.mxu0 0
        %3749 = vmatpush1.bf16.msra.mxu0 0
        %3750 = vmatprep.subr.bf16.mxu0 0
        %3751 = vmatpush1.bf16.msra.mxu0 0
        %3752 = vmatprep.subr.bf16.mxu0 0
        %3753 = vmatpush1.bf16.msra.mxu0 0
        %3754 = vmatprep.subr.bf16.mxu0 0
        %3755 = vmatpush1.bf16.msra.mxu0 0
        %3756 = vmatprep.subr.bf16.mxu0 0
        %3757 = vmatpush1.bf16.msra.mxu0 0
        %3758 = vmatprep.subr.bf16.mxu0 0
        %3759 = vmatpush1.bf16.msra.mxu0 0
        %3760 = vmatprep.subr.bf16.mxu0 0
        %3761 = vmatpush1.bf16.msra.mxu0 0
        %3762 = vmatprep.subr.bf16.mxu0 0
        %3763 = vmatpush1.bf16.msra.mxu0 0
        %3764 = vmatprep.subr.bf16.mxu0 0
        %3765 = vmatpush1.bf16.msra.mxu0 0
        %3766 = vmatprep.subr.bf16.mxu0 0
        %3767 = vmatpush1.bf16.msra.mxu0 0
        %3768 = vmatprep.subr.bf16.mxu0 0
        %3769 = vmatpush1.bf16.msra.mxu0 0
        %3770 = vmatprep.subr.bf16.mxu0 0
        %3771 = vmatpush1.bf16.msra.mxu0 0
        %3772 = vmatprep.subr.bf16.mxu0 0
        %3773 = vmatpush1.bf16.msra.mxu0 0
        %3774 = vmatprep.mubr.bf16.mxu0 0
        %3775 = vmatmul.mubr.bf16.gmra.mrb[0].mxu0 %v3737
        %v3776 = vpop.f32.mrb[0].mxu0
        %v3777 = vadd.f32 0.0, %v3776
        %v3778 = vpop.f32.mrb[0].mxu0
        %v3779 = vpop.f32.mrb[0].mxu0
        %v3780 = vadd.f32 0.0, %v3779
        %v3781 = vpop.f32.mrb[0].mxu0
        %3782 = vmatprep.mubr.bf16.mxu0 0
        %3783 = vmatmul.mubr.bf16.gmra.mrb[0].mxu0 %v3740
        %v3784 = vpop.f32.mrb[0].mxu0
        %v3785 = vadd.f32 0.0, %v3784
        %v3786 = vpop.f32.mrb[0].mxu0
        %v3787 = vpop.f32.mrb[0].mxu0
        %v3788 = vadd.f32 0.0, %v3787
        %v3789 = vpop.f32.mrb[0].mxu0
        %3790 = vdwg.mxu0
        %v3791 = vmul.f32 %v3777, %v3083
        %v3792 = vmul.f32 %v3780, %v3084
        %v3793 = vmul.f32 %v3785, %v3085
        %v3794 = vmul.f32 %v3788, %v3086
        %v3795 = vmax.f32 %v3791, %v3792
        %v3796 = vmax.f32 %v3793, %v3794
        %v3797 = vmax.f32 %v3795, %v3796
        %v3798 = vrot.slane %v3797, 4
        %v3799 = vmax.f32 %v3797, %v3798
        %v3800 = vrot.slane %v3799, 2
        %v3801 = vmax.f32 %v3799, %v3800
        %v3802 = vrot.slane %v3801, 1
        %v3803 = vmax.f32 %v3801, %v3802
        %v3804 = vadd.f32 %v3791, %v3792
        %v3805 = vadd.f32 %v3804, %v3793
        %v3806 = vadd.f32 %v3805, %v3794
        %v3807 = vrot.slane %v3806, 4
        %v3808 = vadd.f32 %v3806, %v3807
        %v3809 = vrot.slane %v3808, 2
        %v3810 = vadd.f32 %v3808, %v3809
        %v3811 = vrot.slane %v3810, 1
        %v3812 = vadd.f32 %v3810, %v3811
        %v3813 = vsub.f32 %v3803, 1.0
        %v3814 = vsub.f32 %v3812, 1.0
        %v3815 = vmul.f32 %v3814, %v1355
        %v3816 = vmax.f32 %v3813, %v3815
        loop: start=0, step=1, limit=10
        $region114: #{tpu_custom_call.1} parent=67 // loop_pre_header
          _
        $region115: #{tpu_custom_call.1} parent=67 // loop_header
          %s3818 = sphi 0, %s3822
          %p3819 = scmp.ge.s32.totalorder %s3818, 10
          %v3823 = vphi %v3816, %v3857
        $region116: #{tpu_custom_call.1} parent=67 // loop_header_branch
          %3821 = sbr.rel (%p3819) target = $region120
        $region117: #{tpu_custom_call.1} parent=67 // loop_body
          %vm3824 = vcmp.gt.f32.partialorder %v3791, %v3823
          %vm3825 = vcmp.gt.f32.partialorder %v3792, %v3823
          %vm3826 = vcmp.gt.f32.partialorder %v3793, %v3823
          %vm3827 = vcmp.gt.f32.partialorder %v3794, %v3823
          %v3828 = vsel %vm3824, 1.0, 0.0
          %v3829 = vsel %vm3825, 1.0, 0.0
          %v3830 = vsel %vm3826, 1.0, 0.0
          %v3831 = vsel %vm3827, 1.0, 0.0
          %v3832 = vadd.f32 %v3828, %v3829
          %v3833 = vadd.f32 %v3832, %v3830
          %v3834 = vadd.f32 %v3833, %v3831
          %v3835 = vrot.slane %v3834, 4
          %v3836 = vadd.f32 %v3834, %v3835
          %v3837 = vrot.slane %v3836, 2
          %v3838 = vadd.f32 %v3836, %v3837
          %v3839 = vrot.slane %v3838, 1
          %v3840 = vadd.f32 %v3838, %v3839
          %v3841 = vmax.f32 %v3840, 1.0
          %v3842 = vmul.f32 %v3828, %v3791
          %v3843 = vmul.f32 %v3829, %v3792
          %v3844 = vmul.f32 %v3830, %v3793
          %v3845 = vmul.f32 %v3831, %v3794
          %v3846 = vadd.f32 %v3842, %v3843
          %v3847 = vadd.f32 %v3846, %v3844
          %v3848 = vadd.f32 %v3847, %v3845
          %v3849 = vrot.slane %v3848, 4
          %v3850 = vadd.f32 %v3848, %v3849
          %v3851 = vrot.slane %v3850, 2
          %v3852 = vadd.f32 %v3850, %v3851
          %v3853 = vrot.slane %v3852, 1
          %v3854 = vadd.f32 %v3852, %v3853
          %v3855 = vsub.f32 %v3854, 1.0
          %v3856 = vrcp.pop %v3841
          %v3857 = vmul.f32 %v3855, %v3856
        $region118: #{tpu_custom_call.1} parent=67 // loop_footer
          %s3822 = sadd.s32 1, %s3818
        $region119: #{tpu_custom_call.1} parent=67 // loop_footer_branch
          %3817 = sbr.rel target = $region115
        $region120: #{tpu_custom_call.1} parent=67 // loop_exit
          _
        %vm3858 = vcmp.gt.f32.partialorder %v3791, %v3823
        %vm3859 = vcmp.gt.f32.partialorder %v3792, %v3823
        %vm3860 = vcmp.gt.f32.partialorder %v3793, %v3823
        %vm3861 = vcmp.gt.f32.partialorder %v3794, %v3823
        %v3862 = vsel %vm3858, 1.0, 0.0
        %v3863 = vsel %vm3859, 1.0, 0.0
        %v3864 = vsel %vm3860, 1.0, 0.0
        %v3865 = vsel %vm3861, 1.0, 0.0
        %v3866 = vadd.f32 %v3862, %v3863
        %v3867 = vadd.f32 %v3866, %v3864
        %v3868 = vadd.f32 %v3867, %v3865
        %v3869 = vrot.slane %v3868, 4
        %v3870 = vadd.f32 %v3868, %v3869
        %v3871 = vrot.slane %v3870, 2
        %v3872 = vadd.f32 %v3870, %v3871
        %v3873 = vrot.slane %v3872, 1
        %v3874 = vadd.f32 %v3872, %v3873
        %v3875 = vmax.f32 %v3874, 1.0
        %v3876 = vmul.f32 %v3862, %v3791
        %v3877 = vmul.f32 %v3863, %v3792
        %v3878 = vmul.f32 %v3864, %v3793
        %v3879 = vmul.f32 %v3865, %v3794
        %v3880 = vadd.f32 %v3876, %v3877
        %v3881 = vadd.f32 %v3880, %v3878
        %v3882 = vadd.f32 %v3881, %v3879
        %v3883 = vrot.slane %v3882, 4
        %v3884 = vadd.f32 %v3882, %v3883
        %v3885 = vrot.slane %v3884, 2
        %v3886 = vadd.f32 %v3884, %v3885
        %v3887 = vrot.slane %v3886, 1
        %v3888 = vadd.f32 %v3886, %v3887
        %v3889 = vsub.f32 %v3888, 1.0
        %v3890 = vrcp.pop %v3875
        %v3891 = vmul.f32 %v3889, %v3890
        %v3892 = vsub.f32 %v3791, %v3891
        %v3893 = vsub.f32 %v3792, %v3891
        %v3894 = vsub.f32 %v3793, %v3891
        %v3895 = vsub.f32 %v3794, %v3891
        %v3896 = vmax.f32 %v3892, 0.0
        %v3897 = vmax.f32 %v3893, 0.0
        %v3898 = vmax.f32 %v3894, 0.0
        %v3899 = vmax.f32 %v3895, 0.0
        %v3900 = vsub.f32 1.5, %v3896
        %v3901 = vsub.f32 1.5, %v3897
        %v3902 = vsub.f32 1.5, %v3898
        %v3903 = vsub.f32 1.5, %v3899
        %v3904 = vmul.f32 %v3900, %v3083
        %v3905 = vmul.f32 %v3901, %v3084
        %v3906 = vmul.f32 %v3902, %v3085
        %v3907 = vmul.f32 %v3903, %v3086
        %v3908 = vmul.f32 %v3896, %v561
        %v3909 = vmul.f32 %v3897, %v562
        %v3910 = vmul.f32 %v3898, %v563
        %v3911 = vmul.f32 %v3899, %v564
        %v3912 = vpack.c.bf16 %v3909, %v3908
        %v3913 = vpack.c.bf16 %v3911, %v3910
        %3914 = vmatprep.subr.bf16.mxu0 0
        %3915 = vmatpush1.bf16.msra.mxu0 %v3912
        %3916 = vmatprep.subr.bf16.mxu0 0
        %3917 = vmatpush1.bf16.msra.mxu0 %v3913
        %3918 = vmatprep.subr.bf16.mxu0 0
        %3919 = vmatpush1.bf16.msra.mxu0 0
        %3920 = vmatprep.subr.bf16.mxu0 0
        %3921 = vmatpush1.bf16.msra.mxu0 0
        %3922 = vmatprep.subr.bf16.mxu0 0
        %3923 = vmatpush1.bf16.msra.mxu0 0
        %3924 = vmatprep.subr.bf16.mxu0 0
        %3925 = vmatpush1.bf16.msra.mxu0 0
        %3926 = vmatprep.subr.bf16.mxu0 0
        %3927 = vmatpush1.bf16.msra.mxu0 0
        %3928 = vmatprep.subr.bf16.mxu0 0
        %3929 = vmatpush1.bf16.msra.mxu0 0
        %3930 = vmatprep.subr.bf16.mxu0 0
        %3931 = vmatpush1.bf16.msra.mxu0 0
        %3932 = vmatprep.subr.bf16.mxu0 0
        %3933 = vmatpush1.bf16.msra.mxu0 0
        %3934 = vmatprep.subr.bf16.mxu0 0
        %3935 = vmatpush1.bf16.msra.mxu0 0
        %3936 = vmatprep.subr.bf16.mxu0 0
        %3937 = vmatpush1.bf16.msra.mxu0 0
        %3938 = vmatprep.subr.bf16.mxu0 0
        %3939 = vmatpush1.bf16.msra.mxu0 0
        %3940 = vmatprep.subr.bf16.mxu0 0
        %3941 = vmatpush1.bf16.msra.mxu0 0
        %3942 = vmatprep.subr.bf16.mxu0 0
        %3943 = vmatpush1.bf16.msra.mxu0 0
        %3944 = vmatprep.subr.bf16.mxu0 0
        %3945 = vmatpush1.bf16.msra.mxu0 0
        %3946 = vmatprep.mubr.bf16.mxu0 0
        %3947 = vmatmul.mubr.bf16.gmra.mrb[0].mxu0 %v595
        %v3948 = vpop.f32.mrb[0].mxu0
        %v3949 = vadd.f32 0.0, %v3948
        %v3950 = vpop.f32.mrb[0].mxu0
        %v3951 = vpop.f32.mrb[0].mxu0
        %v3952 = vadd.f32 0.0, %v3951
        %v3953 = vpop.f32.mrb[0].mxu0
        %3954 = vmatprep.mubr.bf16.mxu0 0
        %3955 = vmatmul.mubr.bf16.gmra.mrb[0].mxu0 %v598
        %v3956 = vpop.f32.mrb[0].mxu0
        %v3957 = vadd.f32 0.0, %v3956
        %v3958 = vpop.f32.mrb[0].mxu0
        %v3959 = vpop.f32.mrb[0].mxu0
        %v3960 = vadd.f32 0.0, %v3959
        %v3961 = vpop.f32.mrb[0].mxu0
        %3962 = vdwg.mxu0
        %3963 = vmatprep.subr.bf16.mxu0 0
        %3964 = vmatpush1.bf16.msra.mxu0 %v3912
        %3965 = vmatprep.subr.bf16.mxu0 0
        %3966 = vmatpush1.bf16.msra.mxu0 %v3913
        %3967 = vmatprep.subr.bf16.mxu0 0
        %3968 = vmatpush1.bf16.msra.mxu0 0
        %3969 = vmatprep.subr.bf16.mxu0 0
        %3970 = vmatpush1.bf16.msra.mxu0 0
        %3971 = vmatprep.subr.bf16.mxu0 0
        %3972 = vmatpush1.bf16.msra.mxu0 0
        %3973 = vmatprep.subr.bf16.mxu0 0
        %3974 = vmatpush1.bf16.msra.mxu0 0
        %3975 = vmatprep.subr.bf16.mxu0 0
        %3976 = vmatpush1.bf16.msra.mxu0 0
        %3977 = vmatprep.subr.bf16.mxu0 0
        %3978 = vmatpush1.bf16.msra.mxu0 0
        %3979 = vmatprep.subr.bf16.mxu0 0
        %3980 = vmatpush1.bf16.msra.mxu0 0
        %3981 = vmatprep.subr.bf16.mxu0 0
        %3982 = vmatpush1.bf16.msra.mxu0 0
        %3983 = vmatprep.subr.bf16.mxu0 0
        %3984 = vmatpush1.bf16.msra.mxu0 0
        %3985 = vmatprep.subr.bf16.mxu0 0
        %3986 = vmatpush1.bf16.msra.mxu0 0
        %3987 = vmatprep.subr.bf16.mxu0 0
        %3988 = vmatpush1.bf16.msra.mxu0 0
        %3989 = vmatprep.subr.bf16.mxu0 0
        %3990 = vmatpush1.bf16.msra.mxu0 0
        %3991 = vmatprep.subr.bf16.mxu0 0
        %3992 = vmatpush1.bf16.msra.mxu0 0
        %3993 = vmatprep.subr.bf16.mxu0 0
        %3994 = vmatpush1.bf16.msra.mxu0 0
        %3995 = vmatprep.mubr.bf16.mxu0 0
        %3996 = vmatmul.mubr.bf16.gmra.mrb[0].mxu0 %v660
        %v3997 = vpop.f32.mrb[0].mxu0
        %v3998 = vadd.f32 0.0, %v3997
        %v3999 = vpop.f32.mrb[0].mxu0
        %v4000 = vpop.f32.mrb[0].mxu0
        %v4001 = vadd.f32 0.0, %v4000
        %v4002 = vpop.f32.mrb[0].mxu0
        %4003 = vmatprep.mubr.bf16.mxu0 0
        %4004 = vmatmul.mubr.bf16.gmra.mrb[0].mxu0 %v663
        %v4005 = vpop.f32.mrb[0].mxu0
        %v4006 = vadd.f32 0.0, %v4005
        %v4007 = vpop.f32.mrb[0].mxu0
        %v4008 = vpop.f32.mrb[0].mxu0
        %v4009 = vadd.f32 0.0, %v4008
        %v4010 = vpop.f32.mrb[0].mxu0
        %4011 = vdwg.mxu0
        %v4012 = vxor.u32 %v3998, 2147483648
        %v4013 = vxor.u32 %v4001, 2147483648
        %v4014 = vxor.u32 %v4006, 2147483648
        %v4015 = vxor.u32 %v4009, 2147483648
        %v4016 = vmul.f32 %v4012, 1.442695
        %v4017 = vpow.pop %v4016
        %v4018 = vmul.f32 %v4013, 1.442695
        %v4019 = vpow.pop %v4018
        %v4020 = vmul.f32 %v4014, 1.442695
        %v4021 = vpow.pop %v4020
        %v4022 = vmul.f32 %v4015, 1.442695
        %v4023 = vpow.pop %v4022
        %v4024 = vadd.f32 %v4017, 1.0
        %v4025 = vadd.f32 %v4019, 1.0
        %v4026 = vadd.f32 %v4021, 1.0
        %v4027 = vadd.f32 %v4023, 1.0
        %v4028 = vrcp.pop %v4024
        %v4029 = vmul.f32 1.0, %v4028
        %v4030 = vrcp.pop %v4025
        %v4031 = vmul.f32 1.0, %v4030
        %v4032 = vrcp.pop %v4026
        %v4033 = vmul.f32 1.0, %v4032
        %v4034 = vrcp.pop %v4027
        %v4035 = vmul.f32 1.0, %v4034
        %v4036 = vmul.f32 %v3949, %v4029
        %v4037 = vmul.f32 %v3952, %v4031
        %v4038 = vmul.f32 %v3957, %v4033
        %v4039 = vmul.f32 %v3960, %v4035
        %v4040 = vpack.c.bf16 %v4037, %v4036
        %v4041 = vpack.c.bf16 %v4039, %v4038
        %4042 = vmatprep.subr.bf16.mxu0 0
        %4043 = vmatpush1.bf16.msra.mxu0 %v4040
        %4044 = vmatprep.subr.bf16.mxu0 0
        %4045 = vmatpush1.bf16.msra.mxu0 %v4041
        %4046 = vmatprep.subr.bf16.mxu0 0
        %4047 = vmatpush1.bf16.msra.mxu0 0
        %4048 = vmatprep.subr.bf16.mxu0 0
        %4049 = vmatpush1.bf16.msra.mxu0 0
        %4050 = vmatprep.subr.bf16.mxu0 0
        %4051 = vmatpush1.bf16.msra.mxu0 0
        %4052 = vmatprep.subr.bf16.mxu0 0
        %4053 = vmatpush1.bf16.msra.mxu0 0
        %4054 = vmatprep.subr.bf16.mxu0 0
        %4055 = vmatpush1.bf16.msra.mxu0 0
        %4056 = vmatprep.subr.bf16.mxu0 0
        %4057 = vmatpush1.bf16.msra.mxu0 0
        %4058 = vmatprep.subr.bf16.mxu0 0
        %4059 = vmatpush1.bf16.msra.mxu0 0
        %4060 = vmatprep.subr.bf16.mxu0 0
        %4061 = vmatpush1.bf16.msra.mxu0 0
        %4062 = vmatprep.subr.bf16.mxu0 0
        %4063 = vmatpush1.bf16.msra.mxu0 0
        %4064 = vmatprep.subr.bf16.mxu0 0
        %4065 = vmatpush1.bf16.msra.mxu0 0
        %4066 = vmatprep.subr.bf16.mxu0 0
        %4067 = vmatpush1.bf16.msra.mxu0 0
        %4068 = vmatprep.subr.bf16.mxu0 0
        %4069 = vmatpush1.bf16.msra.mxu0 0
        %4070 = vmatprep.subr.bf16.mxu0 0
        %4071 = vmatpush1.bf16.msra.mxu0 0
        %4072 = vmatprep.subr.bf16.mxu0 0
        %4073 = vmatpush1.bf16.msra.mxu0 0
        %4074 = vmatprep.mubr.bf16.mxu0 0
        %4075 = vmatmul.mubr.bf16.gmra.mrb[0].mxu0 %v755
        %v4076 = vpop.f32.mrb[0].mxu0
        %v4077 = vadd.f32 0.0, %v4076
        %v4078 = vpop.f32.mrb[0].mxu0
        %v4079 = vpop.f32.mrb[0].mxu0
        %v4080 = vadd.f32 0.0, %v4079
        %v4081 = vpop.f32.mrb[0].mxu0
        %4082 = vmatprep.mubr.bf16.mxu0 0
        %4083 = vmatmul.mubr.bf16.gmra.mrb[0].mxu0 %v758
        %v4084 = vpop.f32.mrb[0].mxu0
        %v4085 = vadd.f32 0.0, %v4084
        %v4086 = vpop.f32.mrb[0].mxu0
        %v4087 = vpop.f32.mrb[0].mxu0
        %v4088 = vadd.f32 0.0, %v4087
        %v4089 = vpop.f32.mrb[0].mxu0
        %4090 = vdwg.mxu0
        %4091 = vmatprep.subr.bf16.mxu0 0
        %4092 = vmatpush1.bf16.msra.mxu0 %v4040
        %4093 = vmatprep.subr.bf16.mxu0 0
        %4094 = vmatpush1.bf16.msra.mxu0 %v4041
        %4095 = vmatprep.subr.bf16.mxu0 0
        %4096 = vmatpush1.bf16.msra.mxu0 0
        %4097 = vmatprep.subr.bf16.mxu0 0
        %4098 = vmatpush1.bf16.msra.mxu0 0
        %4099 = vmatprep.subr.bf16.mxu0 0
        %4100 = vmatpush1.bf16.msra.mxu0 0
        %4101 = vmatprep.subr.bf16.mxu0 0
        %4102 = vmatpush1.bf16.msra.mxu0 0
        %4103 = vmatprep.subr.bf16.mxu0 0
        %4104 = vmatpush1.bf16.msra.mxu0 0
        %4105 = vmatprep.subr.bf16.mxu0 0
        %4106 = vmatpush1.bf16.msra.mxu0 0
        %4107 = vmatprep.subr.bf16.mxu0 0
        %4108 = vmatpush1.bf16.msra.mxu0 0
        %4109 = vmatprep.subr.bf16.mxu0 0
        %4110 = vmatpush1.bf16.msra.mxu0 0
        %4111 = vmatprep.subr.bf16.mxu0 0
        %4112 = vmatpush1.bf16.msra.mxu0 0
        %4113 = vmatprep.subr.bf16.mxu0 0
        %4114 = vmatpush1.bf16.msra.mxu0 0
        %4115 = vmatprep.subr.bf16.mxu0 0
        %4116 = vmatpush1.bf16.msra.mxu0 0
        %4117 = vmatprep.subr.bf16.mxu0 0
        %4118 = vmatpush1.bf16.msra.mxu0 0
        %4119 = vmatprep.subr.bf16.mxu0 0
        %4120 = vmatpush1.bf16.msra.mxu0 0
        %4121 = vmatprep.subr.bf16.mxu0 0
        %4122 = vmatpush1.bf16.msra.mxu0 0
        %4123 = vmatprep.mubr.bf16.mxu0 0
        %4124 = vmatmul.mubr.bf16.gmra.mrb[0].mxu0 %v820
        %v4125 = vpop.f32.mrb[0].mxu0
        %v4126 = vadd.f32 0.0, %v4125
        %v4127 = vpop.f32.mrb[0].mxu0
        %v4128 = vpop.f32.mrb[0].mxu0
        %v4129 = vadd.f32 0.0, %v4128
        %v4130 = vpop.f32.mrb[0].mxu0
        %4131 = vmatprep.mubr.bf16.mxu0 0
        %4132 = vmatmul.mubr.bf16.gmra.mrb[0].mxu0 %v823
        %v4133 = vpop.f32.mrb[0].mxu0
        %v4134 = vadd.f32 0.0, %v4133
        %v4135 = vpop.f32.mrb[0].mxu0
        %v4136 = vpop.f32.mrb[0].mxu0
        %v4137 = vadd.f32 0.0, %v4136
        %v4138 = vpop.f32.mrb[0].mxu0
        %4139 = vdwg.mxu0
        %v4140 = vxor.u32 %v4126, 2147483648
        %v4141 = vxor.u32 %v4129, 2147483648
        %v4142 = vxor.u32 %v4134, 2147483648
        %v4143 = vxor.u32 %v4137, 2147483648
        %v4144 = vmul.f32 %v4140, 1.442695
        %v4145 = vpow.pop %v4144
        %v4146 = vmul.f32 %v4141, 1.442695
        %v4147 = vpow.pop %v4146
        %v4148 = vmul.f32 %v4142, 1.442695
        %v4149 = vpow.pop %v4148
        %v4150 = vmul.f32 %v4143, 1.442695
        %v4151 = vpow.pop %v4150
        %v4152 = vadd.f32 %v4145, 1.0
        %v4153 = vadd.f32 %v4147, 1.0
        %v4154 = vadd.f32 %v4149, 1.0
        %v4155 = vadd.f32 %v4151, 1.0
        %v4156 = vrcp.pop %v4152
        %v4157 = vmul.f32 1.0, %v4156
        %v4158 = vrcp.pop %v4153
        %v4159 = vmul.f32 1.0, %v4158
        %v4160 = vrcp.pop %v4154
        %v4161 = vmul.f32 1.0, %v4160
        %v4162 = vrcp.pop %v4155
        %v4163 = vmul.f32 1.0, %v4162
        %v4164 = vmul.f32 %v4077, %v4157
        %v4165 = vmul.f32 %v4080, %v4159
        %v4166 = vmul.f32 %v4085, %v4161
        %v4167 = vmul.f32 %v4088, %v4163
        %v4168 = vadd.f32 %v4036, %v4164
        %v4169 = vadd.f32 %v4037, %v4165
        %v4170 = vadd.f32 %v4038, %v4166
        %v4171 = vadd.f32 %v4039, %v4167
        %v4172 = vmul.f32 %v4168, 0.70710677
        %v4173 = vmul.f32 %v4169, 0.70710677
        %v4174 = vmul.f32 %v4170, 0.70710677
        %v4175 = vmul.f32 %v4171, 0.70710677
        %v4176 = vpack.c.bf16 %v4173, %v4172
        %v4177 = vpack.c.bf16 %v4175, %v4174
        %s4178 = scalar_lea.vmem [#allocation10], 128
        %v4179 = vld [vmem:[%s4178] sm:$0xf]
        %v4180 = vld [vmem:[%s4178 + $0x4] sm:$0xf]
        %v4181 = vld [vmem:[%s4178 + $0x8] sm:$0xf]
        %v4182 = vld [vmem:[%s4178 + $0xc] sm:$0xf]
        %s4183 = scalar_lea.vmem [#allocation11], 128
        %v4184 = vld [vmem:[%s4183] sm:$0xf]
        %v4185 = vld [vmem:[%s4183 + $0x4] sm:$0xf]
        %v4186 = vld [vmem:[%s4183 + $0x8] sm:$0xf]
        %v4187 = vld [vmem:[%s4183 + $0xc] sm:$0xf]
        %v4192 = vunpack.c.l.b16 %v4179
        %v4193 = vunpack.c.l.b16 %v4180
        %v4194 = vunpack.c.l.b16 %v4181
        %v4195 = vunpack.c.l.b16 %v4182
        %v4196 = vpack.c.b16 %v4193, %v4192
        %v4197 = vpack.c.b16 %v4195, %v4194
        %v4199 = vsel %vm593, %v4196, 0
        %v4202 = vsel %vm593, %v4197, 0
        %4204 = vmatprep.subr.bf16.mxu0 0
        %4205 = vmatpush1.bf16.msra.mxu0 %v4176
        %4206 = vmatprep.subr.bf16.mxu0 0
        %4207 = vmatpush1.bf16.msra.mxu0 %v4177
        %4208 = vmatprep.subr.bf16.mxu0 0
        %4209 = vmatpush1.bf16.msra.mxu0 0
        %4210 = vmatprep.subr.bf16.mxu0 0
        %4211 = vmatpush1.bf16.msra.mxu0 0
        %4212 = vmatprep.subr.bf16.mxu0 0
        %4213 = vmatpush1.bf16.msra.mxu0 0
        %4214 = vmatprep.subr.bf16.mxu0 0
        %4215 = vmatpush1.bf16.msra.mxu0 0
        %4216 = vmatprep.subr.bf16.mxu0 0
        %4217 = vmatpush1.bf16.msra.mxu0 0
        %4218 = vmatprep.subr.bf16.mxu0 0
        %4219 = vmatpush1.bf16.msra.mxu0 0
        %4220 = vmatprep.subr.bf16.mxu0 0
        %4221 = vmatpush1.bf16.msra.mxu0 0
        %4222 = vmatprep.subr.bf16.mxu0 0
        %4223 = vmatpush1.bf16.msra.mxu0 0
        %4224 = vmatprep.subr.bf16.mxu0 0
        %4225 = vmatpush1.bf16.msra.mxu0 0
        %4226 = vmatprep.subr.bf16.mxu0 0
        %4227 = vmatpush1.bf16.msra.mxu0 0
        %4228 = vmatprep.subr.bf16.mxu0 0
        %4229 = vmatpush1.bf16.msra.mxu0 0
        %4230 = vmatprep.subr.bf16.mxu0 0
        %4231 = vmatpush1.bf16.msra.mxu0 0
        %4232 = vmatprep.subr.bf16.mxu0 0
        %4233 = vmatpush1.bf16.msra.mxu0 0
        %4234 = vmatprep.subr.bf16.mxu0 0
        %4235 = vmatpush1.bf16.msra.mxu0 0
        %4236 = vmatprep.mubr.bf16.mxu0 0
        %4237 = vmatmul.mubr.bf16.gmra.mrb[0].mxu0 %v4199
        %v4238 = vpop.f32.mrb[0].mxu0
        %v4239 = vadd.f32 0.0, %v4238
        %v4240 = vpop.f32.mrb[0].mxu0
        %v4241 = vpop.f32.mrb[0].mxu0
        %v4242 = vadd.f32 0.0, %v4241
        %v4243 = vpop.f32.mrb[0].mxu0
        %4244 = vmatprep.mubr.bf16.mxu0 0
        %4245 = vmatmul.mubr.bf16.gmra.mrb[0].mxu0 %v4202
        %v4246 = vpop.f32.mrb[0].mxu0
        %v4247 = vadd.f32 0.0, %v4246
        %v4248 = vpop.f32.mrb[0].mxu0
        %v4249 = vpop.f32.mrb[0].mxu0
        %v4250 = vadd.f32 0.0, %v4249
        %v4251 = vpop.f32.mrb[0].mxu0
        %4252 = vdwg.mxu0
        %v4257 = vunpack.c.l.b16 %v4184
        %v4258 = vunpack.c.l.b16 %v4185
        %v4259 = vunpack.c.l.b16 %v4186
        %v4260 = vunpack.c.l.b16 %v4187
        %v4261 = vpack.c.b16 %v4258, %v4257
        %v4262 = vpack.c.b16 %v4260, %v4259
        %v4264 = vsel %vm593, %v4261, 0
        %v4267 = vsel %vm593, %v4262, 0
        %4269 = vmatprep.subr.bf16.mxu0 0
        %4270 = vmatpush1.bf16.msra.mxu0 %v4176
        %4271 = vmatprep.subr.bf16.mxu0 0
        %4272 = vmatpush1.bf16.msra.mxu0 %v4177
        %4273 = vmatprep.subr.bf16.mxu0 0
        %4274 = vmatpush1.bf16.msra.mxu0 0
        %4275 = vmatprep.subr.bf16.mxu0 0
        %4276 = vmatpush1.bf16.msra.mxu0 0
        %4277 = vmatprep.subr.bf16.mxu0 0
        %4278 = vmatpush1.bf16.msra.mxu0 0
        %4279 = vmatprep.subr.bf16.mxu0 0
        %4280 = vmatpush1.bf16.msra.mxu0 0
        %4281 = vmatprep.subr.bf16.mxu0 0
        %4282 = vmatpush1.bf16.msra.mxu0 0
        %4283 = vmatprep.subr.bf16.mxu0 0
        %4284 = vmatpush1.bf16.msra.mxu0 0
        %4285 = vmatprep.subr.bf16.mxu0 0
        %4286 = vmatpush1.bf16.msra.mxu0 0
        %4287 = vmatprep.subr.bf16.mxu0 0
        %4288 = vmatpush1.bf16.msra.mxu0 0
        %4289 = vmatprep.subr.bf16.mxu0 0
        %4290 = vmatpush1.bf16.msra.mxu0 0
        %4291 = vmatprep.subr.bf16.mxu0 0
        %4292 = vmatpush1.bf16.msra.mxu0 0
        %4293 = vmatprep.subr.bf16.mxu0 0
        %4294 = vmatpush1.bf16.msra.mxu0 0
        %4295 = vmatprep.subr.bf16.mxu0 0
        %4296 = vmatpush1.bf16.msra.mxu0 0
        %4297 = vmatprep.subr.bf16.mxu0 0
        %4298 = vmatpush1.bf16.msra.mxu0 0
        %4299 = vmatprep.subr.bf16.mxu0 0
        %4300 = vmatpush1.bf16.msra.mxu0 0
        %4301 = vmatprep.mubr.bf16.mxu0 0
        %4302 = vmatmul.mubr.bf16.gmra.mrb[0].mxu0 %v4264
        %v4303 = vpop.f32.mrb[0].mxu0
        %v4304 = vadd.f32 0.0, %v4303
        %v4305 = vpop.f32.mrb[0].mxu0
        %v4306 = vpop.f32.mrb[0].mxu0
        %v4307 = vadd.f32 0.0, %v4306
        %v4308 = vpop.f32.mrb[0].mxu0
        %4309 = vmatprep.mubr.bf16.mxu0 0
        %4310 = vmatmul.mubr.bf16.gmra.mrb[0].mxu0 %v4267
        %v4311 = vpop.f32.mrb[0].mxu0
        %v4312 = vadd.f32 0.0, %v4311
        %v4313 = vpop.f32.mrb[0].mxu0
        %v4314 = vpop.f32.mrb[0].mxu0
        %v4315 = vadd.f32 0.0, %v4314
        %v4316 = vpop.f32.mrb[0].mxu0
        %4317 = vdwg.mxu0
        %v4318 = vxor.u32 %v4304, 2147483648
        %v4319 = vxor.u32 %v4307, 2147483648
        %v4320 = vxor.u32 %v4312, 2147483648
        %v4321 = vxor.u32 %v4315, 2147483648
        %v4322 = vmul.f32 %v4318, 1.442695
        %v4323 = vpow.pop %v4322
        %v4324 = vmul.f32 %v4319, 1.442695
        %v4325 = vpow.pop %v4324
        %v4326 = vmul.f32 %v4320, 1.442695
        %v4327 = vpow.pop %v4326
        %v4328 = vmul.f32 %v4321, 1.442695
        %v4329 = vpow.pop %v4328
        %v4330 = vadd.f32 %v4323, 1.0
        %v4331 = vadd.f32 %v4325, 1.0
        %v4332 = vadd.f32 %v4327, 1.0
        %v4333 = vadd.f32 %v4329, 1.0
        %v4334 = vrcp.pop %v4330
        %v4335 = vmul.f32 1.0, %v4334
        %v4336 = vrcp.pop %v4331
        %v4337 = vmul.f32 1.0, %v4336
        %v4338 = vrcp.pop %v4332
        %v4339 = vmul.f32 1.0, %v4338
        %v4340 = vrcp.pop %v4333
        %v4341 = vmul.f32 1.0, %v4340
        %v4342 = vmul.f32 %v4239, %v4335
        %v4343 = vmul.f32 %v4242, %v4337
        %v4344 = vmul.f32 %v4247, %v4339
        %v4345 = vmul.f32 %v4250, %v4341
        %v4346 = vadd.f32 %v4172, %v4342
        %v4347 = vadd.f32 %v4173, %v4343
        %v4348 = vadd.f32 %v4174, %v4344
        %v4349 = vadd.f32 %v4175, %v4345
        %v4350 = vmul.f32 %v4346, 0.70710677
        %v4351 = vmul.f32 %v4347, 0.70710677
        %v4352 = vmul.f32 %v4348, 0.70710677
        %v4353 = vmul.f32 %v4349, 0.70710677
        %v4354 = vpack.c.bf16 %v4351, %v4350
        %v4355 = vpack.c.bf16 %v4353, %v4352
        %s4356 = scalar_lea.vmem [#allocation10], 144
        %v4357 = vld [vmem:[%s4356] sm:$0xf]
        %v4358 = vld [vmem:[%s4356 + $0x4] sm:$0xf]
        %v4359 = vld [vmem:[%s4356 + $0x8] sm:$0xf]
        %v4360 = vld [vmem:[%s4356 + $0xc] sm:$0xf]
        %s4361 = scalar_lea.vmem [#allocation11], 144
        %v4362 = vld [vmem:[%s4361] sm:$0xf]
        %v4363 = vld [vmem:[%s4361 + $0x4] sm:$0xf]
        %v4364 = vld [vmem:[%s4361 + $0x8] sm:$0xf]
        %v4365 = vld [vmem:[%s4361 + $0xc] sm:$0xf]
        %v4370 = vunpack.c.l.b16 %v4357
        %v4371 = vunpack.c.l.b16 %v4358
        %v4372 = vunpack.c.l.b16 %v4359
        %v4373 = vunpack.c.l.b16 %v4360
        %v4374 = vpack.c.b16 %v4371, %v4370
        %v4375 = vpack.c.b16 %v4373, %v4372
        %v4377 = vsel %vm593, %v4374, 0
        %v4380 = vsel %vm593, %v4375, 0
        %4382 = vmatprep.subr.bf16.mxu0 0
        %4383 = vmatpush1.bf16.msra.mxu0 %v4354
        %4384 = vmatprep.subr.bf16.mxu0 0
        %4385 = vmatpush1.bf16.msra.mxu0 %v4355
        %4386 = vmatprep.subr.bf16.mxu0 0
        %4387 = vmatpush1.bf16.msra.mxu0 0
        %4388 = vmatprep.subr.bf16.mxu0 0
        %4389 = vmatpush1.bf16.msra.mxu0 0
        %4390 = vmatprep.subr.bf16.mxu0 0
        %4391 = vmatpush1.bf16.msra.mxu0 0
        %4392 = vmatprep.subr.bf16.mxu0 0
        %4393 = vmatpush1.bf16.msra.mxu0 0
        %4394 = vmatprep.subr.bf16.mxu0 0
        %4395 = vmatpush1.bf16.msra.mxu0 0
        %4396 = vmatprep.subr.bf16.mxu0 0
        %4397 = vmatpush1.bf16.msra.mxu0 0
        %4398 = vmatprep.subr.bf16.mxu0 0
        %4399 = vmatpush1.bf16.msra.mxu0 0
        %4400 = vmatprep.subr.bf16.mxu0 0
        %4401 = vmatpush1.bf16.msra.mxu0 0
        %4402 = vmatprep.subr.bf16.mxu0 0
        %4403 = vmatpush1.bf16.msra.mxu0 0
        %4404 = vmatprep.subr.bf16.mxu0 0
        %4405 = vmatpush1.bf16.msra.mxu0 0
        %4406 = vmatprep.subr.bf16.mxu0 0
        %4407 = vmatpush1.bf16.msra.mxu0 0
        %4408 = vmatprep.subr.bf16.mxu0 0
        %4409 = vmatpush1.bf16.msra.mxu0 0
        %4410 = vmatprep.subr.bf16.mxu0 0
        %4411 = vmatpush1.bf16.msra.mxu0 0
        %4412 = vmatprep.subr.bf16.mxu0 0
        %4413 = vmatpush1.bf16.msra.mxu0 0
        %4414 = vmatprep.mubr.bf16.mxu0 0
        %4415 = vmatmul.mubr.bf16.gmra.mrb[0].mxu0 %v4377
        %v4416 = vpop.f32.mrb[0].mxu0
        %v4417 = vadd.f32 0.0, %v4416
        %v4418 = vpop.f32.mrb[0].mxu0
        %v4419 = vpop.f32.mrb[0].mxu0
        %v4420 = vadd.f32 0.0, %v4419
        %v4421 = vpop.f32.mrb[0].mxu0
        %4422 = vmatprep.mubr.bf16.mxu0 0
        %4423 = vmatmul.mubr.bf16.gmra.mrb[0].mxu0 %v4380
        %v4424 = vpop.f32.mrb[0].mxu0
        %v4425 = vadd.f32 0.0, %v4424
        %v4426 = vpop.f32.mrb[0].mxu0
        %v4427 = vpop.f32.mrb[0].mxu0
        %v4428 = vadd.f32 0.0, %v4427
        %v4429 = vpop.f32.mrb[0].mxu0
        %4430 = vdwg.mxu0
        %v4435 = vunpack.c.l.b16 %v4362
        %v4436 = vunpack.c.l.b16 %v4363
        %v4437 = vunpack.c.l.b16 %v4364
        %v4438 = vunpack.c.l.b16 %v4365
        %v4439 = vpack.c.b16 %v4436, %v4435
        %v4440 = vpack.c.b16 %v4438, %v4437
        %v4442 = vsel %vm593, %v4439, 0
        %v4445 = vsel %vm593, %v4440, 0
        %4447 = vmatprep.subr.bf16.mxu0 0
        %4448 = vmatpush1.bf16.msra.mxu0 %v4354
        %4449 = vmatprep.subr.bf16.mxu0 0
        %4450 = vmatpush1.bf16.msra.mxu0 %v4355
        %4451 = vmatprep.subr.bf16.mxu0 0
        %4452 = vmatpush1.bf16.msra.mxu0 0
        %4453 = vmatprep.subr.bf16.mxu0 0
        %4454 = vmatpush1.bf16.msra.mxu0 0
        %4455 = vmatprep.subr.bf16.mxu0 0
        %4456 = vmatpush1.bf16.msra.mxu0 0
        %4457 = vmatprep.subr.bf16.mxu0 0
        %4458 = vmatpush1.bf16.msra.mxu0 0
        %4459 = vmatprep.subr.bf16.mxu0 0
        %4460 = vmatpush1.bf16.msra.mxu0 0
        %4461 = vmatprep.subr.bf16.mxu0 0
        %4462 = vmatpush1.bf16.msra.mxu0 0
        %4463 = vmatprep.subr.bf16.mxu0 0
        %4464 = vmatpush1.bf16.msra.mxu0 0
        %4465 = vmatprep.subr.bf16.mxu0 0
        %4466 = vmatpush1.bf16.msra.mxu0 0
        %4467 = vmatprep.subr.bf16.mxu0 0
        %4468 = vmatpush1.bf16.msra.mxu0 0
        %4469 = vmatprep.subr.bf16.mxu0 0
        %4470 = vmatpush1.bf16.msra.mxu0 0
        %4471 = vmatprep.subr.bf16.mxu0 0
        %4472 = vmatpush1.bf16.msra.mxu0 0
        %4473 = vmatprep.subr.bf16.mxu0 0
        %4474 = vmatpush1.bf16.msra.mxu0 0
        %4475 = vmatprep.subr.bf16.mxu0 0
        %4476 = vmatpush1.bf16.msra.mxu0 0
        %4477 = vmatprep.subr.bf16.mxu0 0
        %4478 = vmatpush1.bf16.msra.mxu0 0
        %4479 = vmatprep.mubr.bf16.mxu0 0
        %4480 = vmatmul.mubr.bf16.gmra.mrb[0].mxu0 %v4442
        %v4481 = vpop.f32.mrb[0].mxu0
        %v4482 = vadd.f32 0.0, %v4481
        %v4483 = vpop.f32.mrb[0].mxu0
        %v4484 = vpop.f32.mrb[0].mxu0
        %v4485 = vadd.f32 0.0, %v4484
        %v4486 = vpop.f32.mrb[0].mxu0
        %4487 = vmatprep.mubr.bf16.mxu0 0
        %4488 = vmatmul.mubr.bf16.gmra.mrb[0].mxu0 %v4445
        %v4489 = vpop.f32.mrb[0].mxu0
        %v4490 = vadd.f32 0.0, %v4489
        %v4491 = vpop.f32.mrb[0].mxu0
        %v4492 = vpop.f32.mrb[0].mxu0
        %v4493 = vadd.f32 0.0, %v4492
        %v4494 = vpop.f32.mrb[0].mxu0
        %4495 = vdwg.mxu0
        %v4496 = vxor.u32 %v4482, 2147483648
        %v4497 = vxor.u32 %v4485, 2147483648
        %v4498 = vxor.u32 %v4490, 2147483648
        %v4499 = vxor.u32 %v4493, 2147483648
        %v4500 = vmul.f32 %v4496, 1.442695
        %v4501 = vpow.pop %v4500
        %v4502 = vmul.f32 %v4497, 1.442695
        %v4503 = vpow.pop %v4502
        %v4504 = vmul.f32 %v4498, 1.442695
        %v4505 = vpow.pop %v4504
        %v4506 = vmul.f32 %v4499, 1.442695
        %v4507 = vpow.pop %v4506
        %v4508 = vadd.f32 %v4501, 1.0
        %v4509 = vadd.f32 %v4503, 1.0
        %v4510 = vadd.f32 %v4505, 1.0
        %v4511 = vadd.f32 %v4507, 1.0
        %v4512 = vrcp.pop %v4508
        %v4513 = vmul.f32 1.0, %v4512
        %v4514 = vrcp.pop %v4509
        %v4515 = vmul.f32 1.0, %v4514
        %v4516 = vrcp.pop %v4510
        %v4517 = vmul.f32 1.0, %v4516
        %v4518 = vrcp.pop %v4511
        %v4519 = vmul.f32 1.0, %v4518
        %v4520 = vmul.f32 %v4417, %v4513
        %v4521 = vmul.f32 %v4420, %v4515
        %v4522 = vmul.f32 %v4425, %v4517
        %v4523 = vmul.f32 %v4428, %v4519
        %v4524 = vadd.f32 %v4350, %v4520
        %v4525 = vadd.f32 %v4351, %v4521
        %v4526 = vadd.f32 %v4352, %v4522
        %v4527 = vadd.f32 %v4353, %v4523
        %v4528 = vmul.f32 %v4524, 0.70710677
        %v4529 = vmul.f32 %v4525, 0.70710677
        %v4530 = vmul.f32 %v4526, 0.70710677
        %v4531 = vmul.f32 %v4527, 0.70710677
        %v4532 = vmax.f32 %v4528, 0.0
        %v4533 = vmax.f32 %v4529, 0.0
        %v4534 = vmax.f32 %v4530, 0.0
        %v4535 = vmax.f32 %v4531, 0.0
        %v4536 = vadd.f32 %v3715, %v4532
        %v4537 = vadd.f32 %v3716, %v4533
        %v4538 = vadd.f32 %v3717, %v4534
        %v4539 = vadd.f32 %v3718, %v4535
        %v4540 = vpack.c.bf16 %v4529, %v4528
        %v4541 = vpack.c.bf16 %v4531, %v4530
        %s4542 = scalar_lea.vmem %s9, 64
        %v4543 = vld [vmem:[%s4542] sm:$0xf]
        %v4544 = vld [vmem:[%s4542 + $0x4] sm:$0xf]
        %v4545 = vld [vmem:[%s4542 + $0x8] sm:$0xf]
        %v4546 = vld [vmem:[%s4542 + $0xc] sm:$0xf]
        %v4551 = vunpack.c.l.b16 %v4543
        %v4552 = vunpack.c.l.b16 %v4544
        %v4553 = vunpack.c.l.b16 %v4545
        %v4554 = vunpack.c.l.b16 %v4546
        %v4555 = vpack.c.b16 %v4552, %v4551
        %v4556 = vpack.c.b16 %v4554, %v4553
        %v4558 = vsel %vm593, %v4555, 0
        %v4561 = vsel %vm593, %v4556, 0
        %4563 = vmatprep.subr.bf16.mxu0 0
        %4564 = vmatpush1.bf16.msra.mxu0 %v4540
        %4565 = vmatprep.subr.bf16.mxu0 0
        %4566 = vmatpush1.bf16.msra.mxu0 %v4541
        %4567 = vmatprep.subr.bf16.mxu0 0
        %4568 = vmatpush1.bf16.msra.mxu0 0
        %4569 = vmatprep.subr.bf16.mxu0 0
        %4570 = vmatpush1.bf16.msra.mxu0 0
        %4571 = vmatprep.subr.bf16.mxu0 0
        %4572 = vmatpush1.bf16.msra.mxu0 0
        %4573 = vmatprep.subr.bf16.mxu0 0
        %4574 = vmatpush1.bf16.msra.mxu0 0
        %4575 = vmatprep.subr.bf16.mxu0 0
        %4576 = vmatpush1.bf16.msra.mxu0 0
        %4577 = vmatprep.subr.bf16.mxu0 0
        %4578 = vmatpush1.bf16.msra.mxu0 0
        %4579 = vmatprep.subr.bf16.mxu0 0
        %4580 = vmatpush1.bf16.msra.mxu0 0
        %4581 = vmatprep.subr.bf16.mxu0 0
        %4582 = vmatpush1.bf16.msra.mxu0 0
        %4583 = vmatprep.subr.bf16.mxu0 0
        %4584 = vmatpush1.bf16.msra.mxu0 0
        %4585 = vmatprep.subr.bf16.mxu0 0
        %4586 = vmatpush1.bf16.msra.mxu0 0
        %4587 = vmatprep.subr.bf16.mxu0 0
        %4588 = vmatpush1.bf16.msra.mxu0 0
        %4589 = vmatprep.subr.bf16.mxu0 0
        %4590 = vmatpush1.bf16.msra.mxu0 0
        %4591 = vmatprep.subr.bf16.mxu0 0
        %4592 = vmatpush1.bf16.msra.mxu0 0
        %4593 = vmatprep.subr.bf16.mxu0 0
        %4594 = vmatpush1.bf16.msra.mxu0 0
        %4595 = vmatprep.mubr.bf16.mxu0 0
        %4596 = vmatmul.mubr.bf16.gmra.mrb[0].mxu0 %v4558
        %v4597 = vpop.f32.mrb[0].mxu0
        %v4598 = vadd.f32 0.0, %v4597
        %v4599 = vpop.f32.mrb[0].mxu0
        %v4600 = vpop.f32.mrb[0].mxu0
        %v4601 = vadd.f32 0.0, %v4600
        %v4602 = vpop.f32.mrb[0].mxu0
        %4603 = vmatprep.mubr.bf16.mxu0 0
        %4604 = vmatmul.mubr.bf16.gmra.mrb[0].mxu0 %v4561
        %v4605 = vpop.f32.mrb[0].mxu0
        %v4606 = vadd.f32 0.0, %v4605
        %v4607 = vpop.f32.mrb[0].mxu0
        %v4608 = vpop.f32.mrb[0].mxu0
        %v4609 = vadd.f32 0.0, %v4608
        %v4610 = vpop.f32.mrb[0].mxu0
        %4611 = vdwg.mxu0
        %v4612 = vmul.f32 %v4598, %v3904
        %v4613 = vmul.f32 %v4601, %v3905
        %v4614 = vmul.f32 %v4606, %v3906
        %v4615 = vmul.f32 %v4609, %v3907
        %v4616 = vmax.f32 %v4612, %v4613
        %v4617 = vmax.f32 %v4614, %v4615
        %v4618 = vmax.f32 %v4616, %v4617
        %v4619 = vrot.slane %v4618, 4
        %v4620 = vmax.f32 %v4618, %v4619
        %v4621 = vrot.slane %v4620, 2
        %v4622 = vmax.f32 %v4620, %v4621
        %v4623 = vrot.slane %v4622, 1
        %v4624 = vmax.f32 %v4622, %v4623
        %v4625 = vadd.f32 %v4612, %v4613
        %v4626 = vadd.f32 %v4625, %v4614
        %v4627 = vadd.f32 %v4626, %v4615
        %v4628 = vrot.slane %v4627, 4
        %v4629 = vadd.f32 %v4627, %v4628
        %v4630 = vrot.slane %v4629, 2
        %v4631 = vadd.f32 %v4629, %v4630
        %v4632 = vrot.slane %v4631, 1
        %v4633 = vadd.f32 %v4631, %v4632
        %v4634 = vsub.f32 %v4624, 1.0
        %v4635 = vsub.f32 %v4633, 1.0
        %v4636 = vmul.f32 %v4635, %v1355
        %v4637 = vmax.f32 %v4634, %v4636
        loop: start=0, step=1, limit=10
        $region121: #{tpu_custom_call.1} parent=67 // loop_pre_header
          _
        $region122: #{tpu_custom_call.1} parent=67 // loop_header
          %s4639 = sphi 0, %s4643
          %p4640 = scmp.ge.s32.totalorder %s4639, 10
          %v4644 = vphi %v4637, %v4678
        $region123: #{tpu_custom_call.1} parent=67 // loop_header_branch
          %4642 = sbr.rel (%p4640) target = $region127
        $region124: #{tpu_custom_call.1} parent=67 // loop_body
          %vm4645 = vcmp.gt.f32.partialorder %v4612, %v4644
          %vm4646 = vcmp.gt.f32.partialorder %v4613, %v4644
          %vm4647 = vcmp.gt.f32.partialorder %v4614, %v4644
          %vm4648 = vcmp.gt.f32.partialorder %v4615, %v4644
          %v4649 = vsel %vm4645, 1.0, 0.0
          %v4650 = vsel %vm4646, 1.0, 0.0
          %v4651 = vsel %vm4647, 1.0, 0.0
          %v4652 = vsel %vm4648, 1.0, 0.0
          %v4653 = vadd.f32 %v4649, %v4650
          %v4654 = vadd.f32 %v4653, %v4651
          %v4655 = vadd.f32 %v4654, %v4652
          %v4656 = vrot.slane %v4655, 4
          %v4657 = vadd.f32 %v4655, %v4656
          %v4658 = vrot.slane %v4657, 2
          %v4659 = vadd.f32 %v4657, %v4658
          %v4660 = vrot.slane %v4659, 1
          %v4661 = vadd.f32 %v4659, %v4660
          %v4662 = vmax.f32 %v4661, 1.0
          %v4663 = vmul.f32 %v4649, %v4612
          %v4664 = vmul.f32 %v4650, %v4613
          %v4665 = vmul.f32 %v4651, %v4614
          %v4666 = vmul.f32 %v4652, %v4615
          %v4667 = vadd.f32 %v4663, %v4664
          %v4668 = vadd.f32 %v4667, %v4665
          %v4669 = vadd.f32 %v4668, %v4666
          %v4670 = vrot.slane %v4669, 4
          %v4671 = vadd.f32 %v4669, %v4670
          %v4672 = vrot.slane %v4671, 2
          %v4673 = vadd.f32 %v4671, %v4672
          %v4674 = vrot.slane %v4673, 1
          %v4675 = vadd.f32 %v4673, %v4674
          %v4676 = vsub.f32 %v4675, 1.0
          %v4677 = vrcp.pop %v4662
          %v4678 = vmul.f32 %v4676, %v4677
        $region125: #{tpu_custom_call.1} parent=67 // loop_footer
          %s4643 = sadd.s32 1, %s4639
        $region126: #{tpu_custom_call.1} parent=67 // loop_footer_branch
          %4638 = sbr.rel target = $region122
        $region127: #{tpu_custom_call.1} parent=67 // loop_exit
          _
        %vm4679 = vcmp.gt.f32.partialorder %v4612, %v4644
        %vm4680 = vcmp.gt.f32.partialorder %v4613, %v4644
        %vm4681 = vcmp.gt.f32.partialorder %v4614, %v4644
        %vm4682 = vcmp.gt.f32.partialorder %v4615, %v4644
        %v4683 = vsel %vm4679, 1.0, 0.0
        %v4684 = vsel %vm4680, 1.0, 0.0
        %v4685 = vsel %vm4681, 1.0, 0.0
        %v4686 = vsel %vm4682, 1.0, 0.0
        %v4687 = vadd.f32 %v4683, %v4684
        %v4688 = vadd.f32 %v4687, %v4685
        %v4689 = vadd.f32 %v4688, %v4686
        %v4690 = vrot.slane %v4689, 4
        %v4691 = vadd.f32 %v4689, %v4690
        %v4692 = vrot.slane %v4691, 2
        %v4693 = vadd.f32 %v4691, %v4692
        %v4694 = vrot.slane %v4693, 1
        %v4695 = vadd.f32 %v4693, %v4694
        %v4696 = vmax.f32 %v4695, 1.0
        %v4697 = vmul.f32 %v4683, %v4612
        %v4698 = vmul.f32 %v4684, %v4613
        %v4699 = vmul.f32 %v4685, %v4614
        %v4700 = vmul.f32 %v4686, %v4615
        %v4701 = vadd.f32 %v4697, %v4698
        %v4702 = vadd.f32 %v4701, %v4699
        %v4703 = vadd.f32 %v4702, %v4700
        %v4704 = vrot.slane %v4703, 4
        %v4705 = vadd.f32 %v4703, %v4704
        %v4706 = vrot.slane %v4705, 2
        %v4707 = vadd.f32 %v4705, %v4706
        %v4708 = vrot.slane %v4707, 1
        %v4709 = vadd.f32 %v4707, %v4708
        %v4710 = vsub.f32 %v4709, 1.0
        %v4711 = vrcp.pop %v4696
        %v4712 = vmul.f32 %v4710, %v4711
        %v4713 = vsub.f32 %v4612, %v4712
        %v4714 = vsub.f32 %v4613, %v4712
        %v4715 = vsub.f32 %v4614, %v4712
        %v4716 = vsub.f32 %v4615, %v4712
        %v4717 = vmax.f32 %v4713, 0.0
        %v4718 = vmax.f32 %v4714, 0.0
        %v4719 = vmax.f32 %v4715, 0.0
        %v4720 = vmax.f32 %v4716, 0.0
        %v4721 = vmul.f32 %v4717, %v561
        %v4722 = vmul.f32 %v4718, %v562
        %v4723 = vmul.f32 %v4719, %v563
        %v4724 = vmul.f32 %v4720, %v564
        %v4725 = vpack.c.bf16 %v4722, %v4721
        %v4726 = vpack.c.bf16 %v4724, %v4723
        %4727 = vmatprep.subr.bf16.mxu0 0
        %4728 = vmatpush1.bf16.msra.mxu0 %v4725
        %4729 = vmatprep.subr.bf16.mxu0 0
        %4730 = vmatpush1.bf16.msra.mxu0 %v4726
        %4731 = vmatprep.subr.bf16.mxu0 0
        %4732 = vmatpush1.bf16.msra.mxu0 0
        %4733 = vmatprep.subr.bf16.mxu0 0
        %4734 = vmatpush1.bf16.msra.mxu0 0
        %4735 = vmatprep.subr.bf16.mxu0 0
        %4736 = vmatpush1.bf16.msra.mxu0 0
        %4737 = vmatprep.subr.bf16.mxu0 0
        %4738 = vmatpush1.bf16.msra.mxu0 0
        %4739 = vmatprep.subr.bf16.mxu0 0
        %4740 = vmatpush1.bf16.msra.mxu0 0
        %4741 = vmatprep.subr.bf16.mxu0 0
        %4742 = vmatpush1.bf16.msra.mxu0 0
        %4743 = vmatprep.subr.bf16.mxu0 0
        %4744 = vmatpush1.bf16.msra.mxu0 0
        %4745 = vmatprep.subr.bf16.mxu0 0
        %4746 = vmatpush1.bf16.msra.mxu0 0
        %4747 = vmatprep.subr.bf16.mxu0 0
        %4748 = vmatpush1.bf16.msra.mxu0 0
        %4749 = vmatprep.subr.bf16.mxu0 0
        %4750 = vmatpush1.bf16.msra.mxu0 0
        %4751 = vmatprep.subr.bf16.mxu0 0
        %4752 = vmatpush1.bf16.msra.mxu0 0
        %4753 = vmatprep.subr.bf16.mxu0 0
        %4754 = vmatpush1.bf16.msra.mxu0 0
        %4755 = vmatprep.subr.bf16.mxu0 0
        %4756 = vmatpush1.bf16.msra.mxu0 0
        %4757 = vmatprep.subr.bf16.mxu0 0
        %4758 = vmatpush1.bf16.msra.mxu0 0
        %4759 = vmatprep.mubr.bf16.mxu0 0
        %4760 = vmatmul.mubr.bf16.gmra.mrb[0].mxu0 %v595
        %v4761 = vpop.f32.mrb[0].mxu0
        %v4762 = vadd.f32 0.0, %v4761
        %v4763 = vpop.f32.mrb[0].mxu0
        %v4764 = vpop.f32.mrb[0].mxu0
        %v4765 = vadd.f32 0.0, %v4764
        %v4766 = vpop.f32.mrb[0].mxu0
        %4767 = vmatprep.mubr.bf16.mxu0 0
        %4768 = vmatmul.mubr.bf16.gmra.mrb[0].mxu0 %v598
        %v4769 = vpop.f32.mrb[0].mxu0
        %v4770 = vadd.f32 0.0, %v4769
        %v4771 = vpop.f32.mrb[0].mxu0
        %v4772 = vpop.f32.mrb[0].mxu0
        %v4773 = vadd.f32 0.0, %v4772
        %v4774 = vpop.f32.mrb[0].mxu0
        %4775 = vdwg.mxu0
        %4776 = vmatprep.subr.bf16.mxu0 0
        %4777 = vmatpush1.bf16.msra.mxu0 %v4725
        %4778 = vmatprep.subr.bf16.mxu0 0
        %4779 = vmatpush1.bf16.msra.mxu0 %v4726
        %4780 = vmatprep.subr.bf16.mxu0 0
        %4781 = vmatpush1.bf16.msra.mxu0 0
        %4782 = vmatprep.subr.bf16.mxu0 0
        %4783 = vmatpush1.bf16.msra.mxu0 0
        %4784 = vmatprep.subr.bf16.mxu0 0
        %4785 = vmatpush1.bf16.msra.mxu0 0
        %4786 = vmatprep.subr.bf16.mxu0 0
        %4787 = vmatpush1.bf16.msra.mxu0 0
        %4788 = vmatprep.subr.bf16.mxu0 0
        %4789 = vmatpush1.bf16.msra.mxu0 0
        %4790 = vmatprep.subr.bf16.mxu0 0
        %4791 = vmatpush1.bf16.msra.mxu0 0
        %4792 = vmatprep.subr.bf16.mxu0 0
        %4793 = vmatpush1.bf16.msra.mxu0 0
        %4794 = vmatprep.subr.bf16.mxu0 0
        %4795 = vmatpush1.bf16.msra.mxu0 0
        %4796 = vmatprep.subr.bf16.mxu0 0
        %4797 = vmatpush1.bf16.msra.mxu0 0
        %4798 = vmatprep.subr.bf16.mxu0 0
        %4799 = vmatpush1.bf16.msra.mxu0 0
        %4800 = vmatprep.subr.bf16.mxu0 0
        %4801 = vmatpush1.bf16.msra.mxu0 0
        %4802 = vmatprep.subr.bf16.mxu0 0
        %4803 = vmatpush1.bf16.msra.mxu0 0
        %4804 = vmatprep.subr.bf16.mxu0 0
        %4805 = vmatpush1.bf16.msra.mxu0 0
        %4806 = vmatprep.subr.bf16.mxu0 0
        %4807 = vmatpush1.bf16.msra.mxu0 0
        %4808 = vmatprep.mubr.bf16.mxu0 0
        %4809 = vmatmul.mubr.bf16.gmra.mrb[0].mxu0 %v660
        %v4810 = vpop.f32.mrb[0].mxu0
        %v4811 = vadd.f32 0.0, %v4810
        %v4812 = vpop.f32.mrb[0].mxu0
        %v4813 = vpop.f32.mrb[0].mxu0
        %v4814 = vadd.f32 0.0, %v4813
        %v4815 = vpop.f32.mrb[0].mxu0
        %4816 = vmatprep.mubr.bf16.mxu0 0
        %4817 = vmatmul.mubr.bf16.gmra.mrb[0].mxu0 %v663
        %v4818 = vpop.f32.mrb[0].mxu0
        %v4819 = vadd.f32 0.0, %v4818
        %v4820 = vpop.f32.mrb[0].mxu0
        %v4821 = vpop.f32.mrb[0].mxu0
        %v4822 = vadd.f32 0.0, %v4821
        %v4823 = vpop.f32.mrb[0].mxu0
        %4824 = vdwg.mxu0
        %v4825 = vxor.u32 %v4811, 2147483648
        %v4826 = vxor.u32 %v4814, 2147483648
        %v4827 = vxor.u32 %v4819, 2147483648
        %v4828 = vxor.u32 %v4822, 2147483648
        %v4829 = vmul.f32 %v4825, 1.442695
        %v4830 = vpow.pop %v4829
        %v4831 = vmul.f32 %v4826, 1.442695
        %v4832 = vpow.pop %v4831
        %v4833 = vmul.f32 %v4827, 1.442695
        %v4834 = vpow.pop %v4833
        %v4835 = vmul.f32 %v4828, 1.442695
        %v4836 = vpow.pop %v4835
        %v4837 = vadd.f32 %v4830, 1.0
        %v4838 = vadd.f32 %v4832, 1.0
        %v4839 = vadd.f32 %v4834, 1.0
        %v4840 = vadd.f32 %v4836, 1.0
        %v4841 = vrcp.pop %v4837
        %v4842 = vmul.f32 1.0, %v4841
        %v4843 = vrcp.pop %v4838
        %v4844 = vmul.f32 1.0, %v4843
        %v4845 = vrcp.pop %v4839
        %v4846 = vmul.f32 1.0, %v4845
        %v4847 = vrcp.pop %v4840
        %v4848 = vmul.f32 1.0, %v4847
        %v4849 = vmul.f32 %v4762, %v4842
        %v4850 = vmul.f32 %v4765, %v4844
        %v4851 = vmul.f32 %v4770, %v4846
        %v4852 = vmul.f32 %v4773, %v4848
        %v4853 = vpack.c.bf16 %v4850, %v4849
        %v4854 = vpack.c.bf16 %v4852, %v4851
        %4855 = vmatprep.subr.bf16.mxu0 0
        %4856 = vmatpush1.bf16.msra.mxu0 %v4853
        %4857 = vmatprep.subr.bf16.mxu0 0
        %4858 = vmatpush1.bf16.msra.mxu0 %v4854
        %4859 = vmatprep.subr.bf16.mxu0 0
        %4860 = vmatpush1.bf16.msra.mxu0 0
        %4861 = vmatprep.subr.bf16.mxu0 0
        %4862 = vmatpush1.bf16.msra.mxu0 0
        %4863 = vmatprep.subr.bf16.mxu0 0
        %4864 = vmatpush1.bf16.msra.mxu0 0
        %4865 = vmatprep.subr.bf16.mxu0 0
        %4866 = vmatpush1.bf16.msra.mxu0 0
        %4867 = vmatprep.subr.bf16.mxu0 0
        %4868 = vmatpush1.bf16.msra.mxu0 0
        %4869 = vmatprep.subr.bf16.mxu0 0
        %4870 = vmatpush1.bf16.msra.mxu0 0
        %4871 = vmatprep.subr.bf16.mxu0 0
        %4872 = vmatpush1.bf16.msra.mxu0 0
        %4873 = vmatprep.subr.bf16.mxu0 0
        %4874 = vmatpush1.bf16.msra.mxu0 0
        %4875 = vmatprep.subr.bf16.mxu0 0
        %4876 = vmatpush1.bf16.msra.mxu0 0
        %4877 = vmatprep.subr.bf16.mxu0 0
        %4878 = vmatpush1.bf16.msra.mxu0 0
        %4879 = vmatprep.subr.bf16.mxu0 0
        %4880 = vmatpush1.bf16.msra.mxu0 0
        %4881 = vmatprep.subr.bf16.mxu0 0
        %4882 = vmatpush1.bf16.msra.mxu0 0
        %4883 = vmatprep.subr.bf16.mxu0 0
        %4884 = vmatpush1.bf16.msra.mxu0 0
        %4885 = vmatprep.subr.bf16.mxu0 0
        %4886 = vmatpush1.bf16.msra.mxu0 0
        %4887 = vmatprep.mubr.bf16.mxu0 0
        %4888 = vmatmul.mubr.bf16.gmra.mrb[0].mxu0 %v755
        %v4889 = vpop.f32.mrb[0].mxu0
        %v4890 = vadd.f32 0.0, %v4889
        %v4891 = vpop.f32.mrb[0].mxu0
        %v4892 = vpop.f32.mrb[0].mxu0
        %v4893 = vadd.f32 0.0, %v4892
        %v4894 = vpop.f32.mrb[0].mxu0
        %4895 = vmatprep.mubr.bf16.mxu0 0
        %4896 = vmatmul.mubr.bf16.gmra.mrb[0].mxu0 %v758
        %v4897 = vpop.f32.mrb[0].mxu0
        %v4898 = vadd.f32 0.0, %v4897
        %v4899 = vpop.f32.mrb[0].mxu0
        %v4900 = vpop.f32.mrb[0].mxu0
        %v4901 = vadd.f32 0.0, %v4900
        %v4902 = vpop.f32.mrb[0].mxu0
        %4903 = vdwg.mxu0
        %4904 = vmatprep.subr.bf16.mxu0 0
        %4905 = vmatpush1.bf16.msra.mxu0 %v4853
        %4906 = vmatprep.subr.bf16.mxu0 0
        %4907 = vmatpush1.bf16.msra.mxu0 %v4854
        %4908 = vmatprep.subr.bf16.mxu0 0
        %4909 = vmatpush1.bf16.msra.mxu0 0
        %4910 = vmatprep.subr.bf16.mxu0 0
        %4911 = vmatpush1.bf16.msra.mxu0 0
        %4912 = vmatprep.subr.bf16.mxu0 0
        %4913 = vmatpush1.bf16.msra.mxu0 0
        %4914 = vmatprep.subr.bf16.mxu0 0
        %4915 = vmatpush1.bf16.msra.mxu0 0
        %4916 = vmatprep.subr.bf16.mxu0 0
        %4917 = vmatpush1.bf16.msra.mxu0 0
        %4918 = vmatprep.subr.bf16.mxu0 0
        %4919 = vmatpush1.bf16.msra.mxu0 0
        %4920 = vmatprep.subr.bf16.mxu0 0
        %4921 = vmatpush1.bf16.msra.mxu0 0
        %4922 = vmatprep.subr.bf16.mxu0 0
        %4923 = vmatpush1.bf16.msra.mxu0 0
        %4924 = vmatprep.subr.bf16.mxu0 0
        %4925 = vmatpush1.bf16.msra.mxu0 0
        %4926 = vmatprep.subr.bf16.mxu0 0
        %4927 = vmatpush1.bf16.msra.mxu0 0
        %4928 = vmatprep.subr.bf16.mxu0 0
        %4929 = vmatpush1.bf16.msra.mxu0 0
        %4930 = vmatprep.subr.bf16.mxu0 0
        %4931 = vmatpush1.bf16.msra.mxu0 0
        %4932 = vmatprep.subr.bf16.mxu0 0
        %4933 = vmatpush1.bf16.msra.mxu0 0
        %4934 = vmatprep.subr.bf16.mxu0 0
        %4935 = vmatpush1.bf16.msra.mxu0 0
        %4936 = vmatprep.mubr.bf16.mxu0 0
        %4937 = vmatmul.mubr.bf16.gmra.mrb[0].mxu0 %v820
        %v4938 = vpop.f32.mrb[0].mxu0
        %v4939 = vadd.f32 0.0, %v4938
        %v4940 = vpop.f32.mrb[0].mxu0
        %v4941 = vpop.f32.mrb[0].mxu0
        %v4942 = vadd.f32 0.0, %v4941
        %v4943 = vpop.f32.mrb[0].mxu0
        %4944 = vmatprep.mubr.bf16.mxu0 0
        %4945 = vmatmul.mubr.bf16.gmra.mrb[0].mxu0 %v823
        %v4946 = vpop.f32.mrb[0].mxu0
        %v4947 = vadd.f32 0.0, %v4946
        %v4948 = vpop.f32.mrb[0].mxu0
        %v4949 = vpop.f32.mrb[0].mxu0
        %v4950 = vadd.f32 0.0, %v4949
        %v4951 = vpop.f32.mrb[0].mxu0
        %4952 = vdwg.mxu0
        %v4953 = vxor.u32 %v4939, 2147483648
        %v4954 = vxor.u32 %v4942, 2147483648
        %v4955 = vxor.u32 %v4947, 2147483648
        %v4956 = vxor.u32 %v4950, 2147483648
        %v4957 = vmul.f32 %v4953, 1.442695
        %v4958 = vpow.pop %v4957
        %v4959 = vmul.f32 %v4954, 1.442695
        %v4960 = vpow.pop %v4959
        %v4961 = vmul.f32 %v4955, 1.442695
        %v4962 = vpow.pop %v4961
        %v4963 = vmul.f32 %v4956, 1.442695
        %v4964 = vpow.pop %v4963
        %v4965 = vadd.f32 %v4958, 1.0
        %v4966 = vadd.f32 %v4960, 1.0
        %v4967 = vadd.f32 %v4962, 1.0
        %v4968 = vadd.f32 %v4964, 1.0
        %v4969 = vrcp.pop %v4965
        %v4970 = vmul.f32 1.0, %v4969
        %v4971 = vrcp.pop %v4966
        %v4972 = vmul.f32 1.0, %v4971
        %v4973 = vrcp.pop %v4967
        %v4974 = vmul.f32 1.0, %v4973
        %v4975 = vrcp.pop %v4968
        %v4976 = vmul.f32 1.0, %v4975
        %v4977 = vmul.f32 %v4890, %v4970
        %v4978 = vmul.f32 %v4893, %v4972
        %v4979 = vmul.f32 %v4898, %v4974
        %v4980 = vmul.f32 %v4901, %v4976
        %v4981 = vadd.f32 %v4849, %v4977
        %v4982 = vadd.f32 %v4850, %v4978
        %v4983 = vadd.f32 %v4851, %v4979
        %v4984 = vadd.f32 %v4852, %v4980
        %v4985 = vmul.f32 %v4981, 0.70710677
        %v4986 = vmul.f32 %v4982, 0.70710677
        %v4987 = vmul.f32 %v4983, 0.70710677
        %v4988 = vmul.f32 %v4984, 0.70710677
        %v4989 = vpack.c.bf16 %v4986, %v4985
        %v4990 = vpack.c.bf16 %v4988, %v4987
        %s4991 = scalar_lea.vmem [#allocation10], 160
        %v4992 = vld [vmem:[%s4991] sm:$0xf]
        %v4993 = vld [vmem:[%s4991 + $0x4] sm:$0xf]
        %v4994 = vld [vmem:[%s4991 + $0x8] sm:$0xf]
        %v4995 = vld [vmem:[%s4991 + $0xc] sm:$0xf]
        %s4996 = scalar_lea.vmem [#allocation11], 160
        %v4997 = vld [vmem:[%s4996] sm:$0xf]
        %v4998 = vld [vmem:[%s4996 + $0x4] sm:$0xf]
        %v4999 = vld [vmem:[%s4996 + $0x8] sm:$0xf]
        %v5000 = vld [vmem:[%s4996 + $0xc] sm:$0xf]
        %v5005 = vunpack.c.l.b16 %v4992
        %v5006 = vunpack.c.l.b16 %v4993
        %v5007 = vunpack.c.l.b16 %v4994
        %v5008 = vunpack.c.l.b16 %v4995
        %v5009 = vpack.c.b16 %v5006, %v5005
        %v5010 = vpack.c.b16 %v5008, %v5007
        %v5012 = vsel %vm593, %v5009, 0
        %v5015 = vsel %vm593, %v5010, 0
        %5017 = vmatprep.subr.bf16.mxu0 0
        %5018 = vmatpush1.bf16.msra.mxu0 %v4989
        %5019 = vmatprep.subr.bf16.mxu0 0
        %5020 = vmatpush1.bf16.msra.mxu0 %v4990
        %5021 = vmatprep.subr.bf16.mxu0 0
        %5022 = vmatpush1.bf16.msra.mxu0 0
        %5023 = vmatprep.subr.bf16.mxu0 0
        %5024 = vmatpush1.bf16.msra.mxu0 0
        %5025 = vmatprep.subr.bf16.mxu0 0
        %5026 = vmatpush1.bf16.msra.mxu0 0
        %5027 = vmatprep.subr.bf16.mxu0 0
        %5028 = vmatpush1.bf16.msra.mxu0 0
        %5029 = vmatprep.subr.bf16.mxu0 0
        %5030 = vmatpush1.bf16.msra.mxu0 0
        %5031 = vmatprep.subr.bf16.mxu0 0
        %5032 = vmatpush1.bf16.msra.mxu0 0
        %5033 = vmatprep.subr.bf16.mxu0 0
        %5034 = vmatpush1.bf16.msra.mxu0 0
        %5035 = vmatprep.subr.bf16.mxu0 0
        %5036 = vmatpush1.bf16.msra.mxu0 0
        %5037 = vmatprep.subr.bf16.mxu0 0
        %5038 = vmatpush1.bf16.msra.mxu0 0
        %5039 = vmatprep.subr.bf16.mxu0 0
        %5040 = vmatpush1.bf16.msra.mxu0 0
        %5041 = vmatprep.subr.bf16.mxu0 0
        %5042 = vmatpush1.bf16.msra.mxu0 0
        %5043 = vmatprep.subr.bf16.mxu0 0
        %5044 = vmatpush1.bf16.msra.mxu0 0
        %5045 = vmatprep.subr.bf16.mxu0 0
        %5046 = vmatpush1.bf16.msra.mxu0 0
        %5047 = vmatprep.subr.bf16.mxu0 0
        %5048 = vmatpush1.bf16.msra.mxu0 0
        %5049 = vmatprep.mubr.bf16.mxu0 0
        %5050 = vmatmul.mubr.bf16.gmra.mrb[0].mxu0 %v5012
        %v5051 = vpop.f32.mrb[0].mxu0
        %v5052 = vadd.f32 0.0, %v5051
        %v5053 = vpop.f32.mrb[0].mxu0
        %v5054 = vpop.f32.mrb[0].mxu0
        %v5055 = vadd.f32 0.0, %v5054
        %v5056 = vpop.f32.mrb[0].mxu0
        %5057 = vmatprep.mubr.bf16.mxu0 0
        %5058 = vmatmul.mubr.bf16.gmra.mrb[0].mxu0 %v5015
        %v5059 = vpop.f32.mrb[0].mxu0
        %v5060 = vadd.f32 0.0, %v5059
        %v5061 = vpop.f32.mrb[0].mxu0
        %v5062 = vpop.f32.mrb[0].mxu0
        %v5063 = vadd.f32 0.0, %v5062
        %v5064 = vpop.f32.mrb[0].mxu0
        %5065 = vdwg.mxu0
        %v5070 = vunpack.c.l.b16 %v4997
        %v5071 = vunpack.c.l.b16 %v4998
        %v5072 = vunpack.c.l.b16 %v4999
        %v5073 = vunpack.c.l.b16 %v5000
        %v5074 = vpack.c.b16 %v5071, %v5070
        %v5075 = vpack.c.b16 %v5073, %v5072
        %v5077 = vsel %vm593, %v5074, 0
        %v5080 = vsel %vm593, %v5075, 0
        %5082 = vmatprep.subr.bf16.mxu0 0
        %5083 = vmatpush1.bf16.msra.mxu0 %v4989
        %5084 = vmatprep.subr.bf16.mxu0 0
        %5085 = vmatpush1.bf16.msra.mxu0 %v4990
        %5086 = vmatprep.subr.bf16.mxu0 0
        %5087 = vmatpush1.bf16.msra.mxu0 0
        %5088 = vmatprep.subr.bf16.mxu0 0
        %5089 = vmatpush1.bf16.msra.mxu0 0
        %5090 = vmatprep.subr.bf16.mxu0 0
        %5091 = vmatpush1.bf16.msra.mxu0 0
        %5092 = vmatprep.subr.bf16.mxu0 0
        %5093 = vmatpush1.bf16.msra.mxu0 0
        %5094 = vmatprep.subr.bf16.mxu0 0
        %5095 = vmatpush1.bf16.msra.mxu0 0
        %5096 = vmatprep.subr.bf16.mxu0 0
        %5097 = vmatpush1.bf16.msra.mxu0 0
        %5098 = vmatprep.subr.bf16.mxu0 0
        %5099 = vmatpush1.bf16.msra.mxu0 0
        %5100 = vmatprep.subr.bf16.mxu0 0
        %5101 = vmatpush1.bf16.msra.mxu0 0
        %5102 = vmatprep.subr.bf16.mxu0 0
        %5103 = vmatpush1.bf16.msra.mxu0 0
        %5104 = vmatprep.subr.bf16.mxu0 0
        %5105 = vmatpush1.bf16.msra.mxu0 0
        %5106 = vmatprep.subr.bf16.mxu0 0
        %5107 = vmatpush1.bf16.msra.mxu0 0
        %5108 = vmatprep.subr.bf16.mxu0 0
        %5109 = vmatpush1.bf16.msra.mxu0 0
        %5110 = vmatprep.subr.bf16.mxu0 0
        %5111 = vmatpush1.bf16.msra.mxu0 0
        %5112 = vmatprep.subr.bf16.mxu0 0
        %5113 = vmatpush1.bf16.msra.mxu0 0
        %5114 = vmatprep.mubr.bf16.mxu0 0
        %5115 = vmatmul.mubr.bf16.gmra.mrb[0].mxu0 %v5077
        %v5116 = vpop.f32.mrb[0].mxu0
        %v5117 = vadd.f32 0.0, %v5116
        %v5118 = vpop.f32.mrb[0].mxu0
        %v5119 = vpop.f32.mrb[0].mxu0
        %v5120 = vadd.f32 0.0, %v5119
        %v5121 = vpop.f32.mrb[0].mxu0
        %5122 = vmatprep.mubr.bf16.mxu0 0
        %5123 = vmatmul.mubr.bf16.gmra.mrb[0].mxu0 %v5080
        %v5124 = vpop.f32.mrb[0].mxu0
        %v5125 = vadd.f32 0.0, %v5124
        %v5126 = vpop.f32.mrb[0].mxu0
        %v5127 = vpop.f32.mrb[0].mxu0
        %v5128 = vadd.f32 0.0, %v5127
        %v5129 = vpop.f32.mrb[0].mxu0
        %5130 = vdwg.mxu0
        %v5131 = vxor.u32 %v5117, 2147483648
        %v5132 = vxor.u32 %v5120, 2147483648
        %v5133 = vxor.u32 %v5125, 2147483648
        %v5134 = vxor.u32 %v5128, 2147483648
        %v5135 = vmul.f32 %v5131, 1.442695
        %v5136 = vpow.pop %v5135
        %v5137 = vmul.f32 %v5132, 1.442695
        %v5138 = vpow.pop %v5137
        %v5139 = vmul.f32 %v5133, 1.442695
        %v5140 = vpow.pop %v5139
        %v5141 = vmul.f32 %v5134, 1.442695
        %v5142 = vpow.pop %v5141
        %v5143 = vadd.f32 %v5136, 1.0
        %v5144 = vadd.f32 %v5138, 1.0
        %v5145 = vadd.f32 %v5140, 1.0
        %v5146 = vadd.f32 %v5142, 1.0
        %v5147 = vrcp.pop %v5143
        %v5148 = vmul.f32 1.0, %v5147
        %v5149 = vrcp.pop %v5144
        %v5150 = vmul.f32 1.0, %v5149
        %v5151 = vrcp.pop %v5145
        %v5152 = vmul.f32 1.0, %v5151
        %v5153 = vrcp.pop %v5146
        %v5154 = vmul.f32 1.0, %v5153
        %v5155 = vmul.f32 %v5052, %v5148
        %v5156 = vmul.f32 %v5055, %v5150
        %v5157 = vmul.f32 %v5060, %v5152
        %v5158 = vmul.f32 %v5063, %v5154
        %v5159 = vadd.f32 %v4985, %v5155
        %v5160 = vadd.f32 %v4986, %v5156
        %v5161 = vadd.f32 %v4987, %v5157
        %v5162 = vadd.f32 %v4988, %v5158
        %v5163 = vmul.f32 %v5159, 0.70710677
        %v5164 = vmul.f32 %v5160, 0.70710677
        %v5165 = vmul.f32 %v5161, 0.70710677
        %v5166 = vmul.f32 %v5162, 0.70710677
        %v5167 = vpack.c.bf16 %v5164, %v5163
        %v5168 = vpack.c.bf16 %v5166, %v5165
        %s5169 = scalar_lea.vmem [#allocation10], 176
        %v5170 = vld [vmem:[%s5169] sm:$0xf]
        %v5171 = vld [vmem:[%s5169 + $0x4] sm:$0xf]
        %v5172 = vld [vmem:[%s5169 + $0x8] sm:$0xf]
        %v5173 = vld [vmem:[%s5169 + $0xc] sm:$0xf]
        %s5174 = scalar_lea.vmem [#allocation11], 176
        %v5175 = vld [vmem:[%s5174] sm:$0xf]
        %v5176 = vld [vmem:[%s5174 + $0x4] sm:$0xf]
        %v5177 = vld [vmem:[%s5174 + $0x8] sm:$0xf]
        %v5178 = vld [vmem:[%s5174 + $0xc] sm:$0xf]
        %v5183 = vunpack.c.l.b16 %v5170
        %v5184 = vunpack.c.l.b16 %v5171
        %v5185 = vunpack.c.l.b16 %v5172
        %v5186 = vunpack.c.l.b16 %v5173
        %v5187 = vpack.c.b16 %v5184, %v5183
        %v5188 = vpack.c.b16 %v5186, %v5185
        %v5190 = vsel %vm593, %v5187, 0
        %v5193 = vsel %vm593, %v5188, 0
        %5195 = vmatprep.subr.bf16.mxu0 0
        %5196 = vmatpush1.bf16.msra.mxu0 %v5167
        %5197 = vmatprep.subr.bf16.mxu0 0
        %5198 = vmatpush1.bf16.msra.mxu0 %v5168
        %5199 = vmatprep.subr.bf16.mxu0 0
        %5200 = vmatpush1.bf16.msra.mxu0 0
        %5201 = vmatprep.subr.bf16.mxu0 0
        %5202 = vmatpush1.bf16.msra.mxu0 0
        %5203 = vmatprep.subr.bf16.mxu0 0
        %5204 = vmatpush1.bf16.msra.mxu0 0
        %5205 = vmatprep.subr.bf16.mxu0 0
        %5206 = vmatpush1.bf16.msra.mxu0 0
        %5207 = vmatprep.subr.bf16.mxu0 0
        %5208 = vmatpush1.bf16.msra.mxu0 0
        %5209 = vmatprep.subr.bf16.mxu0 0
        %5210 = vmatpush1.bf16.msra.mxu0 0
        %5211 = vmatprep.subr.bf16.mxu0 0
        %5212 = vmatpush1.bf16.msra.mxu0 0
        %5213 = vmatprep.subr.bf16.mxu0 0
        %5214 = vmatpush1.bf16.msra.mxu0 0
        %5215 = vmatprep.subr.bf16.mxu0 0
        %5216 = vmatpush1.bf16.msra.mxu0 0
        %5217 = vmatprep.subr.bf16.mxu0 0
        %5218 = vmatpush1.bf16.msra.mxu0 0
        %5219 = vmatprep.subr.bf16.mxu0 0
        %5220 = vmatpush1.bf16.msra.mxu0 0
        %5221 = vmatprep.subr.bf16.mxu0 0
        %5222 = vmatpush1.bf16.msra.mxu0 0
        %5223 = vmatprep.subr.bf16.mxu0 0
        %5224 = vmatpush1.bf16.msra.mxu0 0
        %5225 = vmatprep.subr.bf16.mxu0 0
        %5226 = vmatpush1.bf16.msra.mxu0 0
        %5227 = vmatprep.mubr.bf16.mxu0 0
        %5228 = vmatmul.mubr.bf16.gmra.mrb[0].mxu0 %v5190
        %v5229 = vpop.f32.mrb[0].mxu0
        %v5230 = vadd.f32 0.0, %v5229
        %v5231 = vpop.f32.mrb[0].mxu0
        %v5232 = vpop.f32.mrb[0].mxu0
        %v5233 = vadd.f32 0.0, %v5232
        %v5234 = vpop.f32.mrb[0].mxu0
        %5235 = vmatprep.mubr.bf16.mxu0 0
        %5236 = vmatmul.mubr.bf16.gmra.mrb[0].mxu0 %v5193
        %v5237 = vpop.f32.mrb[0].mxu0
        %v5238 = vadd.f32 0.0, %v5237
        %v5239 = vpop.f32.mrb[0].mxu0
        %v5240 = vpop.f32.mrb[0].mxu0
        %v5241 = vadd.f32 0.0, %v5240
        %v5242 = vpop.f32.mrb[0].mxu0
        %5243 = vdwg.mxu0
        %v5248 = vunpack.c.l.b16 %v5175
        %v5249 = vunpack.c.l.b16 %v5176
        %v5250 = vunpack.c.l.b16 %v5177
        %v5251 = vunpack.c.l.b16 %v5178
        %v5252 = vpack.c.b16 %v5249, %v5248
        %v5253 = vpack.c.b16 %v5251, %v5250
        %v5255 = vsel %vm593, %v5252, 0
        %v5258 = vsel %vm593, %v5253, 0
        %5260 = vmatprep.subr.bf16.mxu0 0
        %5261 = vmatpush1.bf16.msra.mxu0 %v5167
        %5262 = vmatprep.subr.bf16.mxu0 0
        %5263 = vmatpush1.bf16.msra.mxu0 %v5168
        %5264 = vmatprep.subr.bf16.mxu0 0
        %5265 = vmatpush1.bf16.msra.mxu0 0
        %5266 = vmatprep.subr.bf16.mxu0 0
        %5267 = vmatpush1.bf16.msra.mxu0 0
        %5268 = vmatprep.subr.bf16.mxu0 0
        %5269 = vmatpush1.bf16.msra.mxu0 0
        %5270 = vmatprep.subr.bf16.mxu0 0
        %5271 = vmatpush1.bf16.msra.mxu0 0
        %5272 = vmatprep.subr.bf16.mxu0 0
        %5273 = vmatpush1.bf16.msra.mxu0 0
        %5274 = vmatprep.subr.bf16.mxu0 0
        %5275 = vmatpush1.bf16.msra.mxu0 0
        %5276 = vmatprep.subr.bf16.mxu0 0
        %5277 = vmatpush1.bf16.msra.mxu0 0
        %5278 = vmatprep.subr.bf16.mxu0 0
        %5279 = vmatpush1.bf16.msra.mxu0 0
        %5280 = vmatprep.subr.bf16.mxu0 0
        %5281 = vmatpush1.bf16.msra.mxu0 0
        %5282 = vmatprep.subr.bf16.mxu0 0
        %5283 = vmatpush1.bf16.msra.mxu0 0
        %5284 = vmatprep.subr.bf16.mxu0 0
        %5285 = vmatpush1.bf16.msra.mxu0 0
        %5286 = vmatprep.subr.bf16.mxu0 0
        %5287 = vmatpush1.bf16.msra.mxu0 0
        %5288 = vmatprep.subr.bf16.mxu0 0
        %5289 = vmatpush1.bf16.msra.mxu0 0
        %5290 = vmatprep.subr.bf16.mxu0 0
        %5291 = vmatpush1.bf16.msra.mxu0 0
        %5292 = vmatprep.mubr.bf16.mxu0 0
        %5293 = vmatmul.mubr.bf16.gmra.mrb[0].mxu0 %v5255
        %v5294 = vpop.f32.mrb[0].mxu0
        %v5295 = vadd.f32 0.0, %v5294
        %v5296 = vpop.f32.mrb[0].mxu0
        %v5297 = vpop.f32.mrb[0].mxu0
        %v5298 = vadd.f32 0.0, %v5297
        %v5299 = vpop.f32.mrb[0].mxu0
        %5300 = vmatprep.mubr.bf16.mxu0 0
        %5301 = vmatmul.mubr.bf16.gmra.mrb[0].mxu0 %v5258
        %v5302 = vpop.f32.mrb[0].mxu0
        %v5303 = vadd.f32 0.0, %v5302
        %v5304 = vpop.f32.mrb[0].mxu0
        %v5305 = vpop.f32.mrb[0].mxu0
        %v5306 = vadd.f32 0.0, %v5305
        %v5307 = vpop.f32.mrb[0].mxu0
        %5308 = vdwg.mxu0
        %v5309 = vxor.u32 %v5295, 2147483648
        %v5310 = vxor.u32 %v5298, 2147483648
        %v5311 = vxor.u32 %v5303, 2147483648
        %v5312 = vxor.u32 %v5306, 2147483648
        %v5313 = vmul.f32 %v5309, 1.442695
        %v5314 = vpow.pop %v5313
        %v5315 = vmul.f32 %v5310, 1.442695
        %v5316 = vpow.pop %v5315
        %v5317 = vmul.f32 %v5311, 1.442695
        %v5318 = vpow.pop %v5317
        %v5319 = vmul.f32 %v5312, 1.442695
        %v5320 = vpow.pop %v5319
        %v5321 = vadd.f32 %v5314, 1.0
        %v5322 = vadd.f32 %v5316, 1.0
        %v5323 = vadd.f32 %v5318, 1.0
        %v5324 = vadd.f32 %v5320, 1.0
        %v5325 = vrcp.pop %v5321
        %v5326 = vmul.f32 1.0, %v5325
        %v5327 = vrcp.pop %v5322
        %v5328 = vmul.f32 1.0, %v5327
        %v5329 = vrcp.pop %v5323
        %v5330 = vmul.f32 1.0, %v5329
        %v5331 = vrcp.pop %v5324
        %v5332 = vmul.f32 1.0, %v5331
        %v5333 = vmul.f32 %v5230, %v5326
        %v5334 = vmul.f32 %v5233, %v5328
        %v5335 = vmul.f32 %v5238, %v5330
        %v5336 = vmul.f32 %v5241, %v5332
        %v5337 = vadd.f32 %v5163, %v5333
        %v5338 = vadd.f32 %v5164, %v5334
        %v5339 = vadd.f32 %v5165, %v5335
        %v5340 = vadd.f32 %v5166, %v5336
        %v5341 = vmul.f32 %v5337, 0.70710677
        %v5342 = vmul.f32 %v5338, 0.70710677
        %v5343 = vmul.f32 %v5339, 0.70710677
        %v5344 = vmul.f32 %v5340, 0.70710677
        %v5345 = vmax.f32 %v5341, 0.0
        %v5346 = vmax.f32 %v5342, 0.0
        %v5347 = vmax.f32 %v5343, 0.0
        %v5348 = vmax.f32 %v5344, 0.0
        %v5349 = vadd.f32 %v4536, %v5345
        %v5350 = vadd.f32 %v4537, %v5346
        %v5351 = vadd.f32 %v4538, %v5347
        %v5352 = vadd.f32 %v4539, %v5348
        %v5353 = vld [vmem:[%s10] sm:$0xff]
        %v5354 = vld [vmem:[%s11] sm:$0xff]
        %5356 = vset.pattern.permute.xlu0 0
        %5357 = vperm.xlu0 %5356, %v5354
        %v5358 = vpop.permute.xlu0 %5357
        %v5361 = vsel %vm593, %v5353, 0
        %5363 = vmatprep.subr.mxu0 0.0
        %5364 = vmatpush1.msra.mxu0 %v5349
        %5365 = vmatprep.subr.mxu0 0.0
        %5366 = vmatpush1.msra.mxu0 %v5350
        %5367 = vmatprep.subr.mxu0 0.0
        %5368 = vmatpush1.msra.mxu0 %v5351
        %5369 = vmatprep.subr.mxu0 0.0
        %5370 = vmatpush1.msra.mxu0 %v5352
        %5371 = vmatprep.subr.mxu0 0.0
        %5372 = vmatpush1.msra.mxu0 0.0
        %5373 = vmatprep.subr.mxu0 0.0
        %5374 = vmatpush1.msra.mxu0 0.0
        %5375 = vmatprep.subr.mxu0 0.0
        %5376 = vmatpush1.msra.mxu0 0.0
        %5377 = vmatprep.subr.mxu0 0.0
        %5378 = vmatpush1.msra.mxu0 0.0
        %5379 = vmatprep.subr.mxu0 0.0
        %5380 = vmatpush1.msra.mxu0 0.0
        %5381 = vmatprep.subr.mxu0 0.0
        %5382 = vmatpush1.msra.mxu0 0.0
        %5383 = vmatprep.subr.mxu0 0.0
        %5384 = vmatpush1.msra.mxu0 0.0
        %5385 = vmatprep.subr.mxu0 0.0
        %5386 = vmatpush1.msra.mxu0 0.0
        %5387 = vmatprep.subr.mxu0 0.0
        %5388 = vmatpush1.msra.mxu0 0.0
        %5389 = vmatprep.subr.mxu0 0.0
        %5390 = vmatpush1.msra.mxu0 0.0
        %5391 = vmatprep.subr.mxu0 0.0
        %5392 = vmatpush1.msra.mxu0 0.0
        %5393 = vmatprep.subr.mxu0 0.0
        %5394 = vmatpush1.msra.mxu0 0.0
        %5395 = vmatprep.subr.mxu0 0.0
        %5396 = vmatpush1.msra.mxu0 0.0
        %5397 = vmatprep.subr.mxu0 0.0
        %5398 = vmatpush1.msra.mxu0 0.0
        %5399 = vmatprep.subr.mxu0 0.0
        %5400 = vmatpush1.msra.mxu0 0.0
        %5401 = vmatprep.subr.mxu0 0.0
        %5402 = vmatpush1.msra.mxu0 0.0
        %5403 = vmatprep.subr.mxu0 0.0
        %5404 = vmatpush1.msra.mxu0 0.0
        %5405 = vmatprep.subr.mxu0 0.0
        %5406 = vmatpush1.msra.mxu0 0.0
        %5407 = vmatprep.subr.mxu0 0.0
        %5408 = vmatpush1.msra.mxu0 0.0
        %5409 = vmatprep.subr.mxu0 0.0
        %5410 = vmatpush1.msra.mxu0 0.0
        %5411 = vmatprep.subr.mxu0 0.0
        %5412 = vmatpush1.msra.mxu0 0.0
        %5413 = vmatprep.subr.mxu0 0.0
        %5414 = vmatpush1.msra.mxu0 0.0
        %5415 = vmatprep.subr.mxu0 0.0
        %5416 = vmatpush1.msra.mxu0 0.0
        %5417 = vmatprep.subr.mxu0 0.0
        %5418 = vmatpush1.msra.mxu0 0.0
        %5419 = vmatprep.subr.mxu0 0.0
        %5420 = vmatpush1.msra.mxu0 0.0
        %5421 = vmatprep.subr.mxu0 0.0
        %5422 = vmatpush1.msra.mxu0 0.0
        %5423 = vmatprep.subr.mxu0 0.0
        %5424 = vmatpush1.msra.mxu0 0.0
        %5425 = vmatprep.subr.mxu0 0.0
        %5426 = vmatpush1.msra.mxu0 0.0
        %5427 = vmatprep.mubr.f32.mxu0 0.0
        %5428 = vmatmul.mubr.f32.gmra.mrb[0].mxu0 %v5361
        %v5429 = vpop.f32.mrb[0].mxu0
        %v5430 = vadd.f32 %v5358, %v5429
        %v5431 = vpop.f32.mrb[0].mxu0
        %5432 = vdwg.mxu0
        %5433 = vst [vmem:[%s503] sm:$0xff] %v5430
        %s5434 = sand.u32 %s297, 1
        %s5435 = scalar_lea.sflag [#allocation4], %s5434
        %s5436 = sand.u32 %s297, 1
        %s5437 = smul.addr %s5436, 8
        %s5438 = scalar_lea.vmem [#allocation13], %s5437
        // Predicated region
        $region128: #{tpu_custom_call.1} parent=67 // pred_check
          %p5439 = pneg %p307
        $region129: #{tpu_custom_call.1} parent=67 // pred_check_branch
          %5441 = sbr.rel (%p5439) target = $region131
        $region130: #{tpu_custom_call.1} parent=67 // pred_region
          %s5443 = ssub.s32 128, 128
          %5444 = vsyncadd %s5435, %s5443
          %s5445 = smul.addr %s32, 128
          %s5446 = scalar_lea.hbm %s12, %s5445
          %s5448 = sshll.u32 %s5438, 4
          %s5449 = int_to_ptr.vmem [resolvable:$true] %s5448
          %5451 = dma.vmem_to_hbm [thread:$0]  %s5449, 128, %s5446, %s5435
        $region131: #{tpu_custom_call.1} parent=67 // pred_fallthru
          _
      $region68: #{tpu_custom_call.1} parent=5 // pred_fallthru
        _
      %p5452 = scmp.le.s32.totalorder 2, %s27
      // Predicated region
      $region132: #{tpu_custom_call.1} parent=5 // pred_check
        %p5453 = pneg %p5452
      $region133: #{tpu_custom_call.1} parent=5 // pred_check_branch
        %5455 = sbr.rel (%p5453) target = $region135
      $region134: #{tpu_custom_call.1} parent=5 // pred_region
        %s5456 = ssub.s32 %s27, 2
        // Predicated region
        $region136: #{tpu_custom_call.1} parent=134 // pred_check
          %p5457 = pneg %p313
        $region137: #{tpu_custom_call.1} parent=134 // pred_check_branch
          %5459 = sbr.rel (%p5457) target = $region139
        $region138: #{tpu_custom_call.1} parent=134 // pred_region
          %s5460 = sand.u32 %s298, 1
          %s5461 = scalar_lea.sflag [#allocation4], %s5460
          %s5462 = sand.u32 %s298, 1
          %s5463 = smul.addr %s5462, 8
          %s5464 = scalar_lea.vmem [#allocation13], %s5463
          %5465 = dma.done %s5461, 128
        $region139: #{tpu_custom_call.1} parent=134 // pred_fallthru
          _
      $region135: #{tpu_custom_call.1} parent=5 // pred_fallthru
        _
    $region6: #{tpu_custom_call.1} parent=1 // loop_footer
      %s31 = sadd.s32 1, %s27
    $region7: #{tpu_custom_call.1} parent=1 // loop_footer_branch
      %26 = sbr.rel target = $region3
    $region8: #{tpu_custom_call.1} parent=1 // loop_exit
      _
    %5466 = vsyncpa [#allocation3], 1
    %s5467 = scalar_lea.sflag [#allocation3], 1
    %5468 = vsyncpa %s5467, 1
    %5469 = vsyncpa [#allocation6], 1
    %5470 = vsyncpa [#allocation9], 1
    %5471 = vsyncpa [#allocation12], 1
    %5472 = vsyncpa [#allocation4], 1
    %s5473 = scalar_lea.sflag [#allocation4], 1
    %5474 = vsyncpa %s5473, 1

</llo_original>
